<compile_context>
chip_gen: v6e
topology: v6e:2x2x1
jax: 0.10.0
libtpu: 0.0.40
codegen_flags: <defaults>
</compile_context>

<pallas_src>
import jax
import jax.numpy as jnp
from jax.experimental import pallas as pl
from jax.experimental.pallas import tpu as pltpu


# ----------------------------------------------------------------------------
# Fused kernel: embedding linear + encoder LSTM + pointer decoder
#   x_flat : (B*L, 2)       flattened coordinates
#   outputs: alphas (B, L, L) attention distributions (batch-major),
#            ptr    (B, L)    greedy pointer indices (int32)
# Gate order matches torch.nn.LSTM / LSTMCell: i, f, g, o.
# ----------------------------------------------------------------------------
def _pointer_net_kernel(
    x_ref,                                   # (B*L, 2)
    emb_w_ref, emb_b_ref,                    # (2, E), (1, E)
    enc_wih_ref, enc_whh_ref, enc_b_ref,     # (E, 4H), (H, 4H), (1, 4H)
    dec_wih_ref, dec_whh_ref, dec_b_ref,     # (E, 4H), (H, 4H), (1, 4H)
    att_win_ref, att_bin_ref,                # (H, H), (1, H)
    att_wctx_ref, att_bctx_ref, att_v_ref,   # (H, H), (1, H), (1, H)
    out_w_ref, out_b_ref,                    # (2H, H), (1, H)
    x0_ref,                                  # (1, E)  decoder_input0
    alphas_ref,                              # (B, L, L) f32 out
    ptr_ref,                                 # (B, L)    i32 out
):
    B, L, _ = alphas_ref.shape
    E = emb_w_ref.shape[1]
    H = att_win_ref.shape[0]
    NEG = jnp.float32(-1e30)                 # stands in for Attention._inf

    # ---------- hoisted constants (shared by both unrolled loops) ----------
    col_ids = jax.lax.broadcasted_iota(jnp.int32, (B, L), 1)       # (B, L)
    step3 = jax.lax.broadcasted_iota(jnp.int32, (1, L, 1), 1)      # (1, L, 1)
    gate_lane = jax.lax.broadcasted_iota(jnp.int32, (B, 4 * H), 1)
    is_tanh_gate = (gate_lane >= 2 * H) & (gate_lane < 3 * H)      # g-gate lanes

    def lstm_cell(gates, c_prev):
        # Full-width activations + lane-mask blend: no per-gate 32-lane
        # transcendental slices on the serial recurrence path.
        act = jnp.where(is_tanh_gate, jnp.tanh(gates), jax.nn.sigmoid(gates))
        i_g = act[:, 0 * H:1 * H]
        f_g = act[:, 1 * H:2 * H]
        g_g = act[:, 2 * H:3 * H]
        o_g = act[:, 3 * H:4 * H]
        c_new = f_g * c_prev + i_g * g_g
        h_new = o_g * jnp.tanh(c_new)
        return h_new, c_new

    # ---------- embedding: (B*L, 2) @ (2, E) + b ----------
    emb_flat = (
        jnp.dot(x_ref[...], emb_w_ref[...], preferred_element_type=jnp.float32)
        + emb_b_ref[...]
    )                                                      # (B*L, E)
    emb = emb_flat.reshape(B, L, E)                        # (B, L, E)

    # ---------- encoder LSTM ----------
    # Time-invariant input projection hoisted out of the recurrence: one
    # (B*L, E) @ (E, 4H) matmul instead of L tiny per-step matmuls.
    w_hh_e = enc_whh_ref[...]
    gx = (
        jnp.dot(emb_flat, enc_wih_ref[...], preferred_element_type=jnp.float32)
        + enc_b_ref[...]
    ).reshape(B, L, 4 * H)

    # Encoder.h0 / Encoder.c0 are Parameters initialized with torch.zeros(1).
    h = jnp.zeros((B, H), jnp.float32)
    c = jnp.zeros((B, H), jnp.float32)
    enc_out = jnp.zeros((B, L, H), jnp.float32)
    for t in range(L):   # static L -> fully unrolled, state carried in vregs
        gates = gx[:, t, :] + jnp.dot(h, w_hh_e,
                                      preferred_element_type=jnp.float32)
        h, c = lstm_cell(gates, c)
        enc_out = jnp.where(step3 == t, h[:, None, :], enc_out)

    # ---------- attention context projection (constant across decode) ----------
    ctx = (
        jnp.dot(enc_out.reshape(B * L, H), att_wctx_ref[...],
                preferred_element_type=jnp.float32)
        + att_bctx_ref[...]
    ).reshape(B, L, H)

    # ---------- decoder: hoist loop-invariant reads and broadcasts ----------
    w_ih_d = dec_wih_ref[...]
    w_hh_d = dec_whh_ref[...]
    dec_bias = jnp.broadcast_to(dec_b_ref[...], (B, 4 * H))
    w_in = att_win_ref[...]
    b_in = jnp.broadcast_to(att_bin_ref[...], (B, H))
    v_b = jnp.broadcast_to(att_v_ref[...].reshape(1, 1, H), (B, L, H))
    w_out_a = out_w_ref[0:H, :]          # applied to attention context
    w_out_b = out_w_ref[H:2 * H, :]      # applied to LSTM hidden
    b_out = jnp.broadcast_to(out_b_ref[...], (B, H))

    x = jnp.broadcast_to(x0_ref[...], (B, E))
    mask = jnp.ones((B, L), jnp.float32)
    alphas = jnp.zeros((B, L, L), jnp.float32)
    ptr = jnp.zeros((B, L), jnp.int32)

    for t in range(L):   # static L -> fully unrolled greedy decode
        # ---- LSTM cell ----
        gates = (
            jnp.dot(x, w_ih_d, preferred_element_type=jnp.float32)
            + jnp.dot(h, w_hh_d, preferred_element_type=jnp.float32)
            + dec_bias
        )
        h_lstm, c = lstm_cell(gates, c)

        # ---- additive attention ----
        inp = jnp.dot(h_lstm, w_in, preferred_element_type=jnp.float32) + b_in
        u = jnp.tanh(inp[:, None, :] + ctx)                 # (B, L, H)
        att = jnp.sum(u * v_b, axis=-1)                     # (B, L)
        att = jnp.where(mask > 0.0, att, NEG)

        # softmax with EUP reciprocal
        att_max = jnp.max(att, axis=-1, keepdims=True)
        e = jnp.exp(att - att_max)
        denom = jnp.sum(e, axis=-1, keepdims=True)
        alpha = e * pl.reciprocal(denom, approx=True)       # (B, L)

        # attention pooling on the MXU: (B,1,L) @ (B,L,H) -> (B,1,H)
        hidden_state = jnp.einsum(
            "bql,blh->bqh", alpha[:, None, :], ctx,
            preferred_element_type=jnp.float32)[:, 0, :]
        h = jnp.tanh(
            jnp.dot(hidden_state, w_out_a, preferred_element_type=jnp.float32)
            + jnp.dot(h_lstm, w_out_b, preferred_element_type=jnp.float32)
            + b_out
        )

        # ---- greedy pointer (torch.argmax first-occurrence semantics) ----
        masked_outs = alpha * mask
        maxv = jnp.max(masked_outs, axis=1, keepdims=True)
        cand = jnp.where(masked_outs == maxv, col_ids, jnp.int32(L))
        first_idx = jnp.min(cand, axis=1, keepdims=True)    # (B, 1) int32
        one_hot = (col_ids == first_idx).astype(jnp.float32)

        mask = mask * (1.0 - one_hot)
        # next decoder input: one-hot gather of emb on the MXU
        x = jnp.einsum(
            "bql,ble->bqe", one_hot[:, None, :], emb,
            preferred_element_type=jnp.float32)[:, 0, :]

        alphas = jnp.where(step3 == t, alpha[:, None, :], alphas)
        ptr = jnp.where(col_ids == t, first_idx, ptr)

    # single dense stores (no per-step masked partial stores)
    alphas_ref[...] = alphas
    ptr_ref[...] = ptr


# ----------------------------------------------------------------------------
# Parameter init (deterministic, matches the shapes implied by PointerNet)
# ----------------------------------------------------------------------------
def init_params(key, embedded_dim, hidden_dim):
    E, H = embedded_dim, hidden_dim
    ks = jax.random.split(key, 16)
    u = lambda k, shape, s: jax.random.uniform(k, shape, jnp.float32, -s, s)
    return {
        # nn.Linear(2, E)
        "emb_w": u(ks[0], (2, E), 0.5),
        "emb_b": u(ks[1], (1, E), 0.5),
        # encoder LSTM (single layer, unidirectional)
        "enc_wih": u(ks[2], (E, 4 * H), 0.1),
        "enc_whh": u(ks[3], (H, 4 * H), 0.1),
        "enc_b":   u(ks[4], (1, 4 * H), 0.1),
        # decoder LSTM cell
        "dec_wih": u(ks[5], (E, 4 * H), 0.1),
        "dec_whh": u(ks[6], (H, 4 * H), 0.1),
        "dec_b":   u(ks[7], (1, 4 * H), 0.1),
        # attention
        "att_win":  u(ks[8], (H, H), 0.1),
        "att_bin":  u(ks[9], (1, H), 0.1),
        "att_wctx": u(ks[10], (H, H), 0.1),
        "att_bctx": u(ks[11], (1, H), 0.1),
        "att_v":    u(ks[12], (1, H), 1.0),          # nn.init.uniform(V, -1, 1)
        # hidden_out: Linear(2H, H)
        "out_w": u(ks[13], (2 * H, H), 0.1),
        "out_b": u(ks[14], (1, H), 0.1),
        # decoder_input0, uniform(-1, 1)
        "dec_input0": u(ks[15], (1, E), 1.0),
    }
    # TODO(synk): multi-layer / bidirectional encoder LSTM and dropout are not
    # exercised here (lstm_layers=1, dropout=0, bidir=False — the default path).


# ----------------------------------------------------------------------------
# Full forward pass — one fused pallas_call, no XLA transposes / argmax after
# ----------------------------------------------------------------------------
@jax.jit
def pointer_net_forward(params, inputs):
    B, L, _ = inputs.shape
    x_flat = inputs.reshape(B * L, 2).astype(jnp.float32)
    alphas, pointers = pl.pallas_call(
        _pointer_net_kernel,
        out_shape=(
            jax.ShapeDtypeStruct((B, L, L), jnp.float32),
            jax.ShapeDtypeStruct((B, L), jnp.int32),
        ),
    )(x_flat,
      params["emb_w"], params["emb_b"],
      params["enc_wih"], params["enc_whh"], params["enc_b"],
      params["dec_wih"], params["dec_whh"], params["dec_b"],
      params["att_win"], params["att_bin"],
      params["att_wctx"], params["att_bctx"], params["att_v"],
      params["out_w"], params["out_b"],
      params["dec_input0"])
    return alphas, pointers


if __name__ == "__main__":
    B, L = 2, 8
    EMBEDDED_DIM, HIDDEN_DIM = 32, 32

    key = jax.random.PRNGKey(0)
    pkey, xkey = jax.random.split(key)
    params = init_params(pkey, EMBEDDED_DIM, HIDDEN_DIM)
    inputs = jax.random.uniform(xkey, (B, L, 2), jnp.float32)   # e.g. TSP coords

    outputs, pointers = pointer_net_forward(params, inputs)
    jax.block_until_ready((outputs, pointers))

    assert outputs.shape == (B, L, L)
    assert pointers.shape == (B, L)
    # attention rows must be valid distributions (approx reciprocal => loose tol)
    assert bool(jnp.all(jnp.abs(jnp.sum(outputs, axis=-1) - 1.0) < 1e-2))
    # greedy pointer decoding visits each position exactly once per batch row
    assert bool(jnp.all(jnp.sort(pointers, axis=1)
                        == jnp.arange(L, dtype=jnp.int32)[None, :]))
    print("KERNEL_OK")
</pallas_src>

<mosaic_0001>
module attributes {stable_mosaic.version = 11 : i64} {
  func.func @_pointer_net_kernel(%arg0: memref<16x2xf32, #tpu.memory_space<vmem>>, %arg1: memref<2x32xf32, #tpu.memory_space<vmem>>, %arg2: memref<1x32xf32, #tpu.memory_space<vmem>>, %arg3: memref<32x128xf32, #tpu.memory_space<vmem>>, %arg4: memref<32x128xf32, #tpu.memory_space<vmem>>, %arg5: memref<1x128xf32, #tpu.memory_space<vmem>>, %arg6: memref<32x128xf32, #tpu.memory_space<vmem>>, %arg7: memref<32x128xf32, #tpu.memory_space<vmem>>, %arg8: memref<1x128xf32, #tpu.memory_space<vmem>>, %arg9: memref<32x32xf32, #tpu.memory_space<vmem>>, %arg10: memref<1x32xf32, #tpu.memory_space<vmem>>, %arg11: memref<32x32xf32, #tpu.memory_space<vmem>>, %arg12: memref<1x32xf32, #tpu.memory_space<vmem>>, %arg13: memref<1x32xf32, #tpu.memory_space<vmem>>, %arg14: memref<64x32xf32, #tpu.memory_space<vmem>>, %arg15: memref<1x32xf32, #tpu.memory_space<vmem>>, %arg16: memref<1x32xf32, #tpu.memory_space<vmem>>, %arg17: memref<2x8x8xf32, #tpu.memory_space<vmem>>, %arg18: memref<2x8xi32, #tpu.memory_space<vmem>>) attributes {dimension_semantics = [], scalar_prefetch = 0 : i64, scratch_operands = 0 : i64, tpu.core_type = #tpu.core_type<tc>} {
    %0 = tpu.iota {dimensions = array<i32: 1>} : vector<2x8xi32>
    %1 = tpu.iota {dimensions = array<i32: 1>} : vector<1x8x1xi32>
    %2 = tpu.iota {dimensions = array<i32: 1>} : vector<2x128xi32>
    %c64_i32 = arith.constant 64 : i32
    %3 = vector.broadcast %c64_i32 : i32 to vector<2x128xi32>
    %4 = arith.cmpi sge, %2, %3 : vector<2x128xi32>
    %c96_i32 = arith.constant 96 : i32
    %5 = vector.broadcast %c96_i32 : i32 to vector<2x128xi32>
    %6 = arith.cmpi slt, %2, %5 : vector<2x128xi32>
    %7 = arith.andi %4, %6 : vector<2x128xi1>
    %c0 = arith.constant 0 : index
    %c0_0 = arith.constant 0 : index
    %8 = vector.load %arg0[%c0, %c0_0] : memref<16x2xf32, #tpu.memory_space<vmem>>, vector<16x2xf32>
    %c0_1 = arith.constant 0 : index
    %c0_2 = arith.constant 0 : index
    %9 = vector.load %arg1[%c0_1, %c0_2] : memref<2x32xf32, #tpu.memory_space<vmem>>, vector<2x32xf32>
    %cst = arith.constant dense<0.000000e+00> : vector<16x32xf32>
    %10 = tpu.matmul %8, %9, %cst {dimension_numbers = #tpu.dot_dimension_numbers<[1], [0], [0], [1], [0, 0, 1, 1], [], []>} : vector<16x2xf32>, vector<2x32xf32>, vector<16x32xf32> -> vector<16x32xf32>
    %c0_3 = arith.constant 0 : index
    %c0_4 = arith.constant 0 : index
    %11 = vector.load %arg2[%c0_3, %c0_4] : memref<1x32xf32, #tpu.memory_space<vmem>>, vector<1x32xf32>
    %12 = vector.broadcast %11 : vector<1x32xf32> to vector<16x32xf32>
    %13 = arith.addf %10, %12 : vector<16x32xf32>
    %14 = vector.shape_cast %13 : vector<16x32xf32> to vector<2x8x32xf32>
    %c0_5 = arith.constant 0 : index
    %c0_6 = arith.constant 0 : index
    %15 = vector.load %arg4[%c0_5, %c0_6] : memref<32x128xf32, #tpu.memory_space<vmem>>, vector<32x128xf32>
    %c0_7 = arith.constant 0 : index
    %c0_8 = arith.constant 0 : index
    %16 = vector.load %arg3[%c0_7, %c0_8] : memref<32x128xf32, #tpu.memory_space<vmem>>, vector<32x128xf32>
    %cst_9 = arith.constant dense<0.000000e+00> : vector<16x128xf32>
    %17 = tpu.matmul %13, %16, %cst_9 {dimension_numbers = #tpu.dot_dimension_numbers<[1], [0], [0], [1], [0, 0, 1, 1], [], []>} : vector<16x32xf32>, vector<32x128xf32>, vector<16x128xf32> -> vector<16x128xf32>
    %c0_10 = arith.constant 0 : index
    %c0_11 = arith.constant 0 : index
    %18 = vector.load %arg5[%c0_10, %c0_11] : memref<1x128xf32, #tpu.memory_space<vmem>>, vector<1x128xf32>
    %19 = vector.broadcast %18 : vector<1x128xf32> to vector<16x128xf32>
    %20 = arith.addf %17, %19 : vector<16x128xf32>
    %21 = vector.shape_cast %20 : vector<16x128xf32> to vector<2x8x128xf32>
    %cst_12 = arith.constant 0.000000e+00 : f32
    %22 = vector.broadcast %cst_12 : f32 to vector<2x32xf32>
    %cst_13 = arith.constant 0.000000e+00 : f32
    %23 = vector.broadcast %cst_13 : f32 to vector<2x32xf32>
    %cst_14 = arith.constant 0.000000e+00 : f32
    %24 = vector.broadcast %cst_14 : f32 to vector<2x8x32xf32>
    %25 = vector.extract_strided_slice %21 {offsets = [0, 0, 0], sizes = [2, 1, 128], strides = [1, 1, 1]} : vector<2x8x128xf32> to vector<2x1x128xf32>
    %26 = vector.shape_cast %25 : vector<2x1x128xf32> to vector<2x128xf32>
    %cst_15 = arith.constant dense<0.000000e+00> : vector<2x128xf32>
    %27 = tpu.matmul %22, %15, %cst_15 {dimension_numbers = #tpu.dot_dimension_numbers<[1], [0], [0], [1], [0, 0, 1, 1], [], []>} : vector<2x32xf32>, vector<32x128xf32>, vector<2x128xf32> -> vector<2x128xf32>
    %28 = arith.addf %26, %27 : vector<2x128xf32>
    %29 = math.tanh %28 : vector<2x128xf32>
    %30 = arith.negf %28 : vector<2x128xf32>
    %31 = math.exp %30 : vector<2x128xf32>
    %cst_16 = arith.constant 1.000000e+00 : f32
    %32 = vector.broadcast %cst_16 : f32 to vector<2x128xf32>
    %33 = arith.addf %32, %31 : vector<2x128xf32>
    %34 = arith.divf %32, %33 : vector<2x128xf32>
    %35 = arith.select %7, %29, %34 : vector<2x128xi1>, vector<2x128xf32>
    %36 = vector.extract_strided_slice %35 {offsets = [0, 0], sizes = [2, 32], strides = [1, 1]} : vector<2x128xf32> to vector<2x32xf32>
    %37 = vector.extract_strided_slice %35 {offsets = [0, 32], sizes = [2, 32], strides = [1, 1]} : vector<2x128xf32> to vector<2x32xf32>
    %38 = vector.extract_strided_slice %35 {offsets = [0, 64], sizes = [2, 32], strides = [1, 1]} : vector<2x128xf32> to vector<2x32xf32>
    %39 = vector.extract_strided_slice %35 {offsets = [0, 96], sizes = [2, 32], strides = [1, 1]} : vector<2x128xf32> to vector<2x32xf32>
    %40 = arith.mulf %37, %23 : vector<2x32xf32>
    %41 = arith.mulf %36, %38 : vector<2x32xf32>
    %42 = arith.addf %40, %41 : vector<2x32xf32>
    %43 = math.tanh %42 : vector<2x32xf32>
    %44 = arith.mulf %39, %43 : vector<2x32xf32>
    %c0_i32 = arith.constant 0 : i32
    %45 = vector.broadcast %c0_i32 : i32 to vector<1x8x1xi32>
    %46 = arith.cmpi eq, %1, %45 : vector<1x8x1xi32>
    %47 = vector.shape_cast %44 : vector<2x32xf32> to vector<2x1x32xf32>
    %48 = vector.shape_cast %46 : vector<1x8x1xi1> to vector<1x8x1xi1>
    %49 = vector.broadcast %48 : vector<1x8x1xi1> to vector<2x8x32xi1>
    %50 = vector.shape_cast %47 : vector<2x1x32xf32> to vector<2x1x32xf32>
    %51 = vector.broadcast %50 : vector<2x1x32xf32> to vector<2x8x32xf32>
    %52 = arith.select %49, %51, %24 : vector<2x8x32xi1>, vector<2x8x32xf32>
    %53 = vector.extract_strided_slice %21 {offsets = [0, 1, 0], sizes = [2, 1, 128], strides = [1, 1, 1]} : vector<2x8x128xf32> to vector<2x1x128xf32>
    %54 = vector.shape_cast %53 : vector<2x1x128xf32> to vector<2x128xf32>
    %cst_17 = arith.constant dense<0.000000e+00> : vector<2x128xf32>
    %55 = tpu.matmul %44, %15, %cst_17 {dimension_numbers = #tpu.dot_dimension_numbers<[1], [0], [0], [1], [0, 0, 1, 1], [], []>} : vector<2x32xf32>, vector<32x128xf32>, vector<2x128xf32> -> vector<2x128xf32>
    %56 = arith.addf %54, %55 : vector<2x128xf32>
    %57 = math.tanh %56 : vector<2x128xf32>
    %58 = arith.negf %56 : vector<2x128xf32>
    %59 = math.exp %58 : vector<2x128xf32>
    %cst_18 = arith.constant 1.000000e+00 : f32
    %60 = vector.broadcast %cst_18 : f32 to vector<2x128xf32>
    %61 = arith.addf %60, %59 : vector<2x128xf32>
    %62 = arith.divf %60, %61 : vector<2x128xf32>
    %63 = arith.select %7, %57, %62 : vector<2x128xi1>, vector<2x128xf32>
    %64 = vector.extract_strided_slice %63 {offsets = [0, 0], sizes = [2, 32], strides = [1, 1]} : vector<2x128xf32> to vector<2x32xf32>
    %65 = vector.extract_strided_slice %63 {offsets = [0, 32], sizes = [2, 32], strides = [1, 1]} : vector<2x128xf32> to vector<2x32xf32>
    %66 = vector.extract_strided_slice %63 {offsets = [0, 64], sizes = [2, 32], strides = [1, 1]} : vector<2x128xf32> to vector<2x32xf32>
    %67 = vector.extract_strided_slice %63 {offsets = [0, 96], sizes = [2, 32], strides = [1, 1]} : vector<2x128xf32> to vector<2x32xf32>
    %68 = arith.mulf %65, %42 : vector<2x32xf32>
    %69 = arith.mulf %64, %66 : vector<2x32xf32>
    %70 = arith.addf %68, %69 : vector<2x32xf32>
    %71 = math.tanh %70 : vector<2x32xf32>
    %72 = arith.mulf %67, %71 : vector<2x32xf32>
    %c1_i32 = arith.constant 1 : i32
    %73 = vector.broadcast %c1_i32 : i32 to vector<1x8x1xi32>
    %74 = arith.cmpi eq, %1, %73 : vector<1x8x1xi32>
    %75 = vector.shape_cast %72 : vector<2x32xf32> to vector<2x1x32xf32>
    %76 = vector.shape_cast %74 : vector<1x8x1xi1> to vector<1x8x1xi1>
    %77 = vector.broadcast %76 : vector<1x8x1xi1> to vector<2x8x32xi1>
    %78 = vector.shape_cast %75 : vector<2x1x32xf32> to vector<2x1x32xf32>
    %79 = vector.broadcast %78 : vector<2x1x32xf32> to vector<2x8x32xf32>
    %80 = arith.select %77, %79, %52 : vector<2x8x32xi1>, vector<2x8x32xf32>
    %81 = vector.extract_strided_slice %21 {offsets = [0, 2, 0], sizes = [2, 1, 128], strides = [1, 1, 1]} : vector<2x8x128xf32> to vector<2x1x128xf32>
    %82 = vector.shape_cast %81 : vector<2x1x128xf32> to vector<2x128xf32>
    %cst_19 = arith.constant dense<0.000000e+00> : vector<2x128xf32>
    %83 = tpu.matmul %72, %15, %cst_19 {dimension_numbers = #tpu.dot_dimension_numbers<[1], [0], [0], [1], [0, 0, 1, 1], [], []>} : vector<2x32xf32>, vector<32x128xf32>, vector<2x128xf32> -> vector<2x128xf32>
    %84 = arith.addf %82, %83 : vector<2x128xf32>
    %85 = math.tanh %84 : vector<2x128xf32>
    %86 = arith.negf %84 : vector<2x128xf32>
    %87 = math.exp %86 : vector<2x128xf32>
    %cst_20 = arith.constant 1.000000e+00 : f32
    %88 = vector.broadcast %cst_20 : f32 to vector<2x128xf32>
    %89 = arith.addf %88, %87 : vector<2x128xf32>
    %90 = arith.divf %88, %89 : vector<2x128xf32>
    %91 = arith.select %7, %85, %90 : vector<2x128xi1>, vector<2x128xf32>
    %92 = vector.extract_strided_slice %91 {offsets = [0, 0], sizes = [2, 32], strides = [1, 1]} : vector<2x128xf32> to vector<2x32xf32>
    %93 = vector.extract_strided_slice %91 {offsets = [0, 32], sizes = [2, 32], strides = [1, 1]} : vector<2x128xf32> to vector<2x32xf32>
    %94 = vector.extract_strided_slice %91 {offsets = [0, 64], sizes = [2, 32], strides = [1, 1]} : vector<2x128xf32> to vector<2x32xf32>
    %95 = vector.extract_strided_slice %91 {offsets = [0, 96], sizes = [2, 32], strides = [1, 1]} : vector<2x128xf32> to vector<2x32xf32>
    %96 = arith.mulf %93, %70 : vector<2x32xf32>
    %97 = arith.mulf %92, %94 : vector<2x32xf32>
    %98 = arith.addf %96, %97 : vector<2x32xf32>
    %99 = math.tanh %98 : vector<2x32xf32>
    %100 = arith.mulf %95, %99 : vector<2x32xf32>
    %c2_i32 = arith.constant 2 : i32
    %101 = vector.broadcast %c2_i32 : i32 to vector<1x8x1xi32>
    %102 = arith.cmpi eq, %1, %101 : vector<1x8x1xi32>
    %103 = vector.shape_cast %100 : vector<2x32xf32> to vector<2x1x32xf32>
    %104 = vector.shape_cast %102 : vector<1x8x1xi1> to vector<1x8x1xi1>
    %105 = vector.broadcast %104 : vector<1x8x1xi1> to vector<2x8x32xi1>
    %106 = vector.shape_cast %103 : vector<2x1x32xf32> to vector<2x1x32xf32>
    %107 = vector.broadcast %106 : vector<2x1x32xf32> to vector<2x8x32xf32>
    %108 = arith.select %105, %107, %80 : vector<2x8x32xi1>, vector<2x8x32xf32>
    %109 = vector.extract_strided_slice %21 {offsets = [0, 3, 0], sizes = [2, 1, 128], strides = [1, 1, 1]} : vector<2x8x128xf32> to vector<2x1x128xf32>
    %110 = vector.shape_cast %109 : vector<2x1x128xf32> to vector<2x128xf32>
    %cst_21 = arith.constant dense<0.000000e+00> : vector<2x128xf32>
    %111 = tpu.matmul %100, %15, %cst_21 {dimension_numbers = #tpu.dot_dimension_numbers<[1], [0], [0], [1], [0, 0, 1, 1], [], []>} : vector<2x32xf32>, vector<32x128xf32>, vector<2x128xf32> -> vector<2x128xf32>
    %112 = arith.addf %110, %111 : vector<2x128xf32>
    %113 = math.tanh %112 : vector<2x128xf32>
    %114 = arith.negf %112 : vector<2x128xf32>
    %115 = math.exp %114 : vector<2x128xf32>
    %cst_22 = arith.constant 1.000000e+00 : f32
    %116 = vector.broadcast %cst_22 : f32 to vector<2x128xf32>
    %117 = arith.addf %116, %115 : vector<2x128xf32>
    %118 = arith.divf %116, %117 : vector<2x128xf32>
    %119 = arith.select %7, %113, %118 : vector<2x128xi1>, vector<2x128xf32>
    %120 = vector.extract_strided_slice %119 {offsets = [0, 0], sizes = [2, 32], strides = [1, 1]} : vector<2x128xf32> to vector<2x32xf32>
    %121 = vector.extract_strided_slice %119 {offsets = [0, 32], sizes = [2, 32], strides = [1, 1]} : vector<2x128xf32> to vector<2x32xf32>
    %122 = vector.extract_strided_slice %119 {offsets = [0, 64], sizes = [2, 32], strides = [1, 1]} : vector<2x128xf32> to vector<2x32xf32>
    %123 = vector.extract_strided_slice %119 {offsets = [0, 96], sizes = [2, 32], strides = [1, 1]} : vector<2x128xf32> to vector<2x32xf32>
    %124 = arith.mulf %121, %98 : vector<2x32xf32>
    %125 = arith.mulf %120, %122 : vector<2x32xf32>
    %126 = arith.addf %124, %125 : vector<2x32xf32>
    %127 = math.tanh %126 : vector<2x32xf32>
    %128 = arith.mulf %123, %127 : vector<2x32xf32>
    %c3_i32 = arith.constant 3 : i32
    %129 = vector.broadcast %c3_i32 : i32 to vector<1x8x1xi32>
    %130 = arith.cmpi eq, %1, %129 : vector<1x8x1xi32>
    %131 = vector.shape_cast %128 : vector<2x32xf32> to vector<2x1x32xf32>
    %132 = vector.shape_cast %130 : vector<1x8x1xi1> to vector<1x8x1xi1>
    %133 = vector.broadcast %132 : vector<1x8x1xi1> to vector<2x8x32xi1>
    %134 = vector.shape_cast %131 : vector<2x1x32xf32> to vector<2x1x32xf32>
    %135 = vector.broadcast %134 : vector<2x1x32xf32> to vector<2x8x32xf32>
    %136 = arith.select %133, %135, %108 : vector<2x8x32xi1>, vector<2x8x32xf32>
    %137 = vector.extract_strided_slice %21 {offsets = [0, 4, 0], sizes = [2, 1, 128], strides = [1, 1, 1]} : vector<2x8x128xf32> to vector<2x1x128xf32>
    %138 = vector.shape_cast %137 : vector<2x1x128xf32> to vector<2x128xf32>
    %cst_23 = arith.constant dense<0.000000e+00> : vector<2x128xf32>
    %139 = tpu.matmul %128, %15, %cst_23 {dimension_numbers = #tpu.dot_dimension_numbers<[1], [0], [0], [1], [0, 0, 1, 1], [], []>} : vector<2x32xf32>, vector<32x128xf32>, vector<2x128xf32> -> vector<2x128xf32>
    %140 = arith.addf %138, %139 : vector<2x128xf32>
    %141 = math.tanh %140 : vector<2x128xf32>
    %142 = arith.negf %140 : vector<2x128xf32>
    %143 = math.exp %142 : vector<2x128xf32>
    %cst_24 = arith.constant 1.000000e+00 : f32
    %144 = vector.broadcast %cst_24 : f32 to vector<2x128xf32>
    %145 = arith.addf %144, %143 : vector<2x128xf32>
    %146 = arith.divf %144, %145 : vector<2x128xf32>
    %147 = arith.select %7, %141, %146 : vector<2x128xi1>, vector<2x128xf32>
    %148 = vector.extract_strided_slice %147 {offsets = [0, 0], sizes = [2, 32], strides = [1, 1]} : vector<2x128xf32> to vector<2x32xf32>
    %149 = vector.extract_strided_slice %147 {offsets = [0, 32], sizes = [2, 32], strides = [1, 1]} : vector<2x128xf32> to vector<2x32xf32>
    %150 = vector.extract_strided_slice %147 {offsets = [0, 64], sizes = [2, 32], strides = [1, 1]} : vector<2x128xf32> to vector<2x32xf32>
    %151 = vector.extract_strided_slice %147 {offsets = [0, 96], sizes = [2, 32], strides = [1, 1]} : vector<2x128xf32> to vector<2x32xf32>
    %152 = arith.mulf %149, %126 : vector<2x32xf32>
    %153 = arith.mulf %148, %150 : vector<2x32xf32>
    %154 = arith.addf %152, %153 : vector<2x32xf32>
    %155 = math.tanh %154 : vector<2x32xf32>
    %156 = arith.mulf %151, %155 : vector<2x32xf32>
    %c4_i32 = arith.constant 4 : i32
    %157 = vector.broadcast %c4_i32 : i32 to vector<1x8x1xi32>
    %158 = arith.cmpi eq, %1, %157 : vector<1x8x1xi32>
    %159 = vector.shape_cast %156 : vector<2x32xf32> to vector<2x1x32xf32>
    %160 = vector.shape_cast %158 : vector<1x8x1xi1> to vector<1x8x1xi1>
    %161 = vector.broadcast %160 : vector<1x8x1xi1> to vector<2x8x32xi1>
    %162 = vector.shape_cast %159 : vector<2x1x32xf32> to vector<2x1x32xf32>
    %163 = vector.broadcast %162 : vector<2x1x32xf32> to vector<2x8x32xf32>
    %164 = arith.select %161, %163, %136 : vector<2x8x32xi1>, vector<2x8x32xf32>
    %165 = vector.extract_strided_slice %21 {offsets = [0, 5, 0], sizes = [2, 1, 128], strides = [1, 1, 1]} : vector<2x8x128xf32> to vector<2x1x128xf32>
    %166 = vector.shape_cast %165 : vector<2x1x128xf32> to vector<2x128xf32>
    %cst_25 = arith.constant dense<0.000000e+00> : vector<2x128xf32>
    %167 = tpu.matmul %156, %15, %cst_25 {dimension_numbers = #tpu.dot_dimension_numbers<[1], [0], [0], [1], [0, 0, 1, 1], [], []>} : vector<2x32xf32>, vector<32x128xf32>, vector<2x128xf32> -> vector<2x128xf32>
    %168 = arith.addf %166, %167 : vector<2x128xf32>
    %169 = math.tanh %168 : vector<2x128xf32>
    %170 = arith.negf %168 : vector<2x128xf32>
    %171 = math.exp %170 : vector<2x128xf32>
    %cst_26 = arith.constant 1.000000e+00 : f32
    %172 = vector.broadcast %cst_26 : f32 to vector<2x128xf32>
    %173 = arith.addf %172, %171 : vector<2x128xf32>
    %174 = arith.divf %172, %173 : vector<2x128xf32>
    %175 = arith.select %7, %169, %174 : vector<2x128xi1>, vector<2x128xf32>
    %176 = vector.extract_strided_slice %175 {offsets = [0, 0], sizes = [2, 32], strides = [1, 1]} : vector<2x128xf32> to vector<2x32xf32>
    %177 = vector.extract_strided_slice %175 {offsets = [0, 32], sizes = [2, 32], strides = [1, 1]} : vector<2x128xf32> to vector<2x32xf32>
    %178 = vector.extract_strided_slice %175 {offsets = [0, 64], sizes = [2, 32], strides = [1, 1]} : vector<2x128xf32> to vector<2x32xf32>
    %179 = vector.extract_strided_slice %175 {offsets = [0, 96], sizes = [2, 32], strides = [1, 1]} : vector<2x128xf32> to vector<2x32xf32>
    %180 = arith.mulf %177, %154 : vector<2x32xf32>
    %181 = arith.mulf %176, %178 : vector<2x32xf32>
    %182 = arith.addf %180, %181 : vector<2x32xf32>
    %183 = math.tanh %182 : vector<2x32xf32>
    %184 = arith.mulf %179, %183 : vector<2x32xf32>
    %c5_i32 = arith.constant 5 : i32
    %185 = vector.broadcast %c5_i32 : i32 to vector<1x8x1xi32>
    %186 = arith.cmpi eq, %1, %185 : vector<1x8x1xi32>
    %187 = vector.shape_cast %184 : vector<2x32xf32> to vector<2x1x32xf32>
    %188 = vector.shape_cast %186 : vector<1x8x1xi1> to vector<1x8x1xi1>
    %189 = vector.broadcast %188 : vector<1x8x1xi1> to vector<2x8x32xi1>
    %190 = vector.shape_cast %187 : vector<2x1x32xf32> to vector<2x1x32xf32>
    %191 = vector.broadcast %190 : vector<2x1x32xf32> to vector<2x8x32xf32>
    %192 = arith.select %189, %191, %164 : vector<2x8x32xi1>, vector<2x8x32xf32>
    %193 = vector.extract_strided_slice %21 {offsets = [0, 6, 0], sizes = [2, 1, 128], strides = [1, 1, 1]} : vector<2x8x128xf32> to vector<2x1x128xf32>
    %194 = vector.shape_cast %193 : vector<2x1x128xf32> to vector<2x128xf32>
    %cst_27 = arith.constant dense<0.000000e+00> : vector<2x128xf32>
    %195 = tpu.matmul %184, %15, %cst_27 {dimension_numbers = #tpu.dot_dimension_numbers<[1], [0], [0], [1], [0, 0, 1, 1], [], []>} : vector<2x32xf32>, vector<32x128xf32>, vector<2x128xf32> -> vector<2x128xf32>
    %196 = arith.addf %194, %195 : vector<2x128xf32>
    %197 = math.tanh %196 : vector<2x128xf32>
    %198 = arith.negf %196 : vector<2x128xf32>
    %199 = math.exp %198 : vector<2x128xf32>
    %cst_28 = arith.constant 1.000000e+00 : f32
    %200 = vector.broadcast %cst_28 : f32 to vector<2x128xf32>
    %201 = arith.addf %200, %199 : vector<2x128xf32>
    %202 = arith.divf %200, %201 : vector<2x128xf32>
    %203 = arith.select %7, %197, %202 : vector<2x128xi1>, vector<2x128xf32>
    %204 = vector.extract_strided_slice %203 {offsets = [0, 0], sizes = [2, 32], strides = [1, 1]} : vector<2x128xf32> to vector<2x32xf32>
    %205 = vector.extract_strided_slice %203 {offsets = [0, 32], sizes = [2, 32], strides = [1, 1]} : vector<2x128xf32> to vector<2x32xf32>
    %206 = vector.extract_strided_slice %203 {offsets = [0, 64], sizes = [2, 32], strides = [1, 1]} : vector<2x128xf32> to vector<2x32xf32>
    %207 = vector.extract_strided_slice %203 {offsets = [0, 96], sizes = [2, 32], strides = [1, 1]} : vector<2x128xf32> to vector<2x32xf32>
    %208 = arith.mulf %205, %182 : vector<2x32xf32>
    %209 = arith.mulf %204, %206 : vector<2x32xf32>
    %210 = arith.addf %208, %209 : vector<2x32xf32>
    %211 = math.tanh %210 : vector<2x32xf32>
    %212 = arith.mulf %207, %211 : vector<2x32xf32>
    %c6_i32 = arith.constant 6 : i32
    %213 = vector.broadcast %c6_i32 : i32 to vector<1x8x1xi32>
    %214 = arith.cmpi eq, %1, %213 : vector<1x8x1xi32>
    %215 = vector.shape_cast %212 : vector<2x32xf32> to vector<2x1x32xf32>
    %216 = vector.shape_cast %214 : vector<1x8x1xi1> to vector<1x8x1xi1>
    %217 = vector.broadcast %216 : vector<1x8x1xi1> to vector<2x8x32xi1>
    %218 = vector.shape_cast %215 : vector<2x1x32xf32> to vector<2x1x32xf32>
    %219 = vector.broadcast %218 : vector<2x1x32xf32> to vector<2x8x32xf32>
    %220 = arith.select %217, %219, %192 : vector<2x8x32xi1>, vector<2x8x32xf32>
    %221 = vector.extract_strided_slice %21 {offsets = [0, 7, 0], sizes = [2, 1, 128], strides = [1, 1, 1]} : vector<2x8x128xf32> to vector<2x1x128xf32>
    %222 = vector.shape_cast %221 : vector<2x1x128xf32> to vector<2x128xf32>
    %cst_29 = arith.constant dense<0.000000e+00> : vector<2x128xf32>
    %223 = tpu.matmul %212, %15, %cst_29 {dimension_numbers = #tpu.dot_dimension_numbers<[1], [0], [0], [1], [0, 0, 1, 1], [], []>} : vector<2x32xf32>, vector<32x128xf32>, vector<2x128xf32> -> vector<2x128xf32>
    %224 = arith.addf %222, %223 : vector<2x128xf32>
    %225 = math.tanh %224 : vector<2x128xf32>
    %226 = arith.negf %224 : vector<2x128xf32>
    %227 = math.exp %226 : vector<2x128xf32>
    %cst_30 = arith.constant 1.000000e+00 : f32
    %228 = vector.broadcast %cst_30 : f32 to vector<2x128xf32>
    %229 = arith.addf %228, %227 : vector<2x128xf32>
    %230 = arith.divf %228, %229 : vector<2x128xf32>
    %231 = arith.select %7, %225, %230 : vector<2x128xi1>, vector<2x128xf32>
    %232 = vector.extract_strided_slice %231 {offsets = [0, 0], sizes = [2, 32], strides = [1, 1]} : vector<2x128xf32> to vector<2x32xf32>
    %233 = vector.extract_strided_slice %231 {offsets = [0, 32], sizes = [2, 32], strides = [1, 1]} : vector<2x128xf32> to vector<2x32xf32>
    %234 = vector.extract_strided_slice %231 {offsets = [0, 64], sizes = [2, 32], strides = [1, 1]} : vector<2x128xf32> to vector<2x32xf32>
    %235 = vector.extract_strided_slice %231 {offsets = [0, 96], sizes = [2, 32], strides = [1, 1]} : vector<2x128xf32> to vector<2x32xf32>
    %236 = arith.mulf %233, %210 : vector<2x32xf32>
    %237 = arith.mulf %232, %234 : vector<2x32xf32>
    %238 = arith.addf %236, %237 : vector<2x32xf32>
    %239 = math.tanh %238 : vector<2x32xf32>
    %240 = arith.mulf %235, %239 : vector<2x32xf32>
    %c7_i32 = arith.constant 7 : i32
    %241 = vector.broadcast %c7_i32 : i32 to vector<1x8x1xi32>
    %242 = arith.cmpi eq, %1, %241 : vector<1x8x1xi32>
    %243 = vector.shape_cast %240 : vector<2x32xf32> to vector<2x1x32xf32>
    %244 = vector.shape_cast %242 : vector<1x8x1xi1> to vector<1x8x1xi1>
    %245 = vector.broadcast %244 : vector<1x8x1xi1> to vector<2x8x32xi1>
    %246 = vector.shape_cast %243 : vector<2x1x32xf32> to vector<2x1x32xf32>
    %247 = vector.broadcast %246 : vector<2x1x32xf32> to vector<2x8x32xf32>
    %248 = arith.select %245, %247, %220 : vector<2x8x32xi1>, vector<2x8x32xf32>
    %249 = vector.shape_cast %248 : vector<2x8x32xf32> to vector<16x32xf32>
    %c0_31 = arith.constant 0 : index
    %c0_32 = arith.constant 0 : index
    %250 = vector.load %arg11[%c0_31, %c0_32] : memref<32x32xf32, #tpu.memory_space<vmem>>, vector<32x32xf32>
    %cst_33 = arith.constant dense<0.000000e+00> : vector<16x32xf32>
    %251 = tpu.matmul %249, %250, %cst_33 {dimension_numbers = #tpu.dot_dimension_numbers<[1], [0], [0], [1], [0, 0, 1, 1], [], []>} : vector<16x32xf32>, vector<32x32xf32>, vector<16x32xf32> -> vector<16x32xf32>
    %c0_34 = arith.constant 0 : index
    %c0_35 = arith.constant 0 : index
    %252 = vector.load %arg12[%c0_34, %c0_35] : memref<1x32xf32, #tpu.memory_space<vmem>>, vector<1x32xf32>
    %253 = vector.broadcast %252 : vector<1x32xf32> to vector<16x32xf32>
    %254 = arith.addf %251, %253 : vector<16x32xf32>
    %255 = vector.shape_cast %254 : vector<16x32xf32> to vector<2x8x32xf32>
    %c0_36 = arith.constant 0 : index
    %c0_37 = arith.constant 0 : index
    %256 = vector.load %arg6[%c0_36, %c0_37] : memref<32x128xf32, #tpu.memory_space<vmem>>, vector<32x128xf32>
    %c0_38 = arith.constant 0 : index
    %c0_39 = arith.constant 0 : index
    %257 = vector.load %arg7[%c0_38, %c0_39] : memref<32x128xf32, #tpu.memory_space<vmem>>, vector<32x128xf32>
    %c0_40 = arith.constant 0 : index
    %c0_41 = arith.constant 0 : index
    %258 = vector.load %arg8[%c0_40, %c0_41] : memref<1x128xf32, #tpu.memory_space<vmem>>, vector<1x128xf32>
    %259 = vector.shape_cast %258 : vector<1x128xf32> to vector<1x128xf32>
    %260 = vector.broadcast %259 : vector<1x128xf32> to vector<2x128xf32>
    %c0_42 = arith.constant 0 : index
    %c0_43 = arith.constant 0 : index
    %261 = vector.load %arg9[%c0_42, %c0_43] : memref<32x32xf32, #tpu.memory_space<vmem>>, vector<32x32xf32>
    %c0_44 = arith.constant 0 : index
    %c0_45 = arith.constant 0 : index
    %262 = vector.load %arg10[%c0_44, %c0_45] : memref<1x32xf32, #tpu.memory_space<vmem>>, vector<1x32xf32>
    %263 = vector.shape_cast %262 : vector<1x32xf32> to vector<1x32xf32>
    %264 = vector.broadcast %263 : vector<1x32xf32> to vector<2x32xf32>
    %c0_46 = arith.constant 0 : index
    %c0_47 = arith.constant 0 : index
    %265 = vector.load %arg13[%c0_46, %c0_47] : memref<1x32xf32, #tpu.memory_space<vmem>>, vector<1x32xf32>
    %266 = vector.shape_cast %265 : vector<1x32xf32> to vector<1x1x32xf32>
    %267 = vector.shape_cast %266 : vector<1x1x32xf32> to vector<1x1x32xf32>
    %268 = vector.broadcast %267 : vector<1x1x32xf32> to vector<2x8x32xf32>
    %c0_48 = arith.constant 0 : index
    %c0_49 = arith.constant 0 : index
    %269 = vector.load %arg14[%c0_48, %c0_49] : memref<64x32xf32, #tpu.memory_space<vmem>>, vector<32x32xf32>
    %c32 = arith.constant 32 : index
    %c0_50 = arith.constant 0 : index
    %270 = vector.load %arg14[%c32, %c0_50] : memref<64x32xf32, #tpu.memory_space<vmem>>, vector<32x32xf32>
    %c0_51 = arith.constant 0 : index
    %c0_52 = arith.constant 0 : index
    %271 = vector.load %arg15[%c0_51, %c0_52] : memref<1x32xf32, #tpu.memory_space<vmem>>, vector<1x32xf32>
    %272 = vector.shape_cast %271 : vector<1x32xf32> to vector<1x32xf32>
    %273 = vector.broadcast %272 : vector<1x32xf32> to vector<2x32xf32>
    %c0_53 = arith.constant 0 : index
    %c0_54 = arith.constant 0 : index
    %274 = vector.load %arg16[%c0_53, %c0_54] : memref<1x32xf32, #tpu.memory_space<vmem>>, vector<1x32xf32>
    %275 = vector.shape_cast %274 : vector<1x32xf32> to vector<1x32xf32>
    %276 = vector.broadcast %275 : vector<1x32xf32> to vector<2x32xf32>
    %cst_55 = arith.constant 1.000000e+00 : f32
    %277 = vector.broadcast %cst_55 : f32 to vector<2x8xf32>
    %cst_56 = arith.constant 0.000000e+00 : f32
    %278 = vector.broadcast %cst_56 : f32 to vector<2x8x8xf32>
    %c0_i32_57 = arith.constant 0 : i32
    %279 = vector.broadcast %c0_i32_57 : i32 to vector<2x8xi32>
    %cst_58 = arith.constant dense<0.000000e+00> : vector<2x128xf32>
    %280 = tpu.matmul %276, %256, %cst_58 {dimension_numbers = #tpu.dot_dimension_numbers<[1], [0], [0], [1], [0, 0, 1, 1], [], []>} : vector<2x32xf32>, vector<32x128xf32>, vector<2x128xf32> -> vector<2x128xf32>
    %cst_59 = arith.constant dense<0.000000e+00> : vector<2x128xf32>
    %281 = tpu.matmul %240, %257, %cst_59 {dimension_numbers = #tpu.dot_dimension_numbers<[1], [0], [0], [1], [0, 0, 1, 1], [], []>} : vector<2x32xf32>, vector<32x128xf32>, vector<2x128xf32> -> vector<2x128xf32>
    %282 = arith.addf %280, %281 : vector<2x128xf32>
    %283 = arith.addf %282, %260 : vector<2x128xf32>
    %284 = math.tanh %283 : vector<2x128xf32>
    %285 = arith.negf %283 : vector<2x128xf32>
    %286 = math.exp %285 : vector<2x128xf32>
    %cst_60 = arith.constant 1.000000e+00 : f32
    %287 = vector.broadcast %cst_60 : f32 to vector<2x128xf32>
    %288 = arith.addf %287, %286 : vector<2x128xf32>
    %289 = arith.divf %287, %288 : vector<2x128xf32>
    %290 = arith.select %7, %284, %289 : vector<2x128xi1>, vector<2x128xf32>
    %291 = vector.extract_strided_slice %290 {offsets = [0, 0], sizes = [2, 32], strides = [1, 1]} : vector<2x128xf32> to vector<2x32xf32>
    %292 = vector.extract_strided_slice %290 {offsets = [0, 32], sizes = [2, 32], strides = [1, 1]} : vector<2x128xf32> to vector<2x32xf32>
    %293 = vector.extract_strided_slice %290 {offsets = [0, 64], sizes = [2, 32], strides = [1, 1]} : vector<2x128xf32> to vector<2x32xf32>
    %294 = vector.extract_strided_slice %290 {offsets = [0, 96], sizes = [2, 32], strides = [1, 1]} : vector<2x128xf32> to vector<2x32xf32>
    %295 = arith.mulf %292, %238 : vector<2x32xf32>
    %296 = arith.mulf %291, %293 : vector<2x32xf32>
    %297 = arith.addf %295, %296 : vector<2x32xf32>
    %298 = math.tanh %297 : vector<2x32xf32>
    %299 = arith.mulf %294, %298 : vector<2x32xf32>
    %cst_61 = arith.constant dense<0.000000e+00> : vector<2x32xf32>
    %300 = tpu.matmul %299, %261, %cst_61 {dimension_numbers = #tpu.dot_dimension_numbers<[1], [0], [0], [1], [0, 0, 1, 1], [], []>} : vector<2x32xf32>, vector<32x32xf32>, vector<2x32xf32> -> vector<2x32xf32>
    %301 = arith.addf %300, %264 : vector<2x32xf32>
    %302 = vector.shape_cast %301 : vector<2x32xf32> to vector<2x1x32xf32>
    %303 = vector.broadcast %302 : vector<2x1x32xf32> to vector<2x8x32xf32>
    %304 = arith.addf %303, %255 : vector<2x8x32xf32>
    %305 = math.tanh %304 : vector<2x8x32xf32>
    %306 = arith.mulf %305, %268 : vector<2x8x32xf32>
    %cst_62 = arith.constant dense<0.000000e+00> : vector<2x8xf32>
    %307 = vector.multi_reduction <add>, %306, %cst_62 [2] : vector<2x8x32xf32> to vector<2x8xf32>
    %cst_63 = arith.constant 0.000000e+00 : f32
    %308 = vector.broadcast %cst_63 : f32 to vector<2x8xf32>
    %309 = arith.cmpf ogt, %277, %308 : vector<2x8xf32>
    %cst_64 = arith.constant -1.000000e+30 : f32
    %310 = vector.broadcast %cst_64 : f32 to vector<2x8xf32>
    %311 = arith.select %309, %307, %310 : vector<2x8xi1>, vector<2x8xf32>
    %cst_65 = arith.constant dense<0xFF800000> : vector<2xf32>
    %312 = vector.multi_reduction <maximumf>, %311, %cst_65 [1] : vector<2x8xf32> to vector<2xf32>
    %313 = vector.shape_cast %312 : vector<2xf32> to vector<2x1xf32>
    %314 = vector.broadcast %313 : vector<2x1xf32> to vector<2x8xf32>
    %315 = arith.subf %311, %314 : vector<2x8xf32>
    %316 = math.exp %315 : vector<2x8xf32>
    %cst_66 = arith.constant dense<0.000000e+00> : vector<2xf32>
    %317 = vector.multi_reduction <add>, %316, %cst_66 [1] : vector<2x8xf32> to vector<2xf32>
    %318 = vector.shape_cast %317 : vector<2xf32> to vector<2x1xf32>
    %319 = tpu.reciprocal %318 {approx = true} : vector<2x1xf32> -> vector<2x1xf32>
    %320 = vector.broadcast %319 : vector<2x1xf32> to vector<2x8xf32>
    %321 = arith.mulf %316, %320 : vector<2x8xf32>
    %322 = vector.shape_cast %321 : vector<2x8xf32> to vector<2x1x8xf32>
    "tpu.trace_start"() <{level = 10 : i32, message = "bql,blh->bqh"}> : () -> ()
    %cst_67 = arith.constant dense<0.000000e+00> : vector<2x1x32xf32>
    %323 = tpu.matmul %322, %255, %cst_67 {dimension_numbers = #tpu.dot_dimension_numbers<[2], [1], [1], [2], [0, 0, 0, 1, 1, 2], [0], [0]>} : vector<2x1x8xf32>, vector<2x8x32xf32>, vector<2x1x32xf32> -> vector<2x1x32xf32>
    "tpu.trace_stop"() : () -> ()
    %324 = vector.shape_cast %323 : vector<2x1x32xf32> to vector<2x32xf32>
    %cst_68 = arith.constant dense<0.000000e+00> : vector<2x32xf32>
    %325 = tpu.matmul %324, %269, %cst_68 {dimension_numbers = #tpu.dot_dimension_numbers<[1], [0], [0], [1], [0, 0, 1, 1], [], []>} : vector<2x32xf32>, vector<32x32xf32>, vector<2x32xf32> -> vector<2x32xf32>
    %cst_69 = arith.constant dense<0.000000e+00> : vector<2x32xf32>
    %326 = tpu.matmul %299, %270, %cst_69 {dimension_numbers = #tpu.dot_dimension_numbers<[1], [0], [0], [1], [0, 0, 1, 1], [], []>} : vector<2x32xf32>, vector<32x32xf32>, vector<2x32xf32> -> vector<2x32xf32>
    %327 = arith.addf %325, %326 : vector<2x32xf32>
    %328 = arith.addf %327, %273 : vector<2x32xf32>
    %329 = math.tanh %328 : vector<2x32xf32>
    %330 = arith.mulf %321, %277 : vector<2x8xf32>
    %cst_70 = arith.constant dense<0xFF800000> : vector<2xf32>
    %331 = vector.multi_reduction <maximumf>, %330, %cst_70 [1] : vector<2x8xf32> to vector<2xf32>
    %332 = vector.shape_cast %331 : vector<2xf32> to vector<2x1xf32>
    %333 = vector.broadcast %332 : vector<2x1xf32> to vector<2x8xf32>
    %334 = arith.cmpf oeq, %330, %333 : vector<2x8xf32>
    %c8_i32 = arith.constant 8 : i32
    %335 = vector.broadcast %c8_i32 : i32 to vector<2x8xi32>
    %336 = arith.select %334, %0, %335 : vector<2x8xi1>, vector<2x8xi32>
    %cst_71 = arith.constant dense<2147483647> : vector<2xi32>
    %337 = vector.multi_reduction <minsi>, %336, %cst_71 [1] : vector<2x8xi32> to vector<2xi32>
    %338 = vector.shape_cast %337 : vector<2xi32> to vector<2x1xi32>
    %339 = vector.broadcast %338 : vector<2x1xi32> to vector<2x8xi32>
    %340 = arith.cmpi eq, %0, %339 : vector<2x8xi32>
    %341 = arith.extui %340 : vector<2x8xi1> to vector<2x8xi32>
    %342 = arith.sitofp %341 : vector<2x8xi32> to vector<2x8xf32>
    %cst_72 = arith.constant 1.000000e+00 : f32
    %343 = vector.broadcast %cst_72 : f32 to vector<2x8xf32>
    %344 = arith.subf %343, %342 : vector<2x8xf32>
    %345 = arith.mulf %277, %344 : vector<2x8xf32>
    %346 = vector.shape_cast %342 : vector<2x8xf32> to vector<2x1x8xf32>
    "tpu.trace_start"() <{level = 10 : i32, message = "bql,ble->bqe"}> : () -> ()
    %cst_73 = arith.constant dense<0.000000e+00> : vector<2x1x32xf32>
    %347 = tpu.matmul %346, %14, %cst_73 {dimension_numbers = #tpu.dot_dimension_numbers<[2], [1], [1], [2], [0, 0, 0, 1, 1, 2], [0], [0]>} : vector<2x1x8xf32>, vector<2x8x32xf32>, vector<2x1x32xf32> -> vector<2x1x32xf32>
    "tpu.trace_stop"() : () -> ()
    %348 = vector.shape_cast %347 : vector<2x1x32xf32> to vector<2x32xf32>
    %c0_i32_74 = arith.constant 0 : i32
    %349 = vector.broadcast %c0_i32_74 : i32 to vector<1x8x1xi32>
    %350 = arith.cmpi eq, %1, %349 : vector<1x8x1xi32>
    %351 = vector.shape_cast %321 : vector<2x8xf32> to vector<2x1x8xf32>
    %352 = vector.shape_cast %350 : vector<1x8x1xi1> to vector<1x8x1xi1>
    %353 = vector.broadcast %352 : vector<1x8x1xi1> to vector<2x8x8xi1>
    %354 = vector.shape_cast %351 : vector<2x1x8xf32> to vector<2x1x8xf32>
    %355 = vector.broadcast %354 : vector<2x1x8xf32> to vector<2x8x8xf32>
    %356 = arith.select %353, %355, %278 : vector<2x8x8xi1>, vector<2x8x8xf32>
    %c0_i32_75 = arith.constant 0 : i32
    %357 = vector.broadcast %c0_i32_75 : i32 to vector<2x8xi32>
    %358 = arith.cmpi eq, %0, %357 : vector<2x8xi32>
    %359 = vector.shape_cast %338 : vector<2x1xi32> to vector<2x1xi32>
    %360 = vector.broadcast %359 : vector<2x1xi32> to vector<2x8xi32>
    %361 = arith.select %358, %360, %279 : vector<2x8xi1>, vector<2x8xi32>
    %cst_76 = arith.constant dense<0.000000e+00> : vector<2x128xf32>
    %362 = tpu.matmul %348, %256, %cst_76 {dimension_numbers = #tpu.dot_dimension_numbers<[1], [0], [0], [1], [0, 0, 1, 1], [], []>} : vector<2x32xf32>, vector<32x128xf32>, vector<2x128xf32> -> vector<2x128xf32>
    %cst_77 = arith.constant dense<0.000000e+00> : vector<2x128xf32>
    %363 = tpu.matmul %329, %257, %cst_77 {dimension_numbers = #tpu.dot_dimension_numbers<[1], [0], [0], [1], [0, 0, 1, 1], [], []>} : vector<2x32xf32>, vector<32x128xf32>, vector<2x128xf32> -> vector<2x128xf32>
    %364 = arith.addf %362, %363 : vector<2x128xf32>
    %365 = arith.addf %364, %260 : vector<2x128xf32>
    %366 = math.tanh %365 : vector<2x128xf32>
    %367 = arith.negf %365 : vector<2x128xf32>
    %368 = math.exp %367 : vector<2x128xf32>
    %cst_78 = arith.constant 1.000000e+00 : f32
    %369 = vector.broadcast %cst_78 : f32 to vector<2x128xf32>
    %370 = arith.addf %369, %368 : vector<2x128xf32>
    %371 = arith.divf %369, %370 : vector<2x128xf32>
    %372 = arith.select %7, %366, %371 : vector<2x128xi1>, vector<2x128xf32>
    %373 = vector.extract_strided_slice %372 {offsets = [0, 0], sizes = [2, 32], strides = [1, 1]} : vector<2x128xf32> to vector<2x32xf32>
    %374 = vector.extract_strided_slice %372 {offsets = [0, 32], sizes = [2, 32], strides = [1, 1]} : vector<2x128xf32> to vector<2x32xf32>
    %375 = vector.extract_strided_slice %372 {offsets = [0, 64], sizes = [2, 32], strides = [1, 1]} : vector<2x128xf32> to vector<2x32xf32>
    %376 = vector.extract_strided_slice %372 {offsets = [0, 96], sizes = [2, 32], strides = [1, 1]} : vector<2x128xf32> to vector<2x32xf32>
    %377 = arith.mulf %374, %297 : vector<2x32xf32>
    %378 = arith.mulf %373, %375 : vector<2x32xf32>
    %379 = arith.addf %377, %378 : vector<2x32xf32>
    %380 = math.tanh %379 : vector<2x32xf32>
    %381 = arith.mulf %376, %380 : vector<2x32xf32>
    %cst_79 = arith.constant dense<0.000000e+00> : vector<2x32xf32>
    %382 = tpu.matmul %381, %261, %cst_79 {dimension_numbers = #tpu.dot_dimension_numbers<[1], [0], [0], [1], [0, 0, 1, 1], [], []>} : vector<2x32xf32>, vector<32x32xf32>, vector<2x32xf32> -> vector<2x32xf32>
    %383 = arith.addf %382, %264 : vector<2x32xf32>
    %384 = vector.shape_cast %383 : vector<2x32xf32> to vector<2x1x32xf32>
    %385 = vector.broadcast %384 : vector<2x1x32xf32> to vector<2x8x32xf32>
    %386 = arith.addf %385, %255 : vector<2x8x32xf32>
    %387 = math.tanh %386 : vector<2x8x32xf32>
    %388 = arith.mulf %387, %268 : vector<2x8x32xf32>
    %cst_80 = arith.constant dense<0.000000e+00> : vector<2x8xf32>
    %389 = vector.multi_reduction <add>, %388, %cst_80 [2] : vector<2x8x32xf32> to vector<2x8xf32>
    %cst_81 = arith.constant 0.000000e+00 : f32
    %390 = vector.broadcast %cst_81 : f32 to vector<2x8xf32>
    %391 = arith.cmpf ogt, %345, %390 : vector<2x8xf32>
    %cst_82 = arith.constant -1.000000e+30 : f32
    %392 = vector.broadcast %cst_82 : f32 to vector<2x8xf32>
    %393 = arith.select %391, %389, %392 : vector<2x8xi1>, vector<2x8xf32>
    %cst_83 = arith.constant dense<0xFF800000> : vector<2xf32>
    %394 = vector.multi_reduction <maximumf>, %393, %cst_83 [1] : vector<2x8xf32> to vector<2xf32>
    %395 = vector.shape_cast %394 : vector<2xf32> to vector<2x1xf32>
    %396 = vector.broadcast %395 : vector<2x1xf32> to vector<2x8xf32>
    %397 = arith.subf %393, %396 : vector<2x8xf32>
    %398 = math.exp %397 : vector<2x8xf32>
    %cst_84 = arith.constant dense<0.000000e+00> : vector<2xf32>
    %399 = vector.multi_reduction <add>, %398, %cst_84 [1] : vector<2x8xf32> to vector<2xf32>
    %400 = vector.shape_cast %399 : vector<2xf32> to vector<2x1xf32>
    %401 = tpu.reciprocal %400 {approx = true} : vector<2x1xf32> -> vector<2x1xf32>
    %402 = vector.broadcast %401 : vector<2x1xf32> to vector<2x8xf32>
    %403 = arith.mulf %398, %402 : vector<2x8xf32>
    %404 = vector.shape_cast %403 : vector<2x8xf32> to vector<2x1x8xf32>
    "tpu.trace_start"() <{level = 10 : i32, message = "bql,blh->bqh"}> : () -> ()
    %cst_85 = arith.constant dense<0.000000e+00> : vector<2x1x32xf32>
    %405 = tpu.matmul %404, %255, %cst_85 {dimension_numbers = #tpu.dot_dimension_numbers<[2], [1], [1], [2], [0, 0, 0, 1, 1, 2], [0], [0]>} : vector<2x1x8xf32>, vector<2x8x32xf32>, vector<2x1x32xf32> -> vector<2x1x32xf32>
    "tpu.trace_stop"() : () -> ()
    %406 = vector.shape_cast %405 : vector<2x1x32xf32> to vector<2x32xf32>
    %cst_86 = arith.constant dense<0.000000e+00> : vector<2x32xf32>
    %407 = tpu.matmul %406, %269, %cst_86 {dimension_numbers = #tpu.dot_dimension_numbers<[1], [0], [0], [1], [0, 0, 1, 1], [], []>} : vector<2x32xf32>, vector<32x32xf32>, vector<2x32xf32> -> vector<2x32xf32>
    %cst_87 = arith.constant dense<0.000000e+00> : vector<2x32xf32>
    %408 = tpu.matmul %381, %270, %cst_87 {dimension_numbers = #tpu.dot_dimension_numbers<[1], [0], [0], [1], [0, 0, 1, 1], [], []>} : vector<2x32xf32>, vector<32x32xf32>, vector<2x32xf32> -> vector<2x32xf32>
    %409 = arith.addf %407, %408 : vector<2x32xf32>
    %410 = arith.addf %409, %273 : vector<2x32xf32>
    %411 = math.tanh %410 : vector<2x32xf32>
    %412 = arith.mulf %403, %345 : vector<2x8xf32>
    %cst_88 = arith.constant dense<0xFF800000> : vector<2xf32>
    %413 = vector.multi_reduction <maximumf>, %412, %cst_88 [1] : vector<2x8xf32> to vector<2xf32>
    %414 = vector.shape_cast %413 : vector<2xf32> to vector<2x1xf32>
    %415 = vector.broadcast %414 : vector<2x1xf32> to vector<2x8xf32>
    %416 = arith.cmpf oeq, %412, %415 : vector<2x8xf32>
    %c8_i32_89 = arith.constant 8 : i32
    %417 = vector.broadcast %c8_i32_89 : i32 to vector<2x8xi32>
    %418 = arith.select %416, %0, %417 : vector<2x8xi1>, vector<2x8xi32>
    %cst_90 = arith.constant dense<2147483647> : vector<2xi32>
    %419 = vector.multi_reduction <minsi>, %418, %cst_90 [1] : vector<2x8xi32> to vector<2xi32>
    %420 = vector.shape_cast %419 : vector<2xi32> to vector<2x1xi32>
    %421 = vector.broadcast %420 : vector<2x1xi32> to vector<2x8xi32>
    %422 = arith.cmpi eq, %0, %421 : vector<2x8xi32>
    %423 = arith.extui %422 : vector<2x8xi1> to vector<2x8xi32>
    %424 = arith.sitofp %423 : vector<2x8xi32> to vector<2x8xf32>
    %cst_91 = arith.constant 1.000000e+00 : f32
    %425 = vector.broadcast %cst_91 : f32 to vector<2x8xf32>
    %426 = arith.subf %425, %424 : vector<2x8xf32>
    %427 = arith.mulf %345, %426 : vector<2x8xf32>
    %428 = vector.shape_cast %424 : vector<2x8xf32> to vector<2x1x8xf32>
    "tpu.trace_start"() <{level = 10 : i32, message = "bql,ble->bqe"}> : () -> ()
    %cst_92 = arith.constant dense<0.000000e+00> : vector<2x1x32xf32>
    %429 = tpu.matmul %428, %14, %cst_92 {dimension_numbers = #tpu.dot_dimension_numbers<[2], [1], [1], [2], [0, 0, 0, 1, 1, 2], [0], [0]>} : vector<2x1x8xf32>, vector<2x8x32xf32>, vector<2x1x32xf32> -> vector<2x1x32xf32>
    "tpu.trace_stop"() : () -> ()
    %430 = vector.shape_cast %429 : vector<2x1x32xf32> to vector<2x32xf32>
    %c1_i32_93 = arith.constant 1 : i32
    %431 = vector.broadcast %c1_i32_93 : i32 to vector<1x8x1xi32>
    %432 = arith.cmpi eq, %1, %431 : vector<1x8x1xi32>
    %433 = vector.shape_cast %403 : vector<2x8xf32> to vector<2x1x8xf32>
    %434 = vector.shape_cast %432 : vector<1x8x1xi1> to vector<1x8x1xi1>
    %435 = vector.broadcast %434 : vector<1x8x1xi1> to vector<2x8x8xi1>
    %436 = vector.shape_cast %433 : vector<2x1x8xf32> to vector<2x1x8xf32>
    %437 = vector.broadcast %436 : vector<2x1x8xf32> to vector<2x8x8xf32>
    %438 = arith.select %435, %437, %356 : vector<2x8x8xi1>, vector<2x8x8xf32>
    %c1_i32_94 = arith.constant 1 : i32
    %439 = vector.broadcast %c1_i32_94 : i32 to vector<2x8xi32>
    %440 = arith.cmpi eq, %0, %439 : vector<2x8xi32>
    %441 = vector.shape_cast %420 : vector<2x1xi32> to vector<2x1xi32>
    %442 = vector.broadcast %441 : vector<2x1xi32> to vector<2x8xi32>
    %443 = arith.select %440, %442, %361 : vector<2x8xi1>, vector<2x8xi32>
    %cst_95 = arith.constant dense<0.000000e+00> : vector<2x128xf32>
    %444 = tpu.matmul %430, %256, %cst_95 {dimension_numbers = #tpu.dot_dimension_numbers<[1], [0], [0], [1], [0, 0, 1, 1], [], []>} : vector<2x32xf32>, vector<32x128xf32>, vector<2x128xf32> -> vector<2x128xf32>
    %cst_96 = arith.constant dense<0.000000e+00> : vector<2x128xf32>
    %445 = tpu.matmul %411, %257, %cst_96 {dimension_numbers = #tpu.dot_dimension_numbers<[1], [0], [0], [1], [0, 0, 1, 1], [], []>} : vector<2x32xf32>, vector<32x128xf32>, vector<2x128xf32> -> vector<2x128xf32>
    %446 = arith.addf %444, %445 : vector<2x128xf32>
    %447 = arith.addf %446, %260 : vector<2x128xf32>
    %448 = math.tanh %447 : vector<2x128xf32>
    %449 = arith.negf %447 : vector<2x128xf32>
    %450 = math.exp %449 : vector<2x128xf32>
    %cst_97 = arith.constant 1.000000e+00 : f32
    %451 = vector.broadcast %cst_97 : f32 to vector<2x128xf32>
    %452 = arith.addf %451, %450 : vector<2x128xf32>
    %453 = arith.divf %451, %452 : vector<2x128xf32>
    %454 = arith.select %7, %448, %453 : vector<2x128xi1>, vector<2x128xf32>
    %455 = vector.extract_strided_slice %454 {offsets = [0, 0], sizes = [2, 32], strides = [1, 1]} : vector<2x128xf32> to vector<2x32xf32>
    %456 = vector.extract_strided_slice %454 {offsets = [0, 32], sizes = [2, 32], strides = [1, 1]} : vector<2x128xf32> to vector<2x32xf32>
    %457 = vector.extract_strided_slice %454 {offsets = [0, 64], sizes = [2, 32], strides = [1, 1]} : vector<2x128xf32> to vector<2x32xf32>
    %458 = vector.extract_strided_slice %454 {offsets = [0, 96], sizes = [2, 32], strides = [1, 1]} : vector<2x128xf32> to vector<2x32xf32>
    %459 = arith.mulf %456, %379 : vector<2x32xf32>
    %460 = arith.mulf %455, %457 : vector<2x32xf32>
    %461 = arith.addf %459, %460 : vector<2x32xf32>
    %462 = math.tanh %461 : vector<2x32xf32>
    %463 = arith.mulf %458, %462 : vector<2x32xf32>
    %cst_98 = arith.constant dense<0.000000e+00> : vector<2x32xf32>
    %464 = tpu.matmul %463, %261, %cst_98 {dimension_numbers = #tpu.dot_dimension_numbers<[1], [0], [0], [1], [0, 0, 1, 1], [], []>} : vector<2x32xf32>, vector<32x32xf32>, vector<2x32xf32> -> vector<2x32xf32>
    %465 = arith.addf %464, %264 : vector<2x32xf32>
    %466 = vector.shape_cast %465 : vector<2x32xf32> to vector<2x1x32xf32>
    %467 = vector.broadcast %466 : vector<2x1x32xf32> to vector<2x8x32xf32>
    %468 = arith.addf %467, %255 : vector<2x8x32xf32>
    %469 = math.tanh %468 : vector<2x8x32xf32>
    %470 = arith.mulf %469, %268 : vector<2x8x32xf32>
    %cst_99 = arith.constant dense<0.000000e+00> : vector<2x8xf32>
    %471 = vector.multi_reduction <add>, %470, %cst_99 [2] : vector<2x8x32xf32> to vector<2x8xf32>
    %cst_100 = arith.constant 0.000000e+00 : f32
    %472 = vector.broadcast %cst_100 : f32 to vector<2x8xf32>
    %473 = arith.cmpf ogt, %427, %472 : vector<2x8xf32>
    %cst_101 = arith.constant -1.000000e+30 : f32
    %474 = vector.broadcast %cst_101 : f32 to vector<2x8xf32>
    %475 = arith.select %473, %471, %474 : vector<2x8xi1>, vector<2x8xf32>
    %cst_102 = arith.constant dense<0xFF800000> : vector<2xf32>
    %476 = vector.multi_reduction <maximumf>, %475, %cst_102 [1] : vector<2x8xf32> to vector<2xf32>
    %477 = vector.shape_cast %476 : vector<2xf32> to vector<2x1xf32>
    %478 = vector.broadcast %477 : vector<2x1xf32> to vector<2x8xf32>
    %479 = arith.subf %475, %478 : vector<2x8xf32>
    %480 = math.exp %479 : vector<2x8xf32>
    %cst_103 = arith.constant dense<0.000000e+00> : vector<2xf32>
    %481 = vector.multi_reduction <add>, %480, %cst_103 [1] : vector<2x8xf32> to vector<2xf32>
    %482 = vector.shape_cast %481 : vector<2xf32> to vector<2x1xf32>
    %483 = tpu.reciprocal %482 {approx = true} : vector<2x1xf32> -> vector<2x1xf32>
    %484 = vector.broadcast %483 : vector<2x1xf32> to vector<2x8xf32>
    %485 = arith.mulf %480, %484 : vector<2x8xf32>
    %486 = vector.shape_cast %485 : vector<2x8xf32> to vector<2x1x8xf32>
    "tpu.trace_start"() <{level = 10 : i32, message = "bql,blh->bqh"}> : () -> ()
    %cst_104 = arith.constant dense<0.000000e+00> : vector<2x1x32xf32>
    %487 = tpu.matmul %486, %255, %cst_104 {dimension_numbers = #tpu.dot_dimension_numbers<[2], [1], [1], [2], [0, 0, 0, 1, 1, 2], [0], [0]>} : vector<2x1x8xf32>, vector<2x8x32xf32>, vector<2x1x32xf32> -> vector<2x1x32xf32>
    "tpu.trace_stop"() : () -> ()
    %488 = vector.shape_cast %487 : vector<2x1x32xf32> to vector<2x32xf32>
    %cst_105 = arith.constant dense<0.000000e+00> : vector<2x32xf32>
    %489 = tpu.matmul %488, %269, %cst_105 {dimension_numbers = #tpu.dot_dimension_numbers<[1], [0], [0], [1], [0, 0, 1, 1], [], []>} : vector<2x32xf32>, vector<32x32xf32>, vector<2x32xf32> -> vector<2x32xf32>
    %cst_106 = arith.constant dense<0.000000e+00> : vector<2x32xf32>
    %490 = tpu.matmul %463, %270, %cst_106 {dimension_numbers = #tpu.dot_dimension_numbers<[1], [0], [0], [1], [0, 0, 1, 1], [], []>} : vector<2x32xf32>, vector<32x32xf32>, vector<2x32xf32> -> vector<2x32xf32>
    %491 = arith.addf %489, %490 : vector<2x32xf32>
    %492 = arith.addf %491, %273 : vector<2x32xf32>
    %493 = math.tanh %492 : vector<2x32xf32>
    %494 = arith.mulf %485, %427 : vector<2x8xf32>
    %cst_107 = arith.constant dense<0xFF800000> : vector<2xf32>
    %495 = vector.multi_reduction <maximumf>, %494, %cst_107 [1] : vector<2x8xf32> to vector<2xf32>
    %496 = vector.shape_cast %495 : vector<2xf32> to vector<2x1xf32>
    %497 = vector.broadcast %496 : vector<2x1xf32> to vector<2x8xf32>
    %498 = arith.cmpf oeq, %494, %497 : vector<2x8xf32>
    %c8_i32_108 = arith.constant 8 : i32
    %499 = vector.broadcast %c8_i32_108 : i32 to vector<2x8xi32>
    %500 = arith.select %498, %0, %499 : vector<2x8xi1>, vector<2x8xi32>
    %cst_109 = arith.constant dense<2147483647> : vector<2xi32>
    %501 = vector.multi_reduction <minsi>, %500, %cst_109 [1] : vector<2x8xi32> to vector<2xi32>
    %502 = vector.shape_cast %501 : vector<2xi32> to vector<2x1xi32>
    %503 = vector.broadcast %502 : vector<2x1xi32> to vector<2x8xi32>
    %504 = arith.cmpi eq, %0, %503 : vector<2x8xi32>
    %505 = arith.extui %504 : vector<2x8xi1> to vector<2x8xi32>
    %506 = arith.sitofp %505 : vector<2x8xi32> to vector<2x8xf32>
    %cst_110 = arith.constant 1.000000e+00 : f32
    %507 = vector.broadcast %cst_110 : f32 to vector<2x8xf32>
    %508 = arith.subf %507, %506 : vector<2x8xf32>
    %509 = arith.mulf %427, %508 : vector<2x8xf32>
    %510 = vector.shape_cast %506 : vector<2x8xf32> to vector<2x1x8xf32>
    "tpu.trace_start"() <{level = 10 : i32, message = "bql,ble->bqe"}> : () -> ()
    %cst_111 = arith.constant dense<0.000000e+00> : vector<2x1x32xf32>
    %511 = tpu.matmul %510, %14, %cst_111 {dimension_numbers = #tpu.dot_dimension_numbers<[2], [1], [1], [2], [0, 0, 0, 1, 1, 2], [0], [0]>} : vector<2x1x8xf32>, vector<2x8x32xf32>, vector<2x1x32xf32> -> vector<2x1x32xf32>
    "tpu.trace_stop"() : () -> ()
    %512 = vector.shape_cast %511 : vector<2x1x32xf32> to vector<2x32xf32>
    %c2_i32_112 = arith.constant 2 : i32
    %513 = vector.broadcast %c2_i32_112 : i32 to vector<1x8x1xi32>
    %514 = arith.cmpi eq, %1, %513 : vector<1x8x1xi32>
    %515 = vector.shape_cast %485 : vector<2x8xf32> to vector<2x1x8xf32>
    %516 = vector.shape_cast %514 : vector<1x8x1xi1> to vector<1x8x1xi1>
    %517 = vector.broadcast %516 : vector<1x8x1xi1> to vector<2x8x8xi1>
    %518 = vector.shape_cast %515 : vector<2x1x8xf32> to vector<2x1x8xf32>
    %519 = vector.broadcast %518 : vector<2x1x8xf32> to vector<2x8x8xf32>
    %520 = arith.select %517, %519, %438 : vector<2x8x8xi1>, vector<2x8x8xf32>
    %c2_i32_113 = arith.constant 2 : i32
    %521 = vector.broadcast %c2_i32_113 : i32 to vector<2x8xi32>
    %522 = arith.cmpi eq, %0, %521 : vector<2x8xi32>
    %523 = vector.shape_cast %502 : vector<2x1xi32> to vector<2x1xi32>
    %524 = vector.broadcast %523 : vector<2x1xi32> to vector<2x8xi32>
    %525 = arith.select %522, %524, %443 : vector<2x8xi1>, vector<2x8xi32>
    %cst_114 = arith.constant dense<0.000000e+00> : vector<2x128xf32>
    %526 = tpu.matmul %512, %256, %cst_114 {dimension_numbers = #tpu.dot_dimension_numbers<[1], [0], [0], [1], [0, 0, 1, 1], [], []>} : vector<2x32xf32>, vector<32x128xf32>, vector<2x128xf32> -> vector<2x128xf32>
    %cst_115 = arith.constant dense<0.000000e+00> : vector<2x128xf32>
    %527 = tpu.matmul %493, %257, %cst_115 {dimension_numbers = #tpu.dot_dimension_numbers<[1], [0], [0], [1], [0, 0, 1, 1], [], []>} : vector<2x32xf32>, vector<32x128xf32>, vector<2x128xf32> -> vector<2x128xf32>
    %528 = arith.addf %526, %527 : vector<2x128xf32>
    %529 = arith.addf %528, %260 : vector<2x128xf32>
    %530 = math.tanh %529 : vector<2x128xf32>
    %531 = arith.negf %529 : vector<2x128xf32>
    %532 = math.exp %531 : vector<2x128xf32>
    %cst_116 = arith.constant 1.000000e+00 : f32
    %533 = vector.broadcast %cst_116 : f32 to vector<2x128xf32>
    %534 = arith.addf %533, %532 : vector<2x128xf32>
    %535 = arith.divf %533, %534 : vector<2x128xf32>
    %536 = arith.select %7, %530, %535 : vector<2x128xi1>, vector<2x128xf32>
    %537 = vector.extract_strided_slice %536 {offsets = [0, 0], sizes = [2, 32], strides = [1, 1]} : vector<2x128xf32> to vector<2x32xf32>
    %538 = vector.extract_strided_slice %536 {offsets = [0, 32], sizes = [2, 32], strides = [1, 1]} : vector<2x128xf32> to vector<2x32xf32>
    %539 = vector.extract_strided_slice %536 {offsets = [0, 64], sizes = [2, 32], strides = [1, 1]} : vector<2x128xf32> to vector<2x32xf32>
    %540 = vector.extract_strided_slice %536 {offsets = [0, 96], sizes = [2, 32], strides = [1, 1]} : vector<2x128xf32> to vector<2x32xf32>
    %541 = arith.mulf %538, %461 : vector<2x32xf32>
    %542 = arith.mulf %537, %539 : vector<2x32xf32>
    %543 = arith.addf %541, %542 : vector<2x32xf32>
    %544 = math.tanh %543 : vector<2x32xf32>
    %545 = arith.mulf %540, %544 : vector<2x32xf32>
    %cst_117 = arith.constant dense<0.000000e+00> : vector<2x32xf32>
    %546 = tpu.matmul %545, %261, %cst_117 {dimension_numbers = #tpu.dot_dimension_numbers<[1], [0], [0], [1], [0, 0, 1, 1], [], []>} : vector<2x32xf32>, vector<32x32xf32>, vector<2x32xf32> -> vector<2x32xf32>
    %547 = arith.addf %546, %264 : vector<2x32xf32>
    %548 = vector.shape_cast %547 : vector<2x32xf32> to vector<2x1x32xf32>
    %549 = vector.broadcast %548 : vector<2x1x32xf32> to vector<2x8x32xf32>
    %550 = arith.addf %549, %255 : vector<2x8x32xf32>
    %551 = math.tanh %550 : vector<2x8x32xf32>
    %552 = arith.mulf %551, %268 : vector<2x8x32xf32>
    %cst_118 = arith.constant dense<0.000000e+00> : vector<2x8xf32>
    %553 = vector.multi_reduction <add>, %552, %cst_118 [2] : vector<2x8x32xf32> to vector<2x8xf32>
    %cst_119 = arith.constant 0.000000e+00 : f32
    %554 = vector.broadcast %cst_119 : f32 to vector<2x8xf32>
    %555 = arith.cmpf ogt, %509, %554 : vector<2x8xf32>
    %cst_120 = arith.constant -1.000000e+30 : f32
    %556 = vector.broadcast %cst_120 : f32 to vector<2x8xf32>
    %557 = arith.select %555, %553, %556 : vector<2x8xi1>, vector<2x8xf32>
    %cst_121 = arith.constant dense<0xFF800000> : vector<2xf32>
    %558 = vector.multi_reduction <maximumf>, %557, %cst_121 [1] : vector<2x8xf32> to vector<2xf32>
    %559 = vector.shape_cast %558 : vector<2xf32> to vector<2x1xf32>
    %560 = vector.broadcast %559 : vector<2x1xf32> to vector<2x8xf32>
    %561 = arith.subf %557, %560 : vector<2x8xf32>
    %562 = math.exp %561 : vector<2x8xf32>
    %cst_122 = arith.constant dense<0.000000e+00> : vector<2xf32>
    %563 = vector.multi_reduction <add>, %562, %cst_122 [1] : vector<2x8xf32> to vector<2xf32>
    %564 = vector.shape_cast %563 : vector<2xf32> to vector<2x1xf32>
    %565 = tpu.reciprocal %564 {approx = true} : vector<2x1xf32> -> vector<2x1xf32>
    %566 = vector.broadcast %565 : vector<2x1xf32> to vector<2x8xf32>
    %567 = arith.mulf %562, %566 : vector<2x8xf32>
    %568 = vector.shape_cast %567 : vector<2x8xf32> to vector<2x1x8xf32>
    "tpu.trace_start"() <{level = 10 : i32, message = "bql,blh->bqh"}> : () -> ()
    %cst_123 = arith.constant dense<0.000000e+00> : vector<2x1x32xf32>
    %569 = tpu.matmul %568, %255, %cst_123 {dimension_numbers = #tpu.dot_dimension_numbers<[2], [1], [1], [2], [0, 0, 0, 1, 1, 2], [0], [0]>} : vector<2x1x8xf32>, vector<2x8x32xf32>, vector<2x1x32xf32> -> vector<2x1x32xf32>
    "tpu.trace_stop"() : () -> ()
    %570 = vector.shape_cast %569 : vector<2x1x32xf32> to vector<2x32xf32>
    %cst_124 = arith.constant dense<0.000000e+00> : vector<2x32xf32>
    %571 = tpu.matmul %570, %269, %cst_124 {dimension_numbers = #tpu.dot_dimension_numbers<[1], [0], [0], [1], [0, 0, 1, 1], [], []>} : vector<2x32xf32>, vector<32x32xf32>, vector<2x32xf32> -> vector<2x32xf32>
    %cst_125 = arith.constant dense<0.000000e+00> : vector<2x32xf32>
    %572 = tpu.matmul %545, %270, %cst_125 {dimension_numbers = #tpu.dot_dimension_numbers<[1], [0], [0], [1], [0, 0, 1, 1], [], []>} : vector<2x32xf32>, vector<32x32xf32>, vector<2x32xf32> -> vector<2x32xf32>
    %573 = arith.addf %571, %572 : vector<2x32xf32>
    %574 = arith.addf %573, %273 : vector<2x32xf32>
    %575 = math.tanh %574 : vector<2x32xf32>
    %576 = arith.mulf %567, %509 : vector<2x8xf32>
    %cst_126 = arith.constant dense<0xFF800000> : vector<2xf32>
    %577 = vector.multi_reduction <maximumf>, %576, %cst_126 [1] : vector<2x8xf32> to vector<2xf32>
    %578 = vector.shape_cast %577 : vector<2xf32> to vector<2x1xf32>
    %579 = vector.broadcast %578 : vector<2x1xf32> to vector<2x8xf32>
    %580 = arith.cmpf oeq, %576, %579 : vector<2x8xf32>
    %c8_i32_127 = arith.constant 8 : i32
    %581 = vector.broadcast %c8_i32_127 : i32 to vector<2x8xi32>
    %582 = arith.select %580, %0, %581 : vector<2x8xi1>, vector<2x8xi32>
    %cst_128 = arith.constant dense<2147483647> : vector<2xi32>
    %583 = vector.multi_reduction <minsi>, %582, %cst_128 [1] : vector<2x8xi32> to vector<2xi32>
    %584 = vector.shape_cast %583 : vector<2xi32> to vector<2x1xi32>
    %585 = vector.broadcast %584 : vector<2x1xi32> to vector<2x8xi32>
    %586 = arith.cmpi eq, %0, %585 : vector<2x8xi32>
    %587 = arith.extui %586 : vector<2x8xi1> to vector<2x8xi32>
    %588 = arith.sitofp %587 : vector<2x8xi32> to vector<2x8xf32>
    %cst_129 = arith.constant 1.000000e+00 : f32
    %589 = vector.broadcast %cst_129 : f32 to vector<2x8xf32>
    %590 = arith.subf %589, %588 : vector<2x8xf32>
    %591 = arith.mulf %509, %590 : vector<2x8xf32>
    %592 = vector.shape_cast %588 : vector<2x8xf32> to vector<2x1x8xf32>
    "tpu.trace_start"() <{level = 10 : i32, message = "bql,ble->bqe"}> : () -> ()
    %cst_130 = arith.constant dense<0.000000e+00> : vector<2x1x32xf32>
    %593 = tpu.matmul %592, %14, %cst_130 {dimension_numbers = #tpu.dot_dimension_numbers<[2], [1], [1], [2], [0, 0, 0, 1, 1, 2], [0], [0]>} : vector<2x1x8xf32>, vector<2x8x32xf32>, vector<2x1x32xf32> -> vector<2x1x32xf32>
    "tpu.trace_stop"() : () -> ()
    %594 = vector.shape_cast %593 : vector<2x1x32xf32> to vector<2x32xf32>
    %c3_i32_131 = arith.constant 3 : i32
    %595 = vector.broadcast %c3_i32_131 : i32 to vector<1x8x1xi32>
    %596 = arith.cmpi eq, %1, %595 : vector<1x8x1xi32>
    %597 = vector.shape_cast %567 : vector<2x8xf32> to vector<2x1x8xf32>
    %598 = vector.shape_cast %596 : vector<1x8x1xi1> to vector<1x8x1xi1>
    %599 = vector.broadcast %598 : vector<1x8x1xi1> to vector<2x8x8xi1>
    %600 = vector.shape_cast %597 : vector<2x1x8xf32> to vector<2x1x8xf32>
    %601 = vector.broadcast %600 : vector<2x1x8xf32> to vector<2x8x8xf32>
    %602 = arith.select %599, %601, %520 : vector<2x8x8xi1>, vector<2x8x8xf32>
    %c3_i32_132 = arith.constant 3 : i32
    %603 = vector.broadcast %c3_i32_132 : i32 to vector<2x8xi32>
    %604 = arith.cmpi eq, %0, %603 : vector<2x8xi32>
    %605 = vector.shape_cast %584 : vector<2x1xi32> to vector<2x1xi32>
    %606 = vector.broadcast %605 : vector<2x1xi32> to vector<2x8xi32>
    %607 = arith.select %604, %606, %525 : vector<2x8xi1>, vector<2x8xi32>
    %cst_133 = arith.constant dense<0.000000e+00> : vector<2x128xf32>
    %608 = tpu.matmul %594, %256, %cst_133 {dimension_numbers = #tpu.dot_dimension_numbers<[1], [0], [0], [1], [0, 0, 1, 1], [], []>} : vector<2x32xf32>, vector<32x128xf32>, vector<2x128xf32> -> vector<2x128xf32>
    %cst_134 = arith.constant dense<0.000000e+00> : vector<2x128xf32>
    %609 = tpu.matmul %575, %257, %cst_134 {dimension_numbers = #tpu.dot_dimension_numbers<[1], [0], [0], [1], [0, 0, 1, 1], [], []>} : vector<2x32xf32>, vector<32x128xf32>, vector<2x128xf32> -> vector<2x128xf32>
    %610 = arith.addf %608, %609 : vector<2x128xf32>
    %611 = arith.addf %610, %260 : vector<2x128xf32>
    %612 = math.tanh %611 : vector<2x128xf32>
    %613 = arith.negf %611 : vector<2x128xf32>
    %614 = math.exp %613 : vector<2x128xf32>
    %cst_135 = arith.constant 1.000000e+00 : f32
    %615 = vector.broadcast %cst_135 : f32 to vector<2x128xf32>
    %616 = arith.addf %615, %614 : vector<2x128xf32>
    %617 = arith.divf %615, %616 : vector<2x128xf32>
    %618 = arith.select %7, %612, %617 : vector<2x128xi1>, vector<2x128xf32>
    %619 = vector.extract_strided_slice %618 {offsets = [0, 0], sizes = [2, 32], strides = [1, 1]} : vector<2x128xf32> to vector<2x32xf32>
    %620 = vector.extract_strided_slice %618 {offsets = [0, 32], sizes = [2, 32], strides = [1, 1]} : vector<2x128xf32> to vector<2x32xf32>
    %621 = vector.extract_strided_slice %618 {offsets = [0, 64], sizes = [2, 32], strides = [1, 1]} : vector<2x128xf32> to vector<2x32xf32>
    %622 = vector.extract_strided_slice %618 {offsets = [0, 96], sizes = [2, 32], strides = [1, 1]} : vector<2x128xf32> to vector<2x32xf32>
    %623 = arith.mulf %620, %543 : vector<2x32xf32>
    %624 = arith.mulf %619, %621 : vector<2x32xf32>
    %625 = arith.addf %623, %624 : vector<2x32xf32>
    %626 = math.tanh %625 : vector<2x32xf32>
    %627 = arith.mulf %622, %626 : vector<2x32xf32>
    %cst_136 = arith.constant dense<0.000000e+00> : vector<2x32xf32>
    %628 = tpu.matmul %627, %261, %cst_136 {dimension_numbers = #tpu.dot_dimension_numbers<[1], [0], [0], [1], [0, 0, 1, 1], [], []>} : vector<2x32xf32>, vector<32x32xf32>, vector<2x32xf32> -> vector<2x32xf32>
    %629 = arith.addf %628, %264 : vector<2x32xf32>
    %630 = vector.shape_cast %629 : vector<2x32xf32> to vector<2x1x32xf32>
    %631 = vector.broadcast %630 : vector<2x1x32xf32> to vector<2x8x32xf32>
    %632 = arith.addf %631, %255 : vector<2x8x32xf32>
    %633 = math.tanh %632 : vector<2x8x32xf32>
    %634 = arith.mulf %633, %268 : vector<2x8x32xf32>
    %cst_137 = arith.constant dense<0.000000e+00> : vector<2x8xf32>
    %635 = vector.multi_reduction <add>, %634, %cst_137 [2] : vector<2x8x32xf32> to vector<2x8xf32>
    %cst_138 = arith.constant 0.000000e+00 : f32
    %636 = vector.broadcast %cst_138 : f32 to vector<2x8xf32>
    %637 = arith.cmpf ogt, %591, %636 : vector<2x8xf32>
    %cst_139 = arith.constant -1.000000e+30 : f32
    %638 = vector.broadcast %cst_139 : f32 to vector<2x8xf32>
    %639 = arith.select %637, %635, %638 : vector<2x8xi1>, vector<2x8xf32>
    %cst_140 = arith.constant dense<0xFF800000> : vector<2xf32>
    %640 = vector.multi_reduction <maximumf>, %639, %cst_140 [1] : vector<2x8xf32> to vector<2xf32>
    %641 = vector.shape_cast %640 : vector<2xf32> to vector<2x1xf32>
    %642 = vector.broadcast %641 : vector<2x1xf32> to vector<2x8xf32>
    %643 = arith.subf %639, %642 : vector<2x8xf32>
    %644 = math.exp %643 : vector<2x8xf32>
    %cst_141 = arith.constant dense<0.000000e+00> : vector<2xf32>
    %645 = vector.multi_reduction <add>, %644, %cst_141 [1] : vector<2x8xf32> to vector<2xf32>
    %646 = vector.shape_cast %645 : vector<2xf32> to vector<2x1xf32>
    %647 = tpu.reciprocal %646 {approx = true} : vector<2x1xf32> -> vector<2x1xf32>
    %648 = vector.broadcast %647 : vector<2x1xf32> to vector<2x8xf32>
    %649 = arith.mulf %644, %648 : vector<2x8xf32>
    %650 = vector.shape_cast %649 : vector<2x8xf32> to vector<2x1x8xf32>
    "tpu.trace_start"() <{level = 10 : i32, message = "bql,blh->bqh"}> : () -> ()
    %cst_142 = arith.constant dense<0.000000e+00> : vector<2x1x32xf32>
    %651 = tpu.matmul %650, %255, %cst_142 {dimension_numbers = #tpu.dot_dimension_numbers<[2], [1], [1], [2], [0, 0, 0, 1, 1, 2], [0], [0]>} : vector<2x1x8xf32>, vector<2x8x32xf32>, vector<2x1x32xf32> -> vector<2x1x32xf32>
    "tpu.trace_stop"() : () -> ()
    %652 = vector.shape_cast %651 : vector<2x1x32xf32> to vector<2x32xf32>
    %cst_143 = arith.constant dense<0.000000e+00> : vector<2x32xf32>
    %653 = tpu.matmul %652, %269, %cst_143 {dimension_numbers = #tpu.dot_dimension_numbers<[1], [0], [0], [1], [0, 0, 1, 1], [], []>} : vector<2x32xf32>, vector<32x32xf32>, vector<2x32xf32> -> vector<2x32xf32>
    %cst_144 = arith.constant dense<0.000000e+00> : vector<2x32xf32>
    %654 = tpu.matmul %627, %270, %cst_144 {dimension_numbers = #tpu.dot_dimension_numbers<[1], [0], [0], [1], [0, 0, 1, 1], [], []>} : vector<2x32xf32>, vector<32x32xf32>, vector<2x32xf32> -> vector<2x32xf32>
    %655 = arith.addf %653, %654 : vector<2x32xf32>
    %656 = arith.addf %655, %273 : vector<2x32xf32>
    %657 = math.tanh %656 : vector<2x32xf32>
    %658 = arith.mulf %649, %591 : vector<2x8xf32>
    %cst_145 = arith.constant dense<0xFF800000> : vector<2xf32>
    %659 = vector.multi_reduction <maximumf>, %658, %cst_145 [1] : vector<2x8xf32> to vector<2xf32>
    %660 = vector.shape_cast %659 : vector<2xf32> to vector<2x1xf32>
    %661 = vector.broadcast %660 : vector<2x1xf32> to vector<2x8xf32>
    %662 = arith.cmpf oeq, %658, %661 : vector<2x8xf32>
    %c8_i32_146 = arith.constant 8 : i32
    %663 = vector.broadcast %c8_i32_146 : i32 to vector<2x8xi32>
    %664 = arith.select %662, %0, %663 : vector<2x8xi1>, vector<2x8xi32>
    %cst_147 = arith.constant dense<2147483647> : vector<2xi32>
    %665 = vector.multi_reduction <minsi>, %664, %cst_147 [1] : vector<2x8xi32> to vector<2xi32>
    %666 = vector.shape_cast %665 : vector<2xi32> to vector<2x1xi32>
    %667 = vector.broadcast %666 : vector<2x1xi32> to vector<2x8xi32>
    %668 = arith.cmpi eq, %0, %667 : vector<2x8xi32>
    %669 = arith.extui %668 : vector<2x8xi1> to vector<2x8xi32>
    %670 = arith.sitofp %669 : vector<2x8xi32> to vector<2x8xf32>
    %cst_148 = arith.constant 1.000000e+00 : f32
    %671 = vector.broadcast %cst_148 : f32 to vector<2x8xf32>
    %672 = arith.subf %671, %670 : vector<2x8xf32>
    %673 = arith.mulf %591, %672 : vector<2x8xf32>
    %674 = vector.shape_cast %670 : vector<2x8xf32> to vector<2x1x8xf32>
    "tpu.trace_start"() <{level = 10 : i32, message = "bql,ble->bqe"}> : () -> ()
    %cst_149 = arith.constant dense<0.000000e+00> : vector<2x1x32xf32>
    %675 = tpu.matmul %674, %14, %cst_149 {dimension_numbers = #tpu.dot_dimension_numbers<[2], [1], [1], [2], [0, 0, 0, 1, 1, 2], [0], [0]>} : vector<2x1x8xf32>, vector<2x8x32xf32>, vector<2x1x32xf32> -> vector<2x1x32xf32>
    "tpu.trace_stop"() : () -> ()
    %676 = vector.shape_cast %675 : vector<2x1x32xf32> to vector<2x32xf32>
    %c4_i32_150 = arith.constant 4 : i32
    %677 = vector.broadcast %c4_i32_150 : i32 to vector<1x8x1xi32>
    %678 = arith.cmpi eq, %1, %677 : vector<1x8x1xi32>
    %679 = vector.shape_cast %649 : vector<2x8xf32> to vector<2x1x8xf32>
    %680 = vector.shape_cast %678 : vector<1x8x1xi1> to vector<1x8x1xi1>
    %681 = vector.broadcast %680 : vector<1x8x1xi1> to vector<2x8x8xi1>
    %682 = vector.shape_cast %679 : vector<2x1x8xf32> to vector<2x1x8xf32>
    %683 = vector.broadcast %682 : vector<2x1x8xf32> to vector<2x8x8xf32>
    %684 = arith.select %681, %683, %602 : vector<2x8x8xi1>, vector<2x8x8xf32>
    %c4_i32_151 = arith.constant 4 : i32
    %685 = vector.broadcast %c4_i32_151 : i32 to vector<2x8xi32>
    %686 = arith.cmpi eq, %0, %685 : vector<2x8xi32>
    %687 = vector.shape_cast %666 : vector<2x1xi32> to vector<2x1xi32>
    %688 = vector.broadcast %687 : vector<2x1xi32> to vector<2x8xi32>
    %689 = arith.select %686, %688, %607 : vector<2x8xi1>, vector<2x8xi32>
    %cst_152 = arith.constant dense<0.000000e+00> : vector<2x128xf32>
    %690 = tpu.matmul %676, %256, %cst_152 {dimension_numbers = #tpu.dot_dimension_numbers<[1], [0], [0], [1], [0, 0, 1, 1], [], []>} : vector<2x32xf32>, vector<32x128xf32>, vector<2x128xf32> -> vector<2x128xf32>
    %cst_153 = arith.constant dense<0.000000e+00> : vector<2x128xf32>
    %691 = tpu.matmul %657, %257, %cst_153 {dimension_numbers = #tpu.dot_dimension_numbers<[1], [0], [0], [1], [0, 0, 1, 1], [], []>} : vector<2x32xf32>, vector<32x128xf32>, vector<2x128xf32> -> vector<2x128xf32>
    %692 = arith.addf %690, %691 : vector<2x128xf32>
    %693 = arith.addf %692, %260 : vector<2x128xf32>
    %694 = math.tanh %693 : vector<2x128xf32>
    %695 = arith.negf %693 : vector<2x128xf32>
    %696 = math.exp %695 : vector<2x128xf32>
    %cst_154 = arith.constant 1.000000e+00 : f32
    %697 = vector.broadcast %cst_154 : f32 to vector<2x128xf32>
    %698 = arith.addf %697, %696 : vector<2x128xf32>
    %699 = arith.divf %697, %698 : vector<2x128xf32>
    %700 = arith.select %7, %694, %699 : vector<2x128xi1>, vector<2x128xf32>
    %701 = vector.extract_strided_slice %700 {offsets = [0, 0], sizes = [2, 32], strides = [1, 1]} : vector<2x128xf32> to vector<2x32xf32>
    %702 = vector.extract_strided_slice %700 {offsets = [0, 32], sizes = [2, 32], strides = [1, 1]} : vector<2x128xf32> to vector<2x32xf32>
    %703 = vector.extract_strided_slice %700 {offsets = [0, 64], sizes = [2, 32], strides = [1, 1]} : vector<2x128xf32> to vector<2x32xf32>
    %704 = vector.extract_strided_slice %700 {offsets = [0, 96], sizes = [2, 32], strides = [1, 1]} : vector<2x128xf32> to vector<2x32xf32>
    %705 = arith.mulf %702, %625 : vector<2x32xf32>
    %706 = arith.mulf %701, %703 : vector<2x32xf32>
    %707 = arith.addf %705, %706 : vector<2x32xf32>
    %708 = math.tanh %707 : vector<2x32xf32>
    %709 = arith.mulf %704, %708 : vector<2x32xf32>
    %cst_155 = arith.constant dense<0.000000e+00> : vector<2x32xf32>
    %710 = tpu.matmul %709, %261, %cst_155 {dimension_numbers = #tpu.dot_dimension_numbers<[1], [0], [0], [1], [0, 0, 1, 1], [], []>} : vector<2x32xf32>, vector<32x32xf32>, vector<2x32xf32> -> vector<2x32xf32>
    %711 = arith.addf %710, %264 : vector<2x32xf32>
    %712 = vector.shape_cast %711 : vector<2x32xf32> to vector<2x1x32xf32>
    %713 = vector.broadcast %712 : vector<2x1x32xf32> to vector<2x8x32xf32>
    %714 = arith.addf %713, %255 : vector<2x8x32xf32>
    %715 = math.tanh %714 : vector<2x8x32xf32>
    %716 = arith.mulf %715, %268 : vector<2x8x32xf32>
    %cst_156 = arith.constant dense<0.000000e+00> : vector<2x8xf32>
    %717 = vector.multi_reduction <add>, %716, %cst_156 [2] : vector<2x8x32xf32> to vector<2x8xf32>
    %cst_157 = arith.constant 0.000000e+00 : f32
    %718 = vector.broadcast %cst_157 : f32 to vector<2x8xf32>
    %719 = arith.cmpf ogt, %673, %718 : vector<2x8xf32>
    %cst_158 = arith.constant -1.000000e+30 : f32
    %720 = vector.broadcast %cst_158 : f32 to vector<2x8xf32>
    %721 = arith.select %719, %717, %720 : vector<2x8xi1>, vector<2x8xf32>
    %cst_159 = arith.constant dense<0xFF800000> : vector<2xf32>
    %722 = vector.multi_reduction <maximumf>, %721, %cst_159 [1] : vector<2x8xf32> to vector<2xf32>
    %723 = vector.shape_cast %722 : vector<2xf32> to vector<2x1xf32>
    %724 = vector.broadcast %723 : vector<2x1xf32> to vector<2x8xf32>
    %725 = arith.subf %721, %724 : vector<2x8xf32>
    %726 = math.exp %725 : vector<2x8xf32>
    %cst_160 = arith.constant dense<0.000000e+00> : vector<2xf32>
    %727 = vector.multi_reduction <add>, %726, %cst_160 [1] : vector<2x8xf32> to vector<2xf32>
    %728 = vector.shape_cast %727 : vector<2xf32> to vector<2x1xf32>
    %729 = tpu.reciprocal %728 {approx = true} : vector<2x1xf32> -> vector<2x1xf32>
    %730 = vector.broadcast %729 : vector<2x1xf32> to vector<2x8xf32>
    %731 = arith.mulf %726, %730 : vector<2x8xf32>
    %732 = vector.shape_cast %731 : vector<2x8xf32> to vector<2x1x8xf32>
    "tpu.trace_start"() <{level = 10 : i32, message = "bql,blh->bqh"}> : () -> ()
    %cst_161 = arith.constant dense<0.000000e+00> : vector<2x1x32xf32>
    %733 = tpu.matmul %732, %255, %cst_161 {dimension_numbers = #tpu.dot_dimension_numbers<[2], [1], [1], [2], [0, 0, 0, 1, 1, 2], [0], [0]>} : vector<2x1x8xf32>, vector<2x8x32xf32>, vector<2x1x32xf32> -> vector<2x1x32xf32>
    "tpu.trace_stop"() : () -> ()
    %734 = vector.shape_cast %733 : vector<2x1x32xf32> to vector<2x32xf32>
    %cst_162 = arith.constant dense<0.000000e+00> : vector<2x32xf32>
    %735 = tpu.matmul %734, %269, %cst_162 {dimension_numbers = #tpu.dot_dimension_numbers<[1], [0], [0], [1], [0, 0, 1, 1], [], []>} : vector<2x32xf32>, vector<32x32xf32>, vector<2x32xf32> -> vector<2x32xf32>
    %cst_163 = arith.constant dense<0.000000e+00> : vector<2x32xf32>
    %736 = tpu.matmul %709, %270, %cst_163 {dimension_numbers = #tpu.dot_dimension_numbers<[1], [0], [0], [1], [0, 0, 1, 1], [], []>} : vector<2x32xf32>, vector<32x32xf32>, vector<2x32xf32> -> vector<2x32xf32>
    %737 = arith.addf %735, %736 : vector<2x32xf32>
    %738 = arith.addf %737, %273 : vector<2x32xf32>
    %739 = math.tanh %738 : vector<2x32xf32>
    %740 = arith.mulf %731, %673 : vector<2x8xf32>
    %cst_164 = arith.constant dense<0xFF800000> : vector<2xf32>
    %741 = vector.multi_reduction <maximumf>, %740, %cst_164 [1] : vector<2x8xf32> to vector<2xf32>
    %742 = vector.shape_cast %741 : vector<2xf32> to vector<2x1xf32>
    %743 = vector.broadcast %742 : vector<2x1xf32> to vector<2x8xf32>
    %744 = arith.cmpf oeq, %740, %743 : vector<2x8xf32>
    %c8_i32_165 = arith.constant 8 : i32
    %745 = vector.broadcast %c8_i32_165 : i32 to vector<2x8xi32>
    %746 = arith.select %744, %0, %745 : vector<2x8xi1>, vector<2x8xi32>
    %cst_166 = arith.constant dense<2147483647> : vector<2xi32>
    %747 = vector.multi_reduction <minsi>, %746, %cst_166 [1] : vector<2x8xi32> to vector<2xi32>
    %748 = vector.shape_cast %747 : vector<2xi32> to vector<2x1xi32>
    %749 = vector.broadcast %748 : vector<2x1xi32> to vector<2x8xi32>
    %750 = arith.cmpi eq, %0, %749 : vector<2x8xi32>
    %751 = arith.extui %750 : vector<2x8xi1> to vector<2x8xi32>
    %752 = arith.sitofp %751 : vector<2x8xi32> to vector<2x8xf32>
    %cst_167 = arith.constant 1.000000e+00 : f32
    %753 = vector.broadcast %cst_167 : f32 to vector<2x8xf32>
    %754 = arith.subf %753, %752 : vector<2x8xf32>
    %755 = arith.mulf %673, %754 : vector<2x8xf32>
    %756 = vector.shape_cast %752 : vector<2x8xf32> to vector<2x1x8xf32>
    "tpu.trace_start"() <{level = 10 : i32, message = "bql,ble->bqe"}> : () -> ()
    %cst_168 = arith.constant dense<0.000000e+00> : vector<2x1x32xf32>
    %757 = tpu.matmul %756, %14, %cst_168 {dimension_numbers = #tpu.dot_dimension_numbers<[2], [1], [1], [2], [0, 0, 0, 1, 1, 2], [0], [0]>} : vector<2x1x8xf32>, vector<2x8x32xf32>, vector<2x1x32xf32> -> vector<2x1x32xf32>
    "tpu.trace_stop"() : () -> ()
    %758 = vector.shape_cast %757 : vector<2x1x32xf32> to vector<2x32xf32>
    %c5_i32_169 = arith.constant 5 : i32
    %759 = vector.broadcast %c5_i32_169 : i32 to vector<1x8x1xi32>
    %760 = arith.cmpi eq, %1, %759 : vector<1x8x1xi32>
    %761 = vector.shape_cast %731 : vector<2x8xf32> to vector<2x1x8xf32>
    %762 = vector.shape_cast %760 : vector<1x8x1xi1> to vector<1x8x1xi1>
    %763 = vector.broadcast %762 : vector<1x8x1xi1> to vector<2x8x8xi1>
    %764 = vector.shape_cast %761 : vector<2x1x8xf32> to vector<2x1x8xf32>
    %765 = vector.broadcast %764 : vector<2x1x8xf32> to vector<2x8x8xf32>
    %766 = arith.select %763, %765, %684 : vector<2x8x8xi1>, vector<2x8x8xf32>
    %c5_i32_170 = arith.constant 5 : i32
    %767 = vector.broadcast %c5_i32_170 : i32 to vector<2x8xi32>
    %768 = arith.cmpi eq, %0, %767 : vector<2x8xi32>
    %769 = vector.shape_cast %748 : vector<2x1xi32> to vector<2x1xi32>
    %770 = vector.broadcast %769 : vector<2x1xi32> to vector<2x8xi32>
    %771 = arith.select %768, %770, %689 : vector<2x8xi1>, vector<2x8xi32>
    %cst_171 = arith.constant dense<0.000000e+00> : vector<2x128xf32>
    %772 = tpu.matmul %758, %256, %cst_171 {dimension_numbers = #tpu.dot_dimension_numbers<[1], [0], [0], [1], [0, 0, 1, 1], [], []>} : vector<2x32xf32>, vector<32x128xf32>, vector<2x128xf32> -> vector<2x128xf32>
    %cst_172 = arith.constant dense<0.000000e+00> : vector<2x128xf32>
    %773 = tpu.matmul %739, %257, %cst_172 {dimension_numbers = #tpu.dot_dimension_numbers<[1], [0], [0], [1], [0, 0, 1, 1], [], []>} : vector<2x32xf32>, vector<32x128xf32>, vector<2x128xf32> -> vector<2x128xf32>
    %774 = arith.addf %772, %773 : vector<2x128xf32>
    %775 = arith.addf %774, %260 : vector<2x128xf32>
    %776 = math.tanh %775 : vector<2x128xf32>
    %777 = arith.negf %775 : vector<2x128xf32>
    %778 = math.exp %777 : vector<2x128xf32>
    %cst_173 = arith.constant 1.000000e+00 : f32
    %779 = vector.broadcast %cst_173 : f32 to vector<2x128xf32>
    %780 = arith.addf %779, %778 : vector<2x128xf32>
    %781 = arith.divf %779, %780 : vector<2x128xf32>
    %782 = arith.select %7, %776, %781 : vector<2x128xi1>, vector<2x128xf32>
    %783 = vector.extract_strided_slice %782 {offsets = [0, 0], sizes = [2, 32], strides = [1, 1]} : vector<2x128xf32> to vector<2x32xf32>
    %784 = vector.extract_strided_slice %782 {offsets = [0, 32], sizes = [2, 32], strides = [1, 1]} : vector<2x128xf32> to vector<2x32xf32>
    %785 = vector.extract_strided_slice %782 {offsets = [0, 64], sizes = [2, 32], strides = [1, 1]} : vector<2x128xf32> to vector<2x32xf32>
    %786 = vector.extract_strided_slice %782 {offsets = [0, 96], sizes = [2, 32], strides = [1, 1]} : vector<2x128xf32> to vector<2x32xf32>
    %787 = arith.mulf %784, %707 : vector<2x32xf32>
    %788 = arith.mulf %783, %785 : vector<2x32xf32>
    %789 = arith.addf %787, %788 : vector<2x32xf32>
    %790 = math.tanh %789 : vector<2x32xf32>
    %791 = arith.mulf %786, %790 : vector<2x32xf32>
    %cst_174 = arith.constant dense<0.000000e+00> : vector<2x32xf32>
    %792 = tpu.matmul %791, %261, %cst_174 {dimension_numbers = #tpu.dot_dimension_numbers<[1], [0], [0], [1], [0, 0, 1, 1], [], []>} : vector<2x32xf32>, vector<32x32xf32>, vector<2x32xf32> -> vector<2x32xf32>
    %793 = arith.addf %792, %264 : vector<2x32xf32>
    %794 = vector.shape_cast %793 : vector<2x32xf32> to vector<2x1x32xf32>
    %795 = vector.broadcast %794 : vector<2x1x32xf32> to vector<2x8x32xf32>
    %796 = arith.addf %795, %255 : vector<2x8x32xf32>
    %797 = math.tanh %796 : vector<2x8x32xf32>
    %798 = arith.mulf %797, %268 : vector<2x8x32xf32>
    %cst_175 = arith.constant dense<0.000000e+00> : vector<2x8xf32>
    %799 = vector.multi_reduction <add>, %798, %cst_175 [2] : vector<2x8x32xf32> to vector<2x8xf32>
    %cst_176 = arith.constant 0.000000e+00 : f32
    %800 = vector.broadcast %cst_176 : f32 to vector<2x8xf32>
    %801 = arith.cmpf ogt, %755, %800 : vector<2x8xf32>
    %cst_177 = arith.constant -1.000000e+30 : f32
    %802 = vector.broadcast %cst_177 : f32 to vector<2x8xf32>
    %803 = arith.select %801, %799, %802 : vector<2x8xi1>, vector<2x8xf32>
    %cst_178 = arith.constant dense<0xFF800000> : vector<2xf32>
    %804 = vector.multi_reduction <maximumf>, %803, %cst_178 [1] : vector<2x8xf32> to vector<2xf32>
    %805 = vector.shape_cast %804 : vector<2xf32> to vector<2x1xf32>
    %806 = vector.broadcast %805 : vector<2x1xf32> to vector<2x8xf32>
    %807 = arith.subf %803, %806 : vector<2x8xf32>
    %808 = math.exp %807 : vector<2x8xf32>
    %cst_179 = arith.constant dense<0.000000e+00> : vector<2xf32>
    %809 = vector.multi_reduction <add>, %808, %cst_179 [1] : vector<2x8xf32> to vector<2xf32>
    %810 = vector.shape_cast %809 : vector<2xf32> to vector<2x1xf32>
    %811 = tpu.reciprocal %810 {approx = true} : vector<2x1xf32> -> vector<2x1xf32>
    %812 = vector.broadcast %811 : vector<2x1xf32> to vector<2x8xf32>
    %813 = arith.mulf %808, %812 : vector<2x8xf32>
    %814 = vector.shape_cast %813 : vector<2x8xf32> to vector<2x1x8xf32>
    "tpu.trace_start"() <{level = 10 : i32, message = "bql,blh->bqh"}> : () -> ()
    %cst_180 = arith.constant dense<0.000000e+00> : vector<2x1x32xf32>
    %815 = tpu.matmul %814, %255, %cst_180 {dimension_numbers = #tpu.dot_dimension_numbers<[2], [1], [1], [2], [0, 0, 0, 1, 1, 2], [0], [0]>} : vector<2x1x8xf32>, vector<2x8x32xf32>, vector<2x1x32xf32> -> vector<2x1x32xf32>
    "tpu.trace_stop"() : () -> ()
    %816 = vector.shape_cast %815 : vector<2x1x32xf32> to vector<2x32xf32>
    %cst_181 = arith.constant dense<0.000000e+00> : vector<2x32xf32>
    %817 = tpu.matmul %816, %269, %cst_181 {dimension_numbers = #tpu.dot_dimension_numbers<[1], [0], [0], [1], [0, 0, 1, 1], [], []>} : vector<2x32xf32>, vector<32x32xf32>, vector<2x32xf32> -> vector<2x32xf32>
    %cst_182 = arith.constant dense<0.000000e+00> : vector<2x32xf32>
    %818 = tpu.matmul %791, %270, %cst_182 {dimension_numbers = #tpu.dot_dimension_numbers<[1], [0], [0], [1], [0, 0, 1, 1], [], []>} : vector<2x32xf32>, vector<32x32xf32>, vector<2x32xf32> -> vector<2x32xf32>
    %819 = arith.addf %817, %818 : vector<2x32xf32>
    %820 = arith.addf %819, %273 : vector<2x32xf32>
    %821 = math.tanh %820 : vector<2x32xf32>
    %822 = arith.mulf %813, %755 : vector<2x8xf32>
    %cst_183 = arith.constant dense<0xFF800000> : vector<2xf32>
    %823 = vector.multi_reduction <maximumf>, %822, %cst_183 [1] : vector<2x8xf32> to vector<2xf32>
    %824 = vector.shape_cast %823 : vector<2xf32> to vector<2x1xf32>
    %825 = vector.broadcast %824 : vector<2x1xf32> to vector<2x8xf32>
    %826 = arith.cmpf oeq, %822, %825 : vector<2x8xf32>
    %c8_i32_184 = arith.constant 8 : i32
    %827 = vector.broadcast %c8_i32_184 : i32 to vector<2x8xi32>
    %828 = arith.select %826, %0, %827 : vector<2x8xi1>, vector<2x8xi32>
    %cst_185 = arith.constant dense<2147483647> : vector<2xi32>
    %829 = vector.multi_reduction <minsi>, %828, %cst_185 [1] : vector<2x8xi32> to vector<2xi32>
    %830 = vector.shape_cast %829 : vector<2xi32> to vector<2x1xi32>
    %831 = vector.broadcast %830 : vector<2x1xi32> to vector<2x8xi32>
    %832 = arith.cmpi eq, %0, %831 : vector<2x8xi32>
    %833 = arith.extui %832 : vector<2x8xi1> to vector<2x8xi32>
    %834 = arith.sitofp %833 : vector<2x8xi32> to vector<2x8xf32>
    %cst_186 = arith.constant 1.000000e+00 : f32
    %835 = vector.broadcast %cst_186 : f32 to vector<2x8xf32>
    %836 = arith.subf %835, %834 : vector<2x8xf32>
    %837 = arith.mulf %755, %836 : vector<2x8xf32>
    %838 = vector.shape_cast %834 : vector<2x8xf32> to vector<2x1x8xf32>
    "tpu.trace_start"() <{level = 10 : i32, message = "bql,ble->bqe"}> : () -> ()
    %cst_187 = arith.constant dense<0.000000e+00> : vector<2x1x32xf32>
    %839 = tpu.matmul %838, %14, %cst_187 {dimension_numbers = #tpu.dot_dimension_numbers<[2], [1], [1], [2], [0, 0, 0, 1, 1, 2], [0], [0]>} : vector<2x1x8xf32>, vector<2x8x32xf32>, vector<2x1x32xf32> -> vector<2x1x32xf32>
    "tpu.trace_stop"() : () -> ()
    %840 = vector.shape_cast %839 : vector<2x1x32xf32> to vector<2x32xf32>
    %c6_i32_188 = arith.constant 6 : i32
    %841 = vector.broadcast %c6_i32_188 : i32 to vector<1x8x1xi32>
    %842 = arith.cmpi eq, %1, %841 : vector<1x8x1xi32>
    %843 = vector.shape_cast %813 : vector<2x8xf32> to vector<2x1x8xf32>
    %844 = vector.shape_cast %842 : vector<1x8x1xi1> to vector<1x8x1xi1>
    %845 = vector.broadcast %844 : vector<1x8x1xi1> to vector<2x8x8xi1>
    %846 = vector.shape_cast %843 : vector<2x1x8xf32> to vector<2x1x8xf32>
    %847 = vector.broadcast %846 : vector<2x1x8xf32> to vector<2x8x8xf32>
    %848 = arith.select %845, %847, %766 : vector<2x8x8xi1>, vector<2x8x8xf32>
    %c6_i32_189 = arith.constant 6 : i32
    %849 = vector.broadcast %c6_i32_189 : i32 to vector<2x8xi32>
    %850 = arith.cmpi eq, %0, %849 : vector<2x8xi32>
    %851 = vector.shape_cast %830 : vector<2x1xi32> to vector<2x1xi32>
    %852 = vector.broadcast %851 : vector<2x1xi32> to vector<2x8xi32>
    %853 = arith.select %850, %852, %771 : vector<2x8xi1>, vector<2x8xi32>
    %cst_190 = arith.constant dense<0.000000e+00> : vector<2x128xf32>
    %854 = tpu.matmul %840, %256, %cst_190 {dimension_numbers = #tpu.dot_dimension_numbers<[1], [0], [0], [1], [0, 0, 1, 1], [], []>} : vector<2x32xf32>, vector<32x128xf32>, vector<2x128xf32> -> vector<2x128xf32>
    %cst_191 = arith.constant dense<0.000000e+00> : vector<2x128xf32>
    %855 = tpu.matmul %821, %257, %cst_191 {dimension_numbers = #tpu.dot_dimension_numbers<[1], [0], [0], [1], [0, 0, 1, 1], [], []>} : vector<2x32xf32>, vector<32x128xf32>, vector<2x128xf32> -> vector<2x128xf32>
    %856 = arith.addf %854, %855 : vector<2x128xf32>
    %857 = arith.addf %856, %260 : vector<2x128xf32>
    %858 = math.tanh %857 : vector<2x128xf32>
    %859 = arith.negf %857 : vector<2x128xf32>
    %860 = math.exp %859 : vector<2x128xf32>
    %cst_192 = arith.constant 1.000000e+00 : f32
    %861 = vector.broadcast %cst_192 : f32 to vector<2x128xf32>
    %862 = arith.addf %861, %860 : vector<2x128xf32>
    %863 = arith.divf %861, %862 : vector<2x128xf32>
    %864 = arith.select %7, %858, %863 : vector<2x128xi1>, vector<2x128xf32>
    %865 = vector.extract_strided_slice %864 {offsets = [0, 0], sizes = [2, 32], strides = [1, 1]} : vector<2x128xf32> to vector<2x32xf32>
    %866 = vector.extract_strided_slice %864 {offsets = [0, 32], sizes = [2, 32], strides = [1, 1]} : vector<2x128xf32> to vector<2x32xf32>
    %867 = vector.extract_strided_slice %864 {offsets = [0, 64], sizes = [2, 32], strides = [1, 1]} : vector<2x128xf32> to vector<2x32xf32>
    %868 = vector.extract_strided_slice %864 {offsets = [0, 96], sizes = [2, 32], strides = [1, 1]} : vector<2x128xf32> to vector<2x32xf32>
    %869 = arith.mulf %866, %789 : vector<2x32xf32>
    %870 = arith.mulf %865, %867 : vector<2x32xf32>
    %871 = arith.addf %869, %870 : vector<2x32xf32>
    %872 = math.tanh %871 : vector<2x32xf32>
    %873 = arith.mulf %868, %872 : vector<2x32xf32>
    %cst_193 = arith.constant dense<0.000000e+00> : vector<2x32xf32>
    %874 = tpu.matmul %873, %261, %cst_193 {dimension_numbers = #tpu.dot_dimension_numbers<[1], [0], [0], [1], [0, 0, 1, 1], [], []>} : vector<2x32xf32>, vector<32x32xf32>, vector<2x32xf32> -> vector<2x32xf32>
    %875 = arith.addf %874, %264 : vector<2x32xf32>
    %876 = vector.shape_cast %875 : vector<2x32xf32> to vector<2x1x32xf32>
    %877 = vector.broadcast %876 : vector<2x1x32xf32> to vector<2x8x32xf32>
    %878 = arith.addf %877, %255 : vector<2x8x32xf32>
    %879 = math.tanh %878 : vector<2x8x32xf32>
    %880 = arith.mulf %879, %268 : vector<2x8x32xf32>
    %cst_194 = arith.constant dense<0.000000e+00> : vector<2x8xf32>
    %881 = vector.multi_reduction <add>, %880, %cst_194 [2] : vector<2x8x32xf32> to vector<2x8xf32>
    %cst_195 = arith.constant 0.000000e+00 : f32
    %882 = vector.broadcast %cst_195 : f32 to vector<2x8xf32>
    %883 = arith.cmpf ogt, %837, %882 : vector<2x8xf32>
    %cst_196 = arith.constant -1.000000e+30 : f32
    %884 = vector.broadcast %cst_196 : f32 to vector<2x8xf32>
    %885 = arith.select %883, %881, %884 : vector<2x8xi1>, vector<2x8xf32>
    %cst_197 = arith.constant dense<0xFF800000> : vector<2xf32>
    %886 = vector.multi_reduction <maximumf>, %885, %cst_197 [1] : vector<2x8xf32> to vector<2xf32>
    %887 = vector.shape_cast %886 : vector<2xf32> to vector<2x1xf32>
    %888 = vector.broadcast %887 : vector<2x1xf32> to vector<2x8xf32>
    %889 = arith.subf %885, %888 : vector<2x8xf32>
    %890 = math.exp %889 : vector<2x8xf32>
    %cst_198 = arith.constant dense<0.000000e+00> : vector<2xf32>
    %891 = vector.multi_reduction <add>, %890, %cst_198 [1] : vector<2x8xf32> to vector<2xf32>
    %892 = vector.shape_cast %891 : vector<2xf32> to vector<2x1xf32>
    %893 = tpu.reciprocal %892 {approx = true} : vector<2x1xf32> -> vector<2x1xf32>
    %894 = vector.broadcast %893 : vector<2x1xf32> to vector<2x8xf32>
    %895 = arith.mulf %890, %894 : vector<2x8xf32>
    %896 = arith.mulf %895, %837 : vector<2x8xf32>
    %cst_199 = arith.constant dense<0xFF800000> : vector<2xf32>
    %897 = vector.multi_reduction <maximumf>, %896, %cst_199 [1] : vector<2x8xf32> to vector<2xf32>
    %898 = vector.shape_cast %897 : vector<2xf32> to vector<2x1xf32>
    %899 = vector.broadcast %898 : vector<2x1xf32> to vector<2x8xf32>
    %900 = arith.cmpf oeq, %896, %899 : vector<2x8xf32>
    %c8_i32_200 = arith.constant 8 : i32
    %901 = vector.broadcast %c8_i32_200 : i32 to vector<2x8xi32>
    %902 = arith.select %900, %0, %901 : vector<2x8xi1>, vector<2x8xi32>
    %cst_201 = arith.constant dense<2147483647> : vector<2xi32>
    %903 = vector.multi_reduction <minsi>, %902, %cst_201 [1] : vector<2x8xi32> to vector<2xi32>
    %904 = vector.shape_cast %903 : vector<2xi32> to vector<2x1xi32>
    %c7_i32_202 = arith.constant 7 : i32
    %905 = vector.broadcast %c7_i32_202 : i32 to vector<1x8x1xi32>
    %906 = arith.cmpi eq, %1, %905 : vector<1x8x1xi32>
    %907 = vector.shape_cast %895 : vector<2x8xf32> to vector<2x1x8xf32>
    %908 = vector.shape_cast %906 : vector<1x8x1xi1> to vector<1x8x1xi1>
    %909 = vector.broadcast %908 : vector<1x8x1xi1> to vector<2x8x8xi1>
    %910 = vector.shape_cast %907 : vector<2x1x8xf32> to vector<2x1x8xf32>
    %911 = vector.broadcast %910 : vector<2x1x8xf32> to vector<2x8x8xf32>
    %912 = arith.select %909, %911, %848 : vector<2x8x8xi1>, vector<2x8x8xf32>
    %c7_i32_203 = arith.constant 7 : i32
    %913 = vector.broadcast %c7_i32_203 : i32 to vector<2x8xi32>
    %914 = arith.cmpi eq, %0, %913 : vector<2x8xi32>
    %915 = vector.shape_cast %904 : vector<2x1xi32> to vector<2x1xi32>
    %916 = vector.broadcast %915 : vector<2x1xi32> to vector<2x8xi32>
    %917 = arith.select %914, %916, %853 : vector<2x8xi1>, vector<2x8xi32>
    %c0_204 = arith.constant 0 : index
    %c0_205 = arith.constant 0 : index
    %c0_206 = arith.constant 0 : index
    %918 = vector.load %arg17[%c0_204, %c0_205, %c0_206] : memref<2x8x8xf32, #tpu.memory_space<vmem>>, vector<2x8x8xf32>
    tpu.vector_store %arg17[%c0_204, %c0_205, %c0_206], %912 {strides = array<i32>} : memref<2x8x8xf32, #tpu.memory_space<vmem>>, vector<2x8x8xf32>,
    %c0_207 = arith.constant 0 : index
    %c0_208 = arith.constant 0 : index
    %919 = vector.load %arg18[%c0_207, %c0_208] : memref<2x8xi32, #tpu.memory_space<vmem>>, vector<2x8xi32>
    tpu.vector_store %arg18[%c0_207, %c0_208], %917 {strides = array<i32>} : memref<2x8xi32, #tpu.memory_space<vmem>>, vector<2x8xi32>,
    return
  }
}

</mosaic_0001>

<llo_original>
// kernel: pointer_net_forward.1
$region0: #{pointer_net_forward.1}
  #allocation0 [shape = 'u32[]', space=smem, size = 0x4, offset = 0x4, fixed_abs, tag = 'smem constant byte address 0x4 - core index']
  #allocation1 [shape = 'u32[144,128]{1,0:T(1,128)}', space=vmem, size = 0x12000, scoped, tag = 'internal scratch']
  %s0 = inlined_call_operand.vmem [shape: f32[16,2], index: 0, kind: input, shape index: {}]
  %s1 = inlined_call_operand.vmem [shape: f32[2,32], index: 1, kind: input, shape index: {}]
  %s2 = inlined_call_operand.hbm [shape: f32[1,32], index: 2, kind: input, shape index: {}]
  %s3 = inlined_call_operand.vmem [shape: f32[32,128], index: 3, kind: input, shape index: {}]
  %s4 = inlined_call_operand.vmem [shape: f32[32,128], index: 4, kind: input, shape index: {}]
  %s5 = inlined_call_operand.vmem [shape: f32[1,128], index: 5, kind: input, shape index: {}]
  %s6 = inlined_call_operand.vmem [shape: f32[32,128], index: 6, kind: input, shape index: {}]
  %s7 = inlined_call_operand.vmem [shape: f32[32,128], index: 7, kind: input, shape index: {}]
  %s8 = inlined_call_operand.hbm [shape: f32[1,128], index: 8, kind: input, shape index: {}]
  %s9 = inlined_call_operand.hbm [shape: f32[32,32], index: 9, kind: input, shape index: {}]
  %s10 = inlined_call_operand.hbm [shape: f32[1,32], index: 10, kind: input, shape index: {}]
  %s11 = inlined_call_operand.hbm [shape: f32[32,32], index: 11, kind: input, shape index: {}]
  %s12 = inlined_call_operand.hbm [shape: f32[1,32], index: 12, kind: input, shape index: {}]
  %s13 = inlined_call_operand.hbm [shape: f32[1,32], index: 13, kind: input, shape index: {}]
  %s14 = inlined_call_operand.vmem [shape: f32[64,32], index: 14, kind: input, shape index: {}]
  %s15 = inlined_call_operand.vmem [shape: f32[1,32], index: 15, kind: input, shape index: {}]
  %s16 = inlined_call_operand.hbm [shape: f32[1,32], index: 16, kind: input, shape index: {}]
  %s17 = inlined_call_operand.hbm [shape: f32[2,8,8], index: 17, kind: output, shape index: {0}]
  %s18 = inlined_call_operand.hbm [shape: s32[2,8], index: 18, kind: output, shape index: {1}]
  %19 = xla_tuple %s17, %s18
  %s20 = sld [smem:[#allocation0]]
  $region118: #{pointer_net_forward.1} parent=0
    _
  %s22 = ssub.s32 1, %s20
  %s23 = scalar_select 0, %s22, %s20
  $region1: #{pointer_net_forward.1} parent=0
    #allocation2 [shape = 'u8[512]{0}', space=vmem, size = 0x400, scoped, tag = 'input window, operand 2, single buffered']
    #allocation3 [shape = 's32[1]{0}', space=sflag, size = 0x4, scoped, tag = 'scoped memory for pointer_net_forward.1']
    #allocation4 [shape = 's32[1]{0}', space=sflag, size = 0x4, scoped, tag = 'scoped memory for pointer_net_forward.1']
    #allocation5 [shape = 'u8[512]{0}', space=vmem, size = 0x400, scoped, tag = 'input window, operand 8, single buffered']
    #allocation6 [shape = 's32[1]{0}', space=sflag, size = 0x4, scoped, tag = 'scoped memory for pointer_net_forward.1']
    #allocation7 [shape = 'u8[16384]{0}', space=vmem, size = 0x4000, scoped, tag = 'input window, operand 9, single buffered']
    #allocation8 [shape = 'u8[512]{0}', space=vmem, size = 0x400, scoped, tag = 'input window, operand 10, single buffered']
    #allocation9 [shape = 's32[1]{0}', space=sflag, size = 0x4, scoped, tag = 'scoped memory for pointer_net_forward.1']
    #allocation10 [shape = 'u8[16384]{0}', space=vmem, size = 0x4000, scoped, tag = 'input window, operand 11, single buffered']
    #allocation11 [shape = 'u8[512]{0}', space=vmem, size = 0x400, scoped, tag = 'input window, operand 12, single buffered']
    #allocation12 [shape = 's32[1]{0}', space=sflag, size = 0x4, scoped, tag = 'scoped memory for pointer_net_forward.1']
    #allocation13 [shape = 'u8[512]{0}', space=vmem, size = 0x400, scoped, tag = 'input window, operand 13, single buffered']
    #allocation14 [shape = 'u8[512]{0}', space=vmem, size = 0x400, scoped, tag = 'input window, operand 16, single buffered']
    #allocation15 [shape = 's32[1]{0}', space=sflag, size = 0x4, scoped, tag = 'scoped memory for pointer_net_forward.1']
    #allocation16 [shape = 'u8[8192]{0}', space=vmem, size = 0x2000, scoped, tag = 'output window, operand 0, single buffered']
    #allocation17 [shape = 'u8[1024]{0}', space=vmem, size = 0x400, scoped, tag = 'output window, operand 1, single buffered']
    #allocation18 [shape = 's32[1]{0}', space=sflag, size = 0x4, scoped, tag = 'scoped memory for pointer_net_forward.1']
    %24 = vsyncpa [#allocation3], 0
    %25 = vsyncpa [#allocation6], 0
    %26 = vsyncpa [#allocation9], 0
    %27 = vsyncpa [#allocation12], 0
    %28 = vsyncpa [#allocation15], 0
    %29 = vsyncpa [#allocation4], 0
    %30 = vsyncpa [#allocation18], 0
    // Predicated region
    $region2: #{pointer_net_forward.1} parent=1 // pred_check
      _
    $region3: #{pointer_net_forward.1} parent=1 // pred_check_branch
      %32 = sbr.rel (0) target = $region5
    $region4: #{pointer_net_forward.1} parent=1 // pred_region
      _
    $region5: #{pointer_net_forward.1} parent=1 // pred_fallthru
      _
    // Predicated region
    $region6: #{pointer_net_forward.1} parent=1 // pred_check
      _
    $region7: #{pointer_net_forward.1} parent=1 // pred_check_branch
      %34 = sbr.rel (0) target = $region9
    $region8: #{pointer_net_forward.1} parent=1 // pred_region
      _
    $region9: #{pointer_net_forward.1} parent=1 // pred_fallthru
      _
    // Predicated region
    $region10: #{pointer_net_forward.1} parent=1 // pred_check
      _
    $region11: #{pointer_net_forward.1} parent=1 // pred_check_branch
      %36 = sbr.rel (0) target = $region13
    $region12: #{pointer_net_forward.1} parent=1 // pred_region
      %s38 = ssub.s32 16, 16
      %39 = vsyncadd [#allocation3], %s38
      %s41 = sshll.u32 [#allocation2], 4
      %s42 = int_to_ptr.vmem [resolvable:$true] %s41
      %44 = dma.hbm_to_vmem [thread:$0]  %s2, 16, %s42, [#allocation3]
    $region13: #{pointer_net_forward.1} parent=1 // pred_fallthru
      _
    // Predicated region
    $region14: #{pointer_net_forward.1} parent=1 // pred_check
      _
    $region15: #{pointer_net_forward.1} parent=1 // pred_check_branch
      %46 = sbr.rel (0) target = $region17
    $region16: #{pointer_net_forward.1} parent=1 // pred_region
      _
    $region17: #{pointer_net_forward.1} parent=1 // pred_fallthru
      _
    // Predicated region
    $region18: #{pointer_net_forward.1} parent=1 // pred_check
      _
    $region19: #{pointer_net_forward.1} parent=1 // pred_check_branch
      %48 = sbr.rel (0) target = $region21
    $region20: #{pointer_net_forward.1} parent=1 // pred_region
      _
    $region21: #{pointer_net_forward.1} parent=1 // pred_fallthru
      _
    // Predicated region
    $region22: #{pointer_net_forward.1} parent=1 // pred_check
      _
    $region23: #{pointer_net_forward.1} parent=1 // pred_check_branch
      %50 = sbr.rel (0) target = $region25
    $region24: #{pointer_net_forward.1} parent=1 // pred_region
      _
    $region25: #{pointer_net_forward.1} parent=1 // pred_fallthru
      _
    // Predicated region
    $region26: #{pointer_net_forward.1} parent=1 // pred_check
      _
    $region27: #{pointer_net_forward.1} parent=1 // pred_check_branch
      %52 = sbr.rel (0) target = $region29
    $region28: #{pointer_net_forward.1} parent=1 // pred_region
      _
    $region29: #{pointer_net_forward.1} parent=1 // pred_fallthru
      _
    // Predicated region
    $region30: #{pointer_net_forward.1} parent=1 // pred_check
      _
    $region31: #{pointer_net_forward.1} parent=1 // pred_check_branch
      %54 = sbr.rel (0) target = $region33
    $region32: #{pointer_net_forward.1} parent=1 // pred_region
      _
    $region33: #{pointer_net_forward.1} parent=1 // pred_fallthru
      _
    // Predicated region
    $region34: #{pointer_net_forward.1} parent=1 // pred_check
      _
    $region35: #{pointer_net_forward.1} parent=1 // pred_check_branch
      %56 = sbr.rel (0) target = $region37
    $region36: #{pointer_net_forward.1} parent=1 // pred_region
      %s58 = ssub.s32 16, 16
      %59 = vsyncadd [#allocation6], %s58
      %s61 = sshll.u32 [#allocation5], 4
      %s62 = int_to_ptr.vmem [resolvable:$true] %s61
      %64 = dma.hbm_to_vmem [thread:$0]  %s8, 16, %s62, [#allocation6]
    $region37: #{pointer_net_forward.1} parent=1 // pred_fallthru
      _
    // Predicated region
    $region38: #{pointer_net_forward.1} parent=1 // pred_check
      _
    $region39: #{pointer_net_forward.1} parent=1 // pred_check_branch
      %66 = sbr.rel (0) target = $region41
    $region40: #{pointer_net_forward.1} parent=1 // pred_region
      %s68 = ssub.s32 512, 512
      %69 = vsyncadd [#allocation6], %s68
      %s70 = sshll.u32 [#allocation7], 4
      %s71 = int_to_ptr.vmem [resolvable:$true] %s70
      %76 = dma.hbm_to_vmem [thread:$0]  %s9, 512, %s71, [#allocation6], 128, 128, 8
    $region41: #{pointer_net_forward.1} parent=1 // pred_fallthru
      _
    // Predicated region
    $region42: #{pointer_net_forward.1} parent=1 // pred_check
      _
    $region43: #{pointer_net_forward.1} parent=1 // pred_check_branch
      %78 = sbr.rel (0) target = $region45
    $region44: #{pointer_net_forward.1} parent=1 // pred_region
      %s80 = ssub.s32 16, 16
      %81 = vsyncadd [#allocation9], %s80
      %s83 = sshll.u32 [#allocation8], 4
      %s84 = int_to_ptr.vmem [resolvable:$true] %s83
      %86 = dma.hbm_to_vmem [thread:$0]  %s10, 16, %s84, [#allocation9]
    $region45: #{pointer_net_forward.1} parent=1 // pred_fallthru
      _
    // Predicated region
    $region46: #{pointer_net_forward.1} parent=1 // pred_check
      _
    $region47: #{pointer_net_forward.1} parent=1 // pred_check_branch
      %88 = sbr.rel (0) target = $region49
    $region48: #{pointer_net_forward.1} parent=1 // pred_region
      %s90 = ssub.s32 512, 512
      %91 = vsyncadd [#allocation9], %s90
      %s92 = sshll.u32 [#allocation10], 4
      %s93 = int_to_ptr.vmem [resolvable:$true] %s92
      %98 = dma.hbm_to_vmem [thread:$0]  %s11, 512, %s93, [#allocation9], 128, 128, 8
    $region49: #{pointer_net_forward.1} parent=1 // pred_fallthru
      _
    // Predicated region
    $region50: #{pointer_net_forward.1} parent=1 // pred_check
      _
    $region51: #{pointer_net_forward.1} parent=1 // pred_check_branch
      %100 = sbr.rel (0) target = $region53
    $region52: #{pointer_net_forward.1} parent=1 // pred_region
      %s102 = ssub.s32 16, 16
      %103 = vsyncadd [#allocation12], %s102
      %s105 = sshll.u32 [#allocation11], 4
      %s106 = int_to_ptr.vmem [resolvable:$true] %s105
      %108 = dma.hbm_to_vmem [thread:$0]  %s12, 16, %s106, [#allocation12]
    $region53: #{pointer_net_forward.1} parent=1 // pred_fallthru
      _
    // Predicated region
    $region54: #{pointer_net_forward.1} parent=1 // pred_check
      _
    $region55: #{pointer_net_forward.1} parent=1 // pred_check_branch
      %110 = sbr.rel (0) target = $region57
    $region56: #{pointer_net_forward.1} parent=1 // pred_region
      %s112 = ssub.s32 16, 16
      %113 = vsyncadd [#allocation12], %s112
      %s115 = sshll.u32 [#allocation13], 4
      %s116 = int_to_ptr.vmem [resolvable:$true] %s115
      %118 = dma.hbm_to_vmem [thread:$0]  %s13, 16, %s116, [#allocation12]
    $region57: #{pointer_net_forward.1} parent=1 // pred_fallthru
      _
    // Predicated region
    $region58: #{pointer_net_forward.1} parent=1 // pred_check
      _
    $region59: #{pointer_net_forward.1} parent=1 // pred_check_branch
      %120 = sbr.rel (0) target = $region61
    $region60: #{pointer_net_forward.1} parent=1 // pred_region
      _
    $region61: #{pointer_net_forward.1} parent=1 // pred_fallthru
      _
    // Predicated region
    $region62: #{pointer_net_forward.1} parent=1 // pred_check
      _
    $region63: #{pointer_net_forward.1} parent=1 // pred_check_branch
      %122 = sbr.rel (0) target = $region65
    $region64: #{pointer_net_forward.1} parent=1 // pred_region
      _
    $region65: #{pointer_net_forward.1} parent=1 // pred_fallthru
      _
    // Predicated region
    $region66: #{pointer_net_forward.1} parent=1 // pred_check
      _
    $region67: #{pointer_net_forward.1} parent=1 // pred_check_branch
      %124 = sbr.rel (0) target = $region69
    $region68: #{pointer_net_forward.1} parent=1 // pred_region
      %s126 = ssub.s32 16, 16
      %127 = vsyncadd [#allocation15], %s126
      %s129 = sshll.u32 [#allocation14], 4
      %s130 = int_to_ptr.vmem [resolvable:$true] %s129
      %132 = dma.hbm_to_vmem [thread:$0]  %s16, 16, %s130, [#allocation15]
    $region69: #{pointer_net_forward.1} parent=1 // pred_fallthru
      _
    // Predicated region
    $region70: #{pointer_net_forward.1} parent=1 // pred_check
      _
    $region71: #{pointer_net_forward.1} parent=1 // pred_check_branch
      %134 = sbr.rel (0) target = $region73
    $region72: #{pointer_net_forward.1} parent=1 // pred_region
      %135 = dma.done [#allocation3], 16
    $region73: #{pointer_net_forward.1} parent=1 // pred_fallthru
      _
    // Predicated region
    $region74: #{pointer_net_forward.1} parent=1 // pred_check
      _
    $region75: #{pointer_net_forward.1} parent=1 // pred_check_branch
      %137 = sbr.rel (0) target = $region77
    $region76: #{pointer_net_forward.1} parent=1 // pred_region
      %138 = dma.done [#allocation6], 16
    $region77: #{pointer_net_forward.1} parent=1 // pred_fallthru
      _
    // Predicated region
    $region78: #{pointer_net_forward.1} parent=1 // pred_check
      _
    $region79: #{pointer_net_forward.1} parent=1 // pred_check_branch
      %140 = sbr.rel (0) target = $region81
    $region80: #{pointer_net_forward.1} parent=1 // pred_region
      %141 = dma.done [#allocation6], 512
    $region81: #{pointer_net_forward.1} parent=1 // pred_fallthru
      _
    // Predicated region
    $region82: #{pointer_net_forward.1} parent=1 // pred_check
      _
    $region83: #{pointer_net_forward.1} parent=1 // pred_check_branch
      %143 = sbr.rel (0) target = $region85
    $region84: #{pointer_net_forward.1} parent=1 // pred_region
      %144 = dma.done [#allocation9], 16
    $region85: #{pointer_net_forward.1} parent=1 // pred_fallthru
      _
    // Predicated region
    $region86: #{pointer_net_forward.1} parent=1 // pred_check
      _
    $region87: #{pointer_net_forward.1} parent=1 // pred_check_branch
      %146 = sbr.rel (0) target = $region89
    $region88: #{pointer_net_forward.1} parent=1 // pred_region
      %147 = dma.done [#allocation9], 512
    $region89: #{pointer_net_forward.1} parent=1 // pred_fallthru
      _
    // Predicated region
    $region90: #{pointer_net_forward.1} parent=1 // pred_check
      _
    $region91: #{pointer_net_forward.1} parent=1 // pred_check_branch
      %149 = sbr.rel (0) target = $region93
    $region92: #{pointer_net_forward.1} parent=1 // pred_region
      %150 = dma.done [#allocation12], 16
    $region93: #{pointer_net_forward.1} parent=1 // pred_fallthru
      _
    // Predicated region
    $region94: #{pointer_net_forward.1} parent=1 // pred_check
      _
    $region95: #{pointer_net_forward.1} parent=1 // pred_check_branch
      %152 = sbr.rel (0) target = $region97
    $region96: #{pointer_net_forward.1} parent=1 // pred_region
      %153 = dma.done [#allocation12], 16
    $region97: #{pointer_net_forward.1} parent=1 // pred_fallthru
      _
    // Predicated region
    $region98: #{pointer_net_forward.1} parent=1 // pred_check
      _
    $region99: #{pointer_net_forward.1} parent=1 // pred_check_branch
      %155 = sbr.rel (0) target = $region101
    $region100: #{pointer_net_forward.1} parent=1 // pred_region
      %156 = dma.done [#allocation15], 16
    $region101: #{pointer_net_forward.1} parent=1 // pred_fallthru
      _
    %v157 = vlaneseq
    %v158 = vand.u32 %v157, 127
    %v159 = vlaneseq
    %v160 = vshrl.u32 %v159, 7
    %vm161 = vcmp.ge.s32.totalorder %v158, 64
    %vm162 = vcmp.lt.s32.totalorder %v158, 96
    %vm163 = vmand %vm161, %vm162
    %v164 = vld [vmem:[%s0] sm:$0xff]
    %v165 = vld [vmem:[%s0 + $0x8] sm:$0xff]
    %v166 = vld [vmem:[%s1] sm:$0x3]
    %v167 = vld [vmem:[#allocation2] sm:$0x1]
    %v169 = vlaneseq
    %v170 = vshrl.u32 %v169, 7
    %v171 = vsub.s32 0, %v170
    %v172 = vrot.slane %v167, %v171
    %vm174 = vcmask 15360
    %v176 = vsel %vm174, %v164, 0
    %v179 = vsel %vm174, %v165, 0
    %vm181 = vcmask 1041408
    %v183 = vsel %vm181, %v166, 0
    %185 = vmatprep.subr.mxu0 0.0
    %186 = vmatpush1.msra.mxu0 0.0
    %187 = vmatprep.subr.mxu0 0.0
    %188 = vmatpush1.msra.mxu0 0.0
    %189 = vmatprep.subr.mxu0 0.0
    %190 = vmatpush1.msra.mxu0 0.0
    %191 = vmatprep.subr.mxu0 0.0
    %192 = vmatpush1.msra.mxu0 0.0
    %193 = vmatprep.subr.mxu0 0.0
    %194 = vmatpush1.msra.mxu0 0.0
    %195 = vmatprep.subr.mxu0 0.0
    %196 = vmatpush1.msra.mxu0 0.0
    %197 = vmatprep.subr.mxu0 0.0
    %198 = vmatpush1.msra.mxu0 0.0
    %199 = vmatprep.subr.mxu0 0.0
    %200 = vmatpush1.msra.mxu0 0.0
    %201 = vmatprep.subr.mxu0 0.0
    %202 = vmatpush1.msra.mxu0 0.0
    %203 = vmatprep.subr.mxu0 0.0
    %204 = vmatpush1.msra.mxu0 0.0
    %205 = vmatprep.subr.mxu0 0.0
    %206 = vmatpush1.msra.mxu0 0.0
    %207 = vmatprep.subr.mxu0 0.0
    %208 = vmatpush1.msra.mxu0 0.0
    %209 = vmatprep.subr.mxu0 0.0
    %210 = vmatpush1.msra.mxu0 0.0
    %211 = vmatprep.subr.mxu0 0.0
    %212 = vmatpush1.msra.mxu0 0.0
    %213 = vmatprep.subr.mxu0 0.0
    %214 = vmatpush1.msra.mxu0 0.0
    %215 = vmatprep.subr.mxu0 0.0
    %216 = vmatpush1.msra.mxu0 %v183
    %217 = vmatprep.subr.mxu0 0.0
    %218 = vmatpush2.msra.mxu0 0.0
    %219 = vmatprep.subr.mxu0 0.0
    %220 = vmatpush2.msra.mxu0 0.0
    %221 = vmatprep.subr.mxu0 0.0
    %222 = vmatpush2.msra.mxu0 0.0
    %223 = vmatprep.subr.mxu0 0.0
    %224 = vmatpush2.msra.mxu0 0.0
    %225 = vmatprep.subr.mxu0 0.0
    %226 = vmatpush2.msra.mxu0 0.0
    %227 = vmatprep.subr.mxu0 0.0
    %228 = vmatpush2.msra.mxu0 0.0
    %229 = vmatprep.subr.mxu0 0.0
    %230 = vmatpush2.msra.mxu0 0.0
    %231 = vmatprep.subr.mxu0 0.0
    %232 = vmatpush2.msra.mxu0 0.0
    %233 = vmatprep.subr.mxu0 0.0
    %234 = vmatpush2.msra.mxu0 0.0
    %235 = vmatprep.subr.mxu0 0.0
    %236 = vmatpush2.msra.mxu0 0.0
    %237 = vmatprep.subr.mxu0 0.0
    %238 = vmatpush2.msra.mxu0 0.0
    %239 = vmatprep.subr.mxu0 0.0
    %240 = vmatpush2.msra.mxu0 0.0
    %241 = vmatprep.subr.mxu0 0.0
    %242 = vmatpush2.msra.mxu0 0.0
    %243 = vmatprep.subr.mxu0 0.0
    %244 = vmatpush2.msra.mxu0 0.0
    %245 = vmatprep.subr.mxu0 0.0
    %246 = vmatpush2.msra.mxu0 0.0
    %247 = vmatprep.subr.mxu0 0.0
    %248 = vmatpush2.msra.mxu0 0.0
    %249 = vmatprep.mubr.f32.mxu0 0.0
    %250 = vmatmul.mubr.f32.gmra.mxu0 %v176
    %v251 = vpop.f32.mrf.mxu0
    %v252 = vadd.f32 %v172, %v251
    %v253 = vpop.f32.mrf.mxu0
    %254 = vmatprep.mubr.f32.mxu0 0.0
    %255 = vmatmul.mubr.f32.gmra.mxu0 %v179
    %v256 = vpop.f32.mrf.mxu0
    %v257 = vadd.f32 %v172, %v256
    %v258 = vpop.f32.mrf.mxu0
    %259 = vdwg.mxu0
    %v260 = vld [vmem:[%s4] sm:$0xff]
    %v261 = vld [vmem:[%s4 + $0x8] sm:$0xff]
    %v262 = vld [vmem:[%s4 + $0x10] sm:$0xff]
    %v263 = vld [vmem:[%s4 + $0x18] sm:$0xff]
    %v264 = vld [vmem:[%s3] sm:$0xff]
    %v265 = vld [vmem:[%s3 + $0x8] sm:$0xff]
    %v266 = vld [vmem:[%s3 + $0x10] sm:$0xff]
    %v267 = vld [vmem:[%s3 + $0x18] sm:$0xff]
    %v268 = vld [vmem:[%s5] sm:$0x1]
    %v270 = vlaneseq
    %v271 = vshrl.u32 %v270, 7
    %v272 = vsub.s32 0, %v271
    %v273 = vrot.slane %v268, %v272
    %vm275 = vcmask 261120
    %v277 = vsel %vm275, %v252, 0
    %v280 = vsel %vm275, %v257, 0
    %282 = vmatprep.subr.mxu0 0.0
    %283 = vmatpush1.msra.mxu0 0.0
    %284 = vmatprep.subr.mxu0 0.0
    %285 = vmatpush1.msra.mxu0 0.0
    %286 = vmatprep.subr.mxu0 0.0
    %287 = vmatpush1.msra.mxu0 0.0
    %288 = vmatprep.subr.mxu0 0.0
    %289 = vmatpush1.msra.mxu0 0.0
    %290 = vmatprep.subr.mxu0 0.0
    %291 = vmatpush1.msra.mxu0 0.0
    %292 = vmatprep.subr.mxu0 0.0
    %293 = vmatpush1.msra.mxu0 0.0
    %294 = vmatprep.subr.mxu0 0.0
    %295 = vmatpush1.msra.mxu0 0.0
    %296 = vmatprep.subr.mxu0 0.0
    %297 = vmatpush1.msra.mxu0 0.0
    %298 = vmatprep.subr.mxu0 0.0
    %299 = vmatpush1.msra.mxu0 0.0
    %300 = vmatprep.subr.mxu0 0.0
    %301 = vmatpush1.msra.mxu0 0.0
    %302 = vmatprep.subr.mxu0 0.0
    %303 = vmatpush1.msra.mxu0 0.0
    %304 = vmatprep.subr.mxu0 0.0
    %305 = vmatpush1.msra.mxu0 0.0
    %306 = vmatprep.subr.mxu0 0.0
    %307 = vmatpush1.msra.mxu0 %v267
    %308 = vmatprep.subr.mxu0 0.0
    %309 = vmatpush1.msra.mxu0 %v266
    %310 = vmatprep.subr.mxu0 0.0
    %311 = vmatpush1.msra.mxu0 %v265
    %312 = vmatprep.subr.mxu0 0.0
    %313 = vmatpush1.msra.mxu0 %v264
    %314 = vmatprep.subr.mxu0 0.0
    %315 = vmatpush2.msra.mxu0 0.0
    %316 = vmatprep.subr.mxu0 0.0
    %317 = vmatpush2.msra.mxu0 0.0
    %318 = vmatprep.subr.mxu0 0.0
    %319 = vmatpush2.msra.mxu0 0.0
    %320 = vmatprep.subr.mxu0 0.0
    %321 = vmatpush2.msra.mxu0 0.0
    %322 = vmatprep.subr.mxu0 0.0
    %323 = vmatpush2.msra.mxu0 0.0
    %324 = vmatprep.subr.mxu0 0.0
    %325 = vmatpush2.msra.mxu0 0.0
    %326 = vmatprep.subr.mxu0 0.0
    %327 = vmatpush2.msra.mxu0 0.0
    %328 = vmatprep.subr.mxu0 0.0
    %329 = vmatpush2.msra.mxu0 0.0
    %330 = vmatprep.subr.mxu0 0.0
    %331 = vmatpush2.msra.mxu0 0.0
    %332 = vmatprep.subr.mxu0 0.0
    %333 = vmatpush2.msra.mxu0 0.0
    %334 = vmatprep.subr.mxu0 0.0
    %335 = vmatpush2.msra.mxu0 0.0
    %336 = vmatprep.subr.mxu0 0.0
    %337 = vmatpush2.msra.mxu0 0.0
    %338 = vmatprep.subr.mxu0 0.0
    %339 = vmatpush2.msra.mxu0 0.0
    %340 = vmatprep.subr.mxu0 0.0
    %341 = vmatpush2.msra.mxu0 0.0
    %342 = vmatprep.subr.mxu0 0.0
    %343 = vmatpush2.msra.mxu0 0.0
    %344 = vmatprep.subr.mxu0 0.0
    %345 = vmatpush2.msra.mxu0 0.0
    %346 = vmatprep.mubr.f32.mxu0 0.0
    %347 = vmatmul.mubr.f32.gmra.mxu0 %v277
    %v348 = vpop.f32.mrf.mxu0
    %v349 = vadd.f32 %v273, %v348
    %v350 = vpop.f32.mrf.mxu0
    %351 = vmatprep.mubr.f32.mxu0 0.0
    %352 = vmatmul.mubr.f32.gmra.mxu0 %v280
    %v353 = vpop.f32.mrf.mxu0
    %v354 = vadd.f32 %v273, %v353
    %v355 = vpop.f32.mrf.mxu0
    %356 = vdwg.mxu0
    %v358 = vsel %vm275, 0.0, 0
    %360 = vmatprep.subr.mxu0 0.0
    %361 = vmatpush1.msra.mxu0 0.0
    %362 = vmatprep.subr.mxu0 0.0
    %363 = vmatpush1.msra.mxu0 0.0
    %364 = vmatprep.subr.mxu0 0.0
    %365 = vmatpush1.msra.mxu0 0.0
    %366 = vmatprep.subr.mxu0 0.0
    %367 = vmatpush1.msra.mxu0 0.0
    %368 = vmatprep.subr.mxu0 0.0
    %369 = vmatpush1.msra.mxu0 0.0
    %370 = vmatprep.subr.mxu0 0.0
    %371 = vmatpush1.msra.mxu0 0.0
    %372 = vmatprep.subr.mxu0 0.0
    %373 = vmatpush1.msra.mxu0 0.0
    %374 = vmatprep.subr.mxu0 0.0
    %375 = vmatpush1.msra.mxu0 0.0
    %376 = vmatprep.subr.mxu0 0.0
    %377 = vmatpush1.msra.mxu0 0.0
    %378 = vmatprep.subr.mxu0 0.0
    %379 = vmatpush1.msra.mxu0 0.0
    %380 = vmatprep.subr.mxu0 0.0
    %381 = vmatpush1.msra.mxu0 0.0
    %382 = vmatprep.subr.mxu0 0.0
    %383 = vmatpush1.msra.mxu0 0.0
    %384 = vmatprep.subr.mxu0 0.0
    %385 = vmatpush1.msra.mxu0 %v263
    %386 = vmatprep.subr.mxu0 0.0
    %387 = vmatpush1.msra.mxu0 %v262
    %388 = vmatprep.subr.mxu0 0.0
    %389 = vmatpush1.msra.mxu0 %v261
    %390 = vmatprep.subr.mxu0 0.0
    %391 = vmatpush1.msra.mxu0 %v260
    %392 = vmatprep.subr.mxu0 0.0
    %393 = vmatpush2.msra.mxu0 0.0
    %394 = vmatprep.subr.mxu0 0.0
    %395 = vmatpush2.msra.mxu0 0.0
    %396 = vmatprep.subr.mxu0 0.0
    %397 = vmatpush2.msra.mxu0 0.0
    %398 = vmatprep.subr.mxu0 0.0
    %399 = vmatpush2.msra.mxu0 0.0
    %400 = vmatprep.subr.mxu0 0.0
    %401 = vmatpush2.msra.mxu0 0.0
    %402 = vmatprep.subr.mxu0 0.0
    %403 = vmatpush2.msra.mxu0 0.0
    %404 = vmatprep.subr.mxu0 0.0
    %405 = vmatpush2.msra.mxu0 0.0
    %406 = vmatprep.subr.mxu0 0.0
    %407 = vmatpush2.msra.mxu0 0.0
    %408 = vmatprep.subr.mxu0 0.0
    %409 = vmatpush2.msra.mxu0 0.0
    %410 = vmatprep.subr.mxu0 0.0
    %411 = vmatpush2.msra.mxu0 0.0
    %412 = vmatprep.subr.mxu0 0.0
    %413 = vmatpush2.msra.mxu0 0.0
    %414 = vmatprep.subr.mxu0 0.0
    %415 = vmatpush2.msra.mxu0 0.0
    %416 = vmatprep.subr.mxu0 0.0
    %417 = vmatpush2.msra.mxu0 0.0
    %418 = vmatprep.subr.mxu0 0.0
    %419 = vmatpush2.msra.mxu0 0.0
    %420 = vmatprep.subr.mxu0 0.0
    %421 = vmatpush2.msra.mxu0 0.0
    %422 = vmatprep.subr.mxu0 0.0
    %423 = vmatpush2.msra.mxu0 0.0
    %424 = vmatprep.mubr.f32.mxu0 0.0
    %425 = vmatmul.mubr.f32.gmra.mxu0 %v358
    %v426 = vpop.f32.mrf.mxu0
    %v427 = vadd.f32 0.0, %v426
    %v428 = vpop.f32.mrf.mxu0
    %429 = vdwg.mxu0
    %v431 = vrot.slane %v427, 1
    %v434 = vadd.f32 %v349, %v427
    %v435 = vadd.f32 %v354, %v431
    %v436 = vtanh.pop %v434
    %v437 = vtanh.pop %v435
    %v438 = vxor.u32 %v434, 2147483648
    %v439 = vxor.u32 %v435, 2147483648
    %v440 = vmul.f32 %v438, 1.442695
    %v441 = vpow.pop %v440
    %v442 = vmul.f32 %v439, 1.442695
    %v443 = vpow.pop %v442
    %v444 = vadd.f32 %v441, 1.0
    %v445 = vadd.f32 %v443, 1.0
    %v446 = vrcp.pop %v444
    %v447 = vmul.f32 1.0, %v446
    %v448 = vrcp.pop %v445
    %v449 = vmul.f32 1.0, %v448
    %v452 = vrot.slane %v437, 7
    %vm453 = vcmask 1041409
    %v454 = vsel %vm453, %v452, %v436
    %v458 = vrot.slane %v449, 7
    %v459 = vsel %vm453, %v458, %v447
    %v461 = vsel %vm163, %v454, %v459
    %v462 = vmul.f32 %v461, 0.0
    %464 = vrot.lane.b32.xlu0 %v461, 64
    %v465 = vpop.permute.xlu0 %464
    %v467 = vmul.f32 %v461, %v465
    %469 = vrot.lane.b32.xlu0 %v467, 32
    %v470 = vpop.permute.xlu0 %469
    %v472 = vadd.f32 %v462, %v470
    %v473 = vtanh.pop %v472
    %475 = vrot.lane.b32.xlu0 %v473, 64
    %v476 = vpop.permute.xlu0 %475
    %v478 = vmul.f32 %v461, %v476
    %vm479 = vcmp.eq.s32.totalorder %v160, 0
    %v482 = vunpack.c.l.s4 1966171168
    %v483 = vunpack.c.0.s8 %v482
    %v484 = vlaneseq
    %v485 = vshrl.u32 %v484, 7
    %v486 = vsub.s32 %v483, %v485
    %v487 = vrot.slane %v478, %v486
    %v488 = vcombine.high %v487, %v487
    %v490 = vunpack.c.l.s4 1966171168
    %v491 = vunpack.c.0.s8 %v490
    %v492 = vlaneseq
    %v493 = vshrl.u32 %v492, 7
    %v494 = vsub.s32 %v491, %v493
    %v495 = vrot.slane %v487, %v494
    %v497 = vunpack.c.l.s4 1966171168
    %v498 = vunpack.c.0.s8 %v497
    %v499 = vlaneseq
    %v500 = vshrl.u32 %v499, 7
    %v501 = vsub.s32 %v498, %v500
    %v502 = vrot.slane %v488, %v501
    %v503 = vsel %vm479, 1, 0
    %vm504 = vcmp.eq.s32.totalorder %v503, 1
    %v505 = vlaneseq
    %v506 = vshrl.u32 %v505, 7
    %v507 = vsub.s32 0, %v506
    %v508 = vrot.slane %v495, %v507
    %v509 = vlaneseq
    %v510 = vshrl.u32 %v509, 7
    %v511 = vsub.s32 0, %v510
    %v512 = vrot.slane %v502, %v511
    %v515 = vsel %vm504, %v508, 0.0
    %v516 = vsel %vm504, %v512, 0.0
    %517 = vrot.lane.b32.xlu0 %v478, 32
    %v518 = vpop.permute.xlu0 %517
    %v519 = vsel %vm275, %v518, 0
    %521 = vmatprep.subr.mxu0 0.0
    %522 = vmatpush1.msra.mxu0 0.0
    %523 = vmatprep.subr.mxu0 0.0
    %524 = vmatpush1.msra.mxu0 0.0
    %525 = vmatprep.subr.mxu0 0.0
    %526 = vmatpush1.msra.mxu0 0.0
    %527 = vmatprep.subr.mxu0 0.0
    %528 = vmatpush1.msra.mxu0 0.0
    %529 = vmatprep.subr.mxu0 0.0
    %530 = vmatpush1.msra.mxu0 0.0
    %531 = vmatprep.subr.mxu0 0.0
    %532 = vmatpush1.msra.mxu0 0.0
    %533 = vmatprep.subr.mxu0 0.0
    %534 = vmatpush1.msra.mxu0 0.0
    %535 = vmatprep.subr.mxu0 0.0
    %536 = vmatpush1.msra.mxu0 0.0
    %537 = vmatprep.subr.mxu0 0.0
    %538 = vmatpush1.msra.mxu0 0.0
    %539 = vmatprep.subr.mxu0 0.0
    %540 = vmatpush1.msra.mxu0 0.0
    %541 = vmatprep.subr.mxu0 0.0
    %542 = vmatpush1.msra.mxu0 0.0
    %543 = vmatprep.subr.mxu0 0.0
    %544 = vmatpush1.msra.mxu0 0.0
    %545 = vmatprep.subr.mxu0 0.0
    %546 = vmatpush1.msra.mxu0 %v263
    %547 = vmatprep.subr.mxu0 0.0
    %548 = vmatpush1.msra.mxu0 %v262
    %549 = vmatprep.subr.mxu0 0.0
    %550 = vmatpush1.msra.mxu0 %v261
    %551 = vmatprep.subr.mxu0 0.0
    %552 = vmatpush1.msra.mxu0 %v260
    %553 = vmatprep.subr.mxu0 0.0
    %554 = vmatpush2.msra.mxu0 0.0
    %555 = vmatprep.subr.mxu0 0.0
    %556 = vmatpush2.msra.mxu0 0.0
    %557 = vmatprep.subr.mxu0 0.0
    %558 = vmatpush2.msra.mxu0 0.0
    %559 = vmatprep.subr.mxu0 0.0
    %560 = vmatpush2.msra.mxu0 0.0
    %561 = vmatprep.subr.mxu0 0.0
    %562 = vmatpush2.msra.mxu0 0.0
    %563 = vmatprep.subr.mxu0 0.0
    %564 = vmatpush2.msra.mxu0 0.0
    %565 = vmatprep.subr.mxu0 0.0
    %566 = vmatpush2.msra.mxu0 0.0
    %567 = vmatprep.subr.mxu0 0.0
    %568 = vmatpush2.msra.mxu0 0.0
    %569 = vmatprep.subr.mxu0 0.0
    %570 = vmatpush2.msra.mxu0 0.0
    %571 = vmatprep.subr.mxu0 0.0
    %572 = vmatpush2.msra.mxu0 0.0
    %573 = vmatprep.subr.mxu0 0.0
    %574 = vmatpush2.msra.mxu0 0.0
    %575 = vmatprep.subr.mxu0 0.0
    %576 = vmatpush2.msra.mxu0 0.0
    %577 = vmatprep.subr.mxu0 0.0
    %578 = vmatpush2.msra.mxu0 0.0
    %579 = vmatprep.subr.mxu0 0.0
    %580 = vmatpush2.msra.mxu0 0.0
    %581 = vmatprep.subr.mxu0 0.0
    %582 = vmatpush2.msra.mxu0 0.0
    %583 = vmatprep.subr.mxu0 0.0
    %584 = vmatpush2.msra.mxu0 0.0
    %585 = vmatprep.mubr.f32.mxu0 0.0
    %586 = vmatmul.mubr.f32.gmra.mxu0 %v519
    %v587 = vpop.f32.mrf.mxu0
    %v588 = vadd.f32 0.0, %v587
    %v589 = vpop.f32.mrf.mxu0
    %590 = vdwg.mxu0
    %v592 = vrot.slane %v588, 7
    %v595 = vadd.f32 %v349, %v592
    %v596 = vadd.f32 %v354, %v588
    %v597 = vtanh.pop %v595
    %v598 = vtanh.pop %v596
    %v599 = vxor.u32 %v595, 2147483648
    %v600 = vxor.u32 %v596, 2147483648
    %v601 = vmul.f32 %v599, 1.442695
    %v602 = vpow.pop %v601
    %v603 = vmul.f32 %v600, 1.442695
    %v604 = vpow.pop %v603
    %v605 = vadd.f32 %v602, 1.0
    %v606 = vadd.f32 %v604, 1.0
    %v607 = vrcp.pop %v605
    %v608 = vmul.f32 1.0, %v607
    %v609 = vrcp.pop %v606
    %v610 = vmul.f32 1.0, %v609
    %v613 = vrot.slane %v597, 1
    %v614 = vsel %vm453, %v598, %v613
    %v618 = vrot.slane %v608, 1
    %v619 = vsel %vm453, %v610, %v618
    %v621 = vsel %vm163, %v614, %v619
    %v622 = vmul.f32 %v621, %v472
    %624 = vrot.lane.b32.xlu0 %v621, 64
    %v625 = vpop.permute.xlu0 %624
    %v627 = vmul.f32 %v621, %v625
    %629 = vrot.lane.b32.xlu0 %v627, 32
    %v630 = vpop.permute.xlu0 %629
    %v632 = vadd.f32 %v622, %v630
    %v633 = vtanh.pop %v632
    %635 = vrot.lane.b32.xlu0 %v633, 64
    %v636 = vpop.permute.xlu0 %635
    %v638 = vmul.f32 %v621, %v636
    %vm639 = vcmp.eq.s32.totalorder %v160, 1
    %v642 = vunpack.c.l.s4 1966171168
    %v643 = vunpack.c.0.s8 %v642
    %v644 = vlaneseq
    %v645 = vshrl.u32 %v644, 7
    %v646 = vsub.s32 %v643, %v645
    %v647 = vrot.slane %v638, %v646
    %v648 = vcombine.high %v647, %v647
    %v650 = vunpack.c.l.s4 1966171168
    %v651 = vunpack.c.0.s8 %v650
    %v652 = vlaneseq
    %v653 = vshrl.u32 %v652, 7
    %v654 = vsub.s32 %v651, %v653
    %v655 = vrot.slane %v647, %v654
    %v657 = vunpack.c.l.s4 1966171168
    %v658 = vunpack.c.0.s8 %v657
    %v659 = vlaneseq
    %v660 = vshrl.u32 %v659, 7
    %v661 = vsub.s32 %v658, %v660
    %v662 = vrot.slane %v648, %v661
    %v663 = vsel %vm639, 1, 0
    %vm664 = vcmp.eq.s32.totalorder %v663, 1
    %v665 = vlaneseq
    %v666 = vshrl.u32 %v665, 7
    %v667 = vsub.s32 0, %v666
    %v668 = vrot.slane %v655, %v667
    %v669 = vlaneseq
    %v670 = vshrl.u32 %v669, 7
    %v671 = vsub.s32 0, %v670
    %v672 = vrot.slane %v662, %v671
    %v675 = vsel %vm664, %v668, %v515
    %v676 = vsel %vm664, %v672, %v516
    %677 = vrot.lane.b32.xlu0 %v638, 32
    %v678 = vpop.permute.xlu0 %677
    %v679 = vsel %vm275, %v678, 0
    %681 = vmatprep.subr.mxu0 0.0
    %682 = vmatpush1.msra.mxu0 0.0
    %683 = vmatprep.subr.mxu0 0.0
    %684 = vmatpush1.msra.mxu0 0.0
    %685 = vmatprep.subr.mxu0 0.0
    %686 = vmatpush1.msra.mxu0 0.0
    %687 = vmatprep.subr.mxu0 0.0
    %688 = vmatpush1.msra.mxu0 0.0
    %689 = vmatprep.subr.mxu0 0.0
    %690 = vmatpush1.msra.mxu0 0.0
    %691 = vmatprep.subr.mxu0 0.0
    %692 = vmatpush1.msra.mxu0 0.0
    %693 = vmatprep.subr.mxu0 0.0
    %694 = vmatpush1.msra.mxu0 0.0
    %695 = vmatprep.subr.mxu0 0.0
    %696 = vmatpush1.msra.mxu0 0.0
    %697 = vmatprep.subr.mxu0 0.0
    %698 = vmatpush1.msra.mxu0 0.0
    %699 = vmatprep.subr.mxu0 0.0
    %700 = vmatpush1.msra.mxu0 0.0
    %701 = vmatprep.subr.mxu0 0.0
    %702 = vmatpush1.msra.mxu0 0.0
    %703 = vmatprep.subr.mxu0 0.0
    %704 = vmatpush1.msra.mxu0 0.0
    %705 = vmatprep.subr.mxu0 0.0
    %706 = vmatpush1.msra.mxu0 %v263
    %707 = vmatprep.subr.mxu0 0.0
    %708 = vmatpush1.msra.mxu0 %v262
    %709 = vmatprep.subr.mxu0 0.0
    %710 = vmatpush1.msra.mxu0 %v261
    %711 = vmatprep.subr.mxu0 0.0
    %712 = vmatpush1.msra.mxu0 %v260
    %713 = vmatprep.subr.mxu0 0.0
    %714 = vmatpush2.msra.mxu0 0.0
    %715 = vmatprep.subr.mxu0 0.0
    %716 = vmatpush2.msra.mxu0 0.0
    %717 = vmatprep.subr.mxu0 0.0
    %718 = vmatpush2.msra.mxu0 0.0
    %719 = vmatprep.subr.mxu0 0.0
    %720 = vmatpush2.msra.mxu0 0.0
    %721 = vmatprep.subr.mxu0 0.0
    %722 = vmatpush2.msra.mxu0 0.0
    %723 = vmatprep.subr.mxu0 0.0
    %724 = vmatpush2.msra.mxu0 0.0
    %725 = vmatprep.subr.mxu0 0.0
    %726 = vmatpush2.msra.mxu0 0.0
    %727 = vmatprep.subr.mxu0 0.0
    %728 = vmatpush2.msra.mxu0 0.0
    %729 = vmatprep.subr.mxu0 0.0
    %730 = vmatpush2.msra.mxu0 0.0
    %731 = vmatprep.subr.mxu0 0.0
    %732 = vmatpush2.msra.mxu0 0.0
    %733 = vmatprep.subr.mxu0 0.0
    %734 = vmatpush2.msra.mxu0 0.0
    %735 = vmatprep.subr.mxu0 0.0
    %736 = vmatpush2.msra.mxu0 0.0
    %737 = vmatprep.subr.mxu0 0.0
    %738 = vmatpush2.msra.mxu0 0.0
    %739 = vmatprep.subr.mxu0 0.0
    %740 = vmatpush2.msra.mxu0 0.0
    %741 = vmatprep.subr.mxu0 0.0
    %742 = vmatpush2.msra.mxu0 0.0
    %743 = vmatprep.subr.mxu0 0.0
    %744 = vmatpush2.msra.mxu0 0.0
    %745 = vmatprep.mubr.f32.mxu0 0.0
    %746 = vmatmul.mubr.f32.gmra.mxu0 %v679
    %v747 = vpop.f32.mrf.mxu0
    %v748 = vadd.f32 0.0, %v747
    %v749 = vpop.f32.mrf.mxu0
    %750 = vdwg.mxu0
    %v752 = vrot.slane %v748, 6
    %v753 = vrot.slane %v748, 7
    %v756 = vadd.f32 %v349, %v752
    %v757 = vadd.f32 %v354, %v753
    %v758 = vtanh.pop %v756
    %v759 = vtanh.pop %v757
    %v760 = vxor.u32 %v756, 2147483648
    %v761 = vxor.u32 %v757, 2147483648
    %v762 = vmul.f32 %v760, 1.442695
    %v763 = vpow.pop %v762
    %v764 = vmul.f32 %v761, 1.442695
    %v765 = vpow.pop %v764
    %v766 = vadd.f32 %v763, 1.0
    %v767 = vadd.f32 %v765, 1.0
    %v768 = vrcp.pop %v766
    %v769 = vmul.f32 1.0, %v768
    %v770 = vrcp.pop %v767
    %v771 = vmul.f32 1.0, %v770
    %v774 = vrot.slane %v758, 2
    %v775 = vrot.slane %v759, 1
    %v776 = vsel %vm453, %v775, %v774
    %v780 = vrot.slane %v769, 2
    %v781 = vrot.slane %v771, 1
    %v782 = vsel %vm453, %v781, %v780
    %v784 = vsel %vm163, %v776, %v782
    %v785 = vmul.f32 %v784, %v632
    %787 = vrot.lane.b32.xlu0 %v784, 64
    %v788 = vpop.permute.xlu0 %787
    %v790 = vmul.f32 %v784, %v788
    %792 = vrot.lane.b32.xlu0 %v790, 32
    %v793 = vpop.permute.xlu0 %792
    %v795 = vadd.f32 %v785, %v793
    %v796 = vtanh.pop %v795
    %798 = vrot.lane.b32.xlu0 %v796, 64
    %v799 = vpop.permute.xlu0 %798
    %v801 = vmul.f32 %v784, %v799
    %vm802 = vcmp.eq.s32.totalorder %v160, 2
    %v805 = vunpack.c.l.s4 1966171168
    %v806 = vunpack.c.0.s8 %v805
    %v807 = vlaneseq
    %v808 = vshrl.u32 %v807, 7
    %v809 = vsub.s32 %v806, %v808
    %v810 = vrot.slane %v801, %v809
    %v811 = vcombine.high %v810, %v810
    %v813 = vunpack.c.l.s4 1966171168
    %v814 = vunpack.c.0.s8 %v813
    %v815 = vlaneseq
    %v816 = vshrl.u32 %v815, 7
    %v817 = vsub.s32 %v814, %v816
    %v818 = vrot.slane %v810, %v817
    %v820 = vunpack.c.l.s4 1966171168
    %v821 = vunpack.c.0.s8 %v820
    %v822 = vlaneseq
    %v823 = vshrl.u32 %v822, 7
    %v824 = vsub.s32 %v821, %v823
    %v825 = vrot.slane %v811, %v824
    %v826 = vsel %vm802, 1, 0
    %vm827 = vcmp.eq.s32.totalorder %v826, 1
    %v828 = vlaneseq
    %v829 = vshrl.u32 %v828, 7
    %v830 = vsub.s32 0, %v829
    %v831 = vrot.slane %v818, %v830
    %v832 = vlaneseq
    %v833 = vshrl.u32 %v832, 7
    %v834 = vsub.s32 0, %v833
    %v835 = vrot.slane %v825, %v834
    %v838 = vsel %vm827, %v831, %v675
    %v839 = vsel %vm827, %v835, %v676
    %840 = vrot.lane.b32.xlu0 %v801, 32
    %v841 = vpop.permute.xlu0 %840
    %v842 = vsel %vm275, %v841, 0
    %844 = vmatprep.subr.mxu0 0.0
    %845 = vmatpush1.msra.mxu0 0.0
    %846 = vmatprep.subr.mxu0 0.0
    %847 = vmatpush1.msra.mxu0 0.0
    %848 = vmatprep.subr.mxu0 0.0
    %849 = vmatpush1.msra.mxu0 0.0
    %850 = vmatprep.subr.mxu0 0.0
    %851 = vmatpush1.msra.mxu0 0.0
    %852 = vmatprep.subr.mxu0 0.0
    %853 = vmatpush1.msra.mxu0 0.0
    %854 = vmatprep.subr.mxu0 0.0
    %855 = vmatpush1.msra.mxu0 0.0
    %856 = vmatprep.subr.mxu0 0.0
    %857 = vmatpush1.msra.mxu0 0.0
    %858 = vmatprep.subr.mxu0 0.0
    %859 = vmatpush1.msra.mxu0 0.0
    %860 = vmatprep.subr.mxu0 0.0
    %861 = vmatpush1.msra.mxu0 0.0
    %862 = vmatprep.subr.mxu0 0.0
    %863 = vmatpush1.msra.mxu0 0.0
    %864 = vmatprep.subr.mxu0 0.0
    %865 = vmatpush1.msra.mxu0 0.0
    %866 = vmatprep.subr.mxu0 0.0
    %867 = vmatpush1.msra.mxu0 0.0
    %868 = vmatprep.subr.mxu0 0.0
    %869 = vmatpush1.msra.mxu0 %v263
    %870 = vmatprep.subr.mxu0 0.0
    %871 = vmatpush1.msra.mxu0 %v262
    %872 = vmatprep.subr.mxu0 0.0
    %873 = vmatpush1.msra.mxu0 %v261
    %874 = vmatprep.subr.mxu0 0.0
    %875 = vmatpush1.msra.mxu0 %v260
    %876 = vmatprep.subr.mxu0 0.0
    %877 = vmatpush2.msra.mxu0 0.0
    %878 = vmatprep.subr.mxu0 0.0
    %879 = vmatpush2.msra.mxu0 0.0
    %880 = vmatprep.subr.mxu0 0.0
    %881 = vmatpush2.msra.mxu0 0.0
    %882 = vmatprep.subr.mxu0 0.0
    %883 = vmatpush2.msra.mxu0 0.0
    %884 = vmatprep.subr.mxu0 0.0
    %885 = vmatpush2.msra.mxu0 0.0
    %886 = vmatprep.subr.mxu0 0.0
    %887 = vmatpush2.msra.mxu0 0.0
    %888 = vmatprep.subr.mxu0 0.0
    %889 = vmatpush2.msra.mxu0 0.0
    %890 = vmatprep.subr.mxu0 0.0
    %891 = vmatpush2.msra.mxu0 0.0
    %892 = vmatprep.subr.mxu0 0.0
    %893 = vmatpush2.msra.mxu0 0.0
    %894 = vmatprep.subr.mxu0 0.0
    %895 = vmatpush2.msra.mxu0 0.0
    %896 = vmatprep.subr.mxu0 0.0
    %897 = vmatpush2.msra.mxu0 0.0
    %898 = vmatprep.subr.mxu0 0.0
    %899 = vmatpush2.msra.mxu0 0.0
    %900 = vmatprep.subr.mxu0 0.0
    %901 = vmatpush2.msra.mxu0 0.0
    %902 = vmatprep.subr.mxu0 0.0
    %903 = vmatpush2.msra.mxu0 0.0
    %904 = vmatprep.subr.mxu0 0.0
    %905 = vmatpush2.msra.mxu0 0.0
    %906 = vmatprep.subr.mxu0 0.0
    %907 = vmatpush2.msra.mxu0 0.0
    %908 = vmatprep.mubr.f32.mxu0 0.0
    %909 = vmatmul.mubr.f32.gmra.mxu0 %v842
    %v910 = vpop.f32.mrf.mxu0
    %v911 = vadd.f32 0.0, %v910
    %v912 = vpop.f32.mrf.mxu0
    %913 = vdwg.mxu0
    %v915 = vrot.slane %v911, 5
    %v916 = vrot.slane %v911, 6
    %v919 = vadd.f32 %v349, %v915
    %v920 = vadd.f32 %v354, %v916
    %v921 = vtanh.pop %v919
    %v922 = vtanh.pop %v920
    %v923 = vxor.u32 %v919, 2147483648
    %v924 = vxor.u32 %v920, 2147483648
    %v925 = vmul.f32 %v923, 1.442695
    %v926 = vpow.pop %v925
    %v927 = vmul.f32 %v924, 1.442695
    %v928 = vpow.pop %v927
    %v929 = vadd.f32 %v926, 1.0
    %v930 = vadd.f32 %v928, 1.0
    %v931 = vrcp.pop %v929
    %v932 = vmul.f32 1.0, %v931
    %v933 = vrcp.pop %v930
    %v934 = vmul.f32 1.0, %v933
    %v937 = vrot.slane %v921, 3
    %v938 = vrot.slane %v922, 2
    %v939 = vsel %vm453, %v938, %v937
    %v943 = vrot.slane %v932, 3
    %v944 = vrot.slane %v934, 2
    %v945 = vsel %vm453, %v944, %v943
    %v947 = vsel %vm163, %v939, %v945
    %v948 = vmul.f32 %v947, %v795
    %950 = vrot.lane.b32.xlu0 %v947, 64
    %v951 = vpop.permute.xlu0 %950
    %v953 = vmul.f32 %v947, %v951
    %955 = vrot.lane.b32.xlu0 %v953, 32
    %v956 = vpop.permute.xlu0 %955
    %v958 = vadd.f32 %v948, %v956
    %v959 = vtanh.pop %v958
    %961 = vrot.lane.b32.xlu0 %v959, 64
    %v962 = vpop.permute.xlu0 %961
    %v964 = vmul.f32 %v947, %v962
    %vm965 = vcmp.eq.s32.totalorder %v160, 3
    %v968 = vunpack.c.l.s4 1966171168
    %v969 = vunpack.c.0.s8 %v968
    %v970 = vlaneseq
    %v971 = vshrl.u32 %v970, 7
    %v972 = vsub.s32 %v969, %v971
    %v973 = vrot.slane %v964, %v972
    %v974 = vcombine.high %v973, %v973
    %v976 = vunpack.c.l.s4 1966171168
    %v977 = vunpack.c.0.s8 %v976
    %v978 = vlaneseq
    %v979 = vshrl.u32 %v978, 7
    %v980 = vsub.s32 %v977, %v979
    %v981 = vrot.slane %v973, %v980
    %v983 = vunpack.c.l.s4 1966171168
    %v984 = vunpack.c.0.s8 %v983
    %v985 = vlaneseq
    %v986 = vshrl.u32 %v985, 7
    %v987 = vsub.s32 %v984, %v986
    %v988 = vrot.slane %v974, %v987
    %v989 = vsel %vm965, 1, 0
    %vm990 = vcmp.eq.s32.totalorder %v989, 1
    %v991 = vlaneseq
    %v992 = vshrl.u32 %v991, 7
    %v993 = vsub.s32 0, %v992
    %v994 = vrot.slane %v981, %v993
    %v995 = vlaneseq
    %v996 = vshrl.u32 %v995, 7
    %v997 = vsub.s32 0, %v996
    %v998 = vrot.slane %v988, %v997
    %v1001 = vsel %vm990, %v994, %v838
    %v1002 = vsel %vm990, %v998, %v839
    %1003 = vrot.lane.b32.xlu0 %v964, 32
    %v1004 = vpop.permute.xlu0 %1003
    %v1005 = vsel %vm275, %v1004, 0
    %1007 = vmatprep.subr.mxu0 0.0
    %1008 = vmatpush1.msra.mxu0 0.0
    %1009 = vmatprep.subr.mxu0 0.0
    %1010 = vmatpush1.msra.mxu0 0.0
    %1011 = vmatprep.subr.mxu0 0.0
    %1012 = vmatpush1.msra.mxu0 0.0
    %1013 = vmatprep.subr.mxu0 0.0
    %1014 = vmatpush1.msra.mxu0 0.0
    %1015 = vmatprep.subr.mxu0 0.0
    %1016 = vmatpush1.msra.mxu0 0.0
    %1017 = vmatprep.subr.mxu0 0.0
    %1018 = vmatpush1.msra.mxu0 0.0
    %1019 = vmatprep.subr.mxu0 0.0
    %1020 = vmatpush1.msra.mxu0 0.0
    %1021 = vmatprep.subr.mxu0 0.0
    %1022 = vmatpush1.msra.mxu0 0.0
    %1023 = vmatprep.subr.mxu0 0.0
    %1024 = vmatpush1.msra.mxu0 0.0
    %1025 = vmatprep.subr.mxu0 0.0
    %1026 = vmatpush1.msra.mxu0 0.0
    %1027 = vmatprep.subr.mxu0 0.0
    %1028 = vmatpush1.msra.mxu0 0.0
    %1029 = vmatprep.subr.mxu0 0.0
    %1030 = vmatpush1.msra.mxu0 0.0
    %1031 = vmatprep.subr.mxu0 0.0
    %1032 = vmatpush1.msra.mxu0 %v263
    %1033 = vmatprep.subr.mxu0 0.0
    %1034 = vmatpush1.msra.mxu0 %v262
    %1035 = vmatprep.subr.mxu0 0.0
    %1036 = vmatpush1.msra.mxu0 %v261
    %1037 = vmatprep.subr.mxu0 0.0
    %1038 = vmatpush1.msra.mxu0 %v260
    %1039 = vmatprep.subr.mxu0 0.0
    %1040 = vmatpush2.msra.mxu0 0.0
    %1041 = vmatprep.subr.mxu0 0.0
    %1042 = vmatpush2.msra.mxu0 0.0
    %1043 = vmatprep.subr.mxu0 0.0
    %1044 = vmatpush2.msra.mxu0 0.0
    %1045 = vmatprep.subr.mxu0 0.0
    %1046 = vmatpush2.msra.mxu0 0.0
    %1047 = vmatprep.subr.mxu0 0.0
    %1048 = vmatpush2.msra.mxu0 0.0
    %1049 = vmatprep.subr.mxu0 0.0
    %1050 = vmatpush2.msra.mxu0 0.0
    %1051 = vmatprep.subr.mxu0 0.0
    %1052 = vmatpush2.msra.mxu0 0.0
    %1053 = vmatprep.subr.mxu0 0.0
    %1054 = vmatpush2.msra.mxu0 0.0
    %1055 = vmatprep.subr.mxu0 0.0
    %1056 = vmatpush2.msra.mxu0 0.0
    %1057 = vmatprep.subr.mxu0 0.0
    %1058 = vmatpush2.msra.mxu0 0.0
    %1059 = vmatprep.subr.mxu0 0.0
    %1060 = vmatpush2.msra.mxu0 0.0
    %1061 = vmatprep.subr.mxu0 0.0
    %1062 = vmatpush2.msra.mxu0 0.0
    %1063 = vmatprep.subr.mxu0 0.0
    %1064 = vmatpush2.msra.mxu0 0.0
    %1065 = vmatprep.subr.mxu0 0.0
    %1066 = vmatpush2.msra.mxu0 0.0
    %1067 = vmatprep.subr.mxu0 0.0
    %1068 = vmatpush2.msra.mxu0 0.0
    %1069 = vmatprep.subr.mxu0 0.0
    %1070 = vmatpush2.msra.mxu0 0.0
    %1071 = vmatprep.mubr.f32.mxu0 0.0
    %1072 = vmatmul.mubr.f32.gmra.mxu0 %v1005
    %v1073 = vpop.f32.mrf.mxu0
    %v1074 = vadd.f32 0.0, %v1073
    %v1075 = vpop.f32.mrf.mxu0
    %1076 = vdwg.mxu0
    %v1078 = vrot.slane %v1074, 4
    %v1079 = vrot.slane %v1074, 5
    %v1082 = vadd.f32 %v349, %v1078
    %v1083 = vadd.f32 %v354, %v1079
    %v1084 = vtanh.pop %v1082
    %v1085 = vtanh.pop %v1083
    %v1086 = vxor.u32 %v1082, 2147483648
    %v1087 = vxor.u32 %v1083, 2147483648
    %v1088 = vmul.f32 %v1086, 1.442695
    %v1089 = vpow.pop %v1088
    %v1090 = vmul.f32 %v1087, 1.442695
    %v1091 = vpow.pop %v1090
    %v1092 = vadd.f32 %v1089, 1.0
    %v1093 = vadd.f32 %v1091, 1.0
    %v1094 = vrcp.pop %v1092
    %v1095 = vmul.f32 1.0, %v1094
    %v1096 = vrcp.pop %v1093
    %v1097 = vmul.f32 1.0, %v1096
    %v1100 = vrot.slane %v1084, 4
    %v1101 = vrot.slane %v1085, 3
    %v1102 = vsel %vm453, %v1101, %v1100
    %v1106 = vrot.slane %v1095, 4
    %v1107 = vrot.slane %v1097, 3
    %v1108 = vsel %vm453, %v1107, %v1106
    %v1110 = vsel %vm163, %v1102, %v1108
    %v1111 = vmul.f32 %v1110, %v958
    %1113 = vrot.lane.b32.xlu0 %v1110, 64
    %v1114 = vpop.permute.xlu0 %1113
    %v1116 = vmul.f32 %v1110, %v1114
    %1118 = vrot.lane.b32.xlu0 %v1116, 32
    %v1119 = vpop.permute.xlu0 %1118
    %v1121 = vadd.f32 %v1111, %v1119
    %v1122 = vtanh.pop %v1121
    %1124 = vrot.lane.b32.xlu0 %v1122, 64
    %v1125 = vpop.permute.xlu0 %1124
    %v1127 = vmul.f32 %v1110, %v1125
    %vm1128 = vcmp.eq.s32.totalorder %v160, 4
    %v1131 = vunpack.c.l.s4 1966171168
    %v1132 = vunpack.c.0.s8 %v1131
    %v1133 = vlaneseq
    %v1134 = vshrl.u32 %v1133, 7
    %v1135 = vsub.s32 %v1132, %v1134
    %v1136 = vrot.slane %v1127, %v1135
    %v1137 = vcombine.high %v1136, %v1136
    %v1139 = vunpack.c.l.s4 1966171168
    %v1140 = vunpack.c.0.s8 %v1139
    %v1141 = vlaneseq
    %v1142 = vshrl.u32 %v1141, 7
    %v1143 = vsub.s32 %v1140, %v1142
    %v1144 = vrot.slane %v1136, %v1143
    %v1146 = vunpack.c.l.s4 1966171168
    %v1147 = vunpack.c.0.s8 %v1146
    %v1148 = vlaneseq
    %v1149 = vshrl.u32 %v1148, 7
    %v1150 = vsub.s32 %v1147, %v1149
    %v1151 = vrot.slane %v1137, %v1150
    %v1152 = vsel %vm1128, 1, 0
    %vm1153 = vcmp.eq.s32.totalorder %v1152, 1
    %v1154 = vlaneseq
    %v1155 = vshrl.u32 %v1154, 7
    %v1156 = vsub.s32 0, %v1155
    %v1157 = vrot.slane %v1144, %v1156
    %v1158 = vlaneseq
    %v1159 = vshrl.u32 %v1158, 7
    %v1160 = vsub.s32 0, %v1159
    %v1161 = vrot.slane %v1151, %v1160
    %v1164 = vsel %vm1153, %v1157, %v1001
    %v1165 = vsel %vm1153, %v1161, %v1002
    %1166 = vrot.lane.b32.xlu0 %v1127, 32
    %v1167 = vpop.permute.xlu0 %1166
    %v1168 = vsel %vm275, %v1167, 0
    %1170 = vmatprep.subr.mxu0 0.0
    %1171 = vmatpush1.msra.mxu0 0.0
    %1172 = vmatprep.subr.mxu0 0.0
    %1173 = vmatpush1.msra.mxu0 0.0
    %1174 = vmatprep.subr.mxu0 0.0
    %1175 = vmatpush1.msra.mxu0 0.0
    %1176 = vmatprep.subr.mxu0 0.0
    %1177 = vmatpush1.msra.mxu0 0.0
    %1178 = vmatprep.subr.mxu0 0.0
    %1179 = vmatpush1.msra.mxu0 0.0
    %1180 = vmatprep.subr.mxu0 0.0
    %1181 = vmatpush1.msra.mxu0 0.0
    %1182 = vmatprep.subr.mxu0 0.0
    %1183 = vmatpush1.msra.mxu0 0.0
    %1184 = vmatprep.subr.mxu0 0.0
    %1185 = vmatpush1.msra.mxu0 0.0
    %1186 = vmatprep.subr.mxu0 0.0
    %1187 = vmatpush1.msra.mxu0 0.0
    %1188 = vmatprep.subr.mxu0 0.0
    %1189 = vmatpush1.msra.mxu0 0.0
    %1190 = vmatprep.subr.mxu0 0.0
    %1191 = vmatpush1.msra.mxu0 0.0
    %1192 = vmatprep.subr.mxu0 0.0
    %1193 = vmatpush1.msra.mxu0 0.0
    %1194 = vmatprep.subr.mxu0 0.0
    %1195 = vmatpush1.msra.mxu0 %v263
    %1196 = vmatprep.subr.mxu0 0.0
    %1197 = vmatpush1.msra.mxu0 %v262
    %1198 = vmatprep.subr.mxu0 0.0
    %1199 = vmatpush1.msra.mxu0 %v261
    %1200 = vmatprep.subr.mxu0 0.0
    %1201 = vmatpush1.msra.mxu0 %v260
    %1202 = vmatprep.subr.mxu0 0.0
    %1203 = vmatpush2.msra.mxu0 0.0
    %1204 = vmatprep.subr.mxu0 0.0
    %1205 = vmatpush2.msra.mxu0 0.0
    %1206 = vmatprep.subr.mxu0 0.0
    %1207 = vmatpush2.msra.mxu0 0.0
    %1208 = vmatprep.subr.mxu0 0.0
    %1209 = vmatpush2.msra.mxu0 0.0
    %1210 = vmatprep.subr.mxu0 0.0
    %1211 = vmatpush2.msra.mxu0 0.0
    %1212 = vmatprep.subr.mxu0 0.0
    %1213 = vmatpush2.msra.mxu0 0.0
    %1214 = vmatprep.subr.mxu0 0.0
    %1215 = vmatpush2.msra.mxu0 0.0
    %1216 = vmatprep.subr.mxu0 0.0
    %1217 = vmatpush2.msra.mxu0 0.0
    %1218 = vmatprep.subr.mxu0 0.0
    %1219 = vmatpush2.msra.mxu0 0.0
    %1220 = vmatprep.subr.mxu0 0.0
    %1221 = vmatpush2.msra.mxu0 0.0
    %1222 = vmatprep.subr.mxu0 0.0
    %1223 = vmatpush2.msra.mxu0 0.0
    %1224 = vmatprep.subr.mxu0 0.0
    %1225 = vmatpush2.msra.mxu0 0.0
    %1226 = vmatprep.subr.mxu0 0.0
    %1227 = vmatpush2.msra.mxu0 0.0
    %1228 = vmatprep.subr.mxu0 0.0
    %1229 = vmatpush2.msra.mxu0 0.0
    %1230 = vmatprep.subr.mxu0 0.0
    %1231 = vmatpush2.msra.mxu0 0.0
    %1232 = vmatprep.subr.mxu0 0.0
    %1233 = vmatpush2.msra.mxu0 0.0
    %1234 = vmatprep.mubr.f32.mxu0 0.0
    %1235 = vmatmul.mubr.f32.gmra.mxu0 %v1168
    %v1236 = vpop.f32.mrf.mxu0
    %v1237 = vadd.f32 0.0, %v1236
    %v1238 = vpop.f32.mrf.mxu0
    %1239 = vdwg.mxu0
    %v1241 = vrot.slane %v1237, 3
    %v1242 = vrot.slane %v1237, 4
    %v1245 = vadd.f32 %v349, %v1241
    %v1246 = vadd.f32 %v354, %v1242
    %v1247 = vtanh.pop %v1245
    %v1248 = vtanh.pop %v1246
    %v1249 = vxor.u32 %v1245, 2147483648
    %v1250 = vxor.u32 %v1246, 2147483648
    %v1251 = vmul.f32 %v1249, 1.442695
    %v1252 = vpow.pop %v1251
    %v1253 = vmul.f32 %v1250, 1.442695
    %v1254 = vpow.pop %v1253
    %v1255 = vadd.f32 %v1252, 1.0
    %v1256 = vadd.f32 %v1254, 1.0
    %v1257 = vrcp.pop %v1255
    %v1258 = vmul.f32 1.0, %v1257
    %v1259 = vrcp.pop %v1256
    %v1260 = vmul.f32 1.0, %v1259
    %v1263 = vrot.slane %v1247, 5
    %v1264 = vrot.slane %v1248, 4
    %v1265 = vsel %vm453, %v1264, %v1263
    %v1269 = vrot.slane %v1258, 5
    %v1270 = vrot.slane %v1260, 4
    %v1271 = vsel %vm453, %v1270, %v1269
    %v1273 = vsel %vm163, %v1265, %v1271
    %v1274 = vmul.f32 %v1273, %v1121
    %1276 = vrot.lane.b32.xlu0 %v1273, 64
    %v1277 = vpop.permute.xlu0 %1276
    %v1279 = vmul.f32 %v1273, %v1277
    %1281 = vrot.lane.b32.xlu0 %v1279, 32
    %v1282 = vpop.permute.xlu0 %1281
    %v1284 = vadd.f32 %v1274, %v1282
    %v1285 = vtanh.pop %v1284
    %1287 = vrot.lane.b32.xlu0 %v1285, 64
    %v1288 = vpop.permute.xlu0 %1287
    %v1290 = vmul.f32 %v1273, %v1288
    %vm1291 = vcmp.eq.s32.totalorder %v160, 5
    %v1294 = vunpack.c.l.s4 1966171168
    %v1295 = vunpack.c.0.s8 %v1294
    %v1296 = vlaneseq
    %v1297 = vshrl.u32 %v1296, 7
    %v1298 = vsub.s32 %v1295, %v1297
    %v1299 = vrot.slane %v1290, %v1298
    %v1300 = vcombine.high %v1299, %v1299
    %v1302 = vunpack.c.l.s4 1966171168
    %v1303 = vunpack.c.0.s8 %v1302
    %v1304 = vlaneseq
    %v1305 = vshrl.u32 %v1304, 7
    %v1306 = vsub.s32 %v1303, %v1305
    %v1307 = vrot.slane %v1299, %v1306
    %v1309 = vunpack.c.l.s4 1966171168
    %v1310 = vunpack.c.0.s8 %v1309
    %v1311 = vlaneseq
    %v1312 = vshrl.u32 %v1311, 7
    %v1313 = vsub.s32 %v1310, %v1312
    %v1314 = vrot.slane %v1300, %v1313
    %v1315 = vsel %vm1291, 1, 0
    %vm1316 = vcmp.eq.s32.totalorder %v1315, 1
    %v1317 = vlaneseq
    %v1318 = vshrl.u32 %v1317, 7
    %v1319 = vsub.s32 0, %v1318
    %v1320 = vrot.slane %v1307, %v1319
    %v1321 = vlaneseq
    %v1322 = vshrl.u32 %v1321, 7
    %v1323 = vsub.s32 0, %v1322
    %v1324 = vrot.slane %v1314, %v1323
    %v1327 = vsel %vm1316, %v1320, %v1164
    %v1328 = vsel %vm1316, %v1324, %v1165
    %1329 = vrot.lane.b32.xlu0 %v1290, 32
    %v1330 = vpop.permute.xlu0 %1329
    %v1331 = vsel %vm275, %v1330, 0
    %1333 = vmatprep.subr.mxu0 0.0
    %1334 = vmatpush1.msra.mxu0 0.0
    %1335 = vmatprep.subr.mxu0 0.0
    %1336 = vmatpush1.msra.mxu0 0.0
    %1337 = vmatprep.subr.mxu0 0.0
    %1338 = vmatpush1.msra.mxu0 0.0
    %1339 = vmatprep.subr.mxu0 0.0
    %1340 = vmatpush1.msra.mxu0 0.0
    %1341 = vmatprep.subr.mxu0 0.0
    %1342 = vmatpush1.msra.mxu0 0.0
    %1343 = vmatprep.subr.mxu0 0.0
    %1344 = vmatpush1.msra.mxu0 0.0
    %1345 = vmatprep.subr.mxu0 0.0
    %1346 = vmatpush1.msra.mxu0 0.0
    %1347 = vmatprep.subr.mxu0 0.0
    %1348 = vmatpush1.msra.mxu0 0.0
    %1349 = vmatprep.subr.mxu0 0.0
    %1350 = vmatpush1.msra.mxu0 0.0
    %1351 = vmatprep.subr.mxu0 0.0
    %1352 = vmatpush1.msra.mxu0 0.0
    %1353 = vmatprep.subr.mxu0 0.0
    %1354 = vmatpush1.msra.mxu0 0.0
    %1355 = vmatprep.subr.mxu0 0.0
    %1356 = vmatpush1.msra.mxu0 0.0
    %1357 = vmatprep.subr.mxu0 0.0
    %1358 = vmatpush1.msra.mxu0 %v263
    %1359 = vmatprep.subr.mxu0 0.0
    %1360 = vmatpush1.msra.mxu0 %v262
    %1361 = vmatprep.subr.mxu0 0.0
    %1362 = vmatpush1.msra.mxu0 %v261
    %1363 = vmatprep.subr.mxu0 0.0
    %1364 = vmatpush1.msra.mxu0 %v260
    %1365 = vmatprep.subr.mxu0 0.0
    %1366 = vmatpush2.msra.mxu0 0.0
    %1367 = vmatprep.subr.mxu0 0.0
    %1368 = vmatpush2.msra.mxu0 0.0
    %1369 = vmatprep.subr.mxu0 0.0
    %1370 = vmatpush2.msra.mxu0 0.0
    %1371 = vmatprep.subr.mxu0 0.0
    %1372 = vmatpush2.msra.mxu0 0.0
    %1373 = vmatprep.subr.mxu0 0.0
    %1374 = vmatpush2.msra.mxu0 0.0
    %1375 = vmatprep.subr.mxu0 0.0
    %1376 = vmatpush2.msra.mxu0 0.0
    %1377 = vmatprep.subr.mxu0 0.0
    %1378 = vmatpush2.msra.mxu0 0.0
    %1379 = vmatprep.subr.mxu0 0.0
    %1380 = vmatpush2.msra.mxu0 0.0
    %1381 = vmatprep.subr.mxu0 0.0
    %1382 = vmatpush2.msra.mxu0 0.0
    %1383 = vmatprep.subr.mxu0 0.0
    %1384 = vmatpush2.msra.mxu0 0.0
    %1385 = vmatprep.subr.mxu0 0.0
    %1386 = vmatpush2.msra.mxu0 0.0
    %1387 = vmatprep.subr.mxu0 0.0
    %1388 = vmatpush2.msra.mxu0 0.0
    %1389 = vmatprep.subr.mxu0 0.0
    %1390 = vmatpush2.msra.mxu0 0.0
    %1391 = vmatprep.subr.mxu0 0.0
    %1392 = vmatpush2.msra.mxu0 0.0
    %1393 = vmatprep.subr.mxu0 0.0
    %1394 = vmatpush2.msra.mxu0 0.0
    %1395 = vmatprep.subr.mxu0 0.0
    %1396 = vmatpush2.msra.mxu0 0.0
    %1397 = vmatprep.mubr.f32.mxu0 0.0
    %1398 = vmatmul.mubr.f32.gmra.mxu0 %v1331
    %v1399 = vpop.f32.mrf.mxu0
    %v1400 = vadd.f32 0.0, %v1399
    %v1401 = vpop.f32.mrf.mxu0
    %1402 = vdwg.mxu0
    %v1404 = vrot.slane %v1400, 2
    %v1405 = vrot.slane %v1400, 3
    %v1408 = vadd.f32 %v349, %v1404
    %v1409 = vadd.f32 %v354, %v1405
    %v1410 = vtanh.pop %v1408
    %v1411 = vtanh.pop %v1409
    %v1412 = vxor.u32 %v1408, 2147483648
    %v1413 = vxor.u32 %v1409, 2147483648
    %v1414 = vmul.f32 %v1412, 1.442695
    %v1415 = vpow.pop %v1414
    %v1416 = vmul.f32 %v1413, 1.442695
    %v1417 = vpow.pop %v1416
    %v1418 = vadd.f32 %v1415, 1.0
    %v1419 = vadd.f32 %v1417, 1.0
    %v1420 = vrcp.pop %v1418
    %v1421 = vmul.f32 1.0, %v1420
    %v1422 = vrcp.pop %v1419
    %v1423 = vmul.f32 1.0, %v1422
    %v1426 = vrot.slane %v1410, 6
    %v1427 = vrot.slane %v1411, 5
    %v1428 = vsel %vm453, %v1427, %v1426
    %v1432 = vrot.slane %v1421, 6
    %v1433 = vrot.slane %v1423, 5
    %v1434 = vsel %vm453, %v1433, %v1432
    %v1436 = vsel %vm163, %v1428, %v1434
    %v1437 = vmul.f32 %v1436, %v1284
    %1439 = vrot.lane.b32.xlu0 %v1436, 64
    %v1440 = vpop.permute.xlu0 %1439
    %v1442 = vmul.f32 %v1436, %v1440
    %1444 = vrot.lane.b32.xlu0 %v1442, 32
    %v1445 = vpop.permute.xlu0 %1444
    %v1447 = vadd.f32 %v1437, %v1445
    %v1448 = vtanh.pop %v1447
    %1450 = vrot.lane.b32.xlu0 %v1448, 64
    %v1451 = vpop.permute.xlu0 %1450
    %v1453 = vmul.f32 %v1436, %v1451
    %vm1454 = vcmp.eq.s32.totalorder %v160, 6
    %v1457 = vunpack.c.l.s4 1966171168
    %v1458 = vunpack.c.0.s8 %v1457
    %v1459 = vlaneseq
    %v1460 = vshrl.u32 %v1459, 7
    %v1461 = vsub.s32 %v1458, %v1460
    %v1462 = vrot.slane %v1453, %v1461
    %v1463 = vcombine.high %v1462, %v1462
    %v1465 = vunpack.c.l.s4 1966171168
    %v1466 = vunpack.c.0.s8 %v1465
    %v1467 = vlaneseq
    %v1468 = vshrl.u32 %v1467, 7
    %v1469 = vsub.s32 %v1466, %v1468
    %v1470 = vrot.slane %v1462, %v1469
    %v1472 = vunpack.c.l.s4 1966171168
    %v1473 = vunpack.c.0.s8 %v1472
    %v1474 = vlaneseq
    %v1475 = vshrl.u32 %v1474, 7
    %v1476 = vsub.s32 %v1473, %v1475
    %v1477 = vrot.slane %v1463, %v1476
    %v1478 = vsel %vm1454, 1, 0
    %vm1479 = vcmp.eq.s32.totalorder %v1478, 1
    %v1480 = vlaneseq
    %v1481 = vshrl.u32 %v1480, 7
    %v1482 = vsub.s32 0, %v1481
    %v1483 = vrot.slane %v1470, %v1482
    %v1484 = vlaneseq
    %v1485 = vshrl.u32 %v1484, 7
    %v1486 = vsub.s32 0, %v1485
    %v1487 = vrot.slane %v1477, %v1486
    %v1490 = vsel %vm1479, %v1483, %v1327
    %v1491 = vsel %vm1479, %v1487, %v1328
    %1492 = vrot.lane.b32.xlu0 %v1453, 32
    %v1493 = vpop.permute.xlu0 %1492
    %v1494 = vsel %vm275, %v1493, 0
    %1496 = vmatprep.subr.mxu0 0.0
    %1497 = vmatpush1.msra.mxu0 0.0
    %1498 = vmatprep.subr.mxu0 0.0
    %1499 = vmatpush1.msra.mxu0 0.0
    %1500 = vmatprep.subr.mxu0 0.0
    %1501 = vmatpush1.msra.mxu0 0.0
    %1502 = vmatprep.subr.mxu0 0.0
    %1503 = vmatpush1.msra.mxu0 0.0
    %1504 = vmatprep.subr.mxu0 0.0
    %1505 = vmatpush1.msra.mxu0 0.0
    %1506 = vmatprep.subr.mxu0 0.0
    %1507 = vmatpush1.msra.mxu0 0.0
    %1508 = vmatprep.subr.mxu0 0.0
    %1509 = vmatpush1.msra.mxu0 0.0
    %1510 = vmatprep.subr.mxu0 0.0
    %1511 = vmatpush1.msra.mxu0 0.0
    %1512 = vmatprep.subr.mxu0 0.0
    %1513 = vmatpush1.msra.mxu0 0.0
    %1514 = vmatprep.subr.mxu0 0.0
    %1515 = vmatpush1.msra.mxu0 0.0
    %1516 = vmatprep.subr.mxu0 0.0
    %1517 = vmatpush1.msra.mxu0 0.0
    %1518 = vmatprep.subr.mxu0 0.0
    %1519 = vmatpush1.msra.mxu0 0.0
    %1520 = vmatprep.subr.mxu0 0.0
    %1521 = vmatpush1.msra.mxu0 %v263
    %1522 = vmatprep.subr.mxu0 0.0
    %1523 = vmatpush1.msra.mxu0 %v262
    %1524 = vmatprep.subr.mxu0 0.0
    %1525 = vmatpush1.msra.mxu0 %v261
    %1526 = vmatprep.subr.mxu0 0.0
    %1527 = vmatpush1.msra.mxu0 %v260
    %1528 = vmatprep.subr.mxu0 0.0
    %1529 = vmatpush2.msra.mxu0 0.0
    %1530 = vmatprep.subr.mxu0 0.0
    %1531 = vmatpush2.msra.mxu0 0.0
    %1532 = vmatprep.subr.mxu0 0.0
    %1533 = vmatpush2.msra.mxu0 0.0
    %1534 = vmatprep.subr.mxu0 0.0
    %1535 = vmatpush2.msra.mxu0 0.0
    %1536 = vmatprep.subr.mxu0 0.0
    %1537 = vmatpush2.msra.mxu0 0.0
    %1538 = vmatprep.subr.mxu0 0.0
    %1539 = vmatpush2.msra.mxu0 0.0
    %1540 = vmatprep.subr.mxu0 0.0
    %1541 = vmatpush2.msra.mxu0 0.0
    %1542 = vmatprep.subr.mxu0 0.0
    %1543 = vmatpush2.msra.mxu0 0.0
    %1544 = vmatprep.subr.mxu0 0.0
    %1545 = vmatpush2.msra.mxu0 0.0
    %1546 = vmatprep.subr.mxu0 0.0
    %1547 = vmatpush2.msra.mxu0 0.0
    %1548 = vmatprep.subr.mxu0 0.0
    %1549 = vmatpush2.msra.mxu0 0.0
    %1550 = vmatprep.subr.mxu0 0.0
    %1551 = vmatpush2.msra.mxu0 0.0
    %1552 = vmatprep.subr.mxu0 0.0
    %1553 = vmatpush2.msra.mxu0 0.0
    %1554 = vmatprep.subr.mxu0 0.0
    %1555 = vmatpush2.msra.mxu0 0.0
    %1556 = vmatprep.subr.mxu0 0.0
    %1557 = vmatpush2.msra.mxu0 0.0
    %1558 = vmatprep.subr.mxu0 0.0
    %1559 = vmatpush2.msra.mxu0 0.0
    %1560 = vmatprep.mubr.f32.mxu0 0.0
    %1561 = vmatmul.mubr.f32.gmra.mxu0 %v1494
    %v1562 = vpop.f32.mrf.mxu0
    %v1563 = vadd.f32 0.0, %v1562
    %v1564 = vpop.f32.mrf.mxu0
    %1565 = vdwg.mxu0
    %v1567 = vrot.slane %v1563, 1
    %v1568 = vrot.slane %v1563, 2
    %v1571 = vadd.f32 %v349, %v1567
    %v1572 = vadd.f32 %v354, %v1568
    %v1573 = vtanh.pop %v1571
    %v1574 = vtanh.pop %v1572
    %v1575 = vxor.u32 %v1571, 2147483648
    %v1576 = vxor.u32 %v1572, 2147483648
    %v1577 = vmul.f32 %v1575, 1.442695
    %v1578 = vpow.pop %v1577
    %v1579 = vmul.f32 %v1576, 1.442695
    %v1580 = vpow.pop %v1579
    %v1581 = vadd.f32 %v1578, 1.0
    %v1582 = vadd.f32 %v1580, 1.0
    %v1583 = vrcp.pop %v1581
    %v1584 = vmul.f32 1.0, %v1583
    %v1585 = vrcp.pop %v1582
    %v1586 = vmul.f32 1.0, %v1585
    %v1589 = vrot.slane %v1573, 7
    %v1590 = vrot.slane %v1574, 6
    %v1591 = vsel %vm453, %v1590, %v1589
    %v1595 = vrot.slane %v1584, 7
    %v1596 = vrot.slane %v1586, 6
    %v1597 = vsel %vm453, %v1596, %v1595
    %v1599 = vsel %vm163, %v1591, %v1597
    %v1600 = vmul.f32 %v1599, %v1447
    %1602 = vrot.lane.b32.xlu0 %v1599, 64
    %v1603 = vpop.permute.xlu0 %1602
    %v1605 = vmul.f32 %v1599, %v1603
    %1607 = vrot.lane.b32.xlu0 %v1605, 32
    %v1608 = vpop.permute.xlu0 %1607
    %v1610 = vadd.f32 %v1600, %v1608
    %v1611 = vtanh.pop %v1610
    %1613 = vrot.lane.b32.xlu0 %v1611, 64
    %v1614 = vpop.permute.xlu0 %1613
    %v1616 = vmul.f32 %v1599, %v1614
    %vm1617 = vcmp.eq.s32.totalorder %v160, 7
    %v1620 = vunpack.c.l.s4 1966171168
    %v1621 = vunpack.c.0.s8 %v1620
    %v1622 = vlaneseq
    %v1623 = vshrl.u32 %v1622, 7
    %v1624 = vsub.s32 %v1621, %v1623
    %v1625 = vrot.slane %v1616, %v1624
    %v1626 = vcombine.high %v1625, %v1625
    %v1628 = vunpack.c.l.s4 1966171168
    %v1629 = vunpack.c.0.s8 %v1628
    %v1630 = vlaneseq
    %v1631 = vshrl.u32 %v1630, 7
    %v1632 = vsub.s32 %v1629, %v1631
    %v1633 = vrot.slane %v1625, %v1632
    %v1635 = vunpack.c.l.s4 1966171168
    %v1636 = vunpack.c.0.s8 %v1635
    %v1637 = vlaneseq
    %v1638 = vshrl.u32 %v1637, 7
    %v1639 = vsub.s32 %v1636, %v1638
    %v1640 = vrot.slane %v1626, %v1639
    %v1641 = vsel %vm1617, 1, 0
    %vm1642 = vcmp.eq.s32.totalorder %v1641, 1
    %v1643 = vlaneseq
    %v1644 = vshrl.u32 %v1643, 7
    %v1645 = vsub.s32 0, %v1644
    %v1646 = vrot.slane %v1633, %v1645
    %v1647 = vlaneseq
    %v1648 = vshrl.u32 %v1647, 7
    %v1649 = vsub.s32 0, %v1648
    %v1650 = vrot.slane %v1640, %v1649
    %v1653 = vsel %vm1642, %v1646, %v1490
    %v1654 = vsel %vm1642, %v1650, %v1491
    %v1655 = vld [vmem:[#allocation10] sm:$0xff]
    %v1656 = vld [vmem:[#allocation10 + $0x8] sm:$0xff]
    %v1657 = vld [vmem:[#allocation10 + $0x10] sm:$0xff]
    %v1658 = vld [vmem:[#allocation10 + $0x18] sm:$0xff]
    %v1659 = vld [vmem:[#allocation11] sm:$0x1]
    %v1661 = vlaneseq
    %v1662 = vshrl.u32 %v1661, 7
    %v1663 = vsub.s32 0, %v1662
    %v1664 = vrot.slane %v1659, %v1663
    %1668 = vrot.lane.b32.xlu0 %v1653, 32
    %v1669 = vpop.permute.xlu0 %1668
    %1670 = vrot.lane.b32.xlu0 %v1654, 32
    %v1671 = vpop.permute.xlu0 %1670
    %v1672 = vsel %vm275, %v1669, 0
    %v1674 = vsel %vm275, %v1671, 0
    %1676 = vmatprep.subr.mxu0 0.0
    %1677 = vmatpush1.msra.mxu0 0.0
    %1678 = vmatprep.subr.mxu0 0.0
    %1679 = vmatpush1.msra.mxu0 0.0
    %1680 = vmatprep.subr.mxu0 0.0
    %1681 = vmatpush1.msra.mxu0 0.0
    %1682 = vmatprep.subr.mxu0 0.0
    %1683 = vmatpush1.msra.mxu0 0.0
    %1684 = vmatprep.subr.mxu0 0.0
    %1685 = vmatpush1.msra.mxu0 0.0
    %1686 = vmatprep.subr.mxu0 0.0
    %1687 = vmatpush1.msra.mxu0 0.0
    %1688 = vmatprep.subr.mxu0 0.0
    %1689 = vmatpush1.msra.mxu0 0.0
    %1690 = vmatprep.subr.mxu0 0.0
    %1691 = vmatpush1.msra.mxu0 0.0
    %1692 = vmatprep.subr.mxu0 0.0
    %1693 = vmatpush1.msra.mxu0 0.0
    %1694 = vmatprep.subr.mxu0 0.0
    %1695 = vmatpush1.msra.mxu0 0.0
    %1696 = vmatprep.subr.mxu0 0.0
    %1697 = vmatpush1.msra.mxu0 0.0
    %1698 = vmatprep.subr.mxu0 0.0
    %1699 = vmatpush1.msra.mxu0 0.0
    %1700 = vmatprep.subr.mxu0 0.0
    %1701 = vmatpush1.msra.mxu0 %v1658
    %1702 = vmatprep.subr.mxu0 0.0
    %1703 = vmatpush1.msra.mxu0 %v1657
    %1704 = vmatprep.subr.mxu0 0.0
    %1705 = vmatpush1.msra.mxu0 %v1656
    %1706 = vmatprep.subr.mxu0 0.0
    %1707 = vmatpush1.msra.mxu0 %v1655
    %1708 = vmatprep.subr.mxu0 0.0
    %1709 = vmatpush2.msra.mxu0 0.0
    %1710 = vmatprep.subr.mxu0 0.0
    %1711 = vmatpush2.msra.mxu0 0.0
    %1712 = vmatprep.subr.mxu0 0.0
    %1713 = vmatpush2.msra.mxu0 0.0
    %1714 = vmatprep.subr.mxu0 0.0
    %1715 = vmatpush2.msra.mxu0 0.0
    %1716 = vmatprep.subr.mxu0 0.0
    %1717 = vmatpush2.msra.mxu0 0.0
    %1718 = vmatprep.subr.mxu0 0.0
    %1719 = vmatpush2.msra.mxu0 0.0
    %1720 = vmatprep.subr.mxu0 0.0
    %1721 = vmatpush2.msra.mxu0 0.0
    %1722 = vmatprep.subr.mxu0 0.0
    %1723 = vmatpush2.msra.mxu0 0.0
    %1724 = vmatprep.subr.mxu0 0.0
    %1725 = vmatpush2.msra.mxu0 0.0
    %1726 = vmatprep.subr.mxu0 0.0
    %1727 = vmatpush2.msra.mxu0 0.0
    %1728 = vmatprep.subr.mxu0 0.0
    %1729 = vmatpush2.msra.mxu0 0.0
    %1730 = vmatprep.subr.mxu0 0.0
    %1731 = vmatpush2.msra.mxu0 0.0
    %1732 = vmatprep.subr.mxu0 0.0
    %1733 = vmatpush2.msra.mxu0 0.0
    %1734 = vmatprep.subr.mxu0 0.0
    %1735 = vmatpush2.msra.mxu0 0.0
    %1736 = vmatprep.subr.mxu0 0.0
    %1737 = vmatpush2.msra.mxu0 0.0
    %1738 = vmatprep.subr.mxu0 0.0
    %1739 = vmatpush2.msra.mxu0 0.0
    %1740 = vmatprep.mubr.f32.mxu0 0.0
    %1741 = vmatmul.mubr.f32.gmra.mxu0 %v1672
    %v1742 = vpop.f32.mrf.mxu0
    %v1743 = vadd.f32 %v1664, %v1742
    %v1744 = vpop.f32.mrf.mxu0
    %1745 = vmatprep.mubr.f32.mxu0 0.0
    %1746 = vmatmul.mubr.f32.gmra.mxu0 %v1674
    %v1747 = vpop.f32.mrf.mxu0
    %v1748 = vadd.f32 %v1664, %v1747
    %v1749 = vpop.f32.mrf.mxu0
    %1750 = vdwg.mxu0
    %v1751 = vld [vmem:[%s6] sm:$0xff]
    %v1752 = vld [vmem:[%s6 + $0x8] sm:$0xff]
    %v1753 = vld [vmem:[%s6 + $0x10] sm:$0xff]
    %v1754 = vld [vmem:[%s6 + $0x18] sm:$0xff]
    %v1755 = vld [vmem:[%s7] sm:$0xff]
    %v1756 = vld [vmem:[%s7 + $0x8] sm:$0xff]
    %v1757 = vld [vmem:[%s7 + $0x10] sm:$0xff]
    %v1758 = vld [vmem:[%s7 + $0x18] sm:$0xff]
    %v1759 = vld [vmem:[#allocation5] sm:$0x1]
    %v1761 = vlaneseq
    %v1762 = vshrl.u32 %v1761, 7
    %v1763 = vsub.s32 0, %v1762
    %v1764 = vrot.slane %v1759, %v1763
    %v1766 = vld [vmem:[#allocation7] sm:$0xff]
    %v1767 = vld [vmem:[#allocation7 + $0x8] sm:$0xff]
    %v1768 = vld [vmem:[#allocation7 + $0x10] sm:$0xff]
    %v1769 = vld [vmem:[#allocation7 + $0x18] sm:$0xff]
    %v1770 = vld [vmem:[#allocation8] sm:$0x1]
    %v1772 = vlaneseq
    %v1773 = vshrl.u32 %v1772, 7
    %v1774 = vsub.s32 0, %v1773
    %v1775 = vrot.slane %v1770, %v1774
    %v1777 = vld [vmem:[#allocation13] sm:$0x1]
    %v1779 = vlaneseq
    %v1780 = vshrl.u32 %v1779, 7
    %v1781 = vsub.s32 0, %v1780
    %v1782 = vrot.slane %v1777, %v1781
    %v1784 = vld [vmem:[%s14] sm:$0xff]
    %v1785 = vld [vmem:[%s14 + $0x8] sm:$0xff]
    %v1786 = vld [vmem:[%s14 + $0x10] sm:$0xff]
    %v1787 = vld [vmem:[%s14 + $0x18] sm:$0xff]
    %v1788 = vld [vmem:[%s14 + $0x20] sm:$0xff]
    %v1789 = vld [vmem:[%s14 + $0x28] sm:$0xff]
    %v1790 = vld [vmem:[%s14 + $0x30] sm:$0xff]
    %v1791 = vld [vmem:[%s14 + $0x38] sm:$0xff]
    %v1792 = vld [vmem:[%s15] sm:$0x1]
    %v1794 = vlaneseq
    %v1795 = vshrl.u32 %v1794, 7
    %v1796 = vsub.s32 0, %v1795
    %v1797 = vrot.slane %v1792, %v1796
    %v1799 = vld [vmem:[#allocation14] sm:$0x1]
    %v1801 = vlaneseq
    %v1802 = vshrl.u32 %v1801, 7
    %v1803 = vsub.s32 0, %v1802
    %v1804 = vrot.slane %v1799, %v1803
    %1805 = vrot.lane.b32.xlu0 %v1616, 32
    %v1806 = vpop.permute.xlu0 %1805
    %v1807 = vsel %vm275, %v1806, 0
    %1809 = vmatprep.subr.mxu0 0.0
    %1810 = vmatpush1.msra.mxu0 0.0
    %1811 = vmatprep.subr.mxu0 0.0
    %1812 = vmatpush1.msra.mxu0 0.0
    %1813 = vmatprep.subr.mxu0 0.0
    %1814 = vmatpush1.msra.mxu0 0.0
    %1815 = vmatprep.subr.mxu0 0.0
    %1816 = vmatpush1.msra.mxu0 0.0
    %1817 = vmatprep.subr.mxu0 0.0
    %1818 = vmatpush1.msra.mxu0 0.0
    %1819 = vmatprep.subr.mxu0 0.0
    %1820 = vmatpush1.msra.mxu0 0.0
    %1821 = vmatprep.subr.mxu0 0.0
    %1822 = vmatpush1.msra.mxu0 0.0
    %1823 = vmatprep.subr.mxu0 0.0
    %1824 = vmatpush1.msra.mxu0 0.0
    %1825 = vmatprep.subr.mxu0 0.0
    %1826 = vmatpush1.msra.mxu0 0.0
    %1827 = vmatprep.subr.mxu0 0.0
    %1828 = vmatpush1.msra.mxu0 0.0
    %1829 = vmatprep.subr.mxu0 0.0
    %1830 = vmatpush1.msra.mxu0 0.0
    %1831 = vmatprep.subr.mxu0 0.0
    %1832 = vmatpush1.msra.mxu0 0.0
    %1833 = vmatprep.subr.mxu0 0.0
    %1834 = vmatpush1.msra.mxu0 %v1758
    %1835 = vmatprep.subr.mxu0 0.0
    %1836 = vmatpush1.msra.mxu0 %v1757
    %1837 = vmatprep.subr.mxu0 0.0
    %1838 = vmatpush1.msra.mxu0 %v1756
    %1839 = vmatprep.subr.mxu0 0.0
    %1840 = vmatpush1.msra.mxu0 %v1755
    %1841 = vmatprep.subr.mxu0 0.0
    %1842 = vmatpush2.msra.mxu0 0.0
    %1843 = vmatprep.subr.mxu0 0.0
    %1844 = vmatpush2.msra.mxu0 0.0
    %1845 = vmatprep.subr.mxu0 0.0
    %1846 = vmatpush2.msra.mxu0 0.0
    %1847 = vmatprep.subr.mxu0 0.0
    %1848 = vmatpush2.msra.mxu0 0.0
    %1849 = vmatprep.subr.mxu0 0.0
    %1850 = vmatpush2.msra.mxu0 0.0
    %1851 = vmatprep.subr.mxu0 0.0
    %1852 = vmatpush2.msra.mxu0 0.0
    %1853 = vmatprep.subr.mxu0 0.0
    %1854 = vmatpush2.msra.mxu0 0.0
    %1855 = vmatprep.subr.mxu0 0.0
    %1856 = vmatpush2.msra.mxu0 0.0
    %1857 = vmatprep.subr.mxu0 0.0
    %1858 = vmatpush2.msra.mxu0 0.0
    %1859 = vmatprep.subr.mxu0 0.0
    %1860 = vmatpush2.msra.mxu0 0.0
    %1861 = vmatprep.subr.mxu0 0.0
    %1862 = vmatpush2.msra.mxu0 0.0
    %1863 = vmatprep.subr.mxu0 0.0
    %1864 = vmatpush2.msra.mxu0 0.0
    %1865 = vmatprep.subr.mxu0 0.0
    %1866 = vmatpush2.msra.mxu0 0.0
    %1867 = vmatprep.subr.mxu0 0.0
    %1868 = vmatpush2.msra.mxu0 0.0
    %1869 = vmatprep.subr.mxu0 0.0
    %1870 = vmatpush2.msra.mxu0 0.0
    %1871 = vmatprep.subr.mxu0 0.0
    %1872 = vmatpush2.msra.mxu0 0.0
    %1873 = vmatprep.mubr.f32.mxu0 0.0
    %1874 = vmatmul.mubr.f32.gmra.mxu0 %v1807
    %v1875 = vpop.f32.mrf.mxu0
    %v1876 = vadd.f32 0.0, %v1875
    %v1877 = vpop.f32.mrf.mxu0
    %1878 = vdwg.mxu0
    %v1879 = vsel %vm275, %v1804, 0
    %1881 = vmatprep.subr.mxu0 0.0
    %1882 = vmatpush1.msra.mxu0 0.0
    %1883 = vmatprep.subr.mxu0 0.0
    %1884 = vmatpush1.msra.mxu0 0.0
    %1885 = vmatprep.subr.mxu0 0.0
    %1886 = vmatpush1.msra.mxu0 0.0
    %1887 = vmatprep.subr.mxu0 0.0
    %1888 = vmatpush1.msra.mxu0 0.0
    %1889 = vmatprep.subr.mxu0 0.0
    %1890 = vmatpush1.msra.mxu0 0.0
    %1891 = vmatprep.subr.mxu0 0.0
    %1892 = vmatpush1.msra.mxu0 0.0
    %1893 = vmatprep.subr.mxu0 0.0
    %1894 = vmatpush1.msra.mxu0 0.0
    %1895 = vmatprep.subr.mxu0 0.0
    %1896 = vmatpush1.msra.mxu0 0.0
    %1897 = vmatprep.subr.mxu0 0.0
    %1898 = vmatpush1.msra.mxu0 0.0
    %1899 = vmatprep.subr.mxu0 0.0
    %1900 = vmatpush1.msra.mxu0 0.0
    %1901 = vmatprep.subr.mxu0 0.0
    %1902 = vmatpush1.msra.mxu0 0.0
    %1903 = vmatprep.subr.mxu0 0.0
    %1904 = vmatpush1.msra.mxu0 0.0
    %1905 = vmatprep.subr.mxu0 0.0
    %1906 = vmatpush1.msra.mxu0 %v1754
    %1907 = vmatprep.subr.mxu0 0.0
    %1908 = vmatpush1.msra.mxu0 %v1753
    %1909 = vmatprep.subr.mxu0 0.0
    %1910 = vmatpush1.msra.mxu0 %v1752
    %1911 = vmatprep.subr.mxu0 0.0
    %1912 = vmatpush1.msra.mxu0 %v1751
    %1913 = vmatprep.subr.mxu0 0.0
    %1914 = vmatpush2.msra.mxu0 0.0
    %1915 = vmatprep.subr.mxu0 0.0
    %1916 = vmatpush2.msra.mxu0 0.0
    %1917 = vmatprep.subr.mxu0 0.0
    %1918 = vmatpush2.msra.mxu0 0.0
    %1919 = vmatprep.subr.mxu0 0.0
    %1920 = vmatpush2.msra.mxu0 0.0
    %1921 = vmatprep.subr.mxu0 0.0
    %1922 = vmatpush2.msra.mxu0 0.0
    %1923 = vmatprep.subr.mxu0 0.0
    %1924 = vmatpush2.msra.mxu0 0.0
    %1925 = vmatprep.subr.mxu0 0.0
    %1926 = vmatpush2.msra.mxu0 0.0
    %1927 = vmatprep.subr.mxu0 0.0
    %1928 = vmatpush2.msra.mxu0 0.0
    %1929 = vmatprep.subr.mxu0 0.0
    %1930 = vmatpush2.msra.mxu0 0.0
    %1931 = vmatprep.subr.mxu0 0.0
    %1932 = vmatpush2.msra.mxu0 0.0
    %1933 = vmatprep.subr.mxu0 0.0
    %1934 = vmatpush2.msra.mxu0 0.0
    %1935 = vmatprep.subr.mxu0 0.0
    %1936 = vmatpush2.msra.mxu0 0.0
    %1937 = vmatprep.subr.mxu0 0.0
    %1938 = vmatpush2.msra.mxu0 0.0
    %1939 = vmatprep.subr.mxu0 0.0
    %1940 = vmatpush2.msra.mxu0 0.0
    %1941 = vmatprep.subr.mxu0 0.0
    %1942 = vmatpush2.msra.mxu0 0.0
    %1943 = vmatprep.subr.mxu0 0.0
    %1944 = vmatpush2.msra.mxu0 0.0
    %1945 = vmatprep.mubr.f32.mxu0 0.0
    %1946 = vmatmul.mubr.f32.gmra.mxu0 %v1879
    %v1947 = vpop.f32.mrf.mxu0
    %v1948 = vadd.f32 %v1876, %v1947
    %v1949 = vpop.f32.mrf.mxu0
    %1950 = vdwg.mxu0
    %v1951 = vadd.f32 %v1948, %v1764
    %v1952 = vtanh.pop %v1951
    %v1953 = vxor.u32 %v1951, 2147483648
    %v1954 = vmul.f32 %v1953, 1.442695
    %v1955 = vpow.pop %v1954
    %v1956 = vadd.f32 %v1955, 1.0
    %v1957 = vrcp.pop %v1956
    %v1958 = vmul.f32 1.0, %v1957
    %v1959 = vsel %vm163, %v1952, %v1958
    %v1960 = vmul.f32 %v1959, %v1610
    %1962 = vrot.lane.b32.xlu0 %v1959, 64
    %v1963 = vpop.permute.xlu0 %1962
    %v1965 = vmul.f32 %v1959, %v1963
    %1967 = vrot.lane.b32.xlu0 %v1965, 32
    %v1968 = vpop.permute.xlu0 %1967
    %v1970 = vadd.f32 %v1960, %v1968
    %v1971 = vtanh.pop %v1970
    %1973 = vrot.lane.b32.xlu0 %v1971, 64
    %v1974 = vpop.permute.xlu0 %1973
    %v1976 = vmul.f32 %v1959, %v1974
    %1978 = vrot.lane.b32.xlu0 %v1976, 32
    %v1979 = vpop.permute.xlu0 %1978
    %v1980 = vsel %vm275, %v1979, 0
    %1982 = vmatprep.subr.mxu0 0.0
    %1983 = vmatpush1.msra.mxu0 0.0
    %1984 = vmatprep.subr.mxu0 0.0
    %1985 = vmatpush1.msra.mxu0 0.0
    %1986 = vmatprep.subr.mxu0 0.0
    %1987 = vmatpush1.msra.mxu0 0.0
    %1988 = vmatprep.subr.mxu0 0.0
    %1989 = vmatpush1.msra.mxu0 0.0
    %1990 = vmatprep.subr.mxu0 0.0
    %1991 = vmatpush1.msra.mxu0 0.0
    %1992 = vmatprep.subr.mxu0 0.0
    %1993 = vmatpush1.msra.mxu0 0.0
    %1994 = vmatprep.subr.mxu0 0.0
    %1995 = vmatpush1.msra.mxu0 0.0
    %1996 = vmatprep.subr.mxu0 0.0
    %1997 = vmatpush1.msra.mxu0 0.0
    %1998 = vmatprep.subr.mxu0 0.0
    %1999 = vmatpush1.msra.mxu0 0.0
    %2000 = vmatprep.subr.mxu0 0.0
    %2001 = vmatpush1.msra.mxu0 0.0
    %2002 = vmatprep.subr.mxu0 0.0
    %2003 = vmatpush1.msra.mxu0 0.0
    %2004 = vmatprep.subr.mxu0 0.0
    %2005 = vmatpush1.msra.mxu0 0.0
    %2006 = vmatprep.subr.mxu0 0.0
    %2007 = vmatpush1.msra.mxu0 %v1769
    %2008 = vmatprep.subr.mxu0 0.0
    %2009 = vmatpush1.msra.mxu0 %v1768
    %2010 = vmatprep.subr.mxu0 0.0
    %2011 = vmatpush1.msra.mxu0 %v1767
    %2012 = vmatprep.subr.mxu0 0.0
    %2013 = vmatpush1.msra.mxu0 %v1766
    %2014 = vmatprep.subr.mxu0 0.0
    %2015 = vmatpush2.msra.mxu0 0.0
    %2016 = vmatprep.subr.mxu0 0.0
    %2017 = vmatpush2.msra.mxu0 0.0
    %2018 = vmatprep.subr.mxu0 0.0
    %2019 = vmatpush2.msra.mxu0 0.0
    %2020 = vmatprep.subr.mxu0 0.0
    %2021 = vmatpush2.msra.mxu0 0.0
    %2022 = vmatprep.subr.mxu0 0.0
    %2023 = vmatpush2.msra.mxu0 0.0
    %2024 = vmatprep.subr.mxu0 0.0
    %2025 = vmatpush2.msra.mxu0 0.0
    %2026 = vmatprep.subr.mxu0 0.0
    %2027 = vmatpush2.msra.mxu0 0.0
    %2028 = vmatprep.subr.mxu0 0.0
    %2029 = vmatpush2.msra.mxu0 0.0
    %2030 = vmatprep.subr.mxu0 0.0
    %2031 = vmatpush2.msra.mxu0 0.0
    %2032 = vmatprep.subr.mxu0 0.0
    %2033 = vmatpush2.msra.mxu0 0.0
    %2034 = vmatprep.subr.mxu0 0.0
    %2035 = vmatpush2.msra.mxu0 0.0
    %2036 = vmatprep.subr.mxu0 0.0
    %2037 = vmatpush2.msra.mxu0 0.0
    %2038 = vmatprep.subr.mxu0 0.0
    %2039 = vmatpush2.msra.mxu0 0.0
    %2040 = vmatprep.subr.mxu0 0.0
    %2041 = vmatpush2.msra.mxu0 0.0
    %2042 = vmatprep.subr.mxu0 0.0
    %2043 = vmatpush2.msra.mxu0 0.0
    %2044 = vmatprep.subr.mxu0 0.0
    %2045 = vmatpush2.msra.mxu0 0.0
    %2046 = vmatprep.mubr.f32.mxu0 0.0
    %2047 = vmatmul.mubr.f32.gmra.mxu0 %v1980
    %v2048 = vpop.f32.mrf.mxu0
    %v2049 = vadd.f32 %v1775, %v2048
    %v2050 = vpop.f32.mrf.mxu0
    %2051 = vdwg.mxu0
    %v2054 = vunpack.c.l.s4 1966171168
    %v2055 = vunpack.c.0.s8 %v2054
    %v2056 = vlaneseq
    %v2057 = vshrl.u32 %v2056, 7
    %v2058 = vsub.s32 %v2055, %v2057
    %v2059 = vrot.slane %v2049, %v2058
    %v2060 = vcombine.high %v2059, %v2059
    %v2062 = vunpack.c.l.s4 1966171168
    %v2063 = vunpack.c.0.s8 %v2062
    %v2064 = vlaneseq
    %v2065 = vshrl.u32 %v2064, 7
    %v2066 = vsub.s32 %v2063, %v2065
    %v2067 = vrot.slane %v2059, %v2066
    %v2069 = vunpack.c.l.s4 1966171168
    %v2070 = vunpack.c.0.s8 %v2069
    %v2071 = vlaneseq
    %v2072 = vshrl.u32 %v2071, 7
    %v2073 = vsub.s32 %v2070, %v2072
    %v2074 = vrot.slane %v2060, %v2073
    %v2075 = vlaneseq
    %v2076 = vshrl.u32 %v2075, 7
    %v2077 = vsub.s32 0, %v2076
    %v2078 = vrot.slane %v2067, %v2077
    %v2079 = vlaneseq
    %v2080 = vshrl.u32 %v2079, 7
    %v2081 = vsub.s32 0, %v2080
    %v2082 = vrot.slane %v2074, %v2081
    %v2085 = vadd.f32 %v2078, %v1743
    %v2086 = vadd.f32 %v2082, %v1748
    %v2087 = vtanh.pop %v2085
    %v2088 = vtanh.pop %v2086
    %v2089 = vmul.f32 %v2087, %v1782
    %v2090 = vmul.f32 %v2088, %v1782
    %v2091 = vsel %vm275, %v2089, 0.0
    %2092 = vadd.xlane.f32.xlu0 %v2091
    %v2093 = vpop.xlane.xlu0 %2092
    %v2094 = vsel %vm275, %v2090, 0.0
    %2095 = vadd.xlane.f32.xlu0 %v2094
    %v2096 = vpop.xlane.xlu0 %2095
    %vm2097 = vcmp.gt.f32.partialorder 1.0, 0.0
    %v2098 = vsel %vm2097, %v2093, -1e+30
    %v2099 = vsel %vm2097, %v2096, -1e+30
    %v2102 = vlaneseq
    %v2103 = vshrl.u32 %v2102, 7
    %v2104 = vsub.s32 %v158, %v2103
    %v2105 = vrot.slane %v2098, %v2104
    %v2106 = vlaneseq
    %v2107 = vshrl.u32 %v2106, 7
    %v2108 = vsub.s32 %v158, %v2107
    %v2109 = vrot.slane %v2099, %v2108
    %v2110 = vsel %vm453, %v2109, %v2105
    %vm2112 = vcmask 58368
    %v2113 = vsel %vm2112, %v2110, -inf
    %2114 = vmax.xlane.f32.xlu0 %v2113
    %v2115 = vpop.xlane.xlu0 %2114
    %v2117 = vlaneseq
    %v2118 = vshrl.u32 %v2117, 7
    %v2119 = vsub.s32 0, %v2118
    %v2120 = vrot.slane %v2115, %v2119
    %v2121 = vlaneseq
    %v2122 = vshrl.u32 %v2121, 7
    %v2123 = vsub.s32 1, %v2122
    %v2124 = vrot.slane %v2115, %v2123
    %v2127 = vsub.f32 %v2098, %v2120
    %v2128 = vsub.f32 %v2099, %v2124
    %v2129 = vmul.f32 %v2127, 1.442695
    %v2130 = vpow.pop %v2129
    %v2131 = vmul.f32 %v2128, 1.442695
    %v2132 = vpow.pop %v2131
    %2135 = vset.pattern.permute.xlu0 0
    %2136 = vperm.xlu0 %2135, %v2130
    %v2137 = vpop.permute.xlu0 %2136
    %2138 = vset.pattern.permute.xlu0 0
    %2139 = vperm.xlu0 %2138, %v2132
    %v2140 = vpop.permute.xlu0 %2139
    %v2141 = vlaneseq
    %v2142 = vshrl.u32 %v2141, 7
    %v2143 = vsub.s32 %v158, %v2142
    %v2144 = vrot.slane %v2137, %v2143
    %v2145 = vlaneseq
    %v2146 = vshrl.u32 %v2145, 7
    %v2147 = vsub.s32 %v158, %v2146
    %v2148 = vrot.slane %v2140, %v2147
    %v2149 = vsel %vm453, %v2148, %v2144
    %v2151 = vsel %vm2112, %v2149, 0.0
    %2152 = vadd.xlane.f32.xlu0 %v2151
    %v2153 = vpop.xlane.xlu0 %2152
    %v2154 = vrcp.pop %v2153
    %v2156 = vlaneseq
    %v2157 = vshrl.u32 %v2156, 7
    %v2158 = vsub.s32 0, %v2157
    %v2159 = vrot.slane %v2154, %v2158
    %v2160 = vlaneseq
    %v2161 = vshrl.u32 %v2160, 7
    %v2162 = vsub.s32 1, %v2161
    %v2163 = vrot.slane %v2154, %v2162
    %v2166 = vmul.f32 %v2130, %v2159
    %v2167 = vmul.f32 %v2132, %v2163
    %2169 = vset.pattern.permute.xlu0 0
    %2170 = vperm.xlu0 %2169, %v2166
    %v2171 = vpop.permute.xlu0 %2170
    %v2172 = vlaneseq
    %v2173 = vshrl.u32 %v2172, 7
    %v2174 = vsub.s32 %v158, %v2173
    %v2175 = vrot.slane %v2171, %v2174
    %vm2176 = vcmask 64512
    %v2177 = vsel %vm2176, %v2175, 0
    %2179 = vmatprep.subr.mxu0 0.0
    %2180 = vmatpush1.msra.mxu0 0.0
    %2181 = vmatprep.subr.mxu0 0.0
    %2182 = vmatpush1.msra.mxu0 0.0
    %2183 = vmatprep.subr.mxu0 0.0
    %2184 = vmatpush1.msra.mxu0 0.0
    %2185 = vmatprep.subr.mxu0 0.0
    %2186 = vmatpush1.msra.mxu0 0.0
    %2187 = vmatprep.subr.mxu0 0.0
    %2188 = vmatpush1.msra.mxu0 0.0
    %2189 = vmatprep.subr.mxu0 0.0
    %2190 = vmatpush1.msra.mxu0 0.0
    %2191 = vmatprep.subr.mxu0 0.0
    %2192 = vmatpush1.msra.mxu0 0.0
    %2193 = vmatprep.subr.mxu0 0.0
    %2194 = vmatpush1.msra.mxu0 0.0
    %2195 = vmatprep.subr.mxu0 0.0
    %2196 = vmatpush1.msra.mxu0 0.0
    %2197 = vmatprep.subr.mxu0 0.0
    %2198 = vmatpush1.msra.mxu0 0.0
    %2199 = vmatprep.subr.mxu0 0.0
    %2200 = vmatpush1.msra.mxu0 0.0
    %2201 = vmatprep.subr.mxu0 0.0
    %2202 = vmatpush1.msra.mxu0 0.0
    %2203 = vmatprep.subr.mxu0 0.0
    %2204 = vmatpush1.msra.mxu0 0.0
    %2205 = vmatprep.subr.mxu0 0.0
    %2206 = vmatpush1.msra.mxu0 0.0
    %2207 = vmatprep.subr.mxu0 0.0
    %2208 = vmatpush1.msra.mxu0 0.0
    %2209 = vmatprep.subr.mxu0 0.0
    %2210 = vmatpush1.msra.mxu0 %v1743
    %2211 = vmatprep.subr.mxu0 0.0
    %2212 = vmatpush2.msra.mxu0 0.0
    %2213 = vmatprep.subr.mxu0 0.0
    %2214 = vmatpush2.msra.mxu0 0.0
    %2215 = vmatprep.subr.mxu0 0.0
    %2216 = vmatpush2.msra.mxu0 0.0
    %2217 = vmatprep.subr.mxu0 0.0
    %2218 = vmatpush2.msra.mxu0 0.0
    %2219 = vmatprep.subr.mxu0 0.0
    %2220 = vmatpush2.msra.mxu0 0.0
    %2221 = vmatprep.subr.mxu0 0.0
    %2222 = vmatpush2.msra.mxu0 0.0
    %2223 = vmatprep.subr.mxu0 0.0
    %2224 = vmatpush2.msra.mxu0 0.0
    %2225 = vmatprep.subr.mxu0 0.0
    %2226 = vmatpush2.msra.mxu0 0.0
    %2227 = vmatprep.subr.mxu0 0.0
    %2228 = vmatpush2.msra.mxu0 0.0
    %2229 = vmatprep.subr.mxu0 0.0
    %2230 = vmatpush2.msra.mxu0 0.0
    %2231 = vmatprep.subr.mxu0 0.0
    %2232 = vmatpush2.msra.mxu0 0.0
    %2233 = vmatprep.subr.mxu0 0.0
    %2234 = vmatpush2.msra.mxu0 0.0
    %2235 = vmatprep.subr.mxu0 0.0
    %2236 = vmatpush2.msra.mxu0 0.0
    %2237 = vmatprep.subr.mxu0 0.0
    %2238 = vmatpush2.msra.mxu0 0.0
    %2239 = vmatprep.subr.mxu0 0.0
    %2240 = vmatpush2.msra.mxu0 0.0
    %2241 = vmatprep.subr.mxu0 0.0
    %2242 = vmatpush2.msra.mxu0 0.0
    %2243 = vmatprep.mubr.f32.mxu0 0.0
    %2244 = vmatmul.mubr.f32.gmra.mxu0 %v2177
    %v2245 = vpop.f32.mrf.mxu0
    %v2246 = vadd.f32 0.0, %v2245
    %v2247 = vpop.f32.mrf.mxu0
    %2248 = vdwg.mxu0
    %2250 = vset.pattern.permute.xlu0 0
    %2251 = vperm.xlu0 %2250, %v2167
    %v2252 = vpop.permute.xlu0 %2251
    %v2253 = vlaneseq
    %v2254 = vshrl.u32 %v2253, 7
    %v2255 = vsub.s32 %v158, %v2254
    %v2256 = vrot.slane %v2252, %v2255
    %v2257 = vsel %vm2176, %v2256, 0
    %2259 = vmatprep.subr.mxu0 0.0
    %2260 = vmatpush1.msra.mxu0 0.0
    %2261 = vmatprep.subr.mxu0 0.0
    %2262 = vmatpush1.msra.mxu0 0.0
    %2263 = vmatprep.subr.mxu0 0.0
    %2264 = vmatpush1.msra.mxu0 0.0
    %2265 = vmatprep.subr.mxu0 0.0
    %2266 = vmatpush1.msra.mxu0 0.0
    %2267 = vmatprep.subr.mxu0 0.0
    %2268 = vmatpush1.msra.mxu0 0.0
    %2269 = vmatprep.subr.mxu0 0.0
    %2270 = vmatpush1.msra.mxu0 0.0
    %2271 = vmatprep.subr.mxu0 0.0
    %2272 = vmatpush1.msra.mxu0 0.0
    %2273 = vmatprep.subr.mxu0 0.0
    %2274 = vmatpush1.msra.mxu0 0.0
    %2275 = vmatprep.subr.mxu0 0.0
    %2276 = vmatpush1.msra.mxu0 0.0
    %2277 = vmatprep.subr.mxu0 0.0
    %2278 = vmatpush1.msra.mxu0 0.0
    %2279 = vmatprep.subr.mxu0 0.0
    %2280 = vmatpush1.msra.mxu0 0.0
    %2281 = vmatprep.subr.mxu0 0.0
    %2282 = vmatpush1.msra.mxu0 0.0
    %2283 = vmatprep.subr.mxu0 0.0
    %2284 = vmatpush1.msra.mxu0 0.0
    %2285 = vmatprep.subr.mxu0 0.0
    %2286 = vmatpush1.msra.mxu0 0.0
    %2287 = vmatprep.subr.mxu0 0.0
    %2288 = vmatpush1.msra.mxu0 0.0
    %2289 = vmatprep.subr.mxu0 0.0
    %2290 = vmatpush1.msra.mxu0 %v1748
    %2291 = vmatprep.subr.mxu0 0.0
    %2292 = vmatpush2.msra.mxu0 0.0
    %2293 = vmatprep.subr.mxu0 0.0
    %2294 = vmatpush2.msra.mxu0 0.0
    %2295 = vmatprep.subr.mxu0 0.0
    %2296 = vmatpush2.msra.mxu0 0.0
    %2297 = vmatprep.subr.mxu0 0.0
    %2298 = vmatpush2.msra.mxu0 0.0
    %2299 = vmatprep.subr.mxu0 0.0
    %2300 = vmatpush2.msra.mxu0 0.0
    %2301 = vmatprep.subr.mxu0 0.0
    %2302 = vmatpush2.msra.mxu0 0.0
    %2303 = vmatprep.subr.mxu0 0.0
    %2304 = vmatpush2.msra.mxu0 0.0
    %2305 = vmatprep.subr.mxu0 0.0
    %2306 = vmatpush2.msra.mxu0 0.0
    %2307 = vmatprep.subr.mxu0 0.0
    %2308 = vmatpush2.msra.mxu0 0.0
    %2309 = vmatprep.subr.mxu0 0.0
    %2310 = vmatpush2.msra.mxu0 0.0
    %2311 = vmatprep.subr.mxu0 0.0
    %2312 = vmatpush2.msra.mxu0 0.0
    %2313 = vmatprep.subr.mxu0 0.0
    %2314 = vmatpush2.msra.mxu0 0.0
    %2315 = vmatprep.subr.mxu0 0.0
    %2316 = vmatpush2.msra.mxu0 0.0
    %2317 = vmatprep.subr.mxu0 0.0
    %2318 = vmatpush2.msra.mxu0 0.0
    %2319 = vmatprep.subr.mxu0 0.0
    %2320 = vmatpush2.msra.mxu0 0.0
    %2321 = vmatprep.subr.mxu0 0.0
    %2322 = vmatpush2.msra.mxu0 0.0
    %2323 = vmatprep.mubr.f32.mxu0 0.0
    %2324 = vmatmul.mubr.f32.gmra.mxu0 %v2257
    %v2325 = vpop.f32.mrf.mxu0
    %v2326 = vadd.f32 0.0, %v2325
    %v2327 = vpop.f32.mrf.mxu0
    %2328 = vdwg.mxu0
    %2329 = vmatprep.subr.mxu0 0.0
    %2330 = vmatpush1.msra.mxu0 0.0
    %2331 = vmatprep.subr.mxu0 0.0
    %2332 = vmatpush1.msra.mxu0 0.0
    %2333 = vmatprep.subr.mxu0 0.0
    %2334 = vmatpush1.msra.mxu0 0.0
    %2335 = vmatprep.subr.mxu0 0.0
    %2336 = vmatpush1.msra.mxu0 0.0
    %2337 = vmatprep.subr.mxu0 0.0
    %2338 = vmatpush1.msra.mxu0 0.0
    %2339 = vmatprep.subr.mxu0 0.0
    %2340 = vmatpush1.msra.mxu0 0.0
    %2341 = vmatprep.subr.mxu0 0.0
    %2342 = vmatpush1.msra.mxu0 0.0
    %2343 = vmatprep.subr.mxu0 0.0
    %2344 = vmatpush1.msra.mxu0 0.0
    %2345 = vmatprep.subr.mxu0 0.0
    %2346 = vmatpush1.msra.mxu0 0.0
    %2347 = vmatprep.subr.mxu0 0.0
    %2348 = vmatpush1.msra.mxu0 0.0
    %2349 = vmatprep.subr.mxu0 0.0
    %2350 = vmatpush1.msra.mxu0 0.0
    %2351 = vmatprep.subr.mxu0 0.0
    %2352 = vmatpush1.msra.mxu0 0.0
    %2353 = vmatprep.subr.mxu0 0.0
    %2354 = vmatpush1.msra.mxu0 %v1791
    %2355 = vmatprep.subr.mxu0 0.0
    %2356 = vmatpush1.msra.mxu0 %v1790
    %2357 = vmatprep.subr.mxu0 0.0
    %2358 = vmatpush1.msra.mxu0 %v1789
    %2359 = vmatprep.subr.mxu0 0.0
    %2360 = vmatpush1.msra.mxu0 %v1788
    %2361 = vmatprep.subr.mxu0 0.0
    %2362 = vmatpush2.msra.mxu0 0.0
    %2363 = vmatprep.subr.mxu0 0.0
    %2364 = vmatpush2.msra.mxu0 0.0
    %2365 = vmatprep.subr.mxu0 0.0
    %2366 = vmatpush2.msra.mxu0 0.0
    %2367 = vmatprep.subr.mxu0 0.0
    %2368 = vmatpush2.msra.mxu0 0.0
    %2369 = vmatprep.subr.mxu0 0.0
    %2370 = vmatpush2.msra.mxu0 0.0
    %2371 = vmatprep.subr.mxu0 0.0
    %2372 = vmatpush2.msra.mxu0 0.0
    %2373 = vmatprep.subr.mxu0 0.0
    %2374 = vmatpush2.msra.mxu0 0.0
    %2375 = vmatprep.subr.mxu0 0.0
    %2376 = vmatpush2.msra.mxu0 0.0
    %2377 = vmatprep.subr.mxu0 0.0
    %2378 = vmatpush2.msra.mxu0 0.0
    %2379 = vmatprep.subr.mxu0 0.0
    %2380 = vmatpush2.msra.mxu0 0.0
    %2381 = vmatprep.subr.mxu0 0.0
    %2382 = vmatpush2.msra.mxu0 0.0
    %2383 = vmatprep.subr.mxu0 0.0
    %2384 = vmatpush2.msra.mxu0 0.0
    %2385 = vmatprep.subr.mxu0 0.0
    %2386 = vmatpush2.msra.mxu0 0.0
    %2387 = vmatprep.subr.mxu0 0.0
    %2388 = vmatpush2.msra.mxu0 0.0
    %2389 = vmatprep.subr.mxu0 0.0
    %2390 = vmatpush2.msra.mxu0 0.0
    %2391 = vmatprep.subr.mxu0 0.0
    %2392 = vmatpush2.msra.mxu0 0.0
    %2393 = vmatprep.mubr.f32.mxu0 0.0
    %2394 = vmatmul.mubr.f32.gmra.mxu0 %v1980
    %v2395 = vpop.f32.mrf.mxu0
    %v2396 = vadd.f32 0.0, %v2395
    %v2397 = vpop.f32.mrf.mxu0
    %2398 = vdwg.mxu0
    %v2401 = vrot.slane %v2326, 7
    %v2402 = vsel %vm453, %v2401, %v2246
    %v2403 = vsel %vm275, %v2402, 0
    %2405 = vmatprep.subr.mxu0 0.0
    %2406 = vmatpush1.msra.mxu0 0.0
    %2407 = vmatprep.subr.mxu0 0.0
    %2408 = vmatpush1.msra.mxu0 0.0
    %2409 = vmatprep.subr.mxu0 0.0
    %2410 = vmatpush1.msra.mxu0 0.0
    %2411 = vmatprep.subr.mxu0 0.0
    %2412 = vmatpush1.msra.mxu0 0.0
    %2413 = vmatprep.subr.mxu0 0.0
    %2414 = vmatpush1.msra.mxu0 0.0
    %2415 = vmatprep.subr.mxu0 0.0
    %2416 = vmatpush1.msra.mxu0 0.0
    %2417 = vmatprep.subr.mxu0 0.0
    %2418 = vmatpush1.msra.mxu0 0.0
    %2419 = vmatprep.subr.mxu0 0.0
    %2420 = vmatpush1.msra.mxu0 0.0
    %2421 = vmatprep.subr.mxu0 0.0
    %2422 = vmatpush1.msra.mxu0 0.0
    %2423 = vmatprep.subr.mxu0 0.0
    %2424 = vmatpush1.msra.mxu0 0.0
    %2425 = vmatprep.subr.mxu0 0.0
    %2426 = vmatpush1.msra.mxu0 0.0
    %2427 = vmatprep.subr.mxu0 0.0
    %2428 = vmatpush1.msra.mxu0 0.0
    %2429 = vmatprep.subr.mxu0 0.0
    %2430 = vmatpush1.msra.mxu0 %v1787
    %2431 = vmatprep.subr.mxu0 0.0
    %2432 = vmatpush1.msra.mxu0 %v1786
    %2433 = vmatprep.subr.mxu0 0.0
    %2434 = vmatpush1.msra.mxu0 %v1785
    %2435 = vmatprep.subr.mxu0 0.0
    %2436 = vmatpush1.msra.mxu0 %v1784
    %2437 = vmatprep.subr.mxu0 0.0
    %2438 = vmatpush2.msra.mxu0 0.0
    %2439 = vmatprep.subr.mxu0 0.0
    %2440 = vmatpush2.msra.mxu0 0.0
    %2441 = vmatprep.subr.mxu0 0.0
    %2442 = vmatpush2.msra.mxu0 0.0
    %2443 = vmatprep.subr.mxu0 0.0
    %2444 = vmatpush2.msra.mxu0 0.0
    %2445 = vmatprep.subr.mxu0 0.0
    %2446 = vmatpush2.msra.mxu0 0.0
    %2447 = vmatprep.subr.mxu0 0.0
    %2448 = vmatpush2.msra.mxu0 0.0
    %2449 = vmatprep.subr.mxu0 0.0
    %2450 = vmatpush2.msra.mxu0 0.0
    %2451 = vmatprep.subr.mxu0 0.0
    %2452 = vmatpush2.msra.mxu0 0.0
    %2453 = vmatprep.subr.mxu0 0.0
    %2454 = vmatpush2.msra.mxu0 0.0
    %2455 = vmatprep.subr.mxu0 0.0
    %2456 = vmatpush2.msra.mxu0 0.0
    %2457 = vmatprep.subr.mxu0 0.0
    %2458 = vmatpush2.msra.mxu0 0.0
    %2459 = vmatprep.subr.mxu0 0.0
    %2460 = vmatpush2.msra.mxu0 0.0
    %2461 = vmatprep.subr.mxu0 0.0
    %2462 = vmatpush2.msra.mxu0 0.0
    %2463 = vmatprep.subr.mxu0 0.0
    %2464 = vmatpush2.msra.mxu0 0.0
    %2465 = vmatprep.subr.mxu0 0.0
    %2466 = vmatpush2.msra.mxu0 0.0
    %2467 = vmatprep.subr.mxu0 0.0
    %2468 = vmatpush2.msra.mxu0 0.0
    %2469 = vmatprep.mubr.f32.mxu0 0.0
    %2470 = vmatmul.mubr.f32.gmra.mxu0 %v2403
    %v2471 = vpop.f32.mrf.mxu0
    %v2472 = vadd.f32 %v2396, %v2471
    %v2473 = vpop.f32.mrf.mxu0
    %2474 = vdwg.mxu0
    %v2475 = vadd.f32 %v2472, %v1797
    %v2476 = vtanh.pop %v2475
    %v2477 = vsel %vm453, %v2256, %v2175
    %v2479 = vsel %vm2112, %v2477, -inf
    %2480 = vmax.xlane.f32.xlu0 %v2479
    %v2481 = vpop.xlane.xlu0 %2480
    %v2483 = vlaneseq
    %v2484 = vshrl.u32 %v2483, 7
    %v2485 = vsub.s32 0, %v2484
    %v2486 = vrot.slane %v2481, %v2485
    %v2487 = vlaneseq
    %v2488 = vshrl.u32 %v2487, 7
    %v2489 = vsub.s32 1, %v2488
    %v2490 = vrot.slane %v2481, %v2489
    %vm2493 = vcmp.eq.f32.partialorder %v2166, %v2486
    %vm2494 = vcmp.eq.f32.partialorder %v2167, %v2490
    %2496 = vbcast.lane.b32.xlu0 %v158, 256
    %v2497 = vpop.permute.xlu0 %2496
    %v2498 = vsel %vm2493, %v2497, 8
    %v2499 = vsel %vm2494, %v2497, 8
    %2500 = vset.pattern.permute.xlu0 0
    %2501 = vperm.xlu0 %2500, %v2498
    %v2502 = vpop.permute.xlu0 %2501
    %2503 = vset.pattern.permute.xlu0 0
    %2504 = vperm.xlu0 %2503, %v2499
    %v2505 = vpop.permute.xlu0 %2504
    %v2506 = vlaneseq
    %v2507 = vshrl.u32 %v2506, 7
    %v2508 = vsub.s32 %v158, %v2507
    %v2509 = vrot.slane %v2502, %v2508
    %v2510 = vlaneseq
    %v2511 = vshrl.u32 %v2510, 7
    %v2512 = vsub.s32 %v158, %v2511
    %v2513 = vrot.slane %v2505, %v2512
    %v2514 = vsel %vm453, %v2513, %v2509
    %v2515 = vsel %vm2112, %v2514, 2147483647
    %v2516 = vand.u32 %v2515, 65535
    %v2517 = vshra.s32 %v2515, 16
    %v2518 = vcvt.s32.f32 %v2516
    %v2519 = vcvt.s32.f32 %v2517
    %2520 = vmin.xlane.f32.xlu0 %v2519
    %v2521 = vpop.xlane.xlu0 %2520
    %vm2522 = vcmp.eq.f32.partialorder %v2519, %v2521
    %v2523 = vsel %vm2522, %v2518, inf
    %2524 = vmin.xlane.f32.xlu0 %v2523
    %v2525 = vpop.xlane.xlu0 %2524
    %v2526 = vcvt.f32.s32 %v2525
    %v2527 = vcvt.f32.s32 %v2521
    %v2528 = vshll.u32 %v2527, 16
    %v2529 = vadd.s32 %v2528, %v2526
    %vm2530 = vcmp.eq.s32.totalorder %v158, %v2529
    %v2531 = vsel %vm2530, 1, 0
    %v2532 = vcvt.s32.f32 %v2531
    %v2533 = vsub.f32 1.0, %v2532
    %v2536 = vunpack.c.l.s4 1966171168
    %v2537 = vunpack.c.0.s8 %v2536
    %v2538 = vlaneseq
    %v2539 = vshrl.u32 %v2538, 7
    %v2540 = vsub.s32 %v2537, %v2539
    %v2541 = vrot.slane %v2532, %v2540
    %v2542 = vcombine.high %v2541, %v2541
    %v2544 = vunpack.c.l.s4 1966171168
    %v2545 = vunpack.c.0.s8 %v2544
    %v2546 = vlaneseq
    %v2547 = vshrl.u32 %v2546, 7
    %v2548 = vsub.s32 %v2545, %v2547
    %v2549 = vrot.slane %v2541, %v2548
    %v2551 = vunpack.c.l.s4 1966171168
    %v2552 = vunpack.c.0.s8 %v2551
    %v2553 = vlaneseq
    %v2554 = vshrl.u32 %v2553, 7
    %v2555 = vsub.s32 %v2552, %v2554
    %v2556 = vrot.slane %v2542, %v2555
    %v2557 = vsel %vm2176, %v2549, 0
    %2559 = vmatprep.subr.mxu0 0.0
    %2560 = vmatpush1.msra.mxu0 0.0
    %2561 = vmatprep.subr.mxu0 0.0
    %2562 = vmatpush1.msra.mxu0 0.0
    %2563 = vmatprep.subr.mxu0 0.0
    %2564 = vmatpush1.msra.mxu0 0.0
    %2565 = vmatprep.subr.mxu0 0.0
    %2566 = vmatpush1.msra.mxu0 0.0
    %2567 = vmatprep.subr.mxu0 0.0
    %2568 = vmatpush1.msra.mxu0 0.0
    %2569 = vmatprep.subr.mxu0 0.0
    %2570 = vmatpush1.msra.mxu0 0.0
    %2571 = vmatprep.subr.mxu0 0.0
    %2572 = vmatpush1.msra.mxu0 0.0
    %2573 = vmatprep.subr.mxu0 0.0
    %2574 = vmatpush1.msra.mxu0 0.0
    %2575 = vmatprep.subr.mxu0 0.0
    %2576 = vmatpush1.msra.mxu0 0.0
    %2577 = vmatprep.subr.mxu0 0.0
    %2578 = vmatpush1.msra.mxu0 0.0
    %2579 = vmatprep.subr.mxu0 0.0
    %2580 = vmatpush1.msra.mxu0 0.0
    %2581 = vmatprep.subr.mxu0 0.0
    %2582 = vmatpush1.msra.mxu0 0.0
    %2583 = vmatprep.subr.mxu0 0.0
    %2584 = vmatpush1.msra.mxu0 0.0
    %2585 = vmatprep.subr.mxu0 0.0
    %2586 = vmatpush1.msra.mxu0 0.0
    %2587 = vmatprep.subr.mxu0 0.0
    %2588 = vmatpush1.msra.mxu0 0.0
    %2589 = vmatprep.subr.mxu0 0.0
    %2590 = vmatpush1.msra.mxu0 %v252
    %2591 = vmatprep.subr.mxu0 0.0
    %2592 = vmatpush2.msra.mxu0 0.0
    %2593 = vmatprep.subr.mxu0 0.0
    %2594 = vmatpush2.msra.mxu0 0.0
    %2595 = vmatprep.subr.mxu0 0.0
    %2596 = vmatpush2.msra.mxu0 0.0
    %2597 = vmatprep.subr.mxu0 0.0
    %2598 = vmatpush2.msra.mxu0 0.0
    %2599 = vmatprep.subr.mxu0 0.0
    %2600 = vmatpush2.msra.mxu0 0.0
    %2601 = vmatprep.subr.mxu0 0.0
    %2602 = vmatpush2.msra.mxu0 0.0
    %2603 = vmatprep.subr.mxu0 0.0
    %2604 = vmatpush2.msra.mxu0 0.0
    %2605 = vmatprep.subr.mxu0 0.0
    %2606 = vmatpush2.msra.mxu0 0.0
    %2607 = vmatprep.subr.mxu0 0.0
    %2608 = vmatpush2.msra.mxu0 0.0
    %2609 = vmatprep.subr.mxu0 0.0
    %2610 = vmatpush2.msra.mxu0 0.0
    %2611 = vmatprep.subr.mxu0 0.0
    %2612 = vmatpush2.msra.mxu0 0.0
    %2613 = vmatprep.subr.mxu0 0.0
    %2614 = vmatpush2.msra.mxu0 0.0
    %2615 = vmatprep.subr.mxu0 0.0
    %2616 = vmatpush2.msra.mxu0 0.0
    %2617 = vmatprep.subr.mxu0 0.0
    %2618 = vmatpush2.msra.mxu0 0.0
    %2619 = vmatprep.subr.mxu0 0.0
    %2620 = vmatpush2.msra.mxu0 0.0
    %2621 = vmatprep.subr.mxu0 0.0
    %2622 = vmatpush2.msra.mxu0 0.0
    %2623 = vmatprep.mubr.f32.mxu0 0.0
    %2624 = vmatmul.mubr.f32.gmra.mxu0 %v2557
    %v2625 = vpop.f32.mrf.mxu0
    %v2626 = vadd.f32 0.0, %v2625
    %v2627 = vpop.f32.mrf.mxu0
    %2628 = vdwg.mxu0
    %v2629 = vsel %vm2176, %v2556, 0
    %2631 = vmatprep.subr.mxu0 0.0
    %2632 = vmatpush1.msra.mxu0 0.0
    %2633 = vmatprep.subr.mxu0 0.0
    %2634 = vmatpush1.msra.mxu0 0.0
    %2635 = vmatprep.subr.mxu0 0.0
    %2636 = vmatpush1.msra.mxu0 0.0
    %2637 = vmatprep.subr.mxu0 0.0
    %2638 = vmatpush1.msra.mxu0 0.0
    %2639 = vmatprep.subr.mxu0 0.0
    %2640 = vmatpush1.msra.mxu0 0.0
    %2641 = vmatprep.subr.mxu0 0.0
    %2642 = vmatpush1.msra.mxu0 0.0
    %2643 = vmatprep.subr.mxu0 0.0
    %2644 = vmatpush1.msra.mxu0 0.0
    %2645 = vmatprep.subr.mxu0 0.0
    %2646 = vmatpush1.msra.mxu0 0.0
    %2647 = vmatprep.subr.mxu0 0.0
    %2648 = vmatpush1.msra.mxu0 0.0
    %2649 = vmatprep.subr.mxu0 0.0
    %2650 = vmatpush1.msra.mxu0 0.0
    %2651 = vmatprep.subr.mxu0 0.0
    %2652 = vmatpush1.msra.mxu0 0.0
    %2653 = vmatprep.subr.mxu0 0.0
    %2654 = vmatpush1.msra.mxu0 0.0
    %2655 = vmatprep.subr.mxu0 0.0
    %2656 = vmatpush1.msra.mxu0 0.0
    %2657 = vmatprep.subr.mxu0 0.0
    %2658 = vmatpush1.msra.mxu0 0.0
    %2659 = vmatprep.subr.mxu0 0.0
    %2660 = vmatpush1.msra.mxu0 0.0
    %2661 = vmatprep.subr.mxu0 0.0
    %2662 = vmatpush1.msra.mxu0 %v257
    %2663 = vmatprep.subr.mxu0 0.0
    %2664 = vmatpush2.msra.mxu0 0.0
    %2665 = vmatprep.subr.mxu0 0.0
    %2666 = vmatpush2.msra.mxu0 0.0
    %2667 = vmatprep.subr.mxu0 0.0
    %2668 = vmatpush2.msra.mxu0 0.0
    %2669 = vmatprep.subr.mxu0 0.0
    %2670 = vmatpush2.msra.mxu0 0.0
    %2671 = vmatprep.subr.mxu0 0.0
    %2672 = vmatpush2.msra.mxu0 0.0
    %2673 = vmatprep.subr.mxu0 0.0
    %2674 = vmatpush2.msra.mxu0 0.0
    %2675 = vmatprep.subr.mxu0 0.0
    %2676 = vmatpush2.msra.mxu0 0.0
    %2677 = vmatprep.subr.mxu0 0.0
    %2678 = vmatpush2.msra.mxu0 0.0
    %2679 = vmatprep.subr.mxu0 0.0
    %2680 = vmatpush2.msra.mxu0 0.0
    %2681 = vmatprep.subr.mxu0 0.0
    %2682 = vmatpush2.msra.mxu0 0.0
    %2683 = vmatprep.subr.mxu0 0.0
    %2684 = vmatpush2.msra.mxu0 0.0
    %2685 = vmatprep.subr.mxu0 0.0
    %2686 = vmatpush2.msra.mxu0 0.0
    %2687 = vmatprep.subr.mxu0 0.0
    %2688 = vmatpush2.msra.mxu0 0.0
    %2689 = vmatprep.subr.mxu0 0.0
    %2690 = vmatpush2.msra.mxu0 0.0
    %2691 = vmatprep.subr.mxu0 0.0
    %2692 = vmatpush2.msra.mxu0 0.0
    %2693 = vmatprep.subr.mxu0 0.0
    %2694 = vmatpush2.msra.mxu0 0.0
    %2695 = vmatprep.mubr.f32.mxu0 0.0
    %2696 = vmatmul.mubr.f32.gmra.mxu0 %v2629
    %v2697 = vpop.f32.mrf.mxu0
    %v2698 = vadd.f32 0.0, %v2697
    %v2699 = vpop.f32.mrf.mxu0
    %2700 = vdwg.mxu0
    %vm2701 = vcmask 1042434
    %v2702 = vsel %vm2701, %v2175, %v2175
    %vm2703 = vcmask 1043459
    %v2704 = vsel %vm2703, %v2175, %v2702
    %vm2705 = vcmask 1044484
    %v2706 = vsel %vm2705, %v2175, %v2704
    %vm2707 = vcmask 1045509
    %v2708 = vsel %vm2707, %v2175, %v2706
    %vm2709 = vcmask 1046534
    %v2710 = vsel %vm2709, %v2175, %v2708
    %vm2711 = vcmask 1047559
    %v2712 = vsel %vm2711, %v2175, %v2710
    %v2713 = vsel %vm2701, %v2256, %v2256
    %v2714 = vsel %vm2703, %v2256, %v2713
    %v2715 = vsel %vm2705, %v2256, %v2714
    %v2716 = vsel %vm2707, %v2256, %v2715
    %v2717 = vsel %vm2709, %v2256, %v2716
    %v2718 = vsel %vm2711, %v2256, %v2717
    %v2721 = vsel %vm504, %v2712, 0.0
    %v2722 = vsel %vm504, %v2718, 0.0
    %vm2723 = vcmp.eq.s32.totalorder %v158, 0
    %v2724 = vsel %vm2723, %v2529, 0
    %v2726 = vsel %vm275, %v2476, 0
    %2728 = vmatprep.subr.mxu0 0.0
    %2729 = vmatpush1.msra.mxu0 0.0
    %2730 = vmatprep.subr.mxu0 0.0
    %2731 = vmatpush1.msra.mxu0 0.0
    %2732 = vmatprep.subr.mxu0 0.0
    %2733 = vmatpush1.msra.mxu0 0.0
    %2734 = vmatprep.subr.mxu0 0.0
    %2735 = vmatpush1.msra.mxu0 0.0
    %2736 = vmatprep.subr.mxu0 0.0
    %2737 = vmatpush1.msra.mxu0 0.0
    %2738 = vmatprep.subr.mxu0 0.0
    %2739 = vmatpush1.msra.mxu0 0.0
    %2740 = vmatprep.subr.mxu0 0.0
    %2741 = vmatpush1.msra.mxu0 0.0
    %2742 = vmatprep.subr.mxu0 0.0
    %2743 = vmatpush1.msra.mxu0 0.0
    %2744 = vmatprep.subr.mxu0 0.0
    %2745 = vmatpush1.msra.mxu0 0.0
    %2746 = vmatprep.subr.mxu0 0.0
    %2747 = vmatpush1.msra.mxu0 0.0
    %2748 = vmatprep.subr.mxu0 0.0
    %2749 = vmatpush1.msra.mxu0 0.0
    %2750 = vmatprep.subr.mxu0 0.0
    %2751 = vmatpush1.msra.mxu0 0.0
    %2752 = vmatprep.subr.mxu0 0.0
    %2753 = vmatpush1.msra.mxu0 %v1758
    %2754 = vmatprep.subr.mxu0 0.0
    %2755 = vmatpush1.msra.mxu0 %v1757
    %2756 = vmatprep.subr.mxu0 0.0
    %2757 = vmatpush1.msra.mxu0 %v1756
    %2758 = vmatprep.subr.mxu0 0.0
    %2759 = vmatpush1.msra.mxu0 %v1755
    %2760 = vmatprep.subr.mxu0 0.0
    %2761 = vmatpush2.msra.mxu0 0.0
    %2762 = vmatprep.subr.mxu0 0.0
    %2763 = vmatpush2.msra.mxu0 0.0
    %2764 = vmatprep.subr.mxu0 0.0
    %2765 = vmatpush2.msra.mxu0 0.0
    %2766 = vmatprep.subr.mxu0 0.0
    %2767 = vmatpush2.msra.mxu0 0.0
    %2768 = vmatprep.subr.mxu0 0.0
    %2769 = vmatpush2.msra.mxu0 0.0
    %2770 = vmatprep.subr.mxu0 0.0
    %2771 = vmatpush2.msra.mxu0 0.0
    %2772 = vmatprep.subr.mxu0 0.0
    %2773 = vmatpush2.msra.mxu0 0.0
    %2774 = vmatprep.subr.mxu0 0.0
    %2775 = vmatpush2.msra.mxu0 0.0
    %2776 = vmatprep.subr.mxu0 0.0
    %2777 = vmatpush2.msra.mxu0 0.0
    %2778 = vmatprep.subr.mxu0 0.0
    %2779 = vmatpush2.msra.mxu0 0.0
    %2780 = vmatprep.subr.mxu0 0.0
    %2781 = vmatpush2.msra.mxu0 0.0
    %2782 = vmatprep.subr.mxu0 0.0
    %2783 = vmatpush2.msra.mxu0 0.0
    %2784 = vmatprep.subr.mxu0 0.0
    %2785 = vmatpush2.msra.mxu0 0.0
    %2786 = vmatprep.subr.mxu0 0.0
    %2787 = vmatpush2.msra.mxu0 0.0
    %2788 = vmatprep.subr.mxu0 0.0
    %2789 = vmatpush2.msra.mxu0 0.0
    %2790 = vmatprep.subr.mxu0 0.0
    %2791 = vmatpush2.msra.mxu0 0.0
    %2792 = vmatprep.mubr.f32.mxu0 0.0
    %2793 = vmatmul.mubr.f32.gmra.mxu0 %v2726
    %v2794 = vpop.f32.mrf.mxu0
    %v2795 = vadd.f32 0.0, %v2794
    %v2796 = vpop.f32.mrf.mxu0
    %2797 = vdwg.mxu0
    %v2800 = vrot.slane %v2698, 7
    %v2801 = vsel %vm453, %v2800, %v2626
    %v2802 = vsel %vm275, %v2801, 0
    %2804 = vmatprep.subr.mxu0 0.0
    %2805 = vmatpush1.msra.mxu0 0.0
    %2806 = vmatprep.subr.mxu0 0.0
    %2807 = vmatpush1.msra.mxu0 0.0
    %2808 = vmatprep.subr.mxu0 0.0
    %2809 = vmatpush1.msra.mxu0 0.0
    %2810 = vmatprep.subr.mxu0 0.0
    %2811 = vmatpush1.msra.mxu0 0.0
    %2812 = vmatprep.subr.mxu0 0.0
    %2813 = vmatpush1.msra.mxu0 0.0
    %2814 = vmatprep.subr.mxu0 0.0
    %2815 = vmatpush1.msra.mxu0 0.0
    %2816 = vmatprep.subr.mxu0 0.0
    %2817 = vmatpush1.msra.mxu0 0.0
    %2818 = vmatprep.subr.mxu0 0.0
    %2819 = vmatpush1.msra.mxu0 0.0
    %2820 = vmatprep.subr.mxu0 0.0
    %2821 = vmatpush1.msra.mxu0 0.0
    %2822 = vmatprep.subr.mxu0 0.0
    %2823 = vmatpush1.msra.mxu0 0.0
    %2824 = vmatprep.subr.mxu0 0.0
    %2825 = vmatpush1.msra.mxu0 0.0
    %2826 = vmatprep.subr.mxu0 0.0
    %2827 = vmatpush1.msra.mxu0 0.0
    %2828 = vmatprep.subr.mxu0 0.0
    %2829 = vmatpush1.msra.mxu0 %v1754
    %2830 = vmatprep.subr.mxu0 0.0
    %2831 = vmatpush1.msra.mxu0 %v1753
    %2832 = vmatprep.subr.mxu0 0.0
    %2833 = vmatpush1.msra.mxu0 %v1752
    %2834 = vmatprep.subr.mxu0 0.0
    %2835 = vmatpush1.msra.mxu0 %v1751
    %2836 = vmatprep.subr.mxu0 0.0
    %2837 = vmatpush2.msra.mxu0 0.0
    %2838 = vmatprep.subr.mxu0 0.0
    %2839 = vmatpush2.msra.mxu0 0.0
    %2840 = vmatprep.subr.mxu0 0.0
    %2841 = vmatpush2.msra.mxu0 0.0
    %2842 = vmatprep.subr.mxu0 0.0
    %2843 = vmatpush2.msra.mxu0 0.0
    %2844 = vmatprep.subr.mxu0 0.0
    %2845 = vmatpush2.msra.mxu0 0.0
    %2846 = vmatprep.subr.mxu0 0.0
    %2847 = vmatpush2.msra.mxu0 0.0
    %2848 = vmatprep.subr.mxu0 0.0
    %2849 = vmatpush2.msra.mxu0 0.0
    %2850 = vmatprep.subr.mxu0 0.0
    %2851 = vmatpush2.msra.mxu0 0.0
    %2852 = vmatprep.subr.mxu0 0.0
    %2853 = vmatpush2.msra.mxu0 0.0
    %2854 = vmatprep.subr.mxu0 0.0
    %2855 = vmatpush2.msra.mxu0 0.0
    %2856 = vmatprep.subr.mxu0 0.0
    %2857 = vmatpush2.msra.mxu0 0.0
    %2858 = vmatprep.subr.mxu0 0.0
    %2859 = vmatpush2.msra.mxu0 0.0
    %2860 = vmatprep.subr.mxu0 0.0
    %2861 = vmatpush2.msra.mxu0 0.0
    %2862 = vmatprep.subr.mxu0 0.0
    %2863 = vmatpush2.msra.mxu0 0.0
    %2864 = vmatprep.subr.mxu0 0.0
    %2865 = vmatpush2.msra.mxu0 0.0
    %2866 = vmatprep.subr.mxu0 0.0
    %2867 = vmatpush2.msra.mxu0 0.0
    %2868 = vmatprep.mubr.f32.mxu0 0.0
    %2869 = vmatmul.mubr.f32.gmra.mxu0 %v2802
    %v2870 = vpop.f32.mrf.mxu0
    %v2871 = vadd.f32 %v2795, %v2870
    %v2872 = vpop.f32.mrf.mxu0
    %2873 = vdwg.mxu0
    %v2874 = vadd.f32 %v2871, %v1764
    %v2875 = vtanh.pop %v2874
    %v2876 = vxor.u32 %v2874, 2147483648
    %v2877 = vmul.f32 %v2876, 1.442695
    %v2878 = vpow.pop %v2877
    %v2879 = vadd.f32 %v2878, 1.0
    %v2880 = vrcp.pop %v2879
    %v2881 = vmul.f32 1.0, %v2880
    %v2882 = vsel %vm163, %v2875, %v2881
    %v2883 = vmul.f32 %v2882, %v1970
    %2885 = vrot.lane.b32.xlu0 %v2882, 64
    %v2886 = vpop.permute.xlu0 %2885
    %v2888 = vmul.f32 %v2882, %v2886
    %2890 = vrot.lane.b32.xlu0 %v2888, 32
    %v2891 = vpop.permute.xlu0 %2890
    %v2893 = vadd.f32 %v2883, %v2891
    %v2894 = vtanh.pop %v2893
    %2896 = vrot.lane.b32.xlu0 %v2894, 64
    %v2897 = vpop.permute.xlu0 %2896
    %v2899 = vmul.f32 %v2882, %v2897
    %2901 = vrot.lane.b32.xlu0 %v2899, 32
    %v2902 = vpop.permute.xlu0 %2901
    %v2903 = vsel %vm275, %v2902, 0
    %2905 = vmatprep.subr.mxu0 0.0
    %2906 = vmatpush1.msra.mxu0 0.0
    %2907 = vmatprep.subr.mxu0 0.0
    %2908 = vmatpush1.msra.mxu0 0.0
    %2909 = vmatprep.subr.mxu0 0.0
    %2910 = vmatpush1.msra.mxu0 0.0
    %2911 = vmatprep.subr.mxu0 0.0
    %2912 = vmatpush1.msra.mxu0 0.0
    %2913 = vmatprep.subr.mxu0 0.0
    %2914 = vmatpush1.msra.mxu0 0.0
    %2915 = vmatprep.subr.mxu0 0.0
    %2916 = vmatpush1.msra.mxu0 0.0
    %2917 = vmatprep.subr.mxu0 0.0
    %2918 = vmatpush1.msra.mxu0 0.0
    %2919 = vmatprep.subr.mxu0 0.0
    %2920 = vmatpush1.msra.mxu0 0.0
    %2921 = vmatprep.subr.mxu0 0.0
    %2922 = vmatpush1.msra.mxu0 0.0
    %2923 = vmatprep.subr.mxu0 0.0
    %2924 = vmatpush1.msra.mxu0 0.0
    %2925 = vmatprep.subr.mxu0 0.0
    %2926 = vmatpush1.msra.mxu0 0.0
    %2927 = vmatprep.subr.mxu0 0.0
    %2928 = vmatpush1.msra.mxu0 0.0
    %2929 = vmatprep.subr.mxu0 0.0
    %2930 = vmatpush1.msra.mxu0 %v1769
    %2931 = vmatprep.subr.mxu0 0.0
    %2932 = vmatpush1.msra.mxu0 %v1768
    %2933 = vmatprep.subr.mxu0 0.0
    %2934 = vmatpush1.msra.mxu0 %v1767
    %2935 = vmatprep.subr.mxu0 0.0
    %2936 = vmatpush1.msra.mxu0 %v1766
    %2937 = vmatprep.subr.mxu0 0.0
    %2938 = vmatpush2.msra.mxu0 0.0
    %2939 = vmatprep.subr.mxu0 0.0
    %2940 = vmatpush2.msra.mxu0 0.0
    %2941 = vmatprep.subr.mxu0 0.0
    %2942 = vmatpush2.msra.mxu0 0.0
    %2943 = vmatprep.subr.mxu0 0.0
    %2944 = vmatpush2.msra.mxu0 0.0
    %2945 = vmatprep.subr.mxu0 0.0
    %2946 = vmatpush2.msra.mxu0 0.0
    %2947 = vmatprep.subr.mxu0 0.0
    %2948 = vmatpush2.msra.mxu0 0.0
    %2949 = vmatprep.subr.mxu0 0.0
    %2950 = vmatpush2.msra.mxu0 0.0
    %2951 = vmatprep.subr.mxu0 0.0
    %2952 = vmatpush2.msra.mxu0 0.0
    %2953 = vmatprep.subr.mxu0 0.0
    %2954 = vmatpush2.msra.mxu0 0.0
    %2955 = vmatprep.subr.mxu0 0.0
    %2956 = vmatpush2.msra.mxu0 0.0
    %2957 = vmatprep.subr.mxu0 0.0
    %2958 = vmatpush2.msra.mxu0 0.0
    %2959 = vmatprep.subr.mxu0 0.0
    %2960 = vmatpush2.msra.mxu0 0.0
    %2961 = vmatprep.subr.mxu0 0.0
    %2962 = vmatpush2.msra.mxu0 0.0
    %2963 = vmatprep.subr.mxu0 0.0
    %2964 = vmatpush2.msra.mxu0 0.0
    %2965 = vmatprep.subr.mxu0 0.0
    %2966 = vmatpush2.msra.mxu0 0.0
    %2967 = vmatprep.subr.mxu0 0.0
    %2968 = vmatpush2.msra.mxu0 0.0
    %2969 = vmatprep.mubr.f32.mxu0 0.0
    %2970 = vmatmul.mubr.f32.gmra.mxu0 %v2903
    %v2971 = vpop.f32.mrf.mxu0
    %v2972 = vadd.f32 %v1775, %v2971
    %v2973 = vpop.f32.mrf.mxu0
    %2974 = vdwg.mxu0
    %v2977 = vunpack.c.l.s4 1966171168
    %v2978 = vunpack.c.0.s8 %v2977
    %v2979 = vlaneseq
    %v2980 = vshrl.u32 %v2979, 7
    %v2981 = vsub.s32 %v2978, %v2980
    %v2982 = vrot.slane %v2972, %v2981
    %v2983 = vcombine.high %v2982, %v2982
    %v2985 = vunpack.c.l.s4 1966171168
    %v2986 = vunpack.c.0.s8 %v2985
    %v2987 = vlaneseq
    %v2988 = vshrl.u32 %v2987, 7
    %v2989 = vsub.s32 %v2986, %v2988
    %v2990 = vrot.slane %v2982, %v2989
    %v2992 = vunpack.c.l.s4 1966171168
    %v2993 = vunpack.c.0.s8 %v2992
    %v2994 = vlaneseq
    %v2995 = vshrl.u32 %v2994, 7
    %v2996 = vsub.s32 %v2993, %v2995
    %v2997 = vrot.slane %v2983, %v2996
    %v2998 = vlaneseq
    %v2999 = vshrl.u32 %v2998, 7
    %v3000 = vsub.s32 0, %v2999
    %v3001 = vrot.slane %v2990, %v3000
    %v3002 = vlaneseq
    %v3003 = vshrl.u32 %v3002, 7
    %v3004 = vsub.s32 0, %v3003
    %v3005 = vrot.slane %v2997, %v3004
    %v3008 = vadd.f32 %v3001, %v1743
    %v3009 = vadd.f32 %v3005, %v1748
    %v3010 = vtanh.pop %v3008
    %v3011 = vtanh.pop %v3009
    %v3012 = vmul.f32 %v3010, %v1782
    %v3013 = vmul.f32 %v3011, %v1782
    %v3014 = vsel %vm275, %v3012, 0.0
    %3015 = vadd.xlane.f32.xlu0 %v3014
    %v3016 = vpop.xlane.xlu0 %3015
    %v3017 = vsel %vm275, %v3013, 0.0
    %3018 = vadd.xlane.f32.xlu0 %v3017
    %v3019 = vpop.xlane.xlu0 %3018
    %vm3020 = vcmp.gt.f32.partialorder %v2533, 0.0
    %v3023 = vlaneseq
    %v3024 = vshrl.u32 %v3023, 7
    %v3025 = vsub.s32 %v158, %v3024
    %v3026 = vrot.slane %v3016, %v3025
    %v3027 = vlaneseq
    %v3028 = vshrl.u32 %v3027, 7
    %v3029 = vsub.s32 %v158, %v3028
    %v3030 = vrot.slane %v3019, %v3029
    %v3031 = vsel %vm453, %v3030, %v3026
    %v3033 = vsel %vm3020, %v3031, -1e+30
    %v3034 = vsel %vm2112, %v3033, -inf
    %3035 = vmax.xlane.f32.xlu0 %v3034
    %v3036 = vpop.xlane.xlu0 %3035
    %v3037 = vsub.f32 %v3033, %v3036
    %v3038 = vmul.f32 %v3037, 1.442695
    %v3039 = vpow.pop %v3038
    %v3040 = vsel %vm2112, %v3039, 0.0
    %3041 = vadd.xlane.f32.xlu0 %v3040
    %v3042 = vpop.xlane.xlu0 %3041
    %v3043 = vrcp.pop %v3042
    %v3044 = vmul.f32 %v3039, %v3043
    %v3047 = vunpack.c.l.s4 1966171168
    %v3048 = vunpack.c.0.s8 %v3047
    %v3049 = vlaneseq
    %v3050 = vshrl.u32 %v3049, 7
    %v3051 = vsub.s32 %v3048, %v3050
    %v3052 = vrot.slane %v3044, %v3051
    %v3053 = vcombine.high %v3052, %v3052
    %v3055 = vunpack.c.l.s4 1966171168
    %v3056 = vunpack.c.0.s8 %v3055
    %v3057 = vlaneseq
    %v3058 = vshrl.u32 %v3057, 7
    %v3059 = vsub.s32 %v3056, %v3058
    %v3060 = vrot.slane %v3052, %v3059
    %v3062 = vunpack.c.l.s4 1966171168
    %v3063 = vunpack.c.0.s8 %v3062
    %v3064 = vlaneseq
    %v3065 = vshrl.u32 %v3064, 7
    %v3066 = vsub.s32 %v3063, %v3065
    %v3067 = vrot.slane %v3053, %v3066
    %v3068 = vsel %vm2176, %v3060, 0
    %3070 = vmatprep.subr.mxu0 0.0
    %3071 = vmatpush1.msra.mxu0 0.0
    %3072 = vmatprep.subr.mxu0 0.0
    %3073 = vmatpush1.msra.mxu0 0.0
    %3074 = vmatprep.subr.mxu0 0.0
    %3075 = vmatpush1.msra.mxu0 0.0
    %3076 = vmatprep.subr.mxu0 0.0
    %3077 = vmatpush1.msra.mxu0 0.0
    %3078 = vmatprep.subr.mxu0 0.0
    %3079 = vmatpush1.msra.mxu0 0.0
    %3080 = vmatprep.subr.mxu0 0.0
    %3081 = vmatpush1.msra.mxu0 0.0
    %3082 = vmatprep.subr.mxu0 0.0
    %3083 = vmatpush1.msra.mxu0 0.0
    %3084 = vmatprep.subr.mxu0 0.0
    %3085 = vmatpush1.msra.mxu0 0.0
    %3086 = vmatprep.subr.mxu0 0.0
    %3087 = vmatpush1.msra.mxu0 0.0
    %3088 = vmatprep.subr.mxu0 0.0
    %3089 = vmatpush1.msra.mxu0 0.0
    %3090 = vmatprep.subr.mxu0 0.0
    %3091 = vmatpush1.msra.mxu0 0.0
    %3092 = vmatprep.subr.mxu0 0.0
    %3093 = vmatpush1.msra.mxu0 0.0
    %3094 = vmatprep.subr.mxu0 0.0
    %3095 = vmatpush1.msra.mxu0 0.0
    %3096 = vmatprep.subr.mxu0 0.0
    %3097 = vmatpush1.msra.mxu0 0.0
    %3098 = vmatprep.subr.mxu0 0.0
    %3099 = vmatpush1.msra.mxu0 0.0
    %3100 = vmatprep.subr.mxu0 0.0
    %3101 = vmatpush1.msra.mxu0 %v1743
    %3102 = vmatprep.subr.mxu0 0.0
    %3103 = vmatpush2.msra.mxu0 0.0
    %3104 = vmatprep.subr.mxu0 0.0
    %3105 = vmatpush2.msra.mxu0 0.0
    %3106 = vmatprep.subr.mxu0 0.0
    %3107 = vmatpush2.msra.mxu0 0.0
    %3108 = vmatprep.subr.mxu0 0.0
    %3109 = vmatpush2.msra.mxu0 0.0
    %3110 = vmatprep.subr.mxu0 0.0
    %3111 = vmatpush2.msra.mxu0 0.0
    %3112 = vmatprep.subr.mxu0 0.0
    %3113 = vmatpush2.msra.mxu0 0.0
    %3114 = vmatprep.subr.mxu0 0.0
    %3115 = vmatpush2.msra.mxu0 0.0
    %3116 = vmatprep.subr.mxu0 0.0
    %3117 = vmatpush2.msra.mxu0 0.0
    %3118 = vmatprep.subr.mxu0 0.0
    %3119 = vmatpush2.msra.mxu0 0.0
    %3120 = vmatprep.subr.mxu0 0.0
    %3121 = vmatpush2.msra.mxu0 0.0
    %3122 = vmatprep.subr.mxu0 0.0
    %3123 = vmatpush2.msra.mxu0 0.0
    %3124 = vmatprep.subr.mxu0 0.0
    %3125 = vmatpush2.msra.mxu0 0.0
    %3126 = vmatprep.subr.mxu0 0.0
    %3127 = vmatpush2.msra.mxu0 0.0
    %3128 = vmatprep.subr.mxu0 0.0
    %3129 = vmatpush2.msra.mxu0 0.0
    %3130 = vmatprep.subr.mxu0 0.0
    %3131 = vmatpush2.msra.mxu0 0.0
    %3132 = vmatprep.subr.mxu0 0.0
    %3133 = vmatpush2.msra.mxu0 0.0
    %3134 = vmatprep.mubr.f32.mxu0 0.0
    %3135 = vmatmul.mubr.f32.gmra.mxu0 %v3068
    %v3136 = vpop.f32.mrf.mxu0
    %v3137 = vadd.f32 0.0, %v3136
    %v3138 = vpop.f32.mrf.mxu0
    %3139 = vdwg.mxu0
    %v3140 = vsel %vm2176, %v3067, 0
    %3142 = vmatprep.subr.mxu0 0.0
    %3143 = vmatpush1.msra.mxu0 0.0
    %3144 = vmatprep.subr.mxu0 0.0
    %3145 = vmatpush1.msra.mxu0 0.0
    %3146 = vmatprep.subr.mxu0 0.0
    %3147 = vmatpush1.msra.mxu0 0.0
    %3148 = vmatprep.subr.mxu0 0.0
    %3149 = vmatpush1.msra.mxu0 0.0
    %3150 = vmatprep.subr.mxu0 0.0
    %3151 = vmatpush1.msra.mxu0 0.0
    %3152 = vmatprep.subr.mxu0 0.0
    %3153 = vmatpush1.msra.mxu0 0.0
    %3154 = vmatprep.subr.mxu0 0.0
    %3155 = vmatpush1.msra.mxu0 0.0
    %3156 = vmatprep.subr.mxu0 0.0
    %3157 = vmatpush1.msra.mxu0 0.0
    %3158 = vmatprep.subr.mxu0 0.0
    %3159 = vmatpush1.msra.mxu0 0.0
    %3160 = vmatprep.subr.mxu0 0.0
    %3161 = vmatpush1.msra.mxu0 0.0
    %3162 = vmatprep.subr.mxu0 0.0
    %3163 = vmatpush1.msra.mxu0 0.0
    %3164 = vmatprep.subr.mxu0 0.0
    %3165 = vmatpush1.msra.mxu0 0.0
    %3166 = vmatprep.subr.mxu0 0.0
    %3167 = vmatpush1.msra.mxu0 0.0
    %3168 = vmatprep.subr.mxu0 0.0
    %3169 = vmatpush1.msra.mxu0 0.0
    %3170 = vmatprep.subr.mxu0 0.0
    %3171 = vmatpush1.msra.mxu0 0.0
    %3172 = vmatprep.subr.mxu0 0.0
    %3173 = vmatpush1.msra.mxu0 %v1748
    %3174 = vmatprep.subr.mxu0 0.0
    %3175 = vmatpush2.msra.mxu0 0.0
    %3176 = vmatprep.subr.mxu0 0.0
    %3177 = vmatpush2.msra.mxu0 0.0
    %3178 = vmatprep.subr.mxu0 0.0
    %3179 = vmatpush2.msra.mxu0 0.0
    %3180 = vmatprep.subr.mxu0 0.0
    %3181 = vmatpush2.msra.mxu0 0.0
    %3182 = vmatprep.subr.mxu0 0.0
    %3183 = vmatpush2.msra.mxu0 0.0
    %3184 = vmatprep.subr.mxu0 0.0
    %3185 = vmatpush2.msra.mxu0 0.0
    %3186 = vmatprep.subr.mxu0 0.0
    %3187 = vmatpush2.msra.mxu0 0.0
    %3188 = vmatprep.subr.mxu0 0.0
    %3189 = vmatpush2.msra.mxu0 0.0
    %3190 = vmatprep.subr.mxu0 0.0
    %3191 = vmatpush2.msra.mxu0 0.0
    %3192 = vmatprep.subr.mxu0 0.0
    %3193 = vmatpush2.msra.mxu0 0.0
    %3194 = vmatprep.subr.mxu0 0.0
    %3195 = vmatpush2.msra.mxu0 0.0
    %3196 = vmatprep.subr.mxu0 0.0
    %3197 = vmatpush2.msra.mxu0 0.0
    %3198 = vmatprep.subr.mxu0 0.0
    %3199 = vmatpush2.msra.mxu0 0.0
    %3200 = vmatprep.subr.mxu0 0.0
    %3201 = vmatpush2.msra.mxu0 0.0
    %3202 = vmatprep.subr.mxu0 0.0
    %3203 = vmatpush2.msra.mxu0 0.0
    %3204 = vmatprep.subr.mxu0 0.0
    %3205 = vmatpush2.msra.mxu0 0.0
    %3206 = vmatprep.mubr.f32.mxu0 0.0
    %3207 = vmatmul.mubr.f32.gmra.mxu0 %v3140
    %v3208 = vpop.f32.mrf.mxu0
    %v3209 = vadd.f32 0.0, %v3208
    %v3210 = vpop.f32.mrf.mxu0
    %3211 = vdwg.mxu0
    %3212 = vmatprep.subr.mxu0 0.0
    %3213 = vmatpush1.msra.mxu0 0.0
    %3214 = vmatprep.subr.mxu0 0.0
    %3215 = vmatpush1.msra.mxu0 0.0
    %3216 = vmatprep.subr.mxu0 0.0
    %3217 = vmatpush1.msra.mxu0 0.0
    %3218 = vmatprep.subr.mxu0 0.0
    %3219 = vmatpush1.msra.mxu0 0.0
    %3220 = vmatprep.subr.mxu0 0.0
    %3221 = vmatpush1.msra.mxu0 0.0
    %3222 = vmatprep.subr.mxu0 0.0
    %3223 = vmatpush1.msra.mxu0 0.0
    %3224 = vmatprep.subr.mxu0 0.0
    %3225 = vmatpush1.msra.mxu0 0.0
    %3226 = vmatprep.subr.mxu0 0.0
    %3227 = vmatpush1.msra.mxu0 0.0
    %3228 = vmatprep.subr.mxu0 0.0
    %3229 = vmatpush1.msra.mxu0 0.0
    %3230 = vmatprep.subr.mxu0 0.0
    %3231 = vmatpush1.msra.mxu0 0.0
    %3232 = vmatprep.subr.mxu0 0.0
    %3233 = vmatpush1.msra.mxu0 0.0
    %3234 = vmatprep.subr.mxu0 0.0
    %3235 = vmatpush1.msra.mxu0 0.0
    %3236 = vmatprep.subr.mxu0 0.0
    %3237 = vmatpush1.msra.mxu0 %v1791
    %3238 = vmatprep.subr.mxu0 0.0
    %3239 = vmatpush1.msra.mxu0 %v1790
    %3240 = vmatprep.subr.mxu0 0.0
    %3241 = vmatpush1.msra.mxu0 %v1789
    %3242 = vmatprep.subr.mxu0 0.0
    %3243 = vmatpush1.msra.mxu0 %v1788
    %3244 = vmatprep.subr.mxu0 0.0
    %3245 = vmatpush2.msra.mxu0 0.0
    %3246 = vmatprep.subr.mxu0 0.0
    %3247 = vmatpush2.msra.mxu0 0.0
    %3248 = vmatprep.subr.mxu0 0.0
    %3249 = vmatpush2.msra.mxu0 0.0
    %3250 = vmatprep.subr.mxu0 0.0
    %3251 = vmatpush2.msra.mxu0 0.0
    %3252 = vmatprep.subr.mxu0 0.0
    %3253 = vmatpush2.msra.mxu0 0.0
    %3254 = vmatprep.subr.mxu0 0.0
    %3255 = vmatpush2.msra.mxu0 0.0
    %3256 = vmatprep.subr.mxu0 0.0
    %3257 = vmatpush2.msra.mxu0 0.0
    %3258 = vmatprep.subr.mxu0 0.0
    %3259 = vmatpush2.msra.mxu0 0.0
    %3260 = vmatprep.subr.mxu0 0.0
    %3261 = vmatpush2.msra.mxu0 0.0
    %3262 = vmatprep.subr.mxu0 0.0
    %3263 = vmatpush2.msra.mxu0 0.0
    %3264 = vmatprep.subr.mxu0 0.0
    %3265 = vmatpush2.msra.mxu0 0.0
    %3266 = vmatprep.subr.mxu0 0.0
    %3267 = vmatpush2.msra.mxu0 0.0
    %3268 = vmatprep.subr.mxu0 0.0
    %3269 = vmatpush2.msra.mxu0 0.0
    %3270 = vmatprep.subr.mxu0 0.0
    %3271 = vmatpush2.msra.mxu0 0.0
    %3272 = vmatprep.subr.mxu0 0.0
    %3273 = vmatpush2.msra.mxu0 0.0
    %3274 = vmatprep.subr.mxu0 0.0
    %3275 = vmatpush2.msra.mxu0 0.0
    %3276 = vmatprep.mubr.f32.mxu0 0.0
    %3277 = vmatmul.mubr.f32.gmra.mxu0 %v2903
    %v3278 = vpop.f32.mrf.mxu0
    %v3279 = vadd.f32 0.0, %v3278
    %v3280 = vpop.f32.mrf.mxu0
    %3281 = vdwg.mxu0
    %v3284 = vrot.slane %v3209, 7
    %v3285 = vsel %vm453, %v3284, %v3137
    %v3286 = vsel %vm275, %v3285, 0
    %3288 = vmatprep.subr.mxu0 0.0
    %3289 = vmatpush1.msra.mxu0 0.0
    %3290 = vmatprep.subr.mxu0 0.0
    %3291 = vmatpush1.msra.mxu0 0.0
    %3292 = vmatprep.subr.mxu0 0.0
    %3293 = vmatpush1.msra.mxu0 0.0
    %3294 = vmatprep.subr.mxu0 0.0
    %3295 = vmatpush1.msra.mxu0 0.0
    %3296 = vmatprep.subr.mxu0 0.0
    %3297 = vmatpush1.msra.mxu0 0.0
    %3298 = vmatprep.subr.mxu0 0.0
    %3299 = vmatpush1.msra.mxu0 0.0
    %3300 = vmatprep.subr.mxu0 0.0
    %3301 = vmatpush1.msra.mxu0 0.0
    %3302 = vmatprep.subr.mxu0 0.0
    %3303 = vmatpush1.msra.mxu0 0.0
    %3304 = vmatprep.subr.mxu0 0.0
    %3305 = vmatpush1.msra.mxu0 0.0
    %3306 = vmatprep.subr.mxu0 0.0
    %3307 = vmatpush1.msra.mxu0 0.0
    %3308 = vmatprep.subr.mxu0 0.0
    %3309 = vmatpush1.msra.mxu0 0.0
    %3310 = vmatprep.subr.mxu0 0.0
    %3311 = vmatpush1.msra.mxu0 0.0
    %3312 = vmatprep.subr.mxu0 0.0
    %3313 = vmatpush1.msra.mxu0 %v1787
    %3314 = vmatprep.subr.mxu0 0.0
    %3315 = vmatpush1.msra.mxu0 %v1786
    %3316 = vmatprep.subr.mxu0 0.0
    %3317 = vmatpush1.msra.mxu0 %v1785
    %3318 = vmatprep.subr.mxu0 0.0
    %3319 = vmatpush1.msra.mxu0 %v1784
    %3320 = vmatprep.subr.mxu0 0.0
    %3321 = vmatpush2.msra.mxu0 0.0
    %3322 = vmatprep.subr.mxu0 0.0
    %3323 = vmatpush2.msra.mxu0 0.0
    %3324 = vmatprep.subr.mxu0 0.0
    %3325 = vmatpush2.msra.mxu0 0.0
    %3326 = vmatprep.subr.mxu0 0.0
    %3327 = vmatpush2.msra.mxu0 0.0
    %3328 = vmatprep.subr.mxu0 0.0
    %3329 = vmatpush2.msra.mxu0 0.0
    %3330 = vmatprep.subr.mxu0 0.0
    %3331 = vmatpush2.msra.mxu0 0.0
    %3332 = vmatprep.subr.mxu0 0.0
    %3333 = vmatpush2.msra.mxu0 0.0
    %3334 = vmatprep.subr.mxu0 0.0
    %3335 = vmatpush2.msra.mxu0 0.0
    %3336 = vmatprep.subr.mxu0 0.0
    %3337 = vmatpush2.msra.mxu0 0.0
    %3338 = vmatprep.subr.mxu0 0.0
    %3339 = vmatpush2.msra.mxu0 0.0
    %3340 = vmatprep.subr.mxu0 0.0
    %3341 = vmatpush2.msra.mxu0 0.0
    %3342 = vmatprep.subr.mxu0 0.0
    %3343 = vmatpush2.msra.mxu0 0.0
    %3344 = vmatprep.subr.mxu0 0.0
    %3345 = vmatpush2.msra.mxu0 0.0
    %3346 = vmatprep.subr.mxu0 0.0
    %3347 = vmatpush2.msra.mxu0 0.0
    %3348 = vmatprep.subr.mxu0 0.0
    %3349 = vmatpush2.msra.mxu0 0.0
    %3350 = vmatprep.subr.mxu0 0.0
    %3351 = vmatpush2.msra.mxu0 0.0
    %3352 = vmatprep.mubr.f32.mxu0 0.0
    %3353 = vmatmul.mubr.f32.gmra.mxu0 %v3286
    %v3354 = vpop.f32.mrf.mxu0
    %v3355 = vadd.f32 %v3279, %v3354
    %v3356 = vpop.f32.mrf.mxu0
    %3357 = vdwg.mxu0
    %v3358 = vadd.f32 %v3355, %v1797
    %v3359 = vtanh.pop %v3358
    %v3360 = vmul.f32 %v3044, %v2533
    %v3361 = vsel %vm2112, %v3360, -inf
    %3362 = vmax.xlane.f32.xlu0 %v3361
    %v3363 = vpop.xlane.xlu0 %3362
    %vm3364 = vcmp.eq.f32.partialorder %v3360, %v3363
    %v3365 = vsel %vm3364, %v158, 8
    %v3366 = vsel %vm2112, %v3365, 2147483647
    %v3367 = vand.u32 %v3366, 65535
    %v3368 = vshra.s32 %v3366, 16
    %v3369 = vcvt.s32.f32 %v3367
    %v3370 = vcvt.s32.f32 %v3368
    %3371 = vmin.xlane.f32.xlu0 %v3370
    %v3372 = vpop.xlane.xlu0 %3371
    %vm3373 = vcmp.eq.f32.partialorder %v3370, %v3372
    %v3374 = vsel %vm3373, %v3369, inf
    %3375 = vmin.xlane.f32.xlu0 %v3374
    %v3376 = vpop.xlane.xlu0 %3375
    %v3377 = vcvt.f32.s32 %v3376
    %v3378 = vcvt.f32.s32 %v3372
    %v3379 = vshll.u32 %v3378, 16
    %v3380 = vadd.s32 %v3379, %v3377
    %vm3381 = vcmp.eq.s32.totalorder %v158, %v3380
    %v3382 = vsel %vm3381, 1, 0
    %v3383 = vcvt.s32.f32 %v3382
    %v3384 = vsub.f32 1.0, %v3383
    %v3385 = vmul.f32 %v2533, %v3384
    %v3388 = vunpack.c.l.s4 1966171168
    %v3389 = vunpack.c.0.s8 %v3388
    %v3390 = vlaneseq
    %v3391 = vshrl.u32 %v3390, 7
    %v3392 = vsub.s32 %v3389, %v3391
    %v3393 = vrot.slane %v3383, %v3392
    %v3394 = vcombine.high %v3393, %v3393
    %v3396 = vunpack.c.l.s4 1966171168
    %v3397 = vunpack.c.0.s8 %v3396
    %v3398 = vlaneseq
    %v3399 = vshrl.u32 %v3398, 7
    %v3400 = vsub.s32 %v3397, %v3399
    %v3401 = vrot.slane %v3393, %v3400
    %v3403 = vunpack.c.l.s4 1966171168
    %v3404 = vunpack.c.0.s8 %v3403
    %v3405 = vlaneseq
    %v3406 = vshrl.u32 %v3405, 7
    %v3407 = vsub.s32 %v3404, %v3406
    %v3408 = vrot.slane %v3394, %v3407
    %v3409 = vsel %vm2176, %v3401, 0
    %3411 = vmatprep.subr.mxu0 0.0
    %3412 = vmatpush1.msra.mxu0 0.0
    %3413 = vmatprep.subr.mxu0 0.0
    %3414 = vmatpush1.msra.mxu0 0.0
    %3415 = vmatprep.subr.mxu0 0.0
    %3416 = vmatpush1.msra.mxu0 0.0
    %3417 = vmatprep.subr.mxu0 0.0
    %3418 = vmatpush1.msra.mxu0 0.0
    %3419 = vmatprep.subr.mxu0 0.0
    %3420 = vmatpush1.msra.mxu0 0.0
    %3421 = vmatprep.subr.mxu0 0.0
    %3422 = vmatpush1.msra.mxu0 0.0
    %3423 = vmatprep.subr.mxu0 0.0
    %3424 = vmatpush1.msra.mxu0 0.0
    %3425 = vmatprep.subr.mxu0 0.0
    %3426 = vmatpush1.msra.mxu0 0.0
    %3427 = vmatprep.subr.mxu0 0.0
    %3428 = vmatpush1.msra.mxu0 0.0
    %3429 = vmatprep.subr.mxu0 0.0
    %3430 = vmatpush1.msra.mxu0 0.0
    %3431 = vmatprep.subr.mxu0 0.0
    %3432 = vmatpush1.msra.mxu0 0.0
    %3433 = vmatprep.subr.mxu0 0.0
    %3434 = vmatpush1.msra.mxu0 0.0
    %3435 = vmatprep.subr.mxu0 0.0
    %3436 = vmatpush1.msra.mxu0 0.0
    %3437 = vmatprep.subr.mxu0 0.0
    %3438 = vmatpush1.msra.mxu0 0.0
    %3439 = vmatprep.subr.mxu0 0.0
    %3440 = vmatpush1.msra.mxu0 0.0
    %3441 = vmatprep.subr.mxu0 0.0
    %3442 = vmatpush1.msra.mxu0 %v252
    %3443 = vmatprep.subr.mxu0 0.0
    %3444 = vmatpush2.msra.mxu0 0.0
    %3445 = vmatprep.subr.mxu0 0.0
    %3446 = vmatpush2.msra.mxu0 0.0
    %3447 = vmatprep.subr.mxu0 0.0
    %3448 = vmatpush2.msra.mxu0 0.0
    %3449 = vmatprep.subr.mxu0 0.0
    %3450 = vmatpush2.msra.mxu0 0.0
    %3451 = vmatprep.subr.mxu0 0.0
    %3452 = vmatpush2.msra.mxu0 0.0
    %3453 = vmatprep.subr.mxu0 0.0
    %3454 = vmatpush2.msra.mxu0 0.0
    %3455 = vmatprep.subr.mxu0 0.0
    %3456 = vmatpush2.msra.mxu0 0.0
    %3457 = vmatprep.subr.mxu0 0.0
    %3458 = vmatpush2.msra.mxu0 0.0
    %3459 = vmatprep.subr.mxu0 0.0
    %3460 = vmatpush2.msra.mxu0 0.0
    %3461 = vmatprep.subr.mxu0 0.0
    %3462 = vmatpush2.msra.mxu0 0.0
    %3463 = vmatprep.subr.mxu0 0.0
    %3464 = vmatpush2.msra.mxu0 0.0
    %3465 = vmatprep.subr.mxu0 0.0
    %3466 = vmatpush2.msra.mxu0 0.0
    %3467 = vmatprep.subr.mxu0 0.0
    %3468 = vmatpush2.msra.mxu0 0.0
    %3469 = vmatprep.subr.mxu0 0.0
    %3470 = vmatpush2.msra.mxu0 0.0
    %3471 = vmatprep.subr.mxu0 0.0
    %3472 = vmatpush2.msra.mxu0 0.0
    %3473 = vmatprep.subr.mxu0 0.0
    %3474 = vmatpush2.msra.mxu0 0.0
    %3475 = vmatprep.mubr.f32.mxu0 0.0
    %3476 = vmatmul.mubr.f32.gmra.mxu0 %v3409
    %v3477 = vpop.f32.mrf.mxu0
    %v3478 = vadd.f32 0.0, %v3477
    %v3479 = vpop.f32.mrf.mxu0
    %3480 = vdwg.mxu0
    %v3481 = vsel %vm2176, %v3408, 0
    %3483 = vmatprep.subr.mxu0 0.0
    %3484 = vmatpush1.msra.mxu0 0.0
    %3485 = vmatprep.subr.mxu0 0.0
    %3486 = vmatpush1.msra.mxu0 0.0
    %3487 = vmatprep.subr.mxu0 0.0
    %3488 = vmatpush1.msra.mxu0 0.0
    %3489 = vmatprep.subr.mxu0 0.0
    %3490 = vmatpush1.msra.mxu0 0.0
    %3491 = vmatprep.subr.mxu0 0.0
    %3492 = vmatpush1.msra.mxu0 0.0
    %3493 = vmatprep.subr.mxu0 0.0
    %3494 = vmatpush1.msra.mxu0 0.0
    %3495 = vmatprep.subr.mxu0 0.0
    %3496 = vmatpush1.msra.mxu0 0.0
    %3497 = vmatprep.subr.mxu0 0.0
    %3498 = vmatpush1.msra.mxu0 0.0
    %3499 = vmatprep.subr.mxu0 0.0
    %3500 = vmatpush1.msra.mxu0 0.0
    %3501 = vmatprep.subr.mxu0 0.0
    %3502 = vmatpush1.msra.mxu0 0.0
    %3503 = vmatprep.subr.mxu0 0.0
    %3504 = vmatpush1.msra.mxu0 0.0
    %3505 = vmatprep.subr.mxu0 0.0
    %3506 = vmatpush1.msra.mxu0 0.0
    %3507 = vmatprep.subr.mxu0 0.0
    %3508 = vmatpush1.msra.mxu0 0.0
    %3509 = vmatprep.subr.mxu0 0.0
    %3510 = vmatpush1.msra.mxu0 0.0
    %3511 = vmatprep.subr.mxu0 0.0
    %3512 = vmatpush1.msra.mxu0 0.0
    %3513 = vmatprep.subr.mxu0 0.0
    %3514 = vmatpush1.msra.mxu0 %v257
    %3515 = vmatprep.subr.mxu0 0.0
    %3516 = vmatpush2.msra.mxu0 0.0
    %3517 = vmatprep.subr.mxu0 0.0
    %3518 = vmatpush2.msra.mxu0 0.0
    %3519 = vmatprep.subr.mxu0 0.0
    %3520 = vmatpush2.msra.mxu0 0.0
    %3521 = vmatprep.subr.mxu0 0.0
    %3522 = vmatpush2.msra.mxu0 0.0
    %3523 = vmatprep.subr.mxu0 0.0
    %3524 = vmatpush2.msra.mxu0 0.0
    %3525 = vmatprep.subr.mxu0 0.0
    %3526 = vmatpush2.msra.mxu0 0.0
    %3527 = vmatprep.subr.mxu0 0.0
    %3528 = vmatpush2.msra.mxu0 0.0
    %3529 = vmatprep.subr.mxu0 0.0
    %3530 = vmatpush2.msra.mxu0 0.0
    %3531 = vmatprep.subr.mxu0 0.0
    %3532 = vmatpush2.msra.mxu0 0.0
    %3533 = vmatprep.subr.mxu0 0.0
    %3534 = vmatpush2.msra.mxu0 0.0
    %3535 = vmatprep.subr.mxu0 0.0
    %3536 = vmatpush2.msra.mxu0 0.0
    %3537 = vmatprep.subr.mxu0 0.0
    %3538 = vmatpush2.msra.mxu0 0.0
    %3539 = vmatprep.subr.mxu0 0.0
    %3540 = vmatpush2.msra.mxu0 0.0
    %3541 = vmatprep.subr.mxu0 0.0
    %3542 = vmatpush2.msra.mxu0 0.0
    %3543 = vmatprep.subr.mxu0 0.0
    %3544 = vmatpush2.msra.mxu0 0.0
    %3545 = vmatprep.subr.mxu0 0.0
    %3546 = vmatpush2.msra.mxu0 0.0
    %3547 = vmatprep.mubr.f32.mxu0 0.0
    %3548 = vmatmul.mubr.f32.gmra.mxu0 %v3481
    %v3549 = vpop.f32.mrf.mxu0
    %v3550 = vadd.f32 0.0, %v3549
    %v3551 = vpop.f32.mrf.mxu0
    %3552 = vdwg.mxu0
    %v3553 = vlaneseq
    %v3554 = vshrl.u32 %v3553, 7
    %v3555 = vsub.s32 0, %v3554
    %v3556 = vrot.slane %v3060, %v3555
    %v3557 = vlaneseq
    %v3558 = vshrl.u32 %v3557, 7
    %v3559 = vsub.s32 0, %v3558
    %v3560 = vrot.slane %v3067, %v3559
    %v3563 = vsel %vm664, %v3556, %v2721
    %v3564 = vsel %vm664, %v3560, %v2722
    %vm3565 = vcmp.eq.s32.totalorder %v158, 1
    %v3566 = vsel %vm3565, %v3380, %v2724
    %v3568 = vsel %vm275, %v3359, 0
    %3570 = vmatprep.subr.mxu0 0.0
    %3571 = vmatpush1.msra.mxu0 0.0
    %3572 = vmatprep.subr.mxu0 0.0
    %3573 = vmatpush1.msra.mxu0 0.0
    %3574 = vmatprep.subr.mxu0 0.0
    %3575 = vmatpush1.msra.mxu0 0.0
    %3576 = vmatprep.subr.mxu0 0.0
    %3577 = vmatpush1.msra.mxu0 0.0
    %3578 = vmatprep.subr.mxu0 0.0
    %3579 = vmatpush1.msra.mxu0 0.0
    %3580 = vmatprep.subr.mxu0 0.0
    %3581 = vmatpush1.msra.mxu0 0.0
    %3582 = vmatprep.subr.mxu0 0.0
    %3583 = vmatpush1.msra.mxu0 0.0
    %3584 = vmatprep.subr.mxu0 0.0
    %3585 = vmatpush1.msra.mxu0 0.0
    %3586 = vmatprep.subr.mxu0 0.0
    %3587 = vmatpush1.msra.mxu0 0.0
    %3588 = vmatprep.subr.mxu0 0.0
    %3589 = vmatpush1.msra.mxu0 0.0
    %3590 = vmatprep.subr.mxu0 0.0
    %3591 = vmatpush1.msra.mxu0 0.0
    %3592 = vmatprep.subr.mxu0 0.0
    %3593 = vmatpush1.msra.mxu0 0.0
    %3594 = vmatprep.subr.mxu0 0.0
    %3595 = vmatpush1.msra.mxu0 %v1758
    %3596 = vmatprep.subr.mxu0 0.0
    %3597 = vmatpush1.msra.mxu0 %v1757
    %3598 = vmatprep.subr.mxu0 0.0
    %3599 = vmatpush1.msra.mxu0 %v1756
    %3600 = vmatprep.subr.mxu0 0.0
    %3601 = vmatpush1.msra.mxu0 %v1755
    %3602 = vmatprep.subr.mxu0 0.0
    %3603 = vmatpush2.msra.mxu0 0.0
    %3604 = vmatprep.subr.mxu0 0.0
    %3605 = vmatpush2.msra.mxu0 0.0
    %3606 = vmatprep.subr.mxu0 0.0
    %3607 = vmatpush2.msra.mxu0 0.0
    %3608 = vmatprep.subr.mxu0 0.0
    %3609 = vmatpush2.msra.mxu0 0.0
    %3610 = vmatprep.subr.mxu0 0.0
    %3611 = vmatpush2.msra.mxu0 0.0
    %3612 = vmatprep.subr.mxu0 0.0
    %3613 = vmatpush2.msra.mxu0 0.0
    %3614 = vmatprep.subr.mxu0 0.0
    %3615 = vmatpush2.msra.mxu0 0.0
    %3616 = vmatprep.subr.mxu0 0.0
    %3617 = vmatpush2.msra.mxu0 0.0
    %3618 = vmatprep.subr.mxu0 0.0
    %3619 = vmatpush2.msra.mxu0 0.0
    %3620 = vmatprep.subr.mxu0 0.0
    %3621 = vmatpush2.msra.mxu0 0.0
    %3622 = vmatprep.subr.mxu0 0.0
    %3623 = vmatpush2.msra.mxu0 0.0
    %3624 = vmatprep.subr.mxu0 0.0
    %3625 = vmatpush2.msra.mxu0 0.0
    %3626 = vmatprep.subr.mxu0 0.0
    %3627 = vmatpush2.msra.mxu0 0.0
    %3628 = vmatprep.subr.mxu0 0.0
    %3629 = vmatpush2.msra.mxu0 0.0
    %3630 = vmatprep.subr.mxu0 0.0
    %3631 = vmatpush2.msra.mxu0 0.0
    %3632 = vmatprep.subr.mxu0 0.0
    %3633 = vmatpush2.msra.mxu0 0.0
    %3634 = vmatprep.mubr.f32.mxu0 0.0
    %3635 = vmatmul.mubr.f32.gmra.mxu0 %v3568
    %v3636 = vpop.f32.mrf.mxu0
    %v3637 = vadd.f32 0.0, %v3636
    %v3638 = vpop.f32.mrf.mxu0
    %3639 = vdwg.mxu0
    %v3642 = vrot.slane %v3550, 7
    %v3643 = vsel %vm453, %v3642, %v3478
    %v3644 = vsel %vm275, %v3643, 0
    %3646 = vmatprep.subr.mxu0 0.0
    %3647 = vmatpush1.msra.mxu0 0.0
    %3648 = vmatprep.subr.mxu0 0.0
    %3649 = vmatpush1.msra.mxu0 0.0
    %3650 = vmatprep.subr.mxu0 0.0
    %3651 = vmatpush1.msra.mxu0 0.0
    %3652 = vmatprep.subr.mxu0 0.0
    %3653 = vmatpush1.msra.mxu0 0.0
    %3654 = vmatprep.subr.mxu0 0.0
    %3655 = vmatpush1.msra.mxu0 0.0
    %3656 = vmatprep.subr.mxu0 0.0
    %3657 = vmatpush1.msra.mxu0 0.0
    %3658 = vmatprep.subr.mxu0 0.0
    %3659 = vmatpush1.msra.mxu0 0.0
    %3660 = vmatprep.subr.mxu0 0.0
    %3661 = vmatpush1.msra.mxu0 0.0
    %3662 = vmatprep.subr.mxu0 0.0
    %3663 = vmatpush1.msra.mxu0 0.0
    %3664 = vmatprep.subr.mxu0 0.0
    %3665 = vmatpush1.msra.mxu0 0.0
    %3666 = vmatprep.subr.mxu0 0.0
    %3667 = vmatpush1.msra.mxu0 0.0
    %3668 = vmatprep.subr.mxu0 0.0
    %3669 = vmatpush1.msra.mxu0 0.0
    %3670 = vmatprep.subr.mxu0 0.0
    %3671 = vmatpush1.msra.mxu0 %v1754
    %3672 = vmatprep.subr.mxu0 0.0
    %3673 = vmatpush1.msra.mxu0 %v1753
    %3674 = vmatprep.subr.mxu0 0.0
    %3675 = vmatpush1.msra.mxu0 %v1752
    %3676 = vmatprep.subr.mxu0 0.0
    %3677 = vmatpush1.msra.mxu0 %v1751
    %3678 = vmatprep.subr.mxu0 0.0
    %3679 = vmatpush2.msra.mxu0 0.0
    %3680 = vmatprep.subr.mxu0 0.0
    %3681 = vmatpush2.msra.mxu0 0.0
    %3682 = vmatprep.subr.mxu0 0.0
    %3683 = vmatpush2.msra.mxu0 0.0
    %3684 = vmatprep.subr.mxu0 0.0
    %3685 = vmatpush2.msra.mxu0 0.0
    %3686 = vmatprep.subr.mxu0 0.0
    %3687 = vmatpush2.msra.mxu0 0.0
    %3688 = vmatprep.subr.mxu0 0.0
    %3689 = vmatpush2.msra.mxu0 0.0
    %3690 = vmatprep.subr.mxu0 0.0
    %3691 = vmatpush2.msra.mxu0 0.0
    %3692 = vmatprep.subr.mxu0 0.0
    %3693 = vmatpush2.msra.mxu0 0.0
    %3694 = vmatprep.subr.mxu0 0.0
    %3695 = vmatpush2.msra.mxu0 0.0
    %3696 = vmatprep.subr.mxu0 0.0
    %3697 = vmatpush2.msra.mxu0 0.0
    %3698 = vmatprep.subr.mxu0 0.0
    %3699 = vmatpush2.msra.mxu0 0.0
    %3700 = vmatprep.subr.mxu0 0.0
    %3701 = vmatpush2.msra.mxu0 0.0
    %3702 = vmatprep.subr.mxu0 0.0
    %3703 = vmatpush2.msra.mxu0 0.0
    %3704 = vmatprep.subr.mxu0 0.0
    %3705 = vmatpush2.msra.mxu0 0.0
    %3706 = vmatprep.subr.mxu0 0.0
    %3707 = vmatpush2.msra.mxu0 0.0
    %3708 = vmatprep.subr.mxu0 0.0
    %3709 = vmatpush2.msra.mxu0 0.0
    %3710 = vmatprep.mubr.f32.mxu0 0.0
    %3711 = vmatmul.mubr.f32.gmra.mxu0 %v3644
    %v3712 = vpop.f32.mrf.mxu0
    %v3713 = vadd.f32 %v3637, %v3712
    %v3714 = vpop.f32.mrf.mxu0
    %3715 = vdwg.mxu0
    %v3716 = vadd.f32 %v3713, %v1764
    %v3717 = vtanh.pop %v3716
    %v3718 = vxor.u32 %v3716, 2147483648
    %v3719 = vmul.f32 %v3718, 1.442695
    %v3720 = vpow.pop %v3719
    %v3721 = vadd.f32 %v3720, 1.0
    %v3722 = vrcp.pop %v3721
    %v3723 = vmul.f32 1.0, %v3722
    %v3724 = vsel %vm163, %v3717, %v3723
    %v3725 = vmul.f32 %v3724, %v2893
    %3727 = vrot.lane.b32.xlu0 %v3724, 64
    %v3728 = vpop.permute.xlu0 %3727
    %v3730 = vmul.f32 %v3724, %v3728
    %3732 = vrot.lane.b32.xlu0 %v3730, 32
    %v3733 = vpop.permute.xlu0 %3732
    %v3735 = vadd.f32 %v3725, %v3733
    %v3736 = vtanh.pop %v3735
    %3738 = vrot.lane.b32.xlu0 %v3736, 64
    %v3739 = vpop.permute.xlu0 %3738
    %v3741 = vmul.f32 %v3724, %v3739
    %3743 = vrot.lane.b32.xlu0 %v3741, 32
    %v3744 = vpop.permute.xlu0 %3743
    %v3745 = vsel %vm275, %v3744, 0
    %3747 = vmatprep.subr.mxu0 0.0
    %3748 = vmatpush1.msra.mxu0 0.0
    %3749 = vmatprep.subr.mxu0 0.0
    %3750 = vmatpush1.msra.mxu0 0.0
    %3751 = vmatprep.subr.mxu0 0.0
    %3752 = vmatpush1.msra.mxu0 0.0
    %3753 = vmatprep.subr.mxu0 0.0
    %3754 = vmatpush1.msra.mxu0 0.0
    %3755 = vmatprep.subr.mxu0 0.0
    %3756 = vmatpush1.msra.mxu0 0.0
    %3757 = vmatprep.subr.mxu0 0.0
    %3758 = vmatpush1.msra.mxu0 0.0
    %3759 = vmatprep.subr.mxu0 0.0
    %3760 = vmatpush1.msra.mxu0 0.0
    %3761 = vmatprep.subr.mxu0 0.0
    %3762 = vmatpush1.msra.mxu0 0.0
    %3763 = vmatprep.subr.mxu0 0.0
    %3764 = vmatpush1.msra.mxu0 0.0
    %3765 = vmatprep.subr.mxu0 0.0
    %3766 = vmatpush1.msra.mxu0 0.0
    %3767 = vmatprep.subr.mxu0 0.0
    %3768 = vmatpush1.msra.mxu0 0.0
    %3769 = vmatprep.subr.mxu0 0.0
    %3770 = vmatpush1.msra.mxu0 0.0
    %3771 = vmatprep.subr.mxu0 0.0
    %3772 = vmatpush1.msra.mxu0 %v1769
    %3773 = vmatprep.subr.mxu0 0.0
    %3774 = vmatpush1.msra.mxu0 %v1768
    %3775 = vmatprep.subr.mxu0 0.0
    %3776 = vmatpush1.msra.mxu0 %v1767
    %3777 = vmatprep.subr.mxu0 0.0
    %3778 = vmatpush1.msra.mxu0 %v1766
    %3779 = vmatprep.subr.mxu0 0.0
    %3780 = vmatpush2.msra.mxu0 0.0
    %3781 = vmatprep.subr.mxu0 0.0
    %3782 = vmatpush2.msra.mxu0 0.0
    %3783 = vmatprep.subr.mxu0 0.0
    %3784 = vmatpush2.msra.mxu0 0.0
    %3785 = vmatprep.subr.mxu0 0.0
    %3786 = vmatpush2.msra.mxu0 0.0
    %3787 = vmatprep.subr.mxu0 0.0
    %3788 = vmatpush2.msra.mxu0 0.0
    %3789 = vmatprep.subr.mxu0 0.0
    %3790 = vmatpush2.msra.mxu0 0.0
    %3791 = vmatprep.subr.mxu0 0.0
    %3792 = vmatpush2.msra.mxu0 0.0
    %3793 = vmatprep.subr.mxu0 0.0
    %3794 = vmatpush2.msra.mxu0 0.0
    %3795 = vmatprep.subr.mxu0 0.0
    %3796 = vmatpush2.msra.mxu0 0.0
    %3797 = vmatprep.subr.mxu0 0.0
    %3798 = vmatpush2.msra.mxu0 0.0
    %3799 = vmatprep.subr.mxu0 0.0
    %3800 = vmatpush2.msra.mxu0 0.0
    %3801 = vmatprep.subr.mxu0 0.0
    %3802 = vmatpush2.msra.mxu0 0.0
    %3803 = vmatprep.subr.mxu0 0.0
    %3804 = vmatpush2.msra.mxu0 0.0
    %3805 = vmatprep.subr.mxu0 0.0
    %3806 = vmatpush2.msra.mxu0 0.0
    %3807 = vmatprep.subr.mxu0 0.0
    %3808 = vmatpush2.msra.mxu0 0.0
    %3809 = vmatprep.subr.mxu0 0.0
    %3810 = vmatpush2.msra.mxu0 0.0
    %3811 = vmatprep.mubr.f32.mxu0 0.0
    %3812 = vmatmul.mubr.f32.gmra.mxu0 %v3745
    %v3813 = vpop.f32.mrf.mxu0
    %v3814 = vadd.f32 %v1775, %v3813
    %v3815 = vpop.f32.mrf.mxu0
    %3816 = vdwg.mxu0
    %v3819 = vunpack.c.l.s4 1966171168
    %v3820 = vunpack.c.0.s8 %v3819
    %v3821 = vlaneseq
    %v3822 = vshrl.u32 %v3821, 7
    %v3823 = vsub.s32 %v3820, %v3822
    %v3824 = vrot.slane %v3814, %v3823
    %v3825 = vcombine.high %v3824, %v3824
    %v3827 = vunpack.c.l.s4 1966171168
    %v3828 = vunpack.c.0.s8 %v3827
    %v3829 = vlaneseq
    %v3830 = vshrl.u32 %v3829, 7
    %v3831 = vsub.s32 %v3828, %v3830
    %v3832 = vrot.slane %v3824, %v3831
    %v3834 = vunpack.c.l.s4 1966171168
    %v3835 = vunpack.c.0.s8 %v3834
    %v3836 = vlaneseq
    %v3837 = vshrl.u32 %v3836, 7
    %v3838 = vsub.s32 %v3835, %v3837
    %v3839 = vrot.slane %v3825, %v3838
    %v3840 = vlaneseq
    %v3841 = vshrl.u32 %v3840, 7
    %v3842 = vsub.s32 0, %v3841
    %v3843 = vrot.slane %v3832, %v3842
    %v3844 = vlaneseq
    %v3845 = vshrl.u32 %v3844, 7
    %v3846 = vsub.s32 0, %v3845
    %v3847 = vrot.slane %v3839, %v3846
    %v3850 = vadd.f32 %v3843, %v1743
    %v3851 = vadd.f32 %v3847, %v1748
    %v3852 = vtanh.pop %v3850
    %v3853 = vtanh.pop %v3851
    %v3854 = vmul.f32 %v3852, %v1782
    %v3855 = vmul.f32 %v3853, %v1782
    %v3856 = vsel %vm275, %v3854, 0.0
    %3857 = vadd.xlane.f32.xlu0 %v3856
    %v3858 = vpop.xlane.xlu0 %3857
    %v3859 = vsel %vm275, %v3855, 0.0
    %3860 = vadd.xlane.f32.xlu0 %v3859
    %v3861 = vpop.xlane.xlu0 %3860
    %vm3862 = vcmp.gt.f32.partialorder %v3385, 0.0
    %v3865 = vlaneseq
    %v3866 = vshrl.u32 %v3865, 7
    %v3867 = vsub.s32 %v158, %v3866
    %v3868 = vrot.slane %v3858, %v3867
    %v3869 = vlaneseq
    %v3870 = vshrl.u32 %v3869, 7
    %v3871 = vsub.s32 %v158, %v3870
    %v3872 = vrot.slane %v3861, %v3871
    %v3873 = vsel %vm453, %v3872, %v3868
    %v3875 = vsel %vm3862, %v3873, -1e+30
    %v3876 = vsel %vm2112, %v3875, -inf
    %3877 = vmax.xlane.f32.xlu0 %v3876
    %v3878 = vpop.xlane.xlu0 %3877
    %v3879 = vsub.f32 %v3875, %v3878
    %v3880 = vmul.f32 %v3879, 1.442695
    %v3881 = vpow.pop %v3880
    %v3882 = vsel %vm2112, %v3881, 0.0
    %3883 = vadd.xlane.f32.xlu0 %v3882
    %v3884 = vpop.xlane.xlu0 %3883
    %v3885 = vrcp.pop %v3884
    %v3886 = vmul.f32 %v3881, %v3885
    %v3889 = vunpack.c.l.s4 1966171168
    %v3890 = vunpack.c.0.s8 %v3889
    %v3891 = vlaneseq
    %v3892 = vshrl.u32 %v3891, 7
    %v3893 = vsub.s32 %v3890, %v3892
    %v3894 = vrot.slane %v3886, %v3893
    %v3895 = vcombine.high %v3894, %v3894
    %v3897 = vunpack.c.l.s4 1966171168
    %v3898 = vunpack.c.0.s8 %v3897
    %v3899 = vlaneseq
    %v3900 = vshrl.u32 %v3899, 7
    %v3901 = vsub.s32 %v3898, %v3900
    %v3902 = vrot.slane %v3894, %v3901
    %v3904 = vunpack.c.l.s4 1966171168
    %v3905 = vunpack.c.0.s8 %v3904
    %v3906 = vlaneseq
    %v3907 = vshrl.u32 %v3906, 7
    %v3908 = vsub.s32 %v3905, %v3907
    %v3909 = vrot.slane %v3895, %v3908
    %v3910 = vsel %vm2176, %v3902, 0
    %3912 = vmatprep.subr.mxu0 0.0
    %3913 = vmatpush1.msra.mxu0 0.0
    %3914 = vmatprep.subr.mxu0 0.0
    %3915 = vmatpush1.msra.mxu0 0.0
    %3916 = vmatprep.subr.mxu0 0.0
    %3917 = vmatpush1.msra.mxu0 0.0
    %3918 = vmatprep.subr.mxu0 0.0
    %3919 = vmatpush1.msra.mxu0 0.0
    %3920 = vmatprep.subr.mxu0 0.0
    %3921 = vmatpush1.msra.mxu0 0.0
    %3922 = vmatprep.subr.mxu0 0.0
    %3923 = vmatpush1.msra.mxu0 0.0
    %3924 = vmatprep.subr.mxu0 0.0
    %3925 = vmatpush1.msra.mxu0 0.0
    %3926 = vmatprep.subr.mxu0 0.0
    %3927 = vmatpush1.msra.mxu0 0.0
    %3928 = vmatprep.subr.mxu0 0.0
    %3929 = vmatpush1.msra.mxu0 0.0
    %3930 = vmatprep.subr.mxu0 0.0
    %3931 = vmatpush1.msra.mxu0 0.0
    %3932 = vmatprep.subr.mxu0 0.0
    %3933 = vmatpush1.msra.mxu0 0.0
    %3934 = vmatprep.subr.mxu0 0.0
    %3935 = vmatpush1.msra.mxu0 0.0
    %3936 = vmatprep.subr.mxu0 0.0
    %3937 = vmatpush1.msra.mxu0 0.0
    %3938 = vmatprep.subr.mxu0 0.0
    %3939 = vmatpush1.msra.mxu0 0.0
    %3940 = vmatprep.subr.mxu0 0.0
    %3941 = vmatpush1.msra.mxu0 0.0
    %3942 = vmatprep.subr.mxu0 0.0
    %3943 = vmatpush1.msra.mxu0 %v1743
    %3944 = vmatprep.subr.mxu0 0.0
    %3945 = vmatpush2.msra.mxu0 0.0
    %3946 = vmatprep.subr.mxu0 0.0
    %3947 = vmatpush2.msra.mxu0 0.0
    %3948 = vmatprep.subr.mxu0 0.0
    %3949 = vmatpush2.msra.mxu0 0.0
    %3950 = vmatprep.subr.mxu0 0.0
    %3951 = vmatpush2.msra.mxu0 0.0
    %3952 = vmatprep.subr.mxu0 0.0
    %3953 = vmatpush2.msra.mxu0 0.0
    %3954 = vmatprep.subr.mxu0 0.0
    %3955 = vmatpush2.msra.mxu0 0.0
    %3956 = vmatprep.subr.mxu0 0.0
    %3957 = vmatpush2.msra.mxu0 0.0
    %3958 = vmatprep.subr.mxu0 0.0
    %3959 = vmatpush2.msra.mxu0 0.0
    %3960 = vmatprep.subr.mxu0 0.0
    %3961 = vmatpush2.msra.mxu0 0.0
    %3962 = vmatprep.subr.mxu0 0.0
    %3963 = vmatpush2.msra.mxu0 0.0
    %3964 = vmatprep.subr.mxu0 0.0
    %3965 = vmatpush2.msra.mxu0 0.0
    %3966 = vmatprep.subr.mxu0 0.0
    %3967 = vmatpush2.msra.mxu0 0.0
    %3968 = vmatprep.subr.mxu0 0.0
    %3969 = vmatpush2.msra.mxu0 0.0
    %3970 = vmatprep.subr.mxu0 0.0
    %3971 = vmatpush2.msra.mxu0 0.0
    %3972 = vmatprep.subr.mxu0 0.0
    %3973 = vmatpush2.msra.mxu0 0.0
    %3974 = vmatprep.subr.mxu0 0.0
    %3975 = vmatpush2.msra.mxu0 0.0
    %3976 = vmatprep.mubr.f32.mxu0 0.0
    %3977 = vmatmul.mubr.f32.gmra.mxu0 %v3910
    %v3978 = vpop.f32.mrf.mxu0
    %v3979 = vadd.f32 0.0, %v3978
    %v3980 = vpop.f32.mrf.mxu0
    %3981 = vdwg.mxu0
    %v3982 = vsel %vm2176, %v3909, 0
    %3984 = vmatprep.subr.mxu0 0.0
    %3985 = vmatpush1.msra.mxu0 0.0
    %3986 = vmatprep.subr.mxu0 0.0
    %3987 = vmatpush1.msra.mxu0 0.0
    %3988 = vmatprep.subr.mxu0 0.0
    %3989 = vmatpush1.msra.mxu0 0.0
    %3990 = vmatprep.subr.mxu0 0.0
    %3991 = vmatpush1.msra.mxu0 0.0
    %3992 = vmatprep.subr.mxu0 0.0
    %3993 = vmatpush1.msra.mxu0 0.0
    %3994 = vmatprep.subr.mxu0 0.0
    %3995 = vmatpush1.msra.mxu0 0.0
    %3996 = vmatprep.subr.mxu0 0.0
    %3997 = vmatpush1.msra.mxu0 0.0
    %3998 = vmatprep.subr.mxu0 0.0
    %3999 = vmatpush1.msra.mxu0 0.0
    %4000 = vmatprep.subr.mxu0 0.0
    %4001 = vmatpush1.msra.mxu0 0.0
    %4002 = vmatprep.subr.mxu0 0.0
    %4003 = vmatpush1.msra.mxu0 0.0
    %4004 = vmatprep.subr.mxu0 0.0
    %4005 = vmatpush1.msra.mxu0 0.0
    %4006 = vmatprep.subr.mxu0 0.0
    %4007 = vmatpush1.msra.mxu0 0.0
    %4008 = vmatprep.subr.mxu0 0.0
    %4009 = vmatpush1.msra.mxu0 0.0
    %4010 = vmatprep.subr.mxu0 0.0
    %4011 = vmatpush1.msra.mxu0 0.0
    %4012 = vmatprep.subr.mxu0 0.0
    %4013 = vmatpush1.msra.mxu0 0.0
    %4014 = vmatprep.subr.mxu0 0.0
    %4015 = vmatpush1.msra.mxu0 %v1748
    %4016 = vmatprep.subr.mxu0 0.0
    %4017 = vmatpush2.msra.mxu0 0.0
    %4018 = vmatprep.subr.mxu0 0.0
    %4019 = vmatpush2.msra.mxu0 0.0
    %4020 = vmatprep.subr.mxu0 0.0
    %4021 = vmatpush2.msra.mxu0 0.0
    %4022 = vmatprep.subr.mxu0 0.0
    %4023 = vmatpush2.msra.mxu0 0.0
    %4024 = vmatprep.subr.mxu0 0.0
    %4025 = vmatpush2.msra.mxu0 0.0
    %4026 = vmatprep.subr.mxu0 0.0
    %4027 = vmatpush2.msra.mxu0 0.0
    %4028 = vmatprep.subr.mxu0 0.0
    %4029 = vmatpush2.msra.mxu0 0.0
    %4030 = vmatprep.subr.mxu0 0.0
    %4031 = vmatpush2.msra.mxu0 0.0
    %4032 = vmatprep.subr.mxu0 0.0
    %4033 = vmatpush2.msra.mxu0 0.0
    %4034 = vmatprep.subr.mxu0 0.0
    %4035 = vmatpush2.msra.mxu0 0.0
    %4036 = vmatprep.subr.mxu0 0.0
    %4037 = vmatpush2.msra.mxu0 0.0
    %4038 = vmatprep.subr.mxu0 0.0
    %4039 = vmatpush2.msra.mxu0 0.0
    %4040 = vmatprep.subr.mxu0 0.0
    %4041 = vmatpush2.msra.mxu0 0.0
    %4042 = vmatprep.subr.mxu0 0.0
    %4043 = vmatpush2.msra.mxu0 0.0
    %4044 = vmatprep.subr.mxu0 0.0
    %4045 = vmatpush2.msra.mxu0 0.0
    %4046 = vmatprep.subr.mxu0 0.0
    %4047 = vmatpush2.msra.mxu0 0.0
    %4048 = vmatprep.mubr.f32.mxu0 0.0
    %4049 = vmatmul.mubr.f32.gmra.mxu0 %v3982
    %v4050 = vpop.f32.mrf.mxu0
    %v4051 = vadd.f32 0.0, %v4050
    %v4052 = vpop.f32.mrf.mxu0
    %4053 = vdwg.mxu0
    %4054 = vmatprep.subr.mxu0 0.0
    %4055 = vmatpush1.msra.mxu0 0.0
    %4056 = vmatprep.subr.mxu0 0.0
    %4057 = vmatpush1.msra.mxu0 0.0
    %4058 = vmatprep.subr.mxu0 0.0
    %4059 = vmatpush1.msra.mxu0 0.0
    %4060 = vmatprep.subr.mxu0 0.0
    %4061 = vmatpush1.msra.mxu0 0.0
    %4062 = vmatprep.subr.mxu0 0.0
    %4063 = vmatpush1.msra.mxu0 0.0
    %4064 = vmatprep.subr.mxu0 0.0
    %4065 = vmatpush1.msra.mxu0 0.0
    %4066 = vmatprep.subr.mxu0 0.0
    %4067 = vmatpush1.msra.mxu0 0.0
    %4068 = vmatprep.subr.mxu0 0.0
    %4069 = vmatpush1.msra.mxu0 0.0
    %4070 = vmatprep.subr.mxu0 0.0
    %4071 = vmatpush1.msra.mxu0 0.0
    %4072 = vmatprep.subr.mxu0 0.0
    %4073 = vmatpush1.msra.mxu0 0.0
    %4074 = vmatprep.subr.mxu0 0.0
    %4075 = vmatpush1.msra.mxu0 0.0
    %4076 = vmatprep.subr.mxu0 0.0
    %4077 = vmatpush1.msra.mxu0 0.0
    %4078 = vmatprep.subr.mxu0 0.0
    %4079 = vmatpush1.msra.mxu0 %v1791
    %4080 = vmatprep.subr.mxu0 0.0
    %4081 = vmatpush1.msra.mxu0 %v1790
    %4082 = vmatprep.subr.mxu0 0.0
    %4083 = vmatpush1.msra.mxu0 %v1789
    %4084 = vmatprep.subr.mxu0 0.0
    %4085 = vmatpush1.msra.mxu0 %v1788
    %4086 = vmatprep.subr.mxu0 0.0
    %4087 = vmatpush2.msra.mxu0 0.0
    %4088 = vmatprep.subr.mxu0 0.0
    %4089 = vmatpush2.msra.mxu0 0.0
    %4090 = vmatprep.subr.mxu0 0.0
    %4091 = vmatpush2.msra.mxu0 0.0
    %4092 = vmatprep.subr.mxu0 0.0
    %4093 = vmatpush2.msra.mxu0 0.0
    %4094 = vmatprep.subr.mxu0 0.0
    %4095 = vmatpush2.msra.mxu0 0.0
    %4096 = vmatprep.subr.mxu0 0.0
    %4097 = vmatpush2.msra.mxu0 0.0
    %4098 = vmatprep.subr.mxu0 0.0
    %4099 = vmatpush2.msra.mxu0 0.0
    %4100 = vmatprep.subr.mxu0 0.0
    %4101 = vmatpush2.msra.mxu0 0.0
    %4102 = vmatprep.subr.mxu0 0.0
    %4103 = vmatpush2.msra.mxu0 0.0
    %4104 = vmatprep.subr.mxu0 0.0
    %4105 = vmatpush2.msra.mxu0 0.0
    %4106 = vmatprep.subr.mxu0 0.0
    %4107 = vmatpush2.msra.mxu0 0.0
    %4108 = vmatprep.subr.mxu0 0.0
    %4109 = vmatpush2.msra.mxu0 0.0
    %4110 = vmatprep.subr.mxu0 0.0
    %4111 = vmatpush2.msra.mxu0 0.0
    %4112 = vmatprep.subr.mxu0 0.0
    %4113 = vmatpush2.msra.mxu0 0.0
    %4114 = vmatprep.subr.mxu0 0.0
    %4115 = vmatpush2.msra.mxu0 0.0
    %4116 = vmatprep.subr.mxu0 0.0
    %4117 = vmatpush2.msra.mxu0 0.0
    %4118 = vmatprep.mubr.f32.mxu0 0.0
    %4119 = vmatmul.mubr.f32.gmra.mxu0 %v3745
    %v4120 = vpop.f32.mrf.mxu0
    %v4121 = vadd.f32 0.0, %v4120
    %v4122 = vpop.f32.mrf.mxu0
    %4123 = vdwg.mxu0
    %v4126 = vrot.slane %v4051, 7
    %v4127 = vsel %vm453, %v4126, %v3979
    %v4128 = vsel %vm275, %v4127, 0
    %4130 = vmatprep.subr.mxu0 0.0
    %4131 = vmatpush1.msra.mxu0 0.0
    %4132 = vmatprep.subr.mxu0 0.0
    %4133 = vmatpush1.msra.mxu0 0.0
    %4134 = vmatprep.subr.mxu0 0.0
    %4135 = vmatpush1.msra.mxu0 0.0
    %4136 = vmatprep.subr.mxu0 0.0
    %4137 = vmatpush1.msra.mxu0 0.0
    %4138 = vmatprep.subr.mxu0 0.0
    %4139 = vmatpush1.msra.mxu0 0.0
    %4140 = vmatprep.subr.mxu0 0.0
    %4141 = vmatpush1.msra.mxu0 0.0
    %4142 = vmatprep.subr.mxu0 0.0
    %4143 = vmatpush1.msra.mxu0 0.0
    %4144 = vmatprep.subr.mxu0 0.0
    %4145 = vmatpush1.msra.mxu0 0.0
    %4146 = vmatprep.subr.mxu0 0.0
    %4147 = vmatpush1.msra.mxu0 0.0
    %4148 = vmatprep.subr.mxu0 0.0
    %4149 = vmatpush1.msra.mxu0 0.0
    %4150 = vmatprep.subr.mxu0 0.0
    %4151 = vmatpush1.msra.mxu0 0.0
    %4152 = vmatprep.subr.mxu0 0.0
    %4153 = vmatpush1.msra.mxu0 0.0
    %4154 = vmatprep.subr.mxu0 0.0
    %4155 = vmatpush1.msra.mxu0 %v1787
    %4156 = vmatprep.subr.mxu0 0.0
    %4157 = vmatpush1.msra.mxu0 %v1786
    %4158 = vmatprep.subr.mxu0 0.0
    %4159 = vmatpush1.msra.mxu0 %v1785
    %4160 = vmatprep.subr.mxu0 0.0
    %4161 = vmatpush1.msra.mxu0 %v1784
    %4162 = vmatprep.subr.mxu0 0.0
    %4163 = vmatpush2.msra.mxu0 0.0
    %4164 = vmatprep.subr.mxu0 0.0
    %4165 = vmatpush2.msra.mxu0 0.0
    %4166 = vmatprep.subr.mxu0 0.0
    %4167 = vmatpush2.msra.mxu0 0.0
    %4168 = vmatprep.subr.mxu0 0.0
    %4169 = vmatpush2.msra.mxu0 0.0
    %4170 = vmatprep.subr.mxu0 0.0
    %4171 = vmatpush2.msra.mxu0 0.0
    %4172 = vmatprep.subr.mxu0 0.0
    %4173 = vmatpush2.msra.mxu0 0.0
    %4174 = vmatprep.subr.mxu0 0.0
    %4175 = vmatpush2.msra.mxu0 0.0
    %4176 = vmatprep.subr.mxu0 0.0
    %4177 = vmatpush2.msra.mxu0 0.0
    %4178 = vmatprep.subr.mxu0 0.0
    %4179 = vmatpush2.msra.mxu0 0.0
    %4180 = vmatprep.subr.mxu0 0.0
    %4181 = vmatpush2.msra.mxu0 0.0
    %4182 = vmatprep.subr.mxu0 0.0
    %4183 = vmatpush2.msra.mxu0 0.0
    %4184 = vmatprep.subr.mxu0 0.0
    %4185 = vmatpush2.msra.mxu0 0.0
    %4186 = vmatprep.subr.mxu0 0.0
    %4187 = vmatpush2.msra.mxu0 0.0
    %4188 = vmatprep.subr.mxu0 0.0
    %4189 = vmatpush2.msra.mxu0 0.0
    %4190 = vmatprep.subr.mxu0 0.0
    %4191 = vmatpush2.msra.mxu0 0.0
    %4192 = vmatprep.subr.mxu0 0.0
    %4193 = vmatpush2.msra.mxu0 0.0
    %4194 = vmatprep.mubr.f32.mxu0 0.0
    %4195 = vmatmul.mubr.f32.gmra.mxu0 %v4128
    %v4196 = vpop.f32.mrf.mxu0
    %v4197 = vadd.f32 %v4121, %v4196
    %v4198 = vpop.f32.mrf.mxu0
    %4199 = vdwg.mxu0
    %v4200 = vadd.f32 %v4197, %v1797
    %v4201 = vtanh.pop %v4200
    %v4202 = vmul.f32 %v3886, %v3385
    %v4203 = vsel %vm2112, %v4202, -inf
    %4204 = vmax.xlane.f32.xlu0 %v4203
    %v4205 = vpop.xlane.xlu0 %4204
    %vm4206 = vcmp.eq.f32.partialorder %v4202, %v4205
    %v4207 = vsel %vm4206, %v158, 8
    %v4208 = vsel %vm2112, %v4207, 2147483647
    %v4209 = vand.u32 %v4208, 65535
    %v4210 = vshra.s32 %v4208, 16
    %v4211 = vcvt.s32.f32 %v4209
    %v4212 = vcvt.s32.f32 %v4210
    %4213 = vmin.xlane.f32.xlu0 %v4212
    %v4214 = vpop.xlane.xlu0 %4213
    %vm4215 = vcmp.eq.f32.partialorder %v4212, %v4214
    %v4216 = vsel %vm4215, %v4211, inf
    %4217 = vmin.xlane.f32.xlu0 %v4216
    %v4218 = vpop.xlane.xlu0 %4217
    %v4219 = vcvt.f32.s32 %v4218
    %v4220 = vcvt.f32.s32 %v4214
    %v4221 = vshll.u32 %v4220, 16
    %v4222 = vadd.s32 %v4221, %v4219
    %vm4223 = vcmp.eq.s32.totalorder %v158, %v4222
    %v4224 = vsel %vm4223, 1, 0
    %v4225 = vcvt.s32.f32 %v4224
    %v4226 = vsub.f32 1.0, %v4225
    %v4227 = vmul.f32 %v3385, %v4226
    %v4230 = vunpack.c.l.s4 1966171168
    %v4231 = vunpack.c.0.s8 %v4230
    %v4232 = vlaneseq
    %v4233 = vshrl.u32 %v4232, 7
    %v4234 = vsub.s32 %v4231, %v4233
    %v4235 = vrot.slane %v4225, %v4234
    %v4236 = vcombine.high %v4235, %v4235
    %v4238 = vunpack.c.l.s4 1966171168
    %v4239 = vunpack.c.0.s8 %v4238
    %v4240 = vlaneseq
    %v4241 = vshrl.u32 %v4240, 7
    %v4242 = vsub.s32 %v4239, %v4241
    %v4243 = vrot.slane %v4235, %v4242
    %v4245 = vunpack.c.l.s4 1966171168
    %v4246 = vunpack.c.0.s8 %v4245
    %v4247 = vlaneseq
    %v4248 = vshrl.u32 %v4247, 7
    %v4249 = vsub.s32 %v4246, %v4248
    %v4250 = vrot.slane %v4236, %v4249
    %v4251 = vsel %vm2176, %v4243, 0
    %4253 = vmatprep.subr.mxu0 0.0
    %4254 = vmatpush1.msra.mxu0 0.0
    %4255 = vmatprep.subr.mxu0 0.0
    %4256 = vmatpush1.msra.mxu0 0.0
    %4257 = vmatprep.subr.mxu0 0.0
    %4258 = vmatpush1.msra.mxu0 0.0
    %4259 = vmatprep.subr.mxu0 0.0
    %4260 = vmatpush1.msra.mxu0 0.0
    %4261 = vmatprep.subr.mxu0 0.0
    %4262 = vmatpush1.msra.mxu0 0.0
    %4263 = vmatprep.subr.mxu0 0.0
    %4264 = vmatpush1.msra.mxu0 0.0
    %4265 = vmatprep.subr.mxu0 0.0
    %4266 = vmatpush1.msra.mxu0 0.0
    %4267 = vmatprep.subr.mxu0 0.0
    %4268 = vmatpush1.msra.mxu0 0.0
    %4269 = vmatprep.subr.mxu0 0.0
    %4270 = vmatpush1.msra.mxu0 0.0
    %4271 = vmatprep.subr.mxu0 0.0
    %4272 = vmatpush1.msra.mxu0 0.0
    %4273 = vmatprep.subr.mxu0 0.0
    %4274 = vmatpush1.msra.mxu0 0.0
    %4275 = vmatprep.subr.mxu0 0.0
    %4276 = vmatpush1.msra.mxu0 0.0
    %4277 = vmatprep.subr.mxu0 0.0
    %4278 = vmatpush1.msra.mxu0 0.0
    %4279 = vmatprep.subr.mxu0 0.0
    %4280 = vmatpush1.msra.mxu0 0.0
    %4281 = vmatprep.subr.mxu0 0.0
    %4282 = vmatpush1.msra.mxu0 0.0
    %4283 = vmatprep.subr.mxu0 0.0
    %4284 = vmatpush1.msra.mxu0 %v252
    %4285 = vmatprep.subr.mxu0 0.0
    %4286 = vmatpush2.msra.mxu0 0.0
    %4287 = vmatprep.subr.mxu0 0.0
    %4288 = vmatpush2.msra.mxu0 0.0
    %4289 = vmatprep.subr.mxu0 0.0
    %4290 = vmatpush2.msra.mxu0 0.0
    %4291 = vmatprep.subr.mxu0 0.0
    %4292 = vmatpush2.msra.mxu0 0.0
    %4293 = vmatprep.subr.mxu0 0.0
    %4294 = vmatpush2.msra.mxu0 0.0
    %4295 = vmatprep.subr.mxu0 0.0
    %4296 = vmatpush2.msra.mxu0 0.0
    %4297 = vmatprep.subr.mxu0 0.0
    %4298 = vmatpush2.msra.mxu0 0.0
    %4299 = vmatprep.subr.mxu0 0.0
    %4300 = vmatpush2.msra.mxu0 0.0
    %4301 = vmatprep.subr.mxu0 0.0
    %4302 = vmatpush2.msra.mxu0 0.0
    %4303 = vmatprep.subr.mxu0 0.0
    %4304 = vmatpush2.msra.mxu0 0.0
    %4305 = vmatprep.subr.mxu0 0.0
    %4306 = vmatpush2.msra.mxu0 0.0
    %4307 = vmatprep.subr.mxu0 0.0
    %4308 = vmatpush2.msra.mxu0 0.0
    %4309 = vmatprep.subr.mxu0 0.0
    %4310 = vmatpush2.msra.mxu0 0.0
    %4311 = vmatprep.subr.mxu0 0.0
    %4312 = vmatpush2.msra.mxu0 0.0
    %4313 = vmatprep.subr.mxu0 0.0
    %4314 = vmatpush2.msra.mxu0 0.0
    %4315 = vmatprep.subr.mxu0 0.0
    %4316 = vmatpush2.msra.mxu0 0.0
    %4317 = vmatprep.mubr.f32.mxu0 0.0
    %4318 = vmatmul.mubr.f32.gmra.mxu0 %v4251
    %v4319 = vpop.f32.mrf.mxu0
    %v4320 = vadd.f32 0.0, %v4319
    %v4321 = vpop.f32.mrf.mxu0
    %4322 = vdwg.mxu0
    %v4323 = vsel %vm2176, %v4250, 0
    %4325 = vmatprep.subr.mxu0 0.0
    %4326 = vmatpush1.msra.mxu0 0.0
    %4327 = vmatprep.subr.mxu0 0.0
    %4328 = vmatpush1.msra.mxu0 0.0
    %4329 = vmatprep.subr.mxu0 0.0
    %4330 = vmatpush1.msra.mxu0 0.0
    %4331 = vmatprep.subr.mxu0 0.0
    %4332 = vmatpush1.msra.mxu0 0.0
    %4333 = vmatprep.subr.mxu0 0.0
    %4334 = vmatpush1.msra.mxu0 0.0
    %4335 = vmatprep.subr.mxu0 0.0
    %4336 = vmatpush1.msra.mxu0 0.0
    %4337 = vmatprep.subr.mxu0 0.0
    %4338 = vmatpush1.msra.mxu0 0.0
    %4339 = vmatprep.subr.mxu0 0.0
    %4340 = vmatpush1.msra.mxu0 0.0
    %4341 = vmatprep.subr.mxu0 0.0
    %4342 = vmatpush1.msra.mxu0 0.0
    %4343 = vmatprep.subr.mxu0 0.0
    %4344 = vmatpush1.msra.mxu0 0.0
    %4345 = vmatprep.subr.mxu0 0.0
    %4346 = vmatpush1.msra.mxu0 0.0
    %4347 = vmatprep.subr.mxu0 0.0
    %4348 = vmatpush1.msra.mxu0 0.0
    %4349 = vmatprep.subr.mxu0 0.0
    %4350 = vmatpush1.msra.mxu0 0.0
    %4351 = vmatprep.subr.mxu0 0.0
    %4352 = vmatpush1.msra.mxu0 0.0
    %4353 = vmatprep.subr.mxu0 0.0
    %4354 = vmatpush1.msra.mxu0 0.0
    %4355 = vmatprep.subr.mxu0 0.0
    %4356 = vmatpush1.msra.mxu0 %v257
    %4357 = vmatprep.subr.mxu0 0.0
    %4358 = vmatpush2.msra.mxu0 0.0
    %4359 = vmatprep.subr.mxu0 0.0
    %4360 = vmatpush2.msra.mxu0 0.0
    %4361 = vmatprep.subr.mxu0 0.0
    %4362 = vmatpush2.msra.mxu0 0.0
    %4363 = vmatprep.subr.mxu0 0.0
    %4364 = vmatpush2.msra.mxu0 0.0
    %4365 = vmatprep.subr.mxu0 0.0
    %4366 = vmatpush2.msra.mxu0 0.0
    %4367 = vmatprep.subr.mxu0 0.0
    %4368 = vmatpush2.msra.mxu0 0.0
    %4369 = vmatprep.subr.mxu0 0.0
    %4370 = vmatpush2.msra.mxu0 0.0
    %4371 = vmatprep.subr.mxu0 0.0
    %4372 = vmatpush2.msra.mxu0 0.0
    %4373 = vmatprep.subr.mxu0 0.0
    %4374 = vmatpush2.msra.mxu0 0.0
    %4375 = vmatprep.subr.mxu0 0.0
    %4376 = vmatpush2.msra.mxu0 0.0
    %4377 = vmatprep.subr.mxu0 0.0
    %4378 = vmatpush2.msra.mxu0 0.0
    %4379 = vmatprep.subr.mxu0 0.0
    %4380 = vmatpush2.msra.mxu0 0.0
    %4381 = vmatprep.subr.mxu0 0.0
    %4382 = vmatpush2.msra.mxu0 0.0
    %4383 = vmatprep.subr.mxu0 0.0
    %4384 = vmatpush2.msra.mxu0 0.0
    %4385 = vmatprep.subr.mxu0 0.0
    %4386 = vmatpush2.msra.mxu0 0.0
    %4387 = vmatprep.subr.mxu0 0.0
    %4388 = vmatpush2.msra.mxu0 0.0
    %4389 = vmatprep.mubr.f32.mxu0 0.0
    %4390 = vmatmul.mubr.f32.gmra.mxu0 %v4323
    %v4391 = vpop.f32.mrf.mxu0
    %v4392 = vadd.f32 0.0, %v4391
    %v4393 = vpop.f32.mrf.mxu0
    %4394 = vdwg.mxu0
    %v4395 = vlaneseq
    %v4396 = vshrl.u32 %v4395, 7
    %v4397 = vsub.s32 0, %v4396
    %v4398 = vrot.slane %v3902, %v4397
    %v4399 = vlaneseq
    %v4400 = vshrl.u32 %v4399, 7
    %v4401 = vsub.s32 0, %v4400
    %v4402 = vrot.slane %v3909, %v4401
    %v4405 = vsel %vm827, %v4398, %v3563
    %v4406 = vsel %vm827, %v4402, %v3564
    %vm4407 = vcmp.eq.s32.totalorder %v158, 2
    %v4408 = vsel %vm4407, %v4222, %v3566
    %v4410 = vsel %vm275, %v4201, 0
    %4412 = vmatprep.subr.mxu0 0.0
    %4413 = vmatpush1.msra.mxu0 0.0
    %4414 = vmatprep.subr.mxu0 0.0
    %4415 = vmatpush1.msra.mxu0 0.0
    %4416 = vmatprep.subr.mxu0 0.0
    %4417 = vmatpush1.msra.mxu0 0.0
    %4418 = vmatprep.subr.mxu0 0.0
    %4419 = vmatpush1.msra.mxu0 0.0
    %4420 = vmatprep.subr.mxu0 0.0
    %4421 = vmatpush1.msra.mxu0 0.0
    %4422 = vmatprep.subr.mxu0 0.0
    %4423 = vmatpush1.msra.mxu0 0.0
    %4424 = vmatprep.subr.mxu0 0.0
    %4425 = vmatpush1.msra.mxu0 0.0
    %4426 = vmatprep.subr.mxu0 0.0
    %4427 = vmatpush1.msra.mxu0 0.0
    %4428 = vmatprep.subr.mxu0 0.0
    %4429 = vmatpush1.msra.mxu0 0.0
    %4430 = vmatprep.subr.mxu0 0.0
    %4431 = vmatpush1.msra.mxu0 0.0
    %4432 = vmatprep.subr.mxu0 0.0
    %4433 = vmatpush1.msra.mxu0 0.0
    %4434 = vmatprep.subr.mxu0 0.0
    %4435 = vmatpush1.msra.mxu0 0.0
    %4436 = vmatprep.subr.mxu0 0.0
    %4437 = vmatpush1.msra.mxu0 %v1758
    %4438 = vmatprep.subr.mxu0 0.0
    %4439 = vmatpush1.msra.mxu0 %v1757
    %4440 = vmatprep.subr.mxu0 0.0
    %4441 = vmatpush1.msra.mxu0 %v1756
    %4442 = vmatprep.subr.mxu0 0.0
    %4443 = vmatpush1.msra.mxu0 %v1755
    %4444 = vmatprep.subr.mxu0 0.0
    %4445 = vmatpush2.msra.mxu0 0.0
    %4446 = vmatprep.subr.mxu0 0.0
    %4447 = vmatpush2.msra.mxu0 0.0
    %4448 = vmatprep.subr.mxu0 0.0
    %4449 = vmatpush2.msra.mxu0 0.0
    %4450 = vmatprep.subr.mxu0 0.0
    %4451 = vmatpush2.msra.mxu0 0.0
    %4452 = vmatprep.subr.mxu0 0.0
    %4453 = vmatpush2.msra.mxu0 0.0
    %4454 = vmatprep.subr.mxu0 0.0
    %4455 = vmatpush2.msra.mxu0 0.0
    %4456 = vmatprep.subr.mxu0 0.0
    %4457 = vmatpush2.msra.mxu0 0.0
    %4458 = vmatprep.subr.mxu0 0.0
    %4459 = vmatpush2.msra.mxu0 0.0
    %4460 = vmatprep.subr.mxu0 0.0
    %4461 = vmatpush2.msra.mxu0 0.0
    %4462 = vmatprep.subr.mxu0 0.0
    %4463 = vmatpush2.msra.mxu0 0.0
    %4464 = vmatprep.subr.mxu0 0.0
    %4465 = vmatpush2.msra.mxu0 0.0
    %4466 = vmatprep.subr.mxu0 0.0
    %4467 = vmatpush2.msra.mxu0 0.0
    %4468 = vmatprep.subr.mxu0 0.0
    %4469 = vmatpush2.msra.mxu0 0.0
    %4470 = vmatprep.subr.mxu0 0.0
    %4471 = vmatpush2.msra.mxu0 0.0
    %4472 = vmatprep.subr.mxu0 0.0
    %4473 = vmatpush2.msra.mxu0 0.0
    %4474 = vmatprep.subr.mxu0 0.0
    %4475 = vmatpush2.msra.mxu0 0.0
    %4476 = vmatprep.mubr.f32.mxu0 0.0
    %4477 = vmatmul.mubr.f32.gmra.mxu0 %v4410
    %v4478 = vpop.f32.mrf.mxu0
    %v4479 = vadd.f32 0.0, %v4478
    %v4480 = vpop.f32.mrf.mxu0
    %4481 = vdwg.mxu0
    %v4484 = vrot.slane %v4392, 7
    %v4485 = vsel %vm453, %v4484, %v4320
    %v4486 = vsel %vm275, %v4485, 0
    %4488 = vmatprep.subr.mxu0 0.0
    %4489 = vmatpush1.msra.mxu0 0.0
    %4490 = vmatprep.subr.mxu0 0.0
    %4491 = vmatpush1.msra.mxu0 0.0
    %4492 = vmatprep.subr.mxu0 0.0
    %4493 = vmatpush1.msra.mxu0 0.0
    %4494 = vmatprep.subr.mxu0 0.0
    %4495 = vmatpush1.msra.mxu0 0.0
    %4496 = vmatprep.subr.mxu0 0.0
    %4497 = vmatpush1.msra.mxu0 0.0
    %4498 = vmatprep.subr.mxu0 0.0
    %4499 = vmatpush1.msra.mxu0 0.0
    %4500 = vmatprep.subr.mxu0 0.0
    %4501 = vmatpush1.msra.mxu0 0.0
    %4502 = vmatprep.subr.mxu0 0.0
    %4503 = vmatpush1.msra.mxu0 0.0
    %4504 = vmatprep.subr.mxu0 0.0
    %4505 = vmatpush1.msra.mxu0 0.0
    %4506 = vmatprep.subr.mxu0 0.0
    %4507 = vmatpush1.msra.mxu0 0.0
    %4508 = vmatprep.subr.mxu0 0.0
    %4509 = vmatpush1.msra.mxu0 0.0
    %4510 = vmatprep.subr.mxu0 0.0
    %4511 = vmatpush1.msra.mxu0 0.0
    %4512 = vmatprep.subr.mxu0 0.0
    %4513 = vmatpush1.msra.mxu0 %v1754
    %4514 = vmatprep.subr.mxu0 0.0
    %4515 = vmatpush1.msra.mxu0 %v1753
    %4516 = vmatprep.subr.mxu0 0.0
    %4517 = vmatpush1.msra.mxu0 %v1752
    %4518 = vmatprep.subr.mxu0 0.0
    %4519 = vmatpush1.msra.mxu0 %v1751
    %4520 = vmatprep.subr.mxu0 0.0
    %4521 = vmatpush2.msra.mxu0 0.0
    %4522 = vmatprep.subr.mxu0 0.0
    %4523 = vmatpush2.msra.mxu0 0.0
    %4524 = vmatprep.subr.mxu0 0.0
    %4525 = vmatpush2.msra.mxu0 0.0
    %4526 = vmatprep.subr.mxu0 0.0
    %4527 = vmatpush2.msra.mxu0 0.0
    %4528 = vmatprep.subr.mxu0 0.0
    %4529 = vmatpush2.msra.mxu0 0.0
    %4530 = vmatprep.subr.mxu0 0.0
    %4531 = vmatpush2.msra.mxu0 0.0
    %4532 = vmatprep.subr.mxu0 0.0
    %4533 = vmatpush2.msra.mxu0 0.0
    %4534 = vmatprep.subr.mxu0 0.0
    %4535 = vmatpush2.msra.mxu0 0.0
    %4536 = vmatprep.subr.mxu0 0.0
    %4537 = vmatpush2.msra.mxu0 0.0
    %4538 = vmatprep.subr.mxu0 0.0
    %4539 = vmatpush2.msra.mxu0 0.0
    %4540 = vmatprep.subr.mxu0 0.0
    %4541 = vmatpush2.msra.mxu0 0.0
    %4542 = vmatprep.subr.mxu0 0.0
    %4543 = vmatpush2.msra.mxu0 0.0
    %4544 = vmatprep.subr.mxu0 0.0
    %4545 = vmatpush2.msra.mxu0 0.0
    %4546 = vmatprep.subr.mxu0 0.0
    %4547 = vmatpush2.msra.mxu0 0.0
    %4548 = vmatprep.subr.mxu0 0.0
    %4549 = vmatpush2.msra.mxu0 0.0
    %4550 = vmatprep.subr.mxu0 0.0
    %4551 = vmatpush2.msra.mxu0 0.0
    %4552 = vmatprep.mubr.f32.mxu0 0.0
    %4553 = vmatmul.mubr.f32.gmra.mxu0 %v4486
    %v4554 = vpop.f32.mrf.mxu0
    %v4555 = vadd.f32 %v4479, %v4554
    %v4556 = vpop.f32.mrf.mxu0
    %4557 = vdwg.mxu0
    %v4558 = vadd.f32 %v4555, %v1764
    %v4559 = vtanh.pop %v4558
    %v4560 = vxor.u32 %v4558, 2147483648
    %v4561 = vmul.f32 %v4560, 1.442695
    %v4562 = vpow.pop %v4561
    %v4563 = vadd.f32 %v4562, 1.0
    %v4564 = vrcp.pop %v4563
    %v4565 = vmul.f32 1.0, %v4564
    %v4566 = vsel %vm163, %v4559, %v4565
    %v4567 = vmul.f32 %v4566, %v3735
    %4569 = vrot.lane.b32.xlu0 %v4566, 64
    %v4570 = vpop.permute.xlu0 %4569
    %v4572 = vmul.f32 %v4566, %v4570
    %4574 = vrot.lane.b32.xlu0 %v4572, 32
    %v4575 = vpop.permute.xlu0 %4574
    %v4577 = vadd.f32 %v4567, %v4575
    %v4578 = vtanh.pop %v4577
    %4580 = vrot.lane.b32.xlu0 %v4578, 64
    %v4581 = vpop.permute.xlu0 %4580
    %v4583 = vmul.f32 %v4566, %v4581
    %4585 = vrot.lane.b32.xlu0 %v4583, 32
    %v4586 = vpop.permute.xlu0 %4585
    %v4587 = vsel %vm275, %v4586, 0
    %4589 = vmatprep.subr.mxu0 0.0
    %4590 = vmatpush1.msra.mxu0 0.0
    %4591 = vmatprep.subr.mxu0 0.0
    %4592 = vmatpush1.msra.mxu0 0.0
    %4593 = vmatprep.subr.mxu0 0.0
    %4594 = vmatpush1.msra.mxu0 0.0
    %4595 = vmatprep.subr.mxu0 0.0
    %4596 = vmatpush1.msra.mxu0 0.0
    %4597 = vmatprep.subr.mxu0 0.0
    %4598 = vmatpush1.msra.mxu0 0.0
    %4599 = vmatprep.subr.mxu0 0.0
    %4600 = vmatpush1.msra.mxu0 0.0
    %4601 = vmatprep.subr.mxu0 0.0
    %4602 = vmatpush1.msra.mxu0 0.0
    %4603 = vmatprep.subr.mxu0 0.0
    %4604 = vmatpush1.msra.mxu0 0.0
    %4605 = vmatprep.subr.mxu0 0.0
    %4606 = vmatpush1.msra.mxu0 0.0
    %4607 = vmatprep.subr.mxu0 0.0
    %4608 = vmatpush1.msra.mxu0 0.0
    %4609 = vmatprep.subr.mxu0 0.0
    %4610 = vmatpush1.msra.mxu0 0.0
    %4611 = vmatprep.subr.mxu0 0.0
    %4612 = vmatpush1.msra.mxu0 0.0
    %4613 = vmatprep.subr.mxu0 0.0
    %4614 = vmatpush1.msra.mxu0 %v1769
    %4615 = vmatprep.subr.mxu0 0.0
    %4616 = vmatpush1.msra.mxu0 %v1768
    %4617 = vmatprep.subr.mxu0 0.0
    %4618 = vmatpush1.msra.mxu0 %v1767
    %4619 = vmatprep.subr.mxu0 0.0
    %4620 = vmatpush1.msra.mxu0 %v1766
    %4621 = vmatprep.subr.mxu0 0.0
    %4622 = vmatpush2.msra.mxu0 0.0
    %4623 = vmatprep.subr.mxu0 0.0
    %4624 = vmatpush2.msra.mxu0 0.0
    %4625 = vmatprep.subr.mxu0 0.0
    %4626 = vmatpush2.msra.mxu0 0.0
    %4627 = vmatprep.subr.mxu0 0.0
    %4628 = vmatpush2.msra.mxu0 0.0
    %4629 = vmatprep.subr.mxu0 0.0
    %4630 = vmatpush2.msra.mxu0 0.0
    %4631 = vmatprep.subr.mxu0 0.0
    %4632 = vmatpush2.msra.mxu0 0.0
    %4633 = vmatprep.subr.mxu0 0.0
    %4634 = vmatpush2.msra.mxu0 0.0
    %4635 = vmatprep.subr.mxu0 0.0
    %4636 = vmatpush2.msra.mxu0 0.0
    %4637 = vmatprep.subr.mxu0 0.0
    %4638 = vmatpush2.msra.mxu0 0.0
    %4639 = vmatprep.subr.mxu0 0.0
    %4640 = vmatpush2.msra.mxu0 0.0
    %4641 = vmatprep.subr.mxu0 0.0
    %4642 = vmatpush2.msra.mxu0 0.0
    %4643 = vmatprep.subr.mxu0 0.0
    %4644 = vmatpush2.msra.mxu0 0.0
    %4645 = vmatprep.subr.mxu0 0.0
    %4646 = vmatpush2.msra.mxu0 0.0
    %4647 = vmatprep.subr.mxu0 0.0
    %4648 = vmatpush2.msra.mxu0 0.0
    %4649 = vmatprep.subr.mxu0 0.0
    %4650 = vmatpush2.msra.mxu0 0.0
    %4651 = vmatprep.subr.mxu0 0.0
    %4652 = vmatpush2.msra.mxu0 0.0
    %4653 = vmatprep.mubr.f32.mxu0 0.0
    %4654 = vmatmul.mubr.f32.gmra.mxu0 %v4587
    %v4655 = vpop.f32.mrf.mxu0
    %v4656 = vadd.f32 %v1775, %v4655
    %v4657 = vpop.f32.mrf.mxu0
    %4658 = vdwg.mxu0
    %v4661 = vunpack.c.l.s4 1966171168
    %v4662 = vunpack.c.0.s8 %v4661
    %v4663 = vlaneseq
    %v4664 = vshrl.u32 %v4663, 7
    %v4665 = vsub.s32 %v4662, %v4664
    %v4666 = vrot.slane %v4656, %v4665
    %v4667 = vcombine.high %v4666, %v4666
    %v4669 = vunpack.c.l.s4 1966171168
    %v4670 = vunpack.c.0.s8 %v4669
    %v4671 = vlaneseq
    %v4672 = vshrl.u32 %v4671, 7
    %v4673 = vsub.s32 %v4670, %v4672
    %v4674 = vrot.slane %v4666, %v4673
    %v4676 = vunpack.c.l.s4 1966171168
    %v4677 = vunpack.c.0.s8 %v4676
    %v4678 = vlaneseq
    %v4679 = vshrl.u32 %v4678, 7
    %v4680 = vsub.s32 %v4677, %v4679
    %v4681 = vrot.slane %v4667, %v4680
    %v4682 = vlaneseq
    %v4683 = vshrl.u32 %v4682, 7
    %v4684 = vsub.s32 0, %v4683
    %v4685 = vrot.slane %v4674, %v4684
    %v4686 = vlaneseq
    %v4687 = vshrl.u32 %v4686, 7
    %v4688 = vsub.s32 0, %v4687
    %v4689 = vrot.slane %v4681, %v4688
    %v4692 = vadd.f32 %v4685, %v1743
    %v4693 = vadd.f32 %v4689, %v1748
    %v4694 = vtanh.pop %v4692
    %v4695 = vtanh.pop %v4693
    %v4696 = vmul.f32 %v4694, %v1782
    %v4697 = vmul.f32 %v4695, %v1782
    %v4698 = vsel %vm275, %v4696, 0.0
    %4699 = vadd.xlane.f32.xlu0 %v4698
    %v4700 = vpop.xlane.xlu0 %4699
    %v4701 = vsel %vm275, %v4697, 0.0
    %4702 = vadd.xlane.f32.xlu0 %v4701
    %v4703 = vpop.xlane.xlu0 %4702
    %vm4704 = vcmp.gt.f32.partialorder %v4227, 0.0
    %v4707 = vlaneseq
    %v4708 = vshrl.u32 %v4707, 7
    %v4709 = vsub.s32 %v158, %v4708
    %v4710 = vrot.slane %v4700, %v4709
    %v4711 = vlaneseq
    %v4712 = vshrl.u32 %v4711, 7
    %v4713 = vsub.s32 %v158, %v4712
    %v4714 = vrot.slane %v4703, %v4713
    %v4715 = vsel %vm453, %v4714, %v4710
    %v4717 = vsel %vm4704, %v4715, -1e+30
    %v4718 = vsel %vm2112, %v4717, -inf
    %4719 = vmax.xlane.f32.xlu0 %v4718
    %v4720 = vpop.xlane.xlu0 %4719
    %v4721 = vsub.f32 %v4717, %v4720
    %v4722 = vmul.f32 %v4721, 1.442695
    %v4723 = vpow.pop %v4722
    %v4724 = vsel %vm2112, %v4723, 0.0
    %4725 = vadd.xlane.f32.xlu0 %v4724
    %v4726 = vpop.xlane.xlu0 %4725
    %v4727 = vrcp.pop %v4726
    %v4728 = vmul.f32 %v4723, %v4727
    %v4731 = vunpack.c.l.s4 1966171168
    %v4732 = vunpack.c.0.s8 %v4731
    %v4733 = vlaneseq
    %v4734 = vshrl.u32 %v4733, 7
    %v4735 = vsub.s32 %v4732, %v4734
    %v4736 = vrot.slane %v4728, %v4735
    %v4737 = vcombine.high %v4736, %v4736
    %v4739 = vunpack.c.l.s4 1966171168
    %v4740 = vunpack.c.0.s8 %v4739
    %v4741 = vlaneseq
    %v4742 = vshrl.u32 %v4741, 7
    %v4743 = vsub.s32 %v4740, %v4742
    %v4744 = vrot.slane %v4736, %v4743
    %v4746 = vunpack.c.l.s4 1966171168
    %v4747 = vunpack.c.0.s8 %v4746
    %v4748 = vlaneseq
    %v4749 = vshrl.u32 %v4748, 7
    %v4750 = vsub.s32 %v4747, %v4749
    %v4751 = vrot.slane %v4737, %v4750
    %v4752 = vsel %vm2176, %v4744, 0
    %4754 = vmatprep.subr.mxu0 0.0
    %4755 = vmatpush1.msra.mxu0 0.0
    %4756 = vmatprep.subr.mxu0 0.0
    %4757 = vmatpush1.msra.mxu0 0.0
    %4758 = vmatprep.subr.mxu0 0.0
    %4759 = vmatpush1.msra.mxu0 0.0
    %4760 = vmatprep.subr.mxu0 0.0
    %4761 = vmatpush1.msra.mxu0 0.0
    %4762 = vmatprep.subr.mxu0 0.0
    %4763 = vmatpush1.msra.mxu0 0.0
    %4764 = vmatprep.subr.mxu0 0.0
    %4765 = vmatpush1.msra.mxu0 0.0
    %4766 = vmatprep.subr.mxu0 0.0
    %4767 = vmatpush1.msra.mxu0 0.0
    %4768 = vmatprep.subr.mxu0 0.0
    %4769 = vmatpush1.msra.mxu0 0.0
    %4770 = vmatprep.subr.mxu0 0.0
    %4771 = vmatpush1.msra.mxu0 0.0
    %4772 = vmatprep.subr.mxu0 0.0
    %4773 = vmatpush1.msra.mxu0 0.0
    %4774 = vmatprep.subr.mxu0 0.0
    %4775 = vmatpush1.msra.mxu0 0.0
    %4776 = vmatprep.subr.mxu0 0.0
    %4777 = vmatpush1.msra.mxu0 0.0
    %4778 = vmatprep.subr.mxu0 0.0
    %4779 = vmatpush1.msra.mxu0 0.0
    %4780 = vmatprep.subr.mxu0 0.0
    %4781 = vmatpush1.msra.mxu0 0.0
    %4782 = vmatprep.subr.mxu0 0.0
    %4783 = vmatpush1.msra.mxu0 0.0
    %4784 = vmatprep.subr.mxu0 0.0
    %4785 = vmatpush1.msra.mxu0 %v1743
    %4786 = vmatprep.subr.mxu0 0.0
    %4787 = vmatpush2.msra.mxu0 0.0
    %4788 = vmatprep.subr.mxu0 0.0
    %4789 = vmatpush2.msra.mxu0 0.0
    %4790 = vmatprep.subr.mxu0 0.0
    %4791 = vmatpush2.msra.mxu0 0.0
    %4792 = vmatprep.subr.mxu0 0.0
    %4793 = vmatpush2.msra.mxu0 0.0
    %4794 = vmatprep.subr.mxu0 0.0
    %4795 = vmatpush2.msra.mxu0 0.0
    %4796 = vmatprep.subr.mxu0 0.0
    %4797 = vmatpush2.msra.mxu0 0.0
    %4798 = vmatprep.subr.mxu0 0.0
    %4799 = vmatpush2.msra.mxu0 0.0
    %4800 = vmatprep.subr.mxu0 0.0
    %4801 = vmatpush2.msra.mxu0 0.0
    %4802 = vmatprep.subr.mxu0 0.0
    %4803 = vmatpush2.msra.mxu0 0.0
    %4804 = vmatprep.subr.mxu0 0.0
    %4805 = vmatpush2.msra.mxu0 0.0
    %4806 = vmatprep.subr.mxu0 0.0
    %4807 = vmatpush2.msra.mxu0 0.0
    %4808 = vmatprep.subr.mxu0 0.0
    %4809 = vmatpush2.msra.mxu0 0.0
    %4810 = vmatprep.subr.mxu0 0.0
    %4811 = vmatpush2.msra.mxu0 0.0
    %4812 = vmatprep.subr.mxu0 0.0
    %4813 = vmatpush2.msra.mxu0 0.0
    %4814 = vmatprep.subr.mxu0 0.0
    %4815 = vmatpush2.msra.mxu0 0.0
    %4816 = vmatprep.subr.mxu0 0.0
    %4817 = vmatpush2.msra.mxu0 0.0
    %4818 = vmatprep.mubr.f32.mxu0 0.0
    %4819 = vmatmul.mubr.f32.gmra.mxu0 %v4752
    %v4820 = vpop.f32.mrf.mxu0
    %v4821 = vadd.f32 0.0, %v4820
    %v4822 = vpop.f32.mrf.mxu0
    %4823 = vdwg.mxu0
    %v4824 = vsel %vm2176, %v4751, 0
    %4826 = vmatprep.subr.mxu0 0.0
    %4827 = vmatpush1.msra.mxu0 0.0
    %4828 = vmatprep.subr.mxu0 0.0
    %4829 = vmatpush1.msra.mxu0 0.0
    %4830 = vmatprep.subr.mxu0 0.0
    %4831 = vmatpush1.msra.mxu0 0.0
    %4832 = vmatprep.subr.mxu0 0.0
    %4833 = vmatpush1.msra.mxu0 0.0
    %4834 = vmatprep.subr.mxu0 0.0
    %4835 = vmatpush1.msra.mxu0 0.0
    %4836 = vmatprep.subr.mxu0 0.0
    %4837 = vmatpush1.msra.mxu0 0.0
    %4838 = vmatprep.subr.mxu0 0.0
    %4839 = vmatpush1.msra.mxu0 0.0
    %4840 = vmatprep.subr.mxu0 0.0
    %4841 = vmatpush1.msra.mxu0 0.0
    %4842 = vmatprep.subr.mxu0 0.0
    %4843 = vmatpush1.msra.mxu0 0.0
    %4844 = vmatprep.subr.mxu0 0.0
    %4845 = vmatpush1.msra.mxu0 0.0
    %4846 = vmatprep.subr.mxu0 0.0
    %4847 = vmatpush1.msra.mxu0 0.0
    %4848 = vmatprep.subr.mxu0 0.0
    %4849 = vmatpush1.msra.mxu0 0.0
    %4850 = vmatprep.subr.mxu0 0.0
    %4851 = vmatpush1.msra.mxu0 0.0
    %4852 = vmatprep.subr.mxu0 0.0
    %4853 = vmatpush1.msra.mxu0 0.0
    %4854 = vmatprep.subr.mxu0 0.0
    %4855 = vmatpush1.msra.mxu0 0.0
    %4856 = vmatprep.subr.mxu0 0.0
    %4857 = vmatpush1.msra.mxu0 %v1748
    %4858 = vmatprep.subr.mxu0 0.0
    %4859 = vmatpush2.msra.mxu0 0.0
    %4860 = vmatprep.subr.mxu0 0.0
    %4861 = vmatpush2.msra.mxu0 0.0
    %4862 = vmatprep.subr.mxu0 0.0
    %4863 = vmatpush2.msra.mxu0 0.0
    %4864 = vmatprep.subr.mxu0 0.0
    %4865 = vmatpush2.msra.mxu0 0.0
    %4866 = vmatprep.subr.mxu0 0.0
    %4867 = vmatpush2.msra.mxu0 0.0
    %4868 = vmatprep.subr.mxu0 0.0
    %4869 = vmatpush2.msra.mxu0 0.0
    %4870 = vmatprep.subr.mxu0 0.0
    %4871 = vmatpush2.msra.mxu0 0.0
    %4872 = vmatprep.subr.mxu0 0.0
    %4873 = vmatpush2.msra.mxu0 0.0
    %4874 = vmatprep.subr.mxu0 0.0
    %4875 = vmatpush2.msra.mxu0 0.0
    %4876 = vmatprep.subr.mxu0 0.0
    %4877 = vmatpush2.msra.mxu0 0.0
    %4878 = vmatprep.subr.mxu0 0.0
    %4879 = vmatpush2.msra.mxu0 0.0
    %4880 = vmatprep.subr.mxu0 0.0
    %4881 = vmatpush2.msra.mxu0 0.0
    %4882 = vmatprep.subr.mxu0 0.0
    %4883 = vmatpush2.msra.mxu0 0.0
    %4884 = vmatprep.subr.mxu0 0.0
    %4885 = vmatpush2.msra.mxu0 0.0
    %4886 = vmatprep.subr.mxu0 0.0
    %4887 = vmatpush2.msra.mxu0 0.0
    %4888 = vmatprep.subr.mxu0 0.0
    %4889 = vmatpush2.msra.mxu0 0.0
    %4890 = vmatprep.mubr.f32.mxu0 0.0
    %4891 = vmatmul.mubr.f32.gmra.mxu0 %v4824
    %v4892 = vpop.f32.mrf.mxu0
    %v4893 = vadd.f32 0.0, %v4892
    %v4894 = vpop.f32.mrf.mxu0
    %4895 = vdwg.mxu0
    %4896 = vmatprep.subr.mxu0 0.0
    %4897 = vmatpush1.msra.mxu0 0.0
    %4898 = vmatprep.subr.mxu0 0.0
    %4899 = vmatpush1.msra.mxu0 0.0
    %4900 = vmatprep.subr.mxu0 0.0
    %4901 = vmatpush1.msra.mxu0 0.0
    %4902 = vmatprep.subr.mxu0 0.0
    %4903 = vmatpush1.msra.mxu0 0.0
    %4904 = vmatprep.subr.mxu0 0.0
    %4905 = vmatpush1.msra.mxu0 0.0
    %4906 = vmatprep.subr.mxu0 0.0
    %4907 = vmatpush1.msra.mxu0 0.0
    %4908 = vmatprep.subr.mxu0 0.0
    %4909 = vmatpush1.msra.mxu0 0.0
    %4910 = vmatprep.subr.mxu0 0.0
    %4911 = vmatpush1.msra.mxu0 0.0
    %4912 = vmatprep.subr.mxu0 0.0
    %4913 = vmatpush1.msra.mxu0 0.0
    %4914 = vmatprep.subr.mxu0 0.0
    %4915 = vmatpush1.msra.mxu0 0.0
    %4916 = vmatprep.subr.mxu0 0.0
    %4917 = vmatpush1.msra.mxu0 0.0
    %4918 = vmatprep.subr.mxu0 0.0
    %4919 = vmatpush1.msra.mxu0 0.0
    %4920 = vmatprep.subr.mxu0 0.0
    %4921 = vmatpush1.msra.mxu0 %v1791
    %4922 = vmatprep.subr.mxu0 0.0
    %4923 = vmatpush1.msra.mxu0 %v1790
    %4924 = vmatprep.subr.mxu0 0.0
    %4925 = vmatpush1.msra.mxu0 %v1789
    %4926 = vmatprep.subr.mxu0 0.0
    %4927 = vmatpush1.msra.mxu0 %v1788
    %4928 = vmatprep.subr.mxu0 0.0
    %4929 = vmatpush2.msra.mxu0 0.0
    %4930 = vmatprep.subr.mxu0 0.0
    %4931 = vmatpush2.msra.mxu0 0.0
    %4932 = vmatprep.subr.mxu0 0.0
    %4933 = vmatpush2.msra.mxu0 0.0
    %4934 = vmatprep.subr.mxu0 0.0
    %4935 = vmatpush2.msra.mxu0 0.0
    %4936 = vmatprep.subr.mxu0 0.0
    %4937 = vmatpush2.msra.mxu0 0.0
    %4938 = vmatprep.subr.mxu0 0.0
    %4939 = vmatpush2.msra.mxu0 0.0
    %4940 = vmatprep.subr.mxu0 0.0
    %4941 = vmatpush2.msra.mxu0 0.0
    %4942 = vmatprep.subr.mxu0 0.0
    %4943 = vmatpush2.msra.mxu0 0.0
    %4944 = vmatprep.subr.mxu0 0.0
    %4945 = vmatpush2.msra.mxu0 0.0
    %4946 = vmatprep.subr.mxu0 0.0
    %4947 = vmatpush2.msra.mxu0 0.0
    %4948 = vmatprep.subr.mxu0 0.0
    %4949 = vmatpush2.msra.mxu0 0.0
    %4950 = vmatprep.subr.mxu0 0.0
    %4951 = vmatpush2.msra.mxu0 0.0
    %4952 = vmatprep.subr.mxu0 0.0
    %4953 = vmatpush2.msra.mxu0 0.0
    %4954 = vmatprep.subr.mxu0 0.0
    %4955 = vmatpush2.msra.mxu0 0.0
    %4956 = vmatprep.subr.mxu0 0.0
    %4957 = vmatpush2.msra.mxu0 0.0
    %4958 = vmatprep.subr.mxu0 0.0
    %4959 = vmatpush2.msra.mxu0 0.0
    %4960 = vmatprep.mubr.f32.mxu0 0.0
    %4961 = vmatmul.mubr.f32.gmra.mxu0 %v4587
    %v4962 = vpop.f32.mrf.mxu0
    %v4963 = vadd.f32 0.0, %v4962
    %v4964 = vpop.f32.mrf.mxu0
    %4965 = vdwg.mxu0
    %v4968 = vrot.slane %v4893, 7
    %v4969 = vsel %vm453, %v4968, %v4821
    %v4970 = vsel %vm275, %v4969, 0
    %4972 = vmatprep.subr.mxu0 0.0
    %4973 = vmatpush1.msra.mxu0 0.0
    %4974 = vmatprep.subr.mxu0 0.0
    %4975 = vmatpush1.msra.mxu0 0.0
    %4976 = vmatprep.subr.mxu0 0.0
    %4977 = vmatpush1.msra.mxu0 0.0
    %4978 = vmatprep.subr.mxu0 0.0
    %4979 = vmatpush1.msra.mxu0 0.0
    %4980 = vmatprep.subr.mxu0 0.0
    %4981 = vmatpush1.msra.mxu0 0.0
    %4982 = vmatprep.subr.mxu0 0.0
    %4983 = vmatpush1.msra.mxu0 0.0
    %4984 = vmatprep.subr.mxu0 0.0
    %4985 = vmatpush1.msra.mxu0 0.0
    %4986 = vmatprep.subr.mxu0 0.0
    %4987 = vmatpush1.msra.mxu0 0.0
    %4988 = vmatprep.subr.mxu0 0.0
    %4989 = vmatpush1.msra.mxu0 0.0
    %4990 = vmatprep.subr.mxu0 0.0
    %4991 = vmatpush1.msra.mxu0 0.0
    %4992 = vmatprep.subr.mxu0 0.0
    %4993 = vmatpush1.msra.mxu0 0.0
    %4994 = vmatprep.subr.mxu0 0.0
    %4995 = vmatpush1.msra.mxu0 0.0
    %4996 = vmatprep.subr.mxu0 0.0
    %4997 = vmatpush1.msra.mxu0 %v1787
    %4998 = vmatprep.subr.mxu0 0.0
    %4999 = vmatpush1.msra.mxu0 %v1786
    %5000 = vmatprep.subr.mxu0 0.0
    %5001 = vmatpush1.msra.mxu0 %v1785
    %5002 = vmatprep.subr.mxu0 0.0
    %5003 = vmatpush1.msra.mxu0 %v1784
    %5004 = vmatprep.subr.mxu0 0.0
    %5005 = vmatpush2.msra.mxu0 0.0
    %5006 = vmatprep.subr.mxu0 0.0
    %5007 = vmatpush2.msra.mxu0 0.0
    %5008 = vmatprep.subr.mxu0 0.0
    %5009 = vmatpush2.msra.mxu0 0.0
    %5010 = vmatprep.subr.mxu0 0.0
    %5011 = vmatpush2.msra.mxu0 0.0
    %5012 = vmatprep.subr.mxu0 0.0
    %5013 = vmatpush2.msra.mxu0 0.0
    %5014 = vmatprep.subr.mxu0 0.0
    %5015 = vmatpush2.msra.mxu0 0.0
    %5016 = vmatprep.subr.mxu0 0.0
    %5017 = vmatpush2.msra.mxu0 0.0
    %5018 = vmatprep.subr.mxu0 0.0
    %5019 = vmatpush2.msra.mxu0 0.0
    %5020 = vmatprep.subr.mxu0 0.0
    %5021 = vmatpush2.msra.mxu0 0.0
    %5022 = vmatprep.subr.mxu0 0.0
    %5023 = vmatpush2.msra.mxu0 0.0
    %5024 = vmatprep.subr.mxu0 0.0
    %5025 = vmatpush2.msra.mxu0 0.0
    %5026 = vmatprep.subr.mxu0 0.0
    %5027 = vmatpush2.msra.mxu0 0.0
    %5028 = vmatprep.subr.mxu0 0.0
    %5029 = vmatpush2.msra.mxu0 0.0
    %5030 = vmatprep.subr.mxu0 0.0
    %5031 = vmatpush2.msra.mxu0 0.0
    %5032 = vmatprep.subr.mxu0 0.0
    %5033 = vmatpush2.msra.mxu0 0.0
    %5034 = vmatprep.subr.mxu0 0.0
    %5035 = vmatpush2.msra.mxu0 0.0
    %5036 = vmatprep.mubr.f32.mxu0 0.0
    %5037 = vmatmul.mubr.f32.gmra.mxu0 %v4970
    %v5038 = vpop.f32.mrf.mxu0
    %v5039 = vadd.f32 %v4963, %v5038
    %v5040 = vpop.f32.mrf.mxu0
    %5041 = vdwg.mxu0
    %v5042 = vadd.f32 %v5039, %v1797
    %v5043 = vtanh.pop %v5042
    %v5044 = vmul.f32 %v4728, %v4227
    %v5045 = vsel %vm2112, %v5044, -inf
    %5046 = vmax.xlane.f32.xlu0 %v5045
    %v5047 = vpop.xlane.xlu0 %5046
    %vm5048 = vcmp.eq.f32.partialorder %v5044, %v5047
    %v5049 = vsel %vm5048, %v158, 8
    %v5050 = vsel %vm2112, %v5049, 2147483647
    %v5051 = vand.u32 %v5050, 65535
    %v5052 = vshra.s32 %v5050, 16
    %v5053 = vcvt.s32.f32 %v5051
    %v5054 = vcvt.s32.f32 %v5052
    %5055 = vmin.xlane.f32.xlu0 %v5054
    %v5056 = vpop.xlane.xlu0 %5055
    %vm5057 = vcmp.eq.f32.partialorder %v5054, %v5056
    %v5058 = vsel %vm5057, %v5053, inf
    %5059 = vmin.xlane.f32.xlu0 %v5058
    %v5060 = vpop.xlane.xlu0 %5059
    %v5061 = vcvt.f32.s32 %v5060
    %v5062 = vcvt.f32.s32 %v5056
    %v5063 = vshll.u32 %v5062, 16
    %v5064 = vadd.s32 %v5063, %v5061
    %vm5065 = vcmp.eq.s32.totalorder %v158, %v5064
    %v5066 = vsel %vm5065, 1, 0
    %v5067 = vcvt.s32.f32 %v5066
    %v5068 = vsub.f32 1.0, %v5067
    %v5069 = vmul.f32 %v4227, %v5068
    %v5072 = vunpack.c.l.s4 1966171168
    %v5073 = vunpack.c.0.s8 %v5072
    %v5074 = vlaneseq
    %v5075 = vshrl.u32 %v5074, 7
    %v5076 = vsub.s32 %v5073, %v5075
    %v5077 = vrot.slane %v5067, %v5076
    %v5078 = vcombine.high %v5077, %v5077
    %v5080 = vunpack.c.l.s4 1966171168
    %v5081 = vunpack.c.0.s8 %v5080
    %v5082 = vlaneseq
    %v5083 = vshrl.u32 %v5082, 7
    %v5084 = vsub.s32 %v5081, %v5083
    %v5085 = vrot.slane %v5077, %v5084
    %v5087 = vunpack.c.l.s4 1966171168
    %v5088 = vunpack.c.0.s8 %v5087
    %v5089 = vlaneseq
    %v5090 = vshrl.u32 %v5089, 7
    %v5091 = vsub.s32 %v5088, %v5090
    %v5092 = vrot.slane %v5078, %v5091
    %v5093 = vsel %vm2176, %v5085, 0
    %5095 = vmatprep.subr.mxu0 0.0
    %5096 = vmatpush1.msra.mxu0 0.0
    %5097 = vmatprep.subr.mxu0 0.0
    %5098 = vmatpush1.msra.mxu0 0.0
    %5099 = vmatprep.subr.mxu0 0.0
    %5100 = vmatpush1.msra.mxu0 0.0
    %5101 = vmatprep.subr.mxu0 0.0
    %5102 = vmatpush1.msra.mxu0 0.0
    %5103 = vmatprep.subr.mxu0 0.0
    %5104 = vmatpush1.msra.mxu0 0.0
    %5105 = vmatprep.subr.mxu0 0.0
    %5106 = vmatpush1.msra.mxu0 0.0
    %5107 = vmatprep.subr.mxu0 0.0
    %5108 = vmatpush1.msra.mxu0 0.0
    %5109 = vmatprep.subr.mxu0 0.0
    %5110 = vmatpush1.msra.mxu0 0.0
    %5111 = vmatprep.subr.mxu0 0.0
    %5112 = vmatpush1.msra.mxu0 0.0
    %5113 = vmatprep.subr.mxu0 0.0
    %5114 = vmatpush1.msra.mxu0 0.0
    %5115 = vmatprep.subr.mxu0 0.0
    %5116 = vmatpush1.msra.mxu0 0.0
    %5117 = vmatprep.subr.mxu0 0.0
    %5118 = vmatpush1.msra.mxu0 0.0
    %5119 = vmatprep.subr.mxu0 0.0
    %5120 = vmatpush1.msra.mxu0 0.0
    %5121 = vmatprep.subr.mxu0 0.0
    %5122 = vmatpush1.msra.mxu0 0.0
    %5123 = vmatprep.subr.mxu0 0.0
    %5124 = vmatpush1.msra.mxu0 0.0
    %5125 = vmatprep.subr.mxu0 0.0
    %5126 = vmatpush1.msra.mxu0 %v252
    %5127 = vmatprep.subr.mxu0 0.0
    %5128 = vmatpush2.msra.mxu0 0.0
    %5129 = vmatprep.subr.mxu0 0.0
    %5130 = vmatpush2.msra.mxu0 0.0
    %5131 = vmatprep.subr.mxu0 0.0
    %5132 = vmatpush2.msra.mxu0 0.0
    %5133 = vmatprep.subr.mxu0 0.0
    %5134 = vmatpush2.msra.mxu0 0.0
    %5135 = vmatprep.subr.mxu0 0.0
    %5136 = vmatpush2.msra.mxu0 0.0
    %5137 = vmatprep.subr.mxu0 0.0
    %5138 = vmatpush2.msra.mxu0 0.0
    %5139 = vmatprep.subr.mxu0 0.0
    %5140 = vmatpush2.msra.mxu0 0.0
    %5141 = vmatprep.subr.mxu0 0.0
    %5142 = vmatpush2.msra.mxu0 0.0
    %5143 = vmatprep.subr.mxu0 0.0
    %5144 = vmatpush2.msra.mxu0 0.0
    %5145 = vmatprep.subr.mxu0 0.0
    %5146 = vmatpush2.msra.mxu0 0.0
    %5147 = vmatprep.subr.mxu0 0.0
    %5148 = vmatpush2.msra.mxu0 0.0
    %5149 = vmatprep.subr.mxu0 0.0
    %5150 = vmatpush2.msra.mxu0 0.0
    %5151 = vmatprep.subr.mxu0 0.0
    %5152 = vmatpush2.msra.mxu0 0.0
    %5153 = vmatprep.subr.mxu0 0.0
    %5154 = vmatpush2.msra.mxu0 0.0
    %5155 = vmatprep.subr.mxu0 0.0
    %5156 = vmatpush2.msra.mxu0 0.0
    %5157 = vmatprep.subr.mxu0 0.0
    %5158 = vmatpush2.msra.mxu0 0.0
    %5159 = vmatprep.mubr.f32.mxu0 0.0
    %5160 = vmatmul.mubr.f32.gmra.mxu0 %v5093
    %v5161 = vpop.f32.mrf.mxu0
    %v5162 = vadd.f32 0.0, %v5161
    %v5163 = vpop.f32.mrf.mxu0
    %5164 = vdwg.mxu0
    %v5165 = vsel %vm2176, %v5092, 0
    %5167 = vmatprep.subr.mxu0 0.0
    %5168 = vmatpush1.msra.mxu0 0.0
    %5169 = vmatprep.subr.mxu0 0.0
    %5170 = vmatpush1.msra.mxu0 0.0
    %5171 = vmatprep.subr.mxu0 0.0
    %5172 = vmatpush1.msra.mxu0 0.0
    %5173 = vmatprep.subr.mxu0 0.0
    %5174 = vmatpush1.msra.mxu0 0.0
    %5175 = vmatprep.subr.mxu0 0.0
    %5176 = vmatpush1.msra.mxu0 0.0
    %5177 = vmatprep.subr.mxu0 0.0
    %5178 = vmatpush1.msra.mxu0 0.0
    %5179 = vmatprep.subr.mxu0 0.0
    %5180 = vmatpush1.msra.mxu0 0.0
    %5181 = vmatprep.subr.mxu0 0.0
    %5182 = vmatpush1.msra.mxu0 0.0
    %5183 = vmatprep.subr.mxu0 0.0
    %5184 = vmatpush1.msra.mxu0 0.0
    %5185 = vmatprep.subr.mxu0 0.0
    %5186 = vmatpush1.msra.mxu0 0.0
    %5187 = vmatprep.subr.mxu0 0.0
    %5188 = vmatpush1.msra.mxu0 0.0
    %5189 = vmatprep.subr.mxu0 0.0
    %5190 = vmatpush1.msra.mxu0 0.0
    %5191 = vmatprep.subr.mxu0 0.0
    %5192 = vmatpush1.msra.mxu0 0.0
    %5193 = vmatprep.subr.mxu0 0.0
    %5194 = vmatpush1.msra.mxu0 0.0
    %5195 = vmatprep.subr.mxu0 0.0
    %5196 = vmatpush1.msra.mxu0 0.0
    %5197 = vmatprep.subr.mxu0 0.0
    %5198 = vmatpush1.msra.mxu0 %v257
    %5199 = vmatprep.subr.mxu0 0.0
    %5200 = vmatpush2.msra.mxu0 0.0
    %5201 = vmatprep.subr.mxu0 0.0
    %5202 = vmatpush2.msra.mxu0 0.0
    %5203 = vmatprep.subr.mxu0 0.0
    %5204 = vmatpush2.msra.mxu0 0.0
    %5205 = vmatprep.subr.mxu0 0.0
    %5206 = vmatpush2.msra.mxu0 0.0
    %5207 = vmatprep.subr.mxu0 0.0
    %5208 = vmatpush2.msra.mxu0 0.0
    %5209 = vmatprep.subr.mxu0 0.0
    %5210 = vmatpush2.msra.mxu0 0.0
    %5211 = vmatprep.subr.mxu0 0.0
    %5212 = vmatpush2.msra.mxu0 0.0
    %5213 = vmatprep.subr.mxu0 0.0
    %5214 = vmatpush2.msra.mxu0 0.0
    %5215 = vmatprep.subr.mxu0 0.0
    %5216 = vmatpush2.msra.mxu0 0.0
    %5217 = vmatprep.subr.mxu0 0.0
    %5218 = vmatpush2.msra.mxu0 0.0
    %5219 = vmatprep.subr.mxu0 0.0
    %5220 = vmatpush2.msra.mxu0 0.0
    %5221 = vmatprep.subr.mxu0 0.0
    %5222 = vmatpush2.msra.mxu0 0.0
    %5223 = vmatprep.subr.mxu0 0.0
    %5224 = vmatpush2.msra.mxu0 0.0
    %5225 = vmatprep.subr.mxu0 0.0
    %5226 = vmatpush2.msra.mxu0 0.0
    %5227 = vmatprep.subr.mxu0 0.0
    %5228 = vmatpush2.msra.mxu0 0.0
    %5229 = vmatprep.subr.mxu0 0.0
    %5230 = vmatpush2.msra.mxu0 0.0
    %5231 = vmatprep.mubr.f32.mxu0 0.0
    %5232 = vmatmul.mubr.f32.gmra.mxu0 %v5165
    %v5233 = vpop.f32.mrf.mxu0
    %v5234 = vadd.f32 0.0, %v5233
    %v5235 = vpop.f32.mrf.mxu0
    %5236 = vdwg.mxu0
    %v5237 = vlaneseq
    %v5238 = vshrl.u32 %v5237, 7
    %v5239 = vsub.s32 0, %v5238
    %v5240 = vrot.slane %v4744, %v5239
    %v5241 = vlaneseq
    %v5242 = vshrl.u32 %v5241, 7
    %v5243 = vsub.s32 0, %v5242
    %v5244 = vrot.slane %v4751, %v5243
    %v5247 = vsel %vm990, %v5240, %v4405
    %v5248 = vsel %vm990, %v5244, %v4406
    %vm5249 = vcmp.eq.s32.totalorder %v158, 3
    %v5250 = vsel %vm5249, %v5064, %v4408
    %v5252 = vsel %vm275, %v5043, 0
    %5254 = vmatprep.subr.mxu0 0.0
    %5255 = vmatpush1.msra.mxu0 0.0
    %5256 = vmatprep.subr.mxu0 0.0
    %5257 = vmatpush1.msra.mxu0 0.0
    %5258 = vmatprep.subr.mxu0 0.0
    %5259 = vmatpush1.msra.mxu0 0.0
    %5260 = vmatprep.subr.mxu0 0.0
    %5261 = vmatpush1.msra.mxu0 0.0
    %5262 = vmatprep.subr.mxu0 0.0
    %5263 = vmatpush1.msra.mxu0 0.0
    %5264 = vmatprep.subr.mxu0 0.0
    %5265 = vmatpush1.msra.mxu0 0.0
    %5266 = vmatprep.subr.mxu0 0.0
    %5267 = vmatpush1.msra.mxu0 0.0
    %5268 = vmatprep.subr.mxu0 0.0
    %5269 = vmatpush1.msra.mxu0 0.0
    %5270 = vmatprep.subr.mxu0 0.0
    %5271 = vmatpush1.msra.mxu0 0.0
    %5272 = vmatprep.subr.mxu0 0.0
    %5273 = vmatpush1.msra.mxu0 0.0
    %5274 = vmatprep.subr.mxu0 0.0
    %5275 = vmatpush1.msra.mxu0 0.0
    %5276 = vmatprep.subr.mxu0 0.0
    %5277 = vmatpush1.msra.mxu0 0.0
    %5278 = vmatprep.subr.mxu0 0.0
    %5279 = vmatpush1.msra.mxu0 %v1758
    %5280 = vmatprep.subr.mxu0 0.0
    %5281 = vmatpush1.msra.mxu0 %v1757
    %5282 = vmatprep.subr.mxu0 0.0
    %5283 = vmatpush1.msra.mxu0 %v1756
    %5284 = vmatprep.subr.mxu0 0.0
    %5285 = vmatpush1.msra.mxu0 %v1755
    %5286 = vmatprep.subr.mxu0 0.0
    %5287 = vmatpush2.msra.mxu0 0.0
    %5288 = vmatprep.subr.mxu0 0.0
    %5289 = vmatpush2.msra.mxu0 0.0
    %5290 = vmatprep.subr.mxu0 0.0
    %5291 = vmatpush2.msra.mxu0 0.0
    %5292 = vmatprep.subr.mxu0 0.0
    %5293 = vmatpush2.msra.mxu0 0.0
    %5294 = vmatprep.subr.mxu0 0.0
    %5295 = vmatpush2.msra.mxu0 0.0
    %5296 = vmatprep.subr.mxu0 0.0
    %5297 = vmatpush2.msra.mxu0 0.0
    %5298 = vmatprep.subr.mxu0 0.0
    %5299 = vmatpush2.msra.mxu0 0.0
    %5300 = vmatprep.subr.mxu0 0.0
    %5301 = vmatpush2.msra.mxu0 0.0
    %5302 = vmatprep.subr.mxu0 0.0
    %5303 = vmatpush2.msra.mxu0 0.0
    %5304 = vmatprep.subr.mxu0 0.0
    %5305 = vmatpush2.msra.mxu0 0.0
    %5306 = vmatprep.subr.mxu0 0.0
    %5307 = vmatpush2.msra.mxu0 0.0
    %5308 = vmatprep.subr.mxu0 0.0
    %5309 = vmatpush2.msra.mxu0 0.0
    %5310 = vmatprep.subr.mxu0 0.0
    %5311 = vmatpush2.msra.mxu0 0.0
    %5312 = vmatprep.subr.mxu0 0.0
    %5313 = vmatpush2.msra.mxu0 0.0
    %5314 = vmatprep.subr.mxu0 0.0
    %5315 = vmatpush2.msra.mxu0 0.0
    %5316 = vmatprep.subr.mxu0 0.0
    %5317 = vmatpush2.msra.mxu0 0.0
    %5318 = vmatprep.mubr.f32.mxu0 0.0
    %5319 = vmatmul.mubr.f32.gmra.mxu0 %v5252
    %v5320 = vpop.f32.mrf.mxu0
    %v5321 = vadd.f32 0.0, %v5320
    %v5322 = vpop.f32.mrf.mxu0
    %5323 = vdwg.mxu0
    %v5326 = vrot.slane %v5234, 7
    %v5327 = vsel %vm453, %v5326, %v5162
    %v5328 = vsel %vm275, %v5327, 0
    %5330 = vmatprep.subr.mxu0 0.0
    %5331 = vmatpush1.msra.mxu0 0.0
    %5332 = vmatprep.subr.mxu0 0.0
    %5333 = vmatpush1.msra.mxu0 0.0
    %5334 = vmatprep.subr.mxu0 0.0
    %5335 = vmatpush1.msra.mxu0 0.0
    %5336 = vmatprep.subr.mxu0 0.0
    %5337 = vmatpush1.msra.mxu0 0.0
    %5338 = vmatprep.subr.mxu0 0.0
    %5339 = vmatpush1.msra.mxu0 0.0
    %5340 = vmatprep.subr.mxu0 0.0
    %5341 = vmatpush1.msra.mxu0 0.0
    %5342 = vmatprep.subr.mxu0 0.0
    %5343 = vmatpush1.msra.mxu0 0.0
    %5344 = vmatprep.subr.mxu0 0.0
    %5345 = vmatpush1.msra.mxu0 0.0
    %5346 = vmatprep.subr.mxu0 0.0
    %5347 = vmatpush1.msra.mxu0 0.0
    %5348 = vmatprep.subr.mxu0 0.0
    %5349 = vmatpush1.msra.mxu0 0.0
    %5350 = vmatprep.subr.mxu0 0.0
    %5351 = vmatpush1.msra.mxu0 0.0
    %5352 = vmatprep.subr.mxu0 0.0
    %5353 = vmatpush1.msra.mxu0 0.0
    %5354 = vmatprep.subr.mxu0 0.0
    %5355 = vmatpush1.msra.mxu0 %v1754
    %5356 = vmatprep.subr.mxu0 0.0
    %5357 = vmatpush1.msra.mxu0 %v1753
    %5358 = vmatprep.subr.mxu0 0.0
    %5359 = vmatpush1.msra.mxu0 %v1752
    %5360 = vmatprep.subr.mxu0 0.0
    %5361 = vmatpush1.msra.mxu0 %v1751
    %5362 = vmatprep.subr.mxu0 0.0
    %5363 = vmatpush2.msra.mxu0 0.0
    %5364 = vmatprep.subr.mxu0 0.0
    %5365 = vmatpush2.msra.mxu0 0.0
    %5366 = vmatprep.subr.mxu0 0.0
    %5367 = vmatpush2.msra.mxu0 0.0
    %5368 = vmatprep.subr.mxu0 0.0
    %5369 = vmatpush2.msra.mxu0 0.0
    %5370 = vmatprep.subr.mxu0 0.0
    %5371 = vmatpush2.msra.mxu0 0.0
    %5372 = vmatprep.subr.mxu0 0.0
    %5373 = vmatpush2.msra.mxu0 0.0
    %5374 = vmatprep.subr.mxu0 0.0
    %5375 = vmatpush2.msra.mxu0 0.0
    %5376 = vmatprep.subr.mxu0 0.0
    %5377 = vmatpush2.msra.mxu0 0.0
    %5378 = vmatprep.subr.mxu0 0.0
    %5379 = vmatpush2.msra.mxu0 0.0
    %5380 = vmatprep.subr.mxu0 0.0
    %5381 = vmatpush2.msra.mxu0 0.0
    %5382 = vmatprep.subr.mxu0 0.0
    %5383 = vmatpush2.msra.mxu0 0.0
    %5384 = vmatprep.subr.mxu0 0.0
    %5385 = vmatpush2.msra.mxu0 0.0
    %5386 = vmatprep.subr.mxu0 0.0
    %5387 = vmatpush2.msra.mxu0 0.0
    %5388 = vmatprep.subr.mxu0 0.0
    %5389 = vmatpush2.msra.mxu0 0.0
    %5390 = vmatprep.subr.mxu0 0.0
    %5391 = vmatpush2.msra.mxu0 0.0
    %5392 = vmatprep.subr.mxu0 0.0
    %5393 = vmatpush2.msra.mxu0 0.0
    %5394 = vmatprep.mubr.f32.mxu0 0.0
    %5395 = vmatmul.mubr.f32.gmra.mxu0 %v5328
    %v5396 = vpop.f32.mrf.mxu0
    %v5397 = vadd.f32 %v5321, %v5396
    %v5398 = vpop.f32.mrf.mxu0
    %5399 = vdwg.mxu0
    %v5400 = vadd.f32 %v5397, %v1764
    %v5401 = vtanh.pop %v5400
    %v5402 = vxor.u32 %v5400, 2147483648
    %v5403 = vmul.f32 %v5402, 1.442695
    %v5404 = vpow.pop %v5403
    %v5405 = vadd.f32 %v5404, 1.0
    %v5406 = vrcp.pop %v5405
    %v5407 = vmul.f32 1.0, %v5406
    %v5408 = vsel %vm163, %v5401, %v5407
    %v5409 = vmul.f32 %v5408, %v4577
    %5411 = vrot.lane.b32.xlu0 %v5408, 64
    %v5412 = vpop.permute.xlu0 %5411
    %v5414 = vmul.f32 %v5408, %v5412
    %5416 = vrot.lane.b32.xlu0 %v5414, 32
    %v5417 = vpop.permute.xlu0 %5416
    %v5419 = vadd.f32 %v5409, %v5417
    %v5420 = vtanh.pop %v5419
    %5422 = vrot.lane.b32.xlu0 %v5420, 64
    %v5423 = vpop.permute.xlu0 %5422
    %v5425 = vmul.f32 %v5408, %v5423
    %5427 = vrot.lane.b32.xlu0 %v5425, 32
    %v5428 = vpop.permute.xlu0 %5427
    %v5429 = vsel %vm275, %v5428, 0
    %5431 = vmatprep.subr.mxu0 0.0
    %5432 = vmatpush1.msra.mxu0 0.0
    %5433 = vmatprep.subr.mxu0 0.0
    %5434 = vmatpush1.msra.mxu0 0.0
    %5435 = vmatprep.subr.mxu0 0.0
    %5436 = vmatpush1.msra.mxu0 0.0
    %5437 = vmatprep.subr.mxu0 0.0
    %5438 = vmatpush1.msra.mxu0 0.0
    %5439 = vmatprep.subr.mxu0 0.0
    %5440 = vmatpush1.msra.mxu0 0.0
    %5441 = vmatprep.subr.mxu0 0.0
    %5442 = vmatpush1.msra.mxu0 0.0
    %5443 = vmatprep.subr.mxu0 0.0
    %5444 = vmatpush1.msra.mxu0 0.0
    %5445 = vmatprep.subr.mxu0 0.0
    %5446 = vmatpush1.msra.mxu0 0.0
    %5447 = vmatprep.subr.mxu0 0.0
    %5448 = vmatpush1.msra.mxu0 0.0
    %5449 = vmatprep.subr.mxu0 0.0
    %5450 = vmatpush1.msra.mxu0 0.0
    %5451 = vmatprep.subr.mxu0 0.0
    %5452 = vmatpush1.msra.mxu0 0.0
    %5453 = vmatprep.subr.mxu0 0.0
    %5454 = vmatpush1.msra.mxu0 0.0
    %5455 = vmatprep.subr.mxu0 0.0
    %5456 = vmatpush1.msra.mxu0 %v1769
    %5457 = vmatprep.subr.mxu0 0.0
    %5458 = vmatpush1.msra.mxu0 %v1768
    %5459 = vmatprep.subr.mxu0 0.0
    %5460 = vmatpush1.msra.mxu0 %v1767
    %5461 = vmatprep.subr.mxu0 0.0
    %5462 = vmatpush1.msra.mxu0 %v1766
    %5463 = vmatprep.subr.mxu0 0.0
    %5464 = vmatpush2.msra.mxu0 0.0
    %5465 = vmatprep.subr.mxu0 0.0
    %5466 = vmatpush2.msra.mxu0 0.0
    %5467 = vmatprep.subr.mxu0 0.0
    %5468 = vmatpush2.msra.mxu0 0.0
    %5469 = vmatprep.subr.mxu0 0.0
    %5470 = vmatpush2.msra.mxu0 0.0
    %5471 = vmatprep.subr.mxu0 0.0
    %5472 = vmatpush2.msra.mxu0 0.0
    %5473 = vmatprep.subr.mxu0 0.0
    %5474 = vmatpush2.msra.mxu0 0.0
    %5475 = vmatprep.subr.mxu0 0.0
    %5476 = vmatpush2.msra.mxu0 0.0
    %5477 = vmatprep.subr.mxu0 0.0
    %5478 = vmatpush2.msra.mxu0 0.0
    %5479 = vmatprep.subr.mxu0 0.0
    %5480 = vmatpush2.msra.mxu0 0.0
    %5481 = vmatprep.subr.mxu0 0.0
    %5482 = vmatpush2.msra.mxu0 0.0
    %5483 = vmatprep.subr.mxu0 0.0
    %5484 = vmatpush2.msra.mxu0 0.0
    %5485 = vmatprep.subr.mxu0 0.0
    %5486 = vmatpush2.msra.mxu0 0.0
    %5487 = vmatprep.subr.mxu0 0.0
    %5488 = vmatpush2.msra.mxu0 0.0
    %5489 = vmatprep.subr.mxu0 0.0
    %5490 = vmatpush2.msra.mxu0 0.0
    %5491 = vmatprep.subr.mxu0 0.0
    %5492 = vmatpush2.msra.mxu0 0.0
    %5493 = vmatprep.subr.mxu0 0.0
    %5494 = vmatpush2.msra.mxu0 0.0
    %5495 = vmatprep.mubr.f32.mxu0 0.0
    %5496 = vmatmul.mubr.f32.gmra.mxu0 %v5429
    %v5497 = vpop.f32.mrf.mxu0
    %v5498 = vadd.f32 %v1775, %v5497
    %v5499 = vpop.f32.mrf.mxu0
    %5500 = vdwg.mxu0
    %v5503 = vunpack.c.l.s4 1966171168
    %v5504 = vunpack.c.0.s8 %v5503
    %v5505 = vlaneseq
    %v5506 = vshrl.u32 %v5505, 7
    %v5507 = vsub.s32 %v5504, %v5506
    %v5508 = vrot.slane %v5498, %v5507
    %v5509 = vcombine.high %v5508, %v5508
    %v5511 = vunpack.c.l.s4 1966171168
    %v5512 = vunpack.c.0.s8 %v5511
    %v5513 = vlaneseq
    %v5514 = vshrl.u32 %v5513, 7
    %v5515 = vsub.s32 %v5512, %v5514
    %v5516 = vrot.slane %v5508, %v5515
    %v5518 = vunpack.c.l.s4 1966171168
    %v5519 = vunpack.c.0.s8 %v5518
    %v5520 = vlaneseq
    %v5521 = vshrl.u32 %v5520, 7
    %v5522 = vsub.s32 %v5519, %v5521
    %v5523 = vrot.slane %v5509, %v5522
    %v5524 = vlaneseq
    %v5525 = vshrl.u32 %v5524, 7
    %v5526 = vsub.s32 0, %v5525
    %v5527 = vrot.slane %v5516, %v5526
    %v5528 = vlaneseq
    %v5529 = vshrl.u32 %v5528, 7
    %v5530 = vsub.s32 0, %v5529
    %v5531 = vrot.slane %v5523, %v5530
    %v5534 = vadd.f32 %v5527, %v1743
    %v5535 = vadd.f32 %v5531, %v1748
    %v5536 = vtanh.pop %v5534
    %v5537 = vtanh.pop %v5535
    %v5538 = vmul.f32 %v5536, %v1782
    %v5539 = vmul.f32 %v5537, %v1782
    %v5540 = vsel %vm275, %v5538, 0.0
    %5541 = vadd.xlane.f32.xlu0 %v5540
    %v5542 = vpop.xlane.xlu0 %5541
    %v5543 = vsel %vm275, %v5539, 0.0
    %5544 = vadd.xlane.f32.xlu0 %v5543
    %v5545 = vpop.xlane.xlu0 %5544
    %vm5546 = vcmp.gt.f32.partialorder %v5069, 0.0
    %v5549 = vlaneseq
    %v5550 = vshrl.u32 %v5549, 7
    %v5551 = vsub.s32 %v158, %v5550
    %v5552 = vrot.slane %v5542, %v5551
    %v5553 = vlaneseq
    %v5554 = vshrl.u32 %v5553, 7
    %v5555 = vsub.s32 %v158, %v5554
    %v5556 = vrot.slane %v5545, %v5555
    %v5557 = vsel %vm453, %v5556, %v5552
    %v5559 = vsel %vm5546, %v5557, -1e+30
    %v5560 = vsel %vm2112, %v5559, -inf
    %5561 = vmax.xlane.f32.xlu0 %v5560
    %v5562 = vpop.xlane.xlu0 %5561
    %v5563 = vsub.f32 %v5559, %v5562
    %v5564 = vmul.f32 %v5563, 1.442695
    %v5565 = vpow.pop %v5564
    %v5566 = vsel %vm2112, %v5565, 0.0
    %5567 = vadd.xlane.f32.xlu0 %v5566
    %v5568 = vpop.xlane.xlu0 %5567
    %v5569 = vrcp.pop %v5568
    %v5570 = vmul.f32 %v5565, %v5569
    %v5573 = vunpack.c.l.s4 1966171168
    %v5574 = vunpack.c.0.s8 %v5573
    %v5575 = vlaneseq
    %v5576 = vshrl.u32 %v5575, 7
    %v5577 = vsub.s32 %v5574, %v5576
    %v5578 = vrot.slane %v5570, %v5577
    %v5579 = vcombine.high %v5578, %v5578
    %v5581 = vunpack.c.l.s4 1966171168
    %v5582 = vunpack.c.0.s8 %v5581
    %v5583 = vlaneseq
    %v5584 = vshrl.u32 %v5583, 7
    %v5585 = vsub.s32 %v5582, %v5584
    %v5586 = vrot.slane %v5578, %v5585
    %v5588 = vunpack.c.l.s4 1966171168
    %v5589 = vunpack.c.0.s8 %v5588
    %v5590 = vlaneseq
    %v5591 = vshrl.u32 %v5590, 7
    %v5592 = vsub.s32 %v5589, %v5591
    %v5593 = vrot.slane %v5579, %v5592
    %v5594 = vsel %vm2176, %v5586, 0
    %5596 = vmatprep.subr.mxu0 0.0
    %5597 = vmatpush1.msra.mxu0 0.0
    %5598 = vmatprep.subr.mxu0 0.0
    %5599 = vmatpush1.msra.mxu0 0.0
    %5600 = vmatprep.subr.mxu0 0.0
    %5601 = vmatpush1.msra.mxu0 0.0
    %5602 = vmatprep.subr.mxu0 0.0
    %5603 = vmatpush1.msra.mxu0 0.0
    %5604 = vmatprep.subr.mxu0 0.0
    %5605 = vmatpush1.msra.mxu0 0.0
    %5606 = vmatprep.subr.mxu0 0.0
    %5607 = vmatpush1.msra.mxu0 0.0
    %5608 = vmatprep.subr.mxu0 0.0
    %5609 = vmatpush1.msra.mxu0 0.0
    %5610 = vmatprep.subr.mxu0 0.0
    %5611 = vmatpush1.msra.mxu0 0.0
    %5612 = vmatprep.subr.mxu0 0.0
    %5613 = vmatpush1.msra.mxu0 0.0
    %5614 = vmatprep.subr.mxu0 0.0
    %5615 = vmatpush1.msra.mxu0 0.0
    %5616 = vmatprep.subr.mxu0 0.0
    %5617 = vmatpush1.msra.mxu0 0.0
    %5618 = vmatprep.subr.mxu0 0.0
    %5619 = vmatpush1.msra.mxu0 0.0
    %5620 = vmatprep.subr.mxu0 0.0
    %5621 = vmatpush1.msra.mxu0 0.0
    %5622 = vmatprep.subr.mxu0 0.0
    %5623 = vmatpush1.msra.mxu0 0.0
    %5624 = vmatprep.subr.mxu0 0.0
    %5625 = vmatpush1.msra.mxu0 0.0
    %5626 = vmatprep.subr.mxu0 0.0
    %5627 = vmatpush1.msra.mxu0 %v1743
    %5628 = vmatprep.subr.mxu0 0.0
    %5629 = vmatpush2.msra.mxu0 0.0
    %5630 = vmatprep.subr.mxu0 0.0
    %5631 = vmatpush2.msra.mxu0 0.0
    %5632 = vmatprep.subr.mxu0 0.0
    %5633 = vmatpush2.msra.mxu0 0.0
    %5634 = vmatprep.subr.mxu0 0.0
    %5635 = vmatpush2.msra.mxu0 0.0
    %5636 = vmatprep.subr.mxu0 0.0
    %5637 = vmatpush2.msra.mxu0 0.0
    %5638 = vmatprep.subr.mxu0 0.0
    %5639 = vmatpush2.msra.mxu0 0.0
    %5640 = vmatprep.subr.mxu0 0.0
    %5641 = vmatpush2.msra.mxu0 0.0
    %5642 = vmatprep.subr.mxu0 0.0
    %5643 = vmatpush2.msra.mxu0 0.0
    %5644 = vmatprep.subr.mxu0 0.0
    %5645 = vmatpush2.msra.mxu0 0.0
    %5646 = vmatprep.subr.mxu0 0.0
    %5647 = vmatpush2.msra.mxu0 0.0
    %5648 = vmatprep.subr.mxu0 0.0
    %5649 = vmatpush2.msra.mxu0 0.0
    %5650 = vmatprep.subr.mxu0 0.0
    %5651 = vmatpush2.msra.mxu0 0.0
    %5652 = vmatprep.subr.mxu0 0.0
    %5653 = vmatpush2.msra.mxu0 0.0
    %5654 = vmatprep.subr.mxu0 0.0
    %5655 = vmatpush2.msra.mxu0 0.0
    %5656 = vmatprep.subr.mxu0 0.0
    %5657 = vmatpush2.msra.mxu0 0.0
    %5658 = vmatprep.subr.mxu0 0.0
    %5659 = vmatpush2.msra.mxu0 0.0
    %5660 = vmatprep.mubr.f32.mxu0 0.0
    %5661 = vmatmul.mubr.f32.gmra.mxu0 %v5594
    %v5662 = vpop.f32.mrf.mxu0
    %v5663 = vadd.f32 0.0, %v5662
    %v5664 = vpop.f32.mrf.mxu0
    %5665 = vdwg.mxu0
    %v5666 = vsel %vm2176, %v5593, 0
    %5668 = vmatprep.subr.mxu0 0.0
    %5669 = vmatpush1.msra.mxu0 0.0
    %5670 = vmatprep.subr.mxu0 0.0
    %5671 = vmatpush1.msra.mxu0 0.0
    %5672 = vmatprep.subr.mxu0 0.0
    %5673 = vmatpush1.msra.mxu0 0.0
    %5674 = vmatprep.subr.mxu0 0.0
    %5675 = vmatpush1.msra.mxu0 0.0
    %5676 = vmatprep.subr.mxu0 0.0
    %5677 = vmatpush1.msra.mxu0 0.0
    %5678 = vmatprep.subr.mxu0 0.0
    %5679 = vmatpush1.msra.mxu0 0.0
    %5680 = vmatprep.subr.mxu0 0.0
    %5681 = vmatpush1.msra.mxu0 0.0
    %5682 = vmatprep.subr.mxu0 0.0
    %5683 = vmatpush1.msra.mxu0 0.0
    %5684 = vmatprep.subr.mxu0 0.0
    %5685 = vmatpush1.msra.mxu0 0.0
    %5686 = vmatprep.subr.mxu0 0.0
    %5687 = vmatpush1.msra.mxu0 0.0
    %5688 = vmatprep.subr.mxu0 0.0
    %5689 = vmatpush1.msra.mxu0 0.0
    %5690 = vmatprep.subr.mxu0 0.0
    %5691 = vmatpush1.msra.mxu0 0.0
    %5692 = vmatprep.subr.mxu0 0.0
    %5693 = vmatpush1.msra.mxu0 0.0
    %5694 = vmatprep.subr.mxu0 0.0
    %5695 = vmatpush1.msra.mxu0 0.0
    %5696 = vmatprep.subr.mxu0 0.0
    %5697 = vmatpush1.msra.mxu0 0.0
    %5698 = vmatprep.subr.mxu0 0.0
    %5699 = vmatpush1.msra.mxu0 %v1748
    %5700 = vmatprep.subr.mxu0 0.0
    %5701 = vmatpush2.msra.mxu0 0.0
    %5702 = vmatprep.subr.mxu0 0.0
    %5703 = vmatpush2.msra.mxu0 0.0
    %5704 = vmatprep.subr.mxu0 0.0
    %5705 = vmatpush2.msra.mxu0 0.0
    %5706 = vmatprep.subr.mxu0 0.0
    %5707 = vmatpush2.msra.mxu0 0.0
    %5708 = vmatprep.subr.mxu0 0.0
    %5709 = vmatpush2.msra.mxu0 0.0
    %5710 = vmatprep.subr.mxu0 0.0
    %5711 = vmatpush2.msra.mxu0 0.0
    %5712 = vmatprep.subr.mxu0 0.0
    %5713 = vmatpush2.msra.mxu0 0.0
    %5714 = vmatprep.subr.mxu0 0.0
    %5715 = vmatpush2.msra.mxu0 0.0
    %5716 = vmatprep.subr.mxu0 0.0
    %5717 = vmatpush2.msra.mxu0 0.0
    %5718 = vmatprep.subr.mxu0 0.0
    %5719 = vmatpush2.msra.mxu0 0.0
    %5720 = vmatprep.subr.mxu0 0.0
    %5721 = vmatpush2.msra.mxu0 0.0
    %5722 = vmatprep.subr.mxu0 0.0
    %5723 = vmatpush2.msra.mxu0 0.0
    %5724 = vmatprep.subr.mxu0 0.0
    %5725 = vmatpush2.msra.mxu0 0.0
    %5726 = vmatprep.subr.mxu0 0.0
    %5727 = vmatpush2.msra.mxu0 0.0
    %5728 = vmatprep.subr.mxu0 0.0
    %5729 = vmatpush2.msra.mxu0 0.0
    %5730 = vmatprep.subr.mxu0 0.0
    %5731 = vmatpush2.msra.mxu0 0.0
    %5732 = vmatprep.mubr.f32.mxu0 0.0
    %5733 = vmatmul.mubr.f32.gmra.mxu0 %v5666
    %v5734 = vpop.f32.mrf.mxu0
    %v5735 = vadd.f32 0.0, %v5734
    %v5736 = vpop.f32.mrf.mxu0
    %5737 = vdwg.mxu0
    %5738 = vmatprep.subr.mxu0 0.0
    %5739 = vmatpush1.msra.mxu0 0.0
    %5740 = vmatprep.subr.mxu0 0.0
    %5741 = vmatpush1.msra.mxu0 0.0
    %5742 = vmatprep.subr.mxu0 0.0
    %5743 = vmatpush1.msra.mxu0 0.0
    %5744 = vmatprep.subr.mxu0 0.0
    %5745 = vmatpush1.msra.mxu0 0.0
    %5746 = vmatprep.subr.mxu0 0.0
    %5747 = vmatpush1.msra.mxu0 0.0
    %5748 = vmatprep.subr.mxu0 0.0
    %5749 = vmatpush1.msra.mxu0 0.0
    %5750 = vmatprep.subr.mxu0 0.0
    %5751 = vmatpush1.msra.mxu0 0.0
    %5752 = vmatprep.subr.mxu0 0.0
    %5753 = vmatpush1.msra.mxu0 0.0
    %5754 = vmatprep.subr.mxu0 0.0
    %5755 = vmatpush1.msra.mxu0 0.0
    %5756 = vmatprep.subr.mxu0 0.0
    %5757 = vmatpush1.msra.mxu0 0.0
    %5758 = vmatprep.subr.mxu0 0.0
    %5759 = vmatpush1.msra.mxu0 0.0
    %5760 = vmatprep.subr.mxu0 0.0
    %5761 = vmatpush1.msra.mxu0 0.0
    %5762 = vmatprep.subr.mxu0 0.0
    %5763 = vmatpush1.msra.mxu0 %v1791
    %5764 = vmatprep.subr.mxu0 0.0
    %5765 = vmatpush1.msra.mxu0 %v1790
    %5766 = vmatprep.subr.mxu0 0.0
    %5767 = vmatpush1.msra.mxu0 %v1789
    %5768 = vmatprep.subr.mxu0 0.0
    %5769 = vmatpush1.msra.mxu0 %v1788
    %5770 = vmatprep.subr.mxu0 0.0
    %5771 = vmatpush2.msra.mxu0 0.0
    %5772 = vmatprep.subr.mxu0 0.0
    %5773 = vmatpush2.msra.mxu0 0.0
    %5774 = vmatprep.subr.mxu0 0.0
    %5775 = vmatpush2.msra.mxu0 0.0
    %5776 = vmatprep.subr.mxu0 0.0
    %5777 = vmatpush2.msra.mxu0 0.0
    %5778 = vmatprep.subr.mxu0 0.0
    %5779 = vmatpush2.msra.mxu0 0.0
    %5780 = vmatprep.subr.mxu0 0.0
    %5781 = vmatpush2.msra.mxu0 0.0
    %5782 = vmatprep.subr.mxu0 0.0
    %5783 = vmatpush2.msra.mxu0 0.0
    %5784 = vmatprep.subr.mxu0 0.0
    %5785 = vmatpush2.msra.mxu0 0.0
    %5786 = vmatprep.subr.mxu0 0.0
    %5787 = vmatpush2.msra.mxu0 0.0
    %5788 = vmatprep.subr.mxu0 0.0
    %5789 = vmatpush2.msra.mxu0 0.0
    %5790 = vmatprep.subr.mxu0 0.0
    %5791 = vmatpush2.msra.mxu0 0.0
    %5792 = vmatprep.subr.mxu0 0.0
    %5793 = vmatpush2.msra.mxu0 0.0
    %5794 = vmatprep.subr.mxu0 0.0
    %5795 = vmatpush2.msra.mxu0 0.0
    %5796 = vmatprep.subr.mxu0 0.0
    %5797 = vmatpush2.msra.mxu0 0.0
    %5798 = vmatprep.subr.mxu0 0.0
    %5799 = vmatpush2.msra.mxu0 0.0
    %5800 = vmatprep.subr.mxu0 0.0
    %5801 = vmatpush2.msra.mxu0 0.0
    %5802 = vmatprep.mubr.f32.mxu0 0.0
    %5803 = vmatmul.mubr.f32.gmra.mxu0 %v5429
    %v5804 = vpop.f32.mrf.mxu0
    %v5805 = vadd.f32 0.0, %v5804
    %v5806 = vpop.f32.mrf.mxu0
    %5807 = vdwg.mxu0
    %v5810 = vrot.slane %v5735, 7
    %v5811 = vsel %vm453, %v5810, %v5663
    %v5812 = vsel %vm275, %v5811, 0
    %5814 = vmatprep.subr.mxu0 0.0
    %5815 = vmatpush1.msra.mxu0 0.0
    %5816 = vmatprep.subr.mxu0 0.0
    %5817 = vmatpush1.msra.mxu0 0.0
    %5818 = vmatprep.subr.mxu0 0.0
    %5819 = vmatpush1.msra.mxu0 0.0
    %5820 = vmatprep.subr.mxu0 0.0
    %5821 = vmatpush1.msra.mxu0 0.0
    %5822 = vmatprep.subr.mxu0 0.0
    %5823 = vmatpush1.msra.mxu0 0.0
    %5824 = vmatprep.subr.mxu0 0.0
    %5825 = vmatpush1.msra.mxu0 0.0
    %5826 = vmatprep.subr.mxu0 0.0
    %5827 = vmatpush1.msra.mxu0 0.0
    %5828 = vmatprep.subr.mxu0 0.0
    %5829 = vmatpush1.msra.mxu0 0.0
    %5830 = vmatprep.subr.mxu0 0.0
    %5831 = vmatpush1.msra.mxu0 0.0
    %5832 = vmatprep.subr.mxu0 0.0
    %5833 = vmatpush1.msra.mxu0 0.0
    %5834 = vmatprep.subr.mxu0 0.0
    %5835 = vmatpush1.msra.mxu0 0.0
    %5836 = vmatprep.subr.mxu0 0.0
    %5837 = vmatpush1.msra.mxu0 0.0
    %5838 = vmatprep.subr.mxu0 0.0
    %5839 = vmatpush1.msra.mxu0 %v1787
    %5840 = vmatprep.subr.mxu0 0.0
    %5841 = vmatpush1.msra.mxu0 %v1786
    %5842 = vmatprep.subr.mxu0 0.0
    %5843 = vmatpush1.msra.mxu0 %v1785
    %5844 = vmatprep.subr.mxu0 0.0
    %5845 = vmatpush1.msra.mxu0 %v1784
    %5846 = vmatprep.subr.mxu0 0.0
    %5847 = vmatpush2.msra.mxu0 0.0
    %5848 = vmatprep.subr.mxu0 0.0
    %5849 = vmatpush2.msra.mxu0 0.0
    %5850 = vmatprep.subr.mxu0 0.0
    %5851 = vmatpush2.msra.mxu0 0.0
    %5852 = vmatprep.subr.mxu0 0.0
    %5853 = vmatpush2.msra.mxu0 0.0
    %5854 = vmatprep.subr.mxu0 0.0
    %5855 = vmatpush2.msra.mxu0 0.0
    %5856 = vmatprep.subr.mxu0 0.0
    %5857 = vmatpush2.msra.mxu0 0.0
    %5858 = vmatprep.subr.mxu0 0.0
    %5859 = vmatpush2.msra.mxu0 0.0
    %5860 = vmatprep.subr.mxu0 0.0
    %5861 = vmatpush2.msra.mxu0 0.0
    %5862 = vmatprep.subr.mxu0 0.0
    %5863 = vmatpush2.msra.mxu0 0.0
    %5864 = vmatprep.subr.mxu0 0.0
    %5865 = vmatpush2.msra.mxu0 0.0
    %5866 = vmatprep.subr.mxu0 0.0
    %5867 = vmatpush2.msra.mxu0 0.0
    %5868 = vmatprep.subr.mxu0 0.0
    %5869 = vmatpush2.msra.mxu0 0.0
    %5870 = vmatprep.subr.mxu0 0.0
    %5871 = vmatpush2.msra.mxu0 0.0
    %5872 = vmatprep.subr.mxu0 0.0
    %5873 = vmatpush2.msra.mxu0 0.0
    %5874 = vmatprep.subr.mxu0 0.0
    %5875 = vmatpush2.msra.mxu0 0.0
    %5876 = vmatprep.subr.mxu0 0.0
    %5877 = vmatpush2.msra.mxu0 0.0
    %5878 = vmatprep.mubr.f32.mxu0 0.0
    %5879 = vmatmul.mubr.f32.gmra.mxu0 %v5812
    %v5880 = vpop.f32.mrf.mxu0
    %v5881 = vadd.f32 %v5805, %v5880
    %v5882 = vpop.f32.mrf.mxu0
    %5883 = vdwg.mxu0
    %v5884 = vadd.f32 %v5881, %v1797
    %v5885 = vtanh.pop %v5884
    %v5886 = vmul.f32 %v5570, %v5069
    %v5887 = vsel %vm2112, %v5886, -inf
    %5888 = vmax.xlane.f32.xlu0 %v5887
    %v5889 = vpop.xlane.xlu0 %5888
    %vm5890 = vcmp.eq.f32.partialorder %v5886, %v5889
    %v5891 = vsel %vm5890, %v158, 8
    %v5892 = vsel %vm2112, %v5891, 2147483647
    %v5893 = vand.u32 %v5892, 65535
    %v5894 = vshra.s32 %v5892, 16
    %v5895 = vcvt.s32.f32 %v5893
    %v5896 = vcvt.s32.f32 %v5894
    %5897 = vmin.xlane.f32.xlu0 %v5896
    %v5898 = vpop.xlane.xlu0 %5897
    %vm5899 = vcmp.eq.f32.partialorder %v5896, %v5898
    %v5900 = vsel %vm5899, %v5895, inf
    %5901 = vmin.xlane.f32.xlu0 %v5900
    %v5902 = vpop.xlane.xlu0 %5901
    %v5903 = vcvt.f32.s32 %v5902
    %v5904 = vcvt.f32.s32 %v5898
    %v5905 = vshll.u32 %v5904, 16
    %v5906 = vadd.s32 %v5905, %v5903
    %vm5907 = vcmp.eq.s32.totalorder %v158, %v5906
    %v5908 = vsel %vm5907, 1, 0
    %v5909 = vcvt.s32.f32 %v5908
    %v5910 = vsub.f32 1.0, %v5909
    %v5911 = vmul.f32 %v5069, %v5910
    %v5914 = vunpack.c.l.s4 1966171168
    %v5915 = vunpack.c.0.s8 %v5914
    %v5916 = vlaneseq
    %v5917 = vshrl.u32 %v5916, 7
    %v5918 = vsub.s32 %v5915, %v5917
    %v5919 = vrot.slane %v5909, %v5918
    %v5920 = vcombine.high %v5919, %v5919
    %v5922 = vunpack.c.l.s4 1966171168
    %v5923 = vunpack.c.0.s8 %v5922
    %v5924 = vlaneseq
    %v5925 = vshrl.u32 %v5924, 7
    %v5926 = vsub.s32 %v5923, %v5925
    %v5927 = vrot.slane %v5919, %v5926
    %v5929 = vunpack.c.l.s4 1966171168
    %v5930 = vunpack.c.0.s8 %v5929
    %v5931 = vlaneseq
    %v5932 = vshrl.u32 %v5931, 7
    %v5933 = vsub.s32 %v5930, %v5932
    %v5934 = vrot.slane %v5920, %v5933
    %v5935 = vsel %vm2176, %v5927, 0
    %5937 = vmatprep.subr.mxu0 0.0
    %5938 = vmatpush1.msra.mxu0 0.0
    %5939 = vmatprep.subr.mxu0 0.0
    %5940 = vmatpush1.msra.mxu0 0.0
    %5941 = vmatprep.subr.mxu0 0.0
    %5942 = vmatpush1.msra.mxu0 0.0
    %5943 = vmatprep.subr.mxu0 0.0
    %5944 = vmatpush1.msra.mxu0 0.0
    %5945 = vmatprep.subr.mxu0 0.0
    %5946 = vmatpush1.msra.mxu0 0.0
    %5947 = vmatprep.subr.mxu0 0.0
    %5948 = vmatpush1.msra.mxu0 0.0
    %5949 = vmatprep.subr.mxu0 0.0
    %5950 = vmatpush1.msra.mxu0 0.0
    %5951 = vmatprep.subr.mxu0 0.0
    %5952 = vmatpush1.msra.mxu0 0.0
    %5953 = vmatprep.subr.mxu0 0.0
    %5954 = vmatpush1.msra.mxu0 0.0
    %5955 = vmatprep.subr.mxu0 0.0
    %5956 = vmatpush1.msra.mxu0 0.0
    %5957 = vmatprep.subr.mxu0 0.0
    %5958 = vmatpush1.msra.mxu0 0.0
    %5959 = vmatprep.subr.mxu0 0.0
    %5960 = vmatpush1.msra.mxu0 0.0
    %5961 = vmatprep.subr.mxu0 0.0
    %5962 = vmatpush1.msra.mxu0 0.0
    %5963 = vmatprep.subr.mxu0 0.0
    %5964 = vmatpush1.msra.mxu0 0.0
    %5965 = vmatprep.subr.mxu0 0.0
    %5966 = vmatpush1.msra.mxu0 0.0
    %5967 = vmatprep.subr.mxu0 0.0
    %5968 = vmatpush1.msra.mxu0 %v252
    %5969 = vmatprep.subr.mxu0 0.0
    %5970 = vmatpush2.msra.mxu0 0.0
    %5971 = vmatprep.subr.mxu0 0.0
    %5972 = vmatpush2.msra.mxu0 0.0
    %5973 = vmatprep.subr.mxu0 0.0
    %5974 = vmatpush2.msra.mxu0 0.0
    %5975 = vmatprep.subr.mxu0 0.0
    %5976 = vmatpush2.msra.mxu0 0.0
    %5977 = vmatprep.subr.mxu0 0.0
    %5978 = vmatpush2.msra.mxu0 0.0
    %5979 = vmatprep.subr.mxu0 0.0
    %5980 = vmatpush2.msra.mxu0 0.0
    %5981 = vmatprep.subr.mxu0 0.0
    %5982 = vmatpush2.msra.mxu0 0.0
    %5983 = vmatprep.subr.mxu0 0.0
    %5984 = vmatpush2.msra.mxu0 0.0
    %5985 = vmatprep.subr.mxu0 0.0
    %5986 = vmatpush2.msra.mxu0 0.0
    %5987 = vmatprep.subr.mxu0 0.0
    %5988 = vmatpush2.msra.mxu0 0.0
    %5989 = vmatprep.subr.mxu0 0.0
    %5990 = vmatpush2.msra.mxu0 0.0
    %5991 = vmatprep.subr.mxu0 0.0
    %5992 = vmatpush2.msra.mxu0 0.0
    %5993 = vmatprep.subr.mxu0 0.0
    %5994 = vmatpush2.msra.mxu0 0.0
    %5995 = vmatprep.subr.mxu0 0.0
    %5996 = vmatpush2.msra.mxu0 0.0
    %5997 = vmatprep.subr.mxu0 0.0
    %5998 = vmatpush2.msra.mxu0 0.0
    %5999 = vmatprep.subr.mxu0 0.0
    %6000 = vmatpush2.msra.mxu0 0.0
    %6001 = vmatprep.mubr.f32.mxu0 0.0
    %6002 = vmatmul.mubr.f32.gmra.mxu0 %v5935
    %v6003 = vpop.f32.mrf.mxu0
    %v6004 = vadd.f32 0.0, %v6003
    %v6005 = vpop.f32.mrf.mxu0
    %6006 = vdwg.mxu0
    %v6007 = vsel %vm2176, %v5934, 0
    %6009 = vmatprep.subr.mxu0 0.0
    %6010 = vmatpush1.msra.mxu0 0.0
    %6011 = vmatprep.subr.mxu0 0.0
    %6012 = vmatpush1.msra.mxu0 0.0
    %6013 = vmatprep.subr.mxu0 0.0
    %6014 = vmatpush1.msra.mxu0 0.0
    %6015 = vmatprep.subr.mxu0 0.0
    %6016 = vmatpush1.msra.mxu0 0.0
    %6017 = vmatprep.subr.mxu0 0.0
    %6018 = vmatpush1.msra.mxu0 0.0
    %6019 = vmatprep.subr.mxu0 0.0
    %6020 = vmatpush1.msra.mxu0 0.0
    %6021 = vmatprep.subr.mxu0 0.0
    %6022 = vmatpush1.msra.mxu0 0.0
    %6023 = vmatprep.subr.mxu0 0.0
    %6024 = vmatpush1.msra.mxu0 0.0
    %6025 = vmatprep.subr.mxu0 0.0
    %6026 = vmatpush1.msra.mxu0 0.0
    %6027 = vmatprep.subr.mxu0 0.0
    %6028 = vmatpush1.msra.mxu0 0.0
    %6029 = vmatprep.subr.mxu0 0.0
    %6030 = vmatpush1.msra.mxu0 0.0
    %6031 = vmatprep.subr.mxu0 0.0
    %6032 = vmatpush1.msra.mxu0 0.0
    %6033 = vmatprep.subr.mxu0 0.0
    %6034 = vmatpush1.msra.mxu0 0.0
    %6035 = vmatprep.subr.mxu0 0.0
    %6036 = vmatpush1.msra.mxu0 0.0
    %6037 = vmatprep.subr.mxu0 0.0
    %6038 = vmatpush1.msra.mxu0 0.0
    %6039 = vmatprep.subr.mxu0 0.0
    %6040 = vmatpush1.msra.mxu0 %v257
    %6041 = vmatprep.subr.mxu0 0.0
    %6042 = vmatpush2.msra.mxu0 0.0
    %6043 = vmatprep.subr.mxu0 0.0
    %6044 = vmatpush2.msra.mxu0 0.0
    %6045 = vmatprep.subr.mxu0 0.0
    %6046 = vmatpush2.msra.mxu0 0.0
    %6047 = vmatprep.subr.mxu0 0.0
    %6048 = vmatpush2.msra.mxu0 0.0
    %6049 = vmatprep.subr.mxu0 0.0
    %6050 = vmatpush2.msra.mxu0 0.0
    %6051 = vmatprep.subr.mxu0 0.0
    %6052 = vmatpush2.msra.mxu0 0.0
    %6053 = vmatprep.subr.mxu0 0.0
    %6054 = vmatpush2.msra.mxu0 0.0
    %6055 = vmatprep.subr.mxu0 0.0
    %6056 = vmatpush2.msra.mxu0 0.0
    %6057 = vmatprep.subr.mxu0 0.0
    %6058 = vmatpush2.msra.mxu0 0.0
    %6059 = vmatprep.subr.mxu0 0.0
    %6060 = vmatpush2.msra.mxu0 0.0
    %6061 = vmatprep.subr.mxu0 0.0
    %6062 = vmatpush2.msra.mxu0 0.0
    %6063 = vmatprep.subr.mxu0 0.0
    %6064 = vmatpush2.msra.mxu0 0.0
    %6065 = vmatprep.subr.mxu0 0.0
    %6066 = vmatpush2.msra.mxu0 0.0
    %6067 = vmatprep.subr.mxu0 0.0
    %6068 = vmatpush2.msra.mxu0 0.0
    %6069 = vmatprep.subr.mxu0 0.0
    %6070 = vmatpush2.msra.mxu0 0.0
    %6071 = vmatprep.subr.mxu0 0.0
    %6072 = vmatpush2.msra.mxu0 0.0
    %6073 = vmatprep.mubr.f32.mxu0 0.0
    %6074 = vmatmul.mubr.f32.gmra.mxu0 %v6007
    %v6075 = vpop.f32.mrf.mxu0
    %v6076 = vadd.f32 0.0, %v6075
    %v6077 = vpop.f32.mrf.mxu0
    %6078 = vdwg.mxu0
    %v6079 = vlaneseq
    %v6080 = vshrl.u32 %v6079, 7
    %v6081 = vsub.s32 0, %v6080
    %v6082 = vrot.slane %v5586, %v6081
    %v6083 = vlaneseq
    %v6084 = vshrl.u32 %v6083, 7
    %v6085 = vsub.s32 0, %v6084
    %v6086 = vrot.slane %v5593, %v6085
    %v6089 = vsel %vm1153, %v6082, %v5247
    %v6090 = vsel %vm1153, %v6086, %v5248
    %vm6091 = vcmp.eq.s32.totalorder %v158, 4
    %v6092 = vsel %vm6091, %v5906, %v5250
    %v6094 = vsel %vm275, %v5885, 0
    %6096 = vmatprep.subr.mxu0 0.0
    %6097 = vmatpush1.msra.mxu0 0.0
    %6098 = vmatprep.subr.mxu0 0.0
    %6099 = vmatpush1.msra.mxu0 0.0
    %6100 = vmatprep.subr.mxu0 0.0
    %6101 = vmatpush1.msra.mxu0 0.0
    %6102 = vmatprep.subr.mxu0 0.0
    %6103 = vmatpush1.msra.mxu0 0.0
    %6104 = vmatprep.subr.mxu0 0.0
    %6105 = vmatpush1.msra.mxu0 0.0
    %6106 = vmatprep.subr.mxu0 0.0
    %6107 = vmatpush1.msra.mxu0 0.0
    %6108 = vmatprep.subr.mxu0 0.0
    %6109 = vmatpush1.msra.mxu0 0.0
    %6110 = vmatprep.subr.mxu0 0.0
    %6111 = vmatpush1.msra.mxu0 0.0
    %6112 = vmatprep.subr.mxu0 0.0
    %6113 = vmatpush1.msra.mxu0 0.0
    %6114 = vmatprep.subr.mxu0 0.0
    %6115 = vmatpush1.msra.mxu0 0.0
    %6116 = vmatprep.subr.mxu0 0.0
    %6117 = vmatpush1.msra.mxu0 0.0
    %6118 = vmatprep.subr.mxu0 0.0
    %6119 = vmatpush1.msra.mxu0 0.0
    %6120 = vmatprep.subr.mxu0 0.0
    %6121 = vmatpush1.msra.mxu0 %v1758
    %6122 = vmatprep.subr.mxu0 0.0
    %6123 = vmatpush1.msra.mxu0 %v1757
    %6124 = vmatprep.subr.mxu0 0.0
    %6125 = vmatpush1.msra.mxu0 %v1756
    %6126 = vmatprep.subr.mxu0 0.0
    %6127 = vmatpush1.msra.mxu0 %v1755
    %6128 = vmatprep.subr.mxu0 0.0
    %6129 = vmatpush2.msra.mxu0 0.0
    %6130 = vmatprep.subr.mxu0 0.0
    %6131 = vmatpush2.msra.mxu0 0.0
    %6132 = vmatprep.subr.mxu0 0.0
    %6133 = vmatpush2.msra.mxu0 0.0
    %6134 = vmatprep.subr.mxu0 0.0
    %6135 = vmatpush2.msra.mxu0 0.0
    %6136 = vmatprep.subr.mxu0 0.0
    %6137 = vmatpush2.msra.mxu0 0.0
    %6138 = vmatprep.subr.mxu0 0.0
    %6139 = vmatpush2.msra.mxu0 0.0
    %6140 = vmatprep.subr.mxu0 0.0
    %6141 = vmatpush2.msra.mxu0 0.0
    %6142 = vmatprep.subr.mxu0 0.0
    %6143 = vmatpush2.msra.mxu0 0.0
    %6144 = vmatprep.subr.mxu0 0.0
    %6145 = vmatpush2.msra.mxu0 0.0
    %6146 = vmatprep.subr.mxu0 0.0
    %6147 = vmatpush2.msra.mxu0 0.0
    %6148 = vmatprep.subr.mxu0 0.0
    %6149 = vmatpush2.msra.mxu0 0.0
    %6150 = vmatprep.subr.mxu0 0.0
    %6151 = vmatpush2.msra.mxu0 0.0
    %6152 = vmatprep.subr.mxu0 0.0
    %6153 = vmatpush2.msra.mxu0 0.0
    %6154 = vmatprep.subr.mxu0 0.0
    %6155 = vmatpush2.msra.mxu0 0.0
    %6156 = vmatprep.subr.mxu0 0.0
    %6157 = vmatpush2.msra.mxu0 0.0
    %6158 = vmatprep.subr.mxu0 0.0
    %6159 = vmatpush2.msra.mxu0 0.0
    %6160 = vmatprep.mubr.f32.mxu0 0.0
    %6161 = vmatmul.mubr.f32.gmra.mxu0 %v6094
    %v6162 = vpop.f32.mrf.mxu0
    %v6163 = vadd.f32 0.0, %v6162
    %v6164 = vpop.f32.mrf.mxu0
    %6165 = vdwg.mxu0
    %v6168 = vrot.slane %v6076, 7
    %v6169 = vsel %vm453, %v6168, %v6004
    %v6170 = vsel %vm275, %v6169, 0
    %6172 = vmatprep.subr.mxu0 0.0
    %6173 = vmatpush1.msra.mxu0 0.0
    %6174 = vmatprep.subr.mxu0 0.0
    %6175 = vmatpush1.msra.mxu0 0.0
    %6176 = vmatprep.subr.mxu0 0.0
    %6177 = vmatpush1.msra.mxu0 0.0
    %6178 = vmatprep.subr.mxu0 0.0
    %6179 = vmatpush1.msra.mxu0 0.0
    %6180 = vmatprep.subr.mxu0 0.0
    %6181 = vmatpush1.msra.mxu0 0.0
    %6182 = vmatprep.subr.mxu0 0.0
    %6183 = vmatpush1.msra.mxu0 0.0
    %6184 = vmatprep.subr.mxu0 0.0
    %6185 = vmatpush1.msra.mxu0 0.0
    %6186 = vmatprep.subr.mxu0 0.0
    %6187 = vmatpush1.msra.mxu0 0.0
    %6188 = vmatprep.subr.mxu0 0.0
    %6189 = vmatpush1.msra.mxu0 0.0
    %6190 = vmatprep.subr.mxu0 0.0
    %6191 = vmatpush1.msra.mxu0 0.0
    %6192 = vmatprep.subr.mxu0 0.0
    %6193 = vmatpush1.msra.mxu0 0.0
    %6194 = vmatprep.subr.mxu0 0.0
    %6195 = vmatpush1.msra.mxu0 0.0
    %6196 = vmatprep.subr.mxu0 0.0
    %6197 = vmatpush1.msra.mxu0 %v1754
    %6198 = vmatprep.subr.mxu0 0.0
    %6199 = vmatpush1.msra.mxu0 %v1753
    %6200 = vmatprep.subr.mxu0 0.0
    %6201 = vmatpush1.msra.mxu0 %v1752
    %6202 = vmatprep.subr.mxu0 0.0
    %6203 = vmatpush1.msra.mxu0 %v1751
    %6204 = vmatprep.subr.mxu0 0.0
    %6205 = vmatpush2.msra.mxu0 0.0
    %6206 = vmatprep.subr.mxu0 0.0
    %6207 = vmatpush2.msra.mxu0 0.0
    %6208 = vmatprep.subr.mxu0 0.0
    %6209 = vmatpush2.msra.mxu0 0.0
    %6210 = vmatprep.subr.mxu0 0.0
    %6211 = vmatpush2.msra.mxu0 0.0
    %6212 = vmatprep.subr.mxu0 0.0
    %6213 = vmatpush2.msra.mxu0 0.0
    %6214 = vmatprep.subr.mxu0 0.0
    %6215 = vmatpush2.msra.mxu0 0.0
    %6216 = vmatprep.subr.mxu0 0.0
    %6217 = vmatpush2.msra.mxu0 0.0
    %6218 = vmatprep.subr.mxu0 0.0
    %6219 = vmatpush2.msra.mxu0 0.0
    %6220 = vmatprep.subr.mxu0 0.0
    %6221 = vmatpush2.msra.mxu0 0.0
    %6222 = vmatprep.subr.mxu0 0.0
    %6223 = vmatpush2.msra.mxu0 0.0
    %6224 = vmatprep.subr.mxu0 0.0
    %6225 = vmatpush2.msra.mxu0 0.0
    %6226 = vmatprep.subr.mxu0 0.0
    %6227 = vmatpush2.msra.mxu0 0.0
    %6228 = vmatprep.subr.mxu0 0.0
    %6229 = vmatpush2.msra.mxu0 0.0
    %6230 = vmatprep.subr.mxu0 0.0
    %6231 = vmatpush2.msra.mxu0 0.0
    %6232 = vmatprep.subr.mxu0 0.0
    %6233 = vmatpush2.msra.mxu0 0.0
    %6234 = vmatprep.subr.mxu0 0.0
    %6235 = vmatpush2.msra.mxu0 0.0
    %6236 = vmatprep.mubr.f32.mxu0 0.0
    %6237 = vmatmul.mubr.f32.gmra.mxu0 %v6170
    %v6238 = vpop.f32.mrf.mxu0
    %v6239 = vadd.f32 %v6163, %v6238
    %v6240 = vpop.f32.mrf.mxu0
    %6241 = vdwg.mxu0
    %v6242 = vadd.f32 %v6239, %v1764
    %v6243 = vtanh.pop %v6242
    %v6244 = vxor.u32 %v6242, 2147483648
    %v6245 = vmul.f32 %v6244, 1.442695
    %v6246 = vpow.pop %v6245
    %v6247 = vadd.f32 %v6246, 1.0
    %v6248 = vrcp.pop %v6247
    %v6249 = vmul.f32 1.0, %v6248
    %v6250 = vsel %vm163, %v6243, %v6249
    %v6251 = vmul.f32 %v6250, %v5419
    %6253 = vrot.lane.b32.xlu0 %v6250, 64
    %v6254 = vpop.permute.xlu0 %6253
    %v6256 = vmul.f32 %v6250, %v6254
    %6258 = vrot.lane.b32.xlu0 %v6256, 32
    %v6259 = vpop.permute.xlu0 %6258
    %v6261 = vadd.f32 %v6251, %v6259
    %v6262 = vtanh.pop %v6261
    %6264 = vrot.lane.b32.xlu0 %v6262, 64
    %v6265 = vpop.permute.xlu0 %6264
    %v6267 = vmul.f32 %v6250, %v6265
    %6269 = vrot.lane.b32.xlu0 %v6267, 32
    %v6270 = vpop.permute.xlu0 %6269
    %v6271 = vsel %vm275, %v6270, 0
    %6273 = vmatprep.subr.mxu0 0.0
    %6274 = vmatpush1.msra.mxu0 0.0
    %6275 = vmatprep.subr.mxu0 0.0
    %6276 = vmatpush1.msra.mxu0 0.0
    %6277 = vmatprep.subr.mxu0 0.0
    %6278 = vmatpush1.msra.mxu0 0.0
    %6279 = vmatprep.subr.mxu0 0.0
    %6280 = vmatpush1.msra.mxu0 0.0
    %6281 = vmatprep.subr.mxu0 0.0
    %6282 = vmatpush1.msra.mxu0 0.0
    %6283 = vmatprep.subr.mxu0 0.0
    %6284 = vmatpush1.msra.mxu0 0.0
    %6285 = vmatprep.subr.mxu0 0.0
    %6286 = vmatpush1.msra.mxu0 0.0
    %6287 = vmatprep.subr.mxu0 0.0
    %6288 = vmatpush1.msra.mxu0 0.0
    %6289 = vmatprep.subr.mxu0 0.0
    %6290 = vmatpush1.msra.mxu0 0.0
    %6291 = vmatprep.subr.mxu0 0.0
    %6292 = vmatpush1.msra.mxu0 0.0
    %6293 = vmatprep.subr.mxu0 0.0
    %6294 = vmatpush1.msra.mxu0 0.0
    %6295 = vmatprep.subr.mxu0 0.0
    %6296 = vmatpush1.msra.mxu0 0.0
    %6297 = vmatprep.subr.mxu0 0.0
    %6298 = vmatpush1.msra.mxu0 %v1769
    %6299 = vmatprep.subr.mxu0 0.0
    %6300 = vmatpush1.msra.mxu0 %v1768
    %6301 = vmatprep.subr.mxu0 0.0
    %6302 = vmatpush1.msra.mxu0 %v1767
    %6303 = vmatprep.subr.mxu0 0.0
    %6304 = vmatpush1.msra.mxu0 %v1766
    %6305 = vmatprep.subr.mxu0 0.0
    %6306 = vmatpush2.msra.mxu0 0.0
    %6307 = vmatprep.subr.mxu0 0.0
    %6308 = vmatpush2.msra.mxu0 0.0
    %6309 = vmatprep.subr.mxu0 0.0
    %6310 = vmatpush2.msra.mxu0 0.0
    %6311 = vmatprep.subr.mxu0 0.0
    %6312 = vmatpush2.msra.mxu0 0.0
    %6313 = vmatprep.subr.mxu0 0.0
    %6314 = vmatpush2.msra.mxu0 0.0
    %6315 = vmatprep.subr.mxu0 0.0
    %6316 = vmatpush2.msra.mxu0 0.0
    %6317 = vmatprep.subr.mxu0 0.0
    %6318 = vmatpush2.msra.mxu0 0.0
    %6319 = vmatprep.subr.mxu0 0.0
    %6320 = vmatpush2.msra.mxu0 0.0
    %6321 = vmatprep.subr.mxu0 0.0
    %6322 = vmatpush2.msra.mxu0 0.0
    %6323 = vmatprep.subr.mxu0 0.0
    %6324 = vmatpush2.msra.mxu0 0.0
    %6325 = vmatprep.subr.mxu0 0.0
    %6326 = vmatpush2.msra.mxu0 0.0
    %6327 = vmatprep.subr.mxu0 0.0
    %6328 = vmatpush2.msra.mxu0 0.0
    %6329 = vmatprep.subr.mxu0 0.0
    %6330 = vmatpush2.msra.mxu0 0.0
    %6331 = vmatprep.subr.mxu0 0.0
    %6332 = vmatpush2.msra.mxu0 0.0
    %6333 = vmatprep.subr.mxu0 0.0
    %6334 = vmatpush2.msra.mxu0 0.0
    %6335 = vmatprep.subr.mxu0 0.0
    %6336 = vmatpush2.msra.mxu0 0.0
    %6337 = vmatprep.mubr.f32.mxu0 0.0
    %6338 = vmatmul.mubr.f32.gmra.mxu0 %v6271
    %v6339 = vpop.f32.mrf.mxu0
    %v6340 = vadd.f32 %v1775, %v6339
    %v6341 = vpop.f32.mrf.mxu0
    %6342 = vdwg.mxu0
    %v6345 = vunpack.c.l.s4 1966171168
    %v6346 = vunpack.c.0.s8 %v6345
    %v6347 = vlaneseq
    %v6348 = vshrl.u32 %v6347, 7
    %v6349 = vsub.s32 %v6346, %v6348
    %v6350 = vrot.slane %v6340, %v6349
    %v6351 = vcombine.high %v6350, %v6350
    %v6353 = vunpack.c.l.s4 1966171168
    %v6354 = vunpack.c.0.s8 %v6353
    %v6355 = vlaneseq
    %v6356 = vshrl.u32 %v6355, 7
    %v6357 = vsub.s32 %v6354, %v6356
    %v6358 = vrot.slane %v6350, %v6357
    %v6360 = vunpack.c.l.s4 1966171168
    %v6361 = vunpack.c.0.s8 %v6360
    %v6362 = vlaneseq
    %v6363 = vshrl.u32 %v6362, 7
    %v6364 = vsub.s32 %v6361, %v6363
    %v6365 = vrot.slane %v6351, %v6364
    %v6366 = vlaneseq
    %v6367 = vshrl.u32 %v6366, 7
    %v6368 = vsub.s32 0, %v6367
    %v6369 = vrot.slane %v6358, %v6368
    %v6370 = vlaneseq
    %v6371 = vshrl.u32 %v6370, 7
    %v6372 = vsub.s32 0, %v6371
    %v6373 = vrot.slane %v6365, %v6372
    %v6376 = vadd.f32 %v6369, %v1743
    %v6377 = vadd.f32 %v6373, %v1748
    %v6378 = vtanh.pop %v6376
    %v6379 = vtanh.pop %v6377
    %v6380 = vmul.f32 %v6378, %v1782
    %v6381 = vmul.f32 %v6379, %v1782
    %v6382 = vsel %vm275, %v6380, 0.0
    %6383 = vadd.xlane.f32.xlu0 %v6382
    %v6384 = vpop.xlane.xlu0 %6383
    %v6385 = vsel %vm275, %v6381, 0.0
    %6386 = vadd.xlane.f32.xlu0 %v6385
    %v6387 = vpop.xlane.xlu0 %6386
    %vm6388 = vcmp.gt.f32.partialorder %v5911, 0.0
    %v6391 = vlaneseq
    %v6392 = vshrl.u32 %v6391, 7
    %v6393 = vsub.s32 %v158, %v6392
    %v6394 = vrot.slane %v6384, %v6393
    %v6395 = vlaneseq
    %v6396 = vshrl.u32 %v6395, 7
    %v6397 = vsub.s32 %v158, %v6396
    %v6398 = vrot.slane %v6387, %v6397
    %v6399 = vsel %vm453, %v6398, %v6394
    %v6401 = vsel %vm6388, %v6399, -1e+30
    %v6402 = vsel %vm2112, %v6401, -inf
    %6403 = vmax.xlane.f32.xlu0 %v6402
    %v6404 = vpop.xlane.xlu0 %6403
    %v6405 = vsub.f32 %v6401, %v6404
    %v6406 = vmul.f32 %v6405, 1.442695
    %v6407 = vpow.pop %v6406
    %v6408 = vsel %vm2112, %v6407, 0.0
    %6409 = vadd.xlane.f32.xlu0 %v6408
    %v6410 = vpop.xlane.xlu0 %6409
    %v6411 = vrcp.pop %v6410
    %v6412 = vmul.f32 %v6407, %v6411
    %v6415 = vunpack.c.l.s4 1966171168
    %v6416 = vunpack.c.0.s8 %v6415
    %v6417 = vlaneseq
    %v6418 = vshrl.u32 %v6417, 7
    %v6419 = vsub.s32 %v6416, %v6418
    %v6420 = vrot.slane %v6412, %v6419
    %v6421 = vcombine.high %v6420, %v6420
    %v6423 = vunpack.c.l.s4 1966171168
    %v6424 = vunpack.c.0.s8 %v6423
    %v6425 = vlaneseq
    %v6426 = vshrl.u32 %v6425, 7
    %v6427 = vsub.s32 %v6424, %v6426
    %v6428 = vrot.slane %v6420, %v6427
    %v6430 = vunpack.c.l.s4 1966171168
    %v6431 = vunpack.c.0.s8 %v6430
    %v6432 = vlaneseq
    %v6433 = vshrl.u32 %v6432, 7
    %v6434 = vsub.s32 %v6431, %v6433
    %v6435 = vrot.slane %v6421, %v6434
    %v6436 = vsel %vm2176, %v6428, 0
    %6438 = vmatprep.subr.mxu0 0.0
    %6439 = vmatpush1.msra.mxu0 0.0
    %6440 = vmatprep.subr.mxu0 0.0
    %6441 = vmatpush1.msra.mxu0 0.0
    %6442 = vmatprep.subr.mxu0 0.0
    %6443 = vmatpush1.msra.mxu0 0.0
    %6444 = vmatprep.subr.mxu0 0.0
    %6445 = vmatpush1.msra.mxu0 0.0
    %6446 = vmatprep.subr.mxu0 0.0
    %6447 = vmatpush1.msra.mxu0 0.0
    %6448 = vmatprep.subr.mxu0 0.0
    %6449 = vmatpush1.msra.mxu0 0.0
    %6450 = vmatprep.subr.mxu0 0.0
    %6451 = vmatpush1.msra.mxu0 0.0
    %6452 = vmatprep.subr.mxu0 0.0
    %6453 = vmatpush1.msra.mxu0 0.0
    %6454 = vmatprep.subr.mxu0 0.0
    %6455 = vmatpush1.msra.mxu0 0.0
    %6456 = vmatprep.subr.mxu0 0.0
    %6457 = vmatpush1.msra.mxu0 0.0
    %6458 = vmatprep.subr.mxu0 0.0
    %6459 = vmatpush1.msra.mxu0 0.0
    %6460 = vmatprep.subr.mxu0 0.0
    %6461 = vmatpush1.msra.mxu0 0.0
    %6462 = vmatprep.subr.mxu0 0.0
    %6463 = vmatpush1.msra.mxu0 0.0
    %6464 = vmatprep.subr.mxu0 0.0
    %6465 = vmatpush1.msra.mxu0 0.0
    %6466 = vmatprep.subr.mxu0 0.0
    %6467 = vmatpush1.msra.mxu0 0.0
    %6468 = vmatprep.subr.mxu0 0.0
    %6469 = vmatpush1.msra.mxu0 %v1743
    %6470 = vmatprep.subr.mxu0 0.0
    %6471 = vmatpush2.msra.mxu0 0.0
    %6472 = vmatprep.subr.mxu0 0.0
    %6473 = vmatpush2.msra.mxu0 0.0
    %6474 = vmatprep.subr.mxu0 0.0
    %6475 = vmatpush2.msra.mxu0 0.0
    %6476 = vmatprep.subr.mxu0 0.0
    %6477 = vmatpush2.msra.mxu0 0.0
    %6478 = vmatprep.subr.mxu0 0.0
    %6479 = vmatpush2.msra.mxu0 0.0
    %6480 = vmatprep.subr.mxu0 0.0
    %6481 = vmatpush2.msra.mxu0 0.0
    %6482 = vmatprep.subr.mxu0 0.0
    %6483 = vmatpush2.msra.mxu0 0.0
    %6484 = vmatprep.subr.mxu0 0.0
    %6485 = vmatpush2.msra.mxu0 0.0
    %6486 = vmatprep.subr.mxu0 0.0
    %6487 = vmatpush2.msra.mxu0 0.0
    %6488 = vmatprep.subr.mxu0 0.0
    %6489 = vmatpush2.msra.mxu0 0.0
    %6490 = vmatprep.subr.mxu0 0.0
    %6491 = vmatpush2.msra.mxu0 0.0
    %6492 = vmatprep.subr.mxu0 0.0
    %6493 = vmatpush2.msra.mxu0 0.0
    %6494 = vmatprep.subr.mxu0 0.0
    %6495 = vmatpush2.msra.mxu0 0.0
    %6496 = vmatprep.subr.mxu0 0.0
    %6497 = vmatpush2.msra.mxu0 0.0
    %6498 = vmatprep.subr.mxu0 0.0
    %6499 = vmatpush2.msra.mxu0 0.0
    %6500 = vmatprep.subr.mxu0 0.0
    %6501 = vmatpush2.msra.mxu0 0.0
    %6502 = vmatprep.mubr.f32.mxu0 0.0
    %6503 = vmatmul.mubr.f32.gmra.mxu0 %v6436
    %v6504 = vpop.f32.mrf.mxu0
    %v6505 = vadd.f32 0.0, %v6504
    %v6506 = vpop.f32.mrf.mxu0
    %6507 = vdwg.mxu0
    %v6508 = vsel %vm2176, %v6435, 0
    %6510 = vmatprep.subr.mxu0 0.0
    %6511 = vmatpush1.msra.mxu0 0.0
    %6512 = vmatprep.subr.mxu0 0.0
    %6513 = vmatpush1.msra.mxu0 0.0
    %6514 = vmatprep.subr.mxu0 0.0
    %6515 = vmatpush1.msra.mxu0 0.0
    %6516 = vmatprep.subr.mxu0 0.0
    %6517 = vmatpush1.msra.mxu0 0.0
    %6518 = vmatprep.subr.mxu0 0.0
    %6519 = vmatpush1.msra.mxu0 0.0
    %6520 = vmatprep.subr.mxu0 0.0
    %6521 = vmatpush1.msra.mxu0 0.0
    %6522 = vmatprep.subr.mxu0 0.0
    %6523 = vmatpush1.msra.mxu0 0.0
    %6524 = vmatprep.subr.mxu0 0.0
    %6525 = vmatpush1.msra.mxu0 0.0
    %6526 = vmatprep.subr.mxu0 0.0
    %6527 = vmatpush1.msra.mxu0 0.0
    %6528 = vmatprep.subr.mxu0 0.0
    %6529 = vmatpush1.msra.mxu0 0.0
    %6530 = vmatprep.subr.mxu0 0.0
    %6531 = vmatpush1.msra.mxu0 0.0
    %6532 = vmatprep.subr.mxu0 0.0
    %6533 = vmatpush1.msra.mxu0 0.0
    %6534 = vmatprep.subr.mxu0 0.0
    %6535 = vmatpush1.msra.mxu0 0.0
    %6536 = vmatprep.subr.mxu0 0.0
    %6537 = vmatpush1.msra.mxu0 0.0
    %6538 = vmatprep.subr.mxu0 0.0
    %6539 = vmatpush1.msra.mxu0 0.0
    %6540 = vmatprep.subr.mxu0 0.0
    %6541 = vmatpush1.msra.mxu0 %v1748
    %6542 = vmatprep.subr.mxu0 0.0
    %6543 = vmatpush2.msra.mxu0 0.0
    %6544 = vmatprep.subr.mxu0 0.0
    %6545 = vmatpush2.msra.mxu0 0.0
    %6546 = vmatprep.subr.mxu0 0.0
    %6547 = vmatpush2.msra.mxu0 0.0
    %6548 = vmatprep.subr.mxu0 0.0
    %6549 = vmatpush2.msra.mxu0 0.0
    %6550 = vmatprep.subr.mxu0 0.0
    %6551 = vmatpush2.msra.mxu0 0.0
    %6552 = vmatprep.subr.mxu0 0.0
    %6553 = vmatpush2.msra.mxu0 0.0
    %6554 = vmatprep.subr.mxu0 0.0
    %6555 = vmatpush2.msra.mxu0 0.0
    %6556 = vmatprep.subr.mxu0 0.0
    %6557 = vmatpush2.msra.mxu0 0.0
    %6558 = vmatprep.subr.mxu0 0.0
    %6559 = vmatpush2.msra.mxu0 0.0
    %6560 = vmatprep.subr.mxu0 0.0
    %6561 = vmatpush2.msra.mxu0 0.0
    %6562 = vmatprep.subr.mxu0 0.0
    %6563 = vmatpush2.msra.mxu0 0.0
    %6564 = vmatprep.subr.mxu0 0.0
    %6565 = vmatpush2.msra.mxu0 0.0
    %6566 = vmatprep.subr.mxu0 0.0
    %6567 = vmatpush2.msra.mxu0 0.0
    %6568 = vmatprep.subr.mxu0 0.0
    %6569 = vmatpush2.msra.mxu0 0.0
    %6570 = vmatprep.subr.mxu0 0.0
    %6571 = vmatpush2.msra.mxu0 0.0
    %6572 = vmatprep.subr.mxu0 0.0
    %6573 = vmatpush2.msra.mxu0 0.0
    %6574 = vmatprep.mubr.f32.mxu0 0.0
    %6575 = vmatmul.mubr.f32.gmra.mxu0 %v6508
    %v6576 = vpop.f32.mrf.mxu0
    %v6577 = vadd.f32 0.0, %v6576
    %v6578 = vpop.f32.mrf.mxu0
    %6579 = vdwg.mxu0
    %6580 = vmatprep.subr.mxu0 0.0
    %6581 = vmatpush1.msra.mxu0 0.0
    %6582 = vmatprep.subr.mxu0 0.0
    %6583 = vmatpush1.msra.mxu0 0.0
    %6584 = vmatprep.subr.mxu0 0.0
    %6585 = vmatpush1.msra.mxu0 0.0
    %6586 = vmatprep.subr.mxu0 0.0
    %6587 = vmatpush1.msra.mxu0 0.0
    %6588 = vmatprep.subr.mxu0 0.0
    %6589 = vmatpush1.msra.mxu0 0.0
    %6590 = vmatprep.subr.mxu0 0.0
    %6591 = vmatpush1.msra.mxu0 0.0
    %6592 = vmatprep.subr.mxu0 0.0
    %6593 = vmatpush1.msra.mxu0 0.0
    %6594 = vmatprep.subr.mxu0 0.0
    %6595 = vmatpush1.msra.mxu0 0.0
    %6596 = vmatprep.subr.mxu0 0.0
    %6597 = vmatpush1.msra.mxu0 0.0
    %6598 = vmatprep.subr.mxu0 0.0
    %6599 = vmatpush1.msra.mxu0 0.0
    %6600 = vmatprep.subr.mxu0 0.0
    %6601 = vmatpush1.msra.mxu0 0.0
    %6602 = vmatprep.subr.mxu0 0.0
    %6603 = vmatpush1.msra.mxu0 0.0
    %6604 = vmatprep.subr.mxu0 0.0
    %6605 = vmatpush1.msra.mxu0 %v1791
    %6606 = vmatprep.subr.mxu0 0.0
    %6607 = vmatpush1.msra.mxu0 %v1790
    %6608 = vmatprep.subr.mxu0 0.0
    %6609 = vmatpush1.msra.mxu0 %v1789
    %6610 = vmatprep.subr.mxu0 0.0
    %6611 = vmatpush1.msra.mxu0 %v1788
    %6612 = vmatprep.subr.mxu0 0.0
    %6613 = vmatpush2.msra.mxu0 0.0
    %6614 = vmatprep.subr.mxu0 0.0
    %6615 = vmatpush2.msra.mxu0 0.0
    %6616 = vmatprep.subr.mxu0 0.0
    %6617 = vmatpush2.msra.mxu0 0.0
    %6618 = vmatprep.subr.mxu0 0.0
    %6619 = vmatpush2.msra.mxu0 0.0
    %6620 = vmatprep.subr.mxu0 0.0
    %6621 = vmatpush2.msra.mxu0 0.0
    %6622 = vmatprep.subr.mxu0 0.0
    %6623 = vmatpush2.msra.mxu0 0.0
    %6624 = vmatprep.subr.mxu0 0.0
    %6625 = vmatpush2.msra.mxu0 0.0
    %6626 = vmatprep.subr.mxu0 0.0
    %6627 = vmatpush2.msra.mxu0 0.0
    %6628 = vmatprep.subr.mxu0 0.0
    %6629 = vmatpush2.msra.mxu0 0.0
    %6630 = vmatprep.subr.mxu0 0.0
    %6631 = vmatpush2.msra.mxu0 0.0
    %6632 = vmatprep.subr.mxu0 0.0
    %6633 = vmatpush2.msra.mxu0 0.0
    %6634 = vmatprep.subr.mxu0 0.0
    %6635 = vmatpush2.msra.mxu0 0.0
    %6636 = vmatprep.subr.mxu0 0.0
    %6637 = vmatpush2.msra.mxu0 0.0
    %6638 = vmatprep.subr.mxu0 0.0
    %6639 = vmatpush2.msra.mxu0 0.0
    %6640 = vmatprep.subr.mxu0 0.0
    %6641 = vmatpush2.msra.mxu0 0.0
    %6642 = vmatprep.subr.mxu0 0.0
    %6643 = vmatpush2.msra.mxu0 0.0
    %6644 = vmatprep.mubr.f32.mxu0 0.0
    %6645 = vmatmul.mubr.f32.gmra.mxu0 %v6271
    %v6646 = vpop.f32.mrf.mxu0
    %v6647 = vadd.f32 0.0, %v6646
    %v6648 = vpop.f32.mrf.mxu0
    %6649 = vdwg.mxu0
    %v6652 = vrot.slane %v6577, 7
    %v6653 = vsel %vm453, %v6652, %v6505
    %v6654 = vsel %vm275, %v6653, 0
    %6656 = vmatprep.subr.mxu0 0.0
    %6657 = vmatpush1.msra.mxu0 0.0
    %6658 = vmatprep.subr.mxu0 0.0
    %6659 = vmatpush1.msra.mxu0 0.0
    %6660 = vmatprep.subr.mxu0 0.0
    %6661 = vmatpush1.msra.mxu0 0.0
    %6662 = vmatprep.subr.mxu0 0.0
    %6663 = vmatpush1.msra.mxu0 0.0
    %6664 = vmatprep.subr.mxu0 0.0
    %6665 = vmatpush1.msra.mxu0 0.0
    %6666 = vmatprep.subr.mxu0 0.0
    %6667 = vmatpush1.msra.mxu0 0.0
    %6668 = vmatprep.subr.mxu0 0.0
    %6669 = vmatpush1.msra.mxu0 0.0
    %6670 = vmatprep.subr.mxu0 0.0
    %6671 = vmatpush1.msra.mxu0 0.0
    %6672 = vmatprep.subr.mxu0 0.0
    %6673 = vmatpush1.msra.mxu0 0.0
    %6674 = vmatprep.subr.mxu0 0.0
    %6675 = vmatpush1.msra.mxu0 0.0
    %6676 = vmatprep.subr.mxu0 0.0
    %6677 = vmatpush1.msra.mxu0 0.0
    %6678 = vmatprep.subr.mxu0 0.0
    %6679 = vmatpush1.msra.mxu0 0.0
    %6680 = vmatprep.subr.mxu0 0.0
    %6681 = vmatpush1.msra.mxu0 %v1787
    %6682 = vmatprep.subr.mxu0 0.0
    %6683 = vmatpush1.msra.mxu0 %v1786
    %6684 = vmatprep.subr.mxu0 0.0
    %6685 = vmatpush1.msra.mxu0 %v1785
    %6686 = vmatprep.subr.mxu0 0.0
    %6687 = vmatpush1.msra.mxu0 %v1784
    %6688 = vmatprep.subr.mxu0 0.0
    %6689 = vmatpush2.msra.mxu0 0.0
    %6690 = vmatprep.subr.mxu0 0.0
    %6691 = vmatpush2.msra.mxu0 0.0
    %6692 = vmatprep.subr.mxu0 0.0
    %6693 = vmatpush2.msra.mxu0 0.0
    %6694 = vmatprep.subr.mxu0 0.0
    %6695 = vmatpush2.msra.mxu0 0.0
    %6696 = vmatprep.subr.mxu0 0.0
    %6697 = vmatpush2.msra.mxu0 0.0
    %6698 = vmatprep.subr.mxu0 0.0
    %6699 = vmatpush2.msra.mxu0 0.0
    %6700 = vmatprep.subr.mxu0 0.0
    %6701 = vmatpush2.msra.mxu0 0.0
    %6702 = vmatprep.subr.mxu0 0.0
    %6703 = vmatpush2.msra.mxu0 0.0
    %6704 = vmatprep.subr.mxu0 0.0
    %6705 = vmatpush2.msra.mxu0 0.0
    %6706 = vmatprep.subr.mxu0 0.0
    %6707 = vmatpush2.msra.mxu0 0.0
    %6708 = vmatprep.subr.mxu0 0.0
    %6709 = vmatpush2.msra.mxu0 0.0
    %6710 = vmatprep.subr.mxu0 0.0
    %6711 = vmatpush2.msra.mxu0 0.0
    %6712 = vmatprep.subr.mxu0 0.0
    %6713 = vmatpush2.msra.mxu0 0.0
    %6714 = vmatprep.subr.mxu0 0.0
    %6715 = vmatpush2.msra.mxu0 0.0
    %6716 = vmatprep.subr.mxu0 0.0
    %6717 = vmatpush2.msra.mxu0 0.0
    %6718 = vmatprep.subr.mxu0 0.0
    %6719 = vmatpush2.msra.mxu0 0.0
    %6720 = vmatprep.mubr.f32.mxu0 0.0
    %6721 = vmatmul.mubr.f32.gmra.mxu0 %v6654
    %v6722 = vpop.f32.mrf.mxu0
    %v6723 = vadd.f32 %v6647, %v6722
    %v6724 = vpop.f32.mrf.mxu0
    %6725 = vdwg.mxu0
    %v6726 = vadd.f32 %v6723, %v1797
    %v6727 = vtanh.pop %v6726
    %v6728 = vmul.f32 %v6412, %v5911
    %v6729 = vsel %vm2112, %v6728, -inf
    %6730 = vmax.xlane.f32.xlu0 %v6729
    %v6731 = vpop.xlane.xlu0 %6730
    %vm6732 = vcmp.eq.f32.partialorder %v6728, %v6731
    %v6733 = vsel %vm6732, %v158, 8
    %v6734 = vsel %vm2112, %v6733, 2147483647
    %v6735 = vand.u32 %v6734, 65535
    %v6736 = vshra.s32 %v6734, 16
    %v6737 = vcvt.s32.f32 %v6735
    %v6738 = vcvt.s32.f32 %v6736
    %6739 = vmin.xlane.f32.xlu0 %v6738
    %v6740 = vpop.xlane.xlu0 %6739
    %vm6741 = vcmp.eq.f32.partialorder %v6738, %v6740
    %v6742 = vsel %vm6741, %v6737, inf
    %6743 = vmin.xlane.f32.xlu0 %v6742
    %v6744 = vpop.xlane.xlu0 %6743
    %v6745 = vcvt.f32.s32 %v6744
    %v6746 = vcvt.f32.s32 %v6740
    %v6747 = vshll.u32 %v6746, 16
    %v6748 = vadd.s32 %v6747, %v6745
    %vm6749 = vcmp.eq.s32.totalorder %v158, %v6748
    %v6750 = vsel %vm6749, 1, 0
    %v6751 = vcvt.s32.f32 %v6750
    %v6752 = vsub.f32 1.0, %v6751
    %v6753 = vmul.f32 %v5911, %v6752
    %v6756 = vunpack.c.l.s4 1966171168
    %v6757 = vunpack.c.0.s8 %v6756
    %v6758 = vlaneseq
    %v6759 = vshrl.u32 %v6758, 7
    %v6760 = vsub.s32 %v6757, %v6759
    %v6761 = vrot.slane %v6751, %v6760
    %v6762 = vcombine.high %v6761, %v6761
    %v6764 = vunpack.c.l.s4 1966171168
    %v6765 = vunpack.c.0.s8 %v6764
    %v6766 = vlaneseq
    %v6767 = vshrl.u32 %v6766, 7
    %v6768 = vsub.s32 %v6765, %v6767
    %v6769 = vrot.slane %v6761, %v6768
    %v6771 = vunpack.c.l.s4 1966171168
    %v6772 = vunpack.c.0.s8 %v6771
    %v6773 = vlaneseq
    %v6774 = vshrl.u32 %v6773, 7
    %v6775 = vsub.s32 %v6772, %v6774
    %v6776 = vrot.slane %v6762, %v6775
    %v6777 = vsel %vm2176, %v6769, 0
    %6779 = vmatprep.subr.mxu0 0.0
    %6780 = vmatpush1.msra.mxu0 0.0
    %6781 = vmatprep.subr.mxu0 0.0
    %6782 = vmatpush1.msra.mxu0 0.0
    %6783 = vmatprep.subr.mxu0 0.0
    %6784 = vmatpush1.msra.mxu0 0.0
    %6785 = vmatprep.subr.mxu0 0.0
    %6786 = vmatpush1.msra.mxu0 0.0
    %6787 = vmatprep.subr.mxu0 0.0
    %6788 = vmatpush1.msra.mxu0 0.0
    %6789 = vmatprep.subr.mxu0 0.0
    %6790 = vmatpush1.msra.mxu0 0.0
    %6791 = vmatprep.subr.mxu0 0.0
    %6792 = vmatpush1.msra.mxu0 0.0
    %6793 = vmatprep.subr.mxu0 0.0
    %6794 = vmatpush1.msra.mxu0 0.0
    %6795 = vmatprep.subr.mxu0 0.0
    %6796 = vmatpush1.msra.mxu0 0.0
    %6797 = vmatprep.subr.mxu0 0.0
    %6798 = vmatpush1.msra.mxu0 0.0
    %6799 = vmatprep.subr.mxu0 0.0
    %6800 = vmatpush1.msra.mxu0 0.0
    %6801 = vmatprep.subr.mxu0 0.0
    %6802 = vmatpush1.msra.mxu0 0.0
    %6803 = vmatprep.subr.mxu0 0.0
    %6804 = vmatpush1.msra.mxu0 0.0
    %6805 = vmatprep.subr.mxu0 0.0
    %6806 = vmatpush1.msra.mxu0 0.0
    %6807 = vmatprep.subr.mxu0 0.0
    %6808 = vmatpush1.msra.mxu0 0.0
    %6809 = vmatprep.subr.mxu0 0.0
    %6810 = vmatpush1.msra.mxu0 %v252
    %6811 = vmatprep.subr.mxu0 0.0
    %6812 = vmatpush2.msra.mxu0 0.0
    %6813 = vmatprep.subr.mxu0 0.0
    %6814 = vmatpush2.msra.mxu0 0.0
    %6815 = vmatprep.subr.mxu0 0.0
    %6816 = vmatpush2.msra.mxu0 0.0
    %6817 = vmatprep.subr.mxu0 0.0
    %6818 = vmatpush2.msra.mxu0 0.0
    %6819 = vmatprep.subr.mxu0 0.0
    %6820 = vmatpush2.msra.mxu0 0.0
    %6821 = vmatprep.subr.mxu0 0.0
    %6822 = vmatpush2.msra.mxu0 0.0
    %6823 = vmatprep.subr.mxu0 0.0
    %6824 = vmatpush2.msra.mxu0 0.0
    %6825 = vmatprep.subr.mxu0 0.0
    %6826 = vmatpush2.msra.mxu0 0.0
    %6827 = vmatprep.subr.mxu0 0.0
    %6828 = vmatpush2.msra.mxu0 0.0
    %6829 = vmatprep.subr.mxu0 0.0
    %6830 = vmatpush2.msra.mxu0 0.0
    %6831 = vmatprep.subr.mxu0 0.0
    %6832 = vmatpush2.msra.mxu0 0.0
    %6833 = vmatprep.subr.mxu0 0.0
    %6834 = vmatpush2.msra.mxu0 0.0
    %6835 = vmatprep.subr.mxu0 0.0
    %6836 = vmatpush2.msra.mxu0 0.0
    %6837 = vmatprep.subr.mxu0 0.0
    %6838 = vmatpush2.msra.mxu0 0.0
    %6839 = vmatprep.subr.mxu0 0.0
    %6840 = vmatpush2.msra.mxu0 0.0
    %6841 = vmatprep.subr.mxu0 0.0
    %6842 = vmatpush2.msra.mxu0 0.0
    %6843 = vmatprep.mubr.f32.mxu0 0.0
    %6844 = vmatmul.mubr.f32.gmra.mxu0 %v6777
    %v6845 = vpop.f32.mrf.mxu0
    %v6846 = vadd.f32 0.0, %v6845
    %v6847 = vpop.f32.mrf.mxu0
    %6848 = vdwg.mxu0
    %v6849 = vsel %vm2176, %v6776, 0
    %6851 = vmatprep.subr.mxu0 0.0
    %6852 = vmatpush1.msra.mxu0 0.0
    %6853 = vmatprep.subr.mxu0 0.0
    %6854 = vmatpush1.msra.mxu0 0.0
    %6855 = vmatprep.subr.mxu0 0.0
    %6856 = vmatpush1.msra.mxu0 0.0
    %6857 = vmatprep.subr.mxu0 0.0
    %6858 = vmatpush1.msra.mxu0 0.0
    %6859 = vmatprep.subr.mxu0 0.0
    %6860 = vmatpush1.msra.mxu0 0.0
    %6861 = vmatprep.subr.mxu0 0.0
    %6862 = vmatpush1.msra.mxu0 0.0
    %6863 = vmatprep.subr.mxu0 0.0
    %6864 = vmatpush1.msra.mxu0 0.0
    %6865 = vmatprep.subr.mxu0 0.0
    %6866 = vmatpush1.msra.mxu0 0.0
    %6867 = vmatprep.subr.mxu0 0.0
    %6868 = vmatpush1.msra.mxu0 0.0
    %6869 = vmatprep.subr.mxu0 0.0
    %6870 = vmatpush1.msra.mxu0 0.0
    %6871 = vmatprep.subr.mxu0 0.0
    %6872 = vmatpush1.msra.mxu0 0.0
    %6873 = vmatprep.subr.mxu0 0.0
    %6874 = vmatpush1.msra.mxu0 0.0
    %6875 = vmatprep.subr.mxu0 0.0
    %6876 = vmatpush1.msra.mxu0 0.0
    %6877 = vmatprep.subr.mxu0 0.0
    %6878 = vmatpush1.msra.mxu0 0.0
    %6879 = vmatprep.subr.mxu0 0.0
    %6880 = vmatpush1.msra.mxu0 0.0
    %6881 = vmatprep.subr.mxu0 0.0
    %6882 = vmatpush1.msra.mxu0 %v257
    %6883 = vmatprep.subr.mxu0 0.0
    %6884 = vmatpush2.msra.mxu0 0.0
    %6885 = vmatprep.subr.mxu0 0.0
    %6886 = vmatpush2.msra.mxu0 0.0
    %6887 = vmatprep.subr.mxu0 0.0
    %6888 = vmatpush2.msra.mxu0 0.0
    %6889 = vmatprep.subr.mxu0 0.0
    %6890 = vmatpush2.msra.mxu0 0.0
    %6891 = vmatprep.subr.mxu0 0.0
    %6892 = vmatpush2.msra.mxu0 0.0
    %6893 = vmatprep.subr.mxu0 0.0
    %6894 = vmatpush2.msra.mxu0 0.0
    %6895 = vmatprep.subr.mxu0 0.0
    %6896 = vmatpush2.msra.mxu0 0.0
    %6897 = vmatprep.subr.mxu0 0.0
    %6898 = vmatpush2.msra.mxu0 0.0
    %6899 = vmatprep.subr.mxu0 0.0
    %6900 = vmatpush2.msra.mxu0 0.0
    %6901 = vmatprep.subr.mxu0 0.0
    %6902 = vmatpush2.msra.mxu0 0.0
    %6903 = vmatprep.subr.mxu0 0.0
    %6904 = vmatpush2.msra.mxu0 0.0
    %6905 = vmatprep.subr.mxu0 0.0
    %6906 = vmatpush2.msra.mxu0 0.0
    %6907 = vmatprep.subr.mxu0 0.0
    %6908 = vmatpush2.msra.mxu0 0.0
    %6909 = vmatprep.subr.mxu0 0.0
    %6910 = vmatpush2.msra.mxu0 0.0
    %6911 = vmatprep.subr.mxu0 0.0
    %6912 = vmatpush2.msra.mxu0 0.0
    %6913 = vmatprep.subr.mxu0 0.0
    %6914 = vmatpush2.msra.mxu0 0.0
    %6915 = vmatprep.mubr.f32.mxu0 0.0
    %6916 = vmatmul.mubr.f32.gmra.mxu0 %v6849
    %v6917 = vpop.f32.mrf.mxu0
    %v6918 = vadd.f32 0.0, %v6917
    %v6919 = vpop.f32.mrf.mxu0
    %6920 = vdwg.mxu0
    %v6921 = vlaneseq
    %v6922 = vshrl.u32 %v6921, 7
    %v6923 = vsub.s32 0, %v6922
    %v6924 = vrot.slane %v6428, %v6923
    %v6925 = vlaneseq
    %v6926 = vshrl.u32 %v6925, 7
    %v6927 = vsub.s32 0, %v6926
    %v6928 = vrot.slane %v6435, %v6927
    %v6931 = vsel %vm1316, %v6924, %v6089
    %v6932 = vsel %vm1316, %v6928, %v6090
    %vm6933 = vcmp.eq.s32.totalorder %v158, 5
    %v6934 = vsel %vm6933, %v6748, %v6092
    %v6936 = vsel %vm275, %v6727, 0
    %6938 = vmatprep.subr.mxu0 0.0
    %6939 = vmatpush1.msra.mxu0 0.0
    %6940 = vmatprep.subr.mxu0 0.0
    %6941 = vmatpush1.msra.mxu0 0.0
    %6942 = vmatprep.subr.mxu0 0.0
    %6943 = vmatpush1.msra.mxu0 0.0
    %6944 = vmatprep.subr.mxu0 0.0
    %6945 = vmatpush1.msra.mxu0 0.0
    %6946 = vmatprep.subr.mxu0 0.0
    %6947 = vmatpush1.msra.mxu0 0.0
    %6948 = vmatprep.subr.mxu0 0.0
    %6949 = vmatpush1.msra.mxu0 0.0
    %6950 = vmatprep.subr.mxu0 0.0
    %6951 = vmatpush1.msra.mxu0 0.0
    %6952 = vmatprep.subr.mxu0 0.0
    %6953 = vmatpush1.msra.mxu0 0.0
    %6954 = vmatprep.subr.mxu0 0.0
    %6955 = vmatpush1.msra.mxu0 0.0
    %6956 = vmatprep.subr.mxu0 0.0
    %6957 = vmatpush1.msra.mxu0 0.0
    %6958 = vmatprep.subr.mxu0 0.0
    %6959 = vmatpush1.msra.mxu0 0.0
    %6960 = vmatprep.subr.mxu0 0.0
    %6961 = vmatpush1.msra.mxu0 0.0
    %6962 = vmatprep.subr.mxu0 0.0
    %6963 = vmatpush1.msra.mxu0 %v1758
    %6964 = vmatprep.subr.mxu0 0.0
    %6965 = vmatpush1.msra.mxu0 %v1757
    %6966 = vmatprep.subr.mxu0 0.0
    %6967 = vmatpush1.msra.mxu0 %v1756
    %6968 = vmatprep.subr.mxu0 0.0
    %6969 = vmatpush1.msra.mxu0 %v1755
    %6970 = vmatprep.subr.mxu0 0.0
    %6971 = vmatpush2.msra.mxu0 0.0
    %6972 = vmatprep.subr.mxu0 0.0
    %6973 = vmatpush2.msra.mxu0 0.0
    %6974 = vmatprep.subr.mxu0 0.0
    %6975 = vmatpush2.msra.mxu0 0.0
    %6976 = vmatprep.subr.mxu0 0.0
    %6977 = vmatpush2.msra.mxu0 0.0
    %6978 = vmatprep.subr.mxu0 0.0
    %6979 = vmatpush2.msra.mxu0 0.0
    %6980 = vmatprep.subr.mxu0 0.0
    %6981 = vmatpush2.msra.mxu0 0.0
    %6982 = vmatprep.subr.mxu0 0.0
    %6983 = vmatpush2.msra.mxu0 0.0
    %6984 = vmatprep.subr.mxu0 0.0
    %6985 = vmatpush2.msra.mxu0 0.0
    %6986 = vmatprep.subr.mxu0 0.0
    %6987 = vmatpush2.msra.mxu0 0.0
    %6988 = vmatprep.subr.mxu0 0.0
    %6989 = vmatpush2.msra.mxu0 0.0
    %6990 = vmatprep.subr.mxu0 0.0
    %6991 = vmatpush2.msra.mxu0 0.0
    %6992 = vmatprep.subr.mxu0 0.0
    %6993 = vmatpush2.msra.mxu0 0.0
    %6994 = vmatprep.subr.mxu0 0.0
    %6995 = vmatpush2.msra.mxu0 0.0
    %6996 = vmatprep.subr.mxu0 0.0
    %6997 = vmatpush2.msra.mxu0 0.0
    %6998 = vmatprep.subr.mxu0 0.0
    %6999 = vmatpush2.msra.mxu0 0.0
    %7000 = vmatprep.subr.mxu0 0.0
    %7001 = vmatpush2.msra.mxu0 0.0
    %7002 = vmatprep.mubr.f32.mxu0 0.0
    %7003 = vmatmul.mubr.f32.gmra.mxu0 %v6936
    %v7004 = vpop.f32.mrf.mxu0
    %v7005 = vadd.f32 0.0, %v7004
    %v7006 = vpop.f32.mrf.mxu0
    %7007 = vdwg.mxu0
    %v7010 = vrot.slane %v6918, 7
    %v7011 = vsel %vm453, %v7010, %v6846
    %v7012 = vsel %vm275, %v7011, 0
    %7014 = vmatprep.subr.mxu0 0.0
    %7015 = vmatpush1.msra.mxu0 0.0
    %7016 = vmatprep.subr.mxu0 0.0
    %7017 = vmatpush1.msra.mxu0 0.0
    %7018 = vmatprep.subr.mxu0 0.0
    %7019 = vmatpush1.msra.mxu0 0.0
    %7020 = vmatprep.subr.mxu0 0.0
    %7021 = vmatpush1.msra.mxu0 0.0
    %7022 = vmatprep.subr.mxu0 0.0
    %7023 = vmatpush1.msra.mxu0 0.0
    %7024 = vmatprep.subr.mxu0 0.0
    %7025 = vmatpush1.msra.mxu0 0.0
    %7026 = vmatprep.subr.mxu0 0.0
    %7027 = vmatpush1.msra.mxu0 0.0
    %7028 = vmatprep.subr.mxu0 0.0
    %7029 = vmatpush1.msra.mxu0 0.0
    %7030 = vmatprep.subr.mxu0 0.0
    %7031 = vmatpush1.msra.mxu0 0.0
    %7032 = vmatprep.subr.mxu0 0.0
    %7033 = vmatpush1.msra.mxu0 0.0
    %7034 = vmatprep.subr.mxu0 0.0
    %7035 = vmatpush1.msra.mxu0 0.0
    %7036 = vmatprep.subr.mxu0 0.0
    %7037 = vmatpush1.msra.mxu0 0.0
    %7038 = vmatprep.subr.mxu0 0.0
    %7039 = vmatpush1.msra.mxu0 %v1754
    %7040 = vmatprep.subr.mxu0 0.0
    %7041 = vmatpush1.msra.mxu0 %v1753
    %7042 = vmatprep.subr.mxu0 0.0
    %7043 = vmatpush1.msra.mxu0 %v1752
    %7044 = vmatprep.subr.mxu0 0.0
    %7045 = vmatpush1.msra.mxu0 %v1751
    %7046 = vmatprep.subr.mxu0 0.0
    %7047 = vmatpush2.msra.mxu0 0.0
    %7048 = vmatprep.subr.mxu0 0.0
    %7049 = vmatpush2.msra.mxu0 0.0
    %7050 = vmatprep.subr.mxu0 0.0
    %7051 = vmatpush2.msra.mxu0 0.0
    %7052 = vmatprep.subr.mxu0 0.0
    %7053 = vmatpush2.msra.mxu0 0.0
    %7054 = vmatprep.subr.mxu0 0.0
    %7055 = vmatpush2.msra.mxu0 0.0
    %7056 = vmatprep.subr.mxu0 0.0
    %7057 = vmatpush2.msra.mxu0 0.0
    %7058 = vmatprep.subr.mxu0 0.0
    %7059 = vmatpush2.msra.mxu0 0.0
    %7060 = vmatprep.subr.mxu0 0.0
    %7061 = vmatpush2.msra.mxu0 0.0
    %7062 = vmatprep.subr.mxu0 0.0
    %7063 = vmatpush2.msra.mxu0 0.0
    %7064 = vmatprep.subr.mxu0 0.0
    %7065 = vmatpush2.msra.mxu0 0.0
    %7066 = vmatprep.subr.mxu0 0.0
    %7067 = vmatpush2.msra.mxu0 0.0
    %7068 = vmatprep.subr.mxu0 0.0
    %7069 = vmatpush2.msra.mxu0 0.0
    %7070 = vmatprep.subr.mxu0 0.0
    %7071 = vmatpush2.msra.mxu0 0.0
    %7072 = vmatprep.subr.mxu0 0.0
    %7073 = vmatpush2.msra.mxu0 0.0
    %7074 = vmatprep.subr.mxu0 0.0
    %7075 = vmatpush2.msra.mxu0 0.0
    %7076 = vmatprep.subr.mxu0 0.0
    %7077 = vmatpush2.msra.mxu0 0.0
    %7078 = vmatprep.mubr.f32.mxu0 0.0
    %7079 = vmatmul.mubr.f32.gmra.mxu0 %v7012
    %v7080 = vpop.f32.mrf.mxu0
    %v7081 = vadd.f32 %v7005, %v7080
    %v7082 = vpop.f32.mrf.mxu0
    %7083 = vdwg.mxu0
    %v7084 = vadd.f32 %v7081, %v1764
    %v7085 = vtanh.pop %v7084
    %v7086 = vxor.u32 %v7084, 2147483648
    %v7087 = vmul.f32 %v7086, 1.442695
    %v7088 = vpow.pop %v7087
    %v7089 = vadd.f32 %v7088, 1.0
    %v7090 = vrcp.pop %v7089
    %v7091 = vmul.f32 1.0, %v7090
    %v7092 = vsel %vm163, %v7085, %v7091
    %v7093 = vmul.f32 %v7092, %v6261
    %7095 = vrot.lane.b32.xlu0 %v7092, 64
    %v7096 = vpop.permute.xlu0 %7095
    %v7098 = vmul.f32 %v7092, %v7096
    %7100 = vrot.lane.b32.xlu0 %v7098, 32
    %v7101 = vpop.permute.xlu0 %7100
    %v7103 = vadd.f32 %v7093, %v7101
    %v7104 = vtanh.pop %v7103
    %7106 = vrot.lane.b32.xlu0 %v7104, 64
    %v7107 = vpop.permute.xlu0 %7106
    %v7109 = vmul.f32 %v7092, %v7107
    %7111 = vrot.lane.b32.xlu0 %v7109, 32
    %v7112 = vpop.permute.xlu0 %7111
    %v7113 = vsel %vm275, %v7112, 0
    %7115 = vmatprep.subr.mxu0 0.0
    %7116 = vmatpush1.msra.mxu0 0.0
    %7117 = vmatprep.subr.mxu0 0.0
    %7118 = vmatpush1.msra.mxu0 0.0
    %7119 = vmatprep.subr.mxu0 0.0
    %7120 = vmatpush1.msra.mxu0 0.0
    %7121 = vmatprep.subr.mxu0 0.0
    %7122 = vmatpush1.msra.mxu0 0.0
    %7123 = vmatprep.subr.mxu0 0.0
    %7124 = vmatpush1.msra.mxu0 0.0
    %7125 = vmatprep.subr.mxu0 0.0
    %7126 = vmatpush1.msra.mxu0 0.0
    %7127 = vmatprep.subr.mxu0 0.0
    %7128 = vmatpush1.msra.mxu0 0.0
    %7129 = vmatprep.subr.mxu0 0.0
    %7130 = vmatpush1.msra.mxu0 0.0
    %7131 = vmatprep.subr.mxu0 0.0
    %7132 = vmatpush1.msra.mxu0 0.0
    %7133 = vmatprep.subr.mxu0 0.0
    %7134 = vmatpush1.msra.mxu0 0.0
    %7135 = vmatprep.subr.mxu0 0.0
    %7136 = vmatpush1.msra.mxu0 0.0
    %7137 = vmatprep.subr.mxu0 0.0
    %7138 = vmatpush1.msra.mxu0 0.0
    %7139 = vmatprep.subr.mxu0 0.0
    %7140 = vmatpush1.msra.mxu0 %v1769
    %7141 = vmatprep.subr.mxu0 0.0
    %7142 = vmatpush1.msra.mxu0 %v1768
    %7143 = vmatprep.subr.mxu0 0.0
    %7144 = vmatpush1.msra.mxu0 %v1767
    %7145 = vmatprep.subr.mxu0 0.0
    %7146 = vmatpush1.msra.mxu0 %v1766
    %7147 = vmatprep.subr.mxu0 0.0
    %7148 = vmatpush2.msra.mxu0 0.0
    %7149 = vmatprep.subr.mxu0 0.0
    %7150 = vmatpush2.msra.mxu0 0.0
    %7151 = vmatprep.subr.mxu0 0.0
    %7152 = vmatpush2.msra.mxu0 0.0
    %7153 = vmatprep.subr.mxu0 0.0
    %7154 = vmatpush2.msra.mxu0 0.0
    %7155 = vmatprep.subr.mxu0 0.0
    %7156 = vmatpush2.msra.mxu0 0.0
    %7157 = vmatprep.subr.mxu0 0.0
    %7158 = vmatpush2.msra.mxu0 0.0
    %7159 = vmatprep.subr.mxu0 0.0
    %7160 = vmatpush2.msra.mxu0 0.0
    %7161 = vmatprep.subr.mxu0 0.0
    %7162 = vmatpush2.msra.mxu0 0.0
    %7163 = vmatprep.subr.mxu0 0.0
    %7164 = vmatpush2.msra.mxu0 0.0
    %7165 = vmatprep.subr.mxu0 0.0
    %7166 = vmatpush2.msra.mxu0 0.0
    %7167 = vmatprep.subr.mxu0 0.0
    %7168 = vmatpush2.msra.mxu0 0.0
    %7169 = vmatprep.subr.mxu0 0.0
    %7170 = vmatpush2.msra.mxu0 0.0
    %7171 = vmatprep.subr.mxu0 0.0
    %7172 = vmatpush2.msra.mxu0 0.0
    %7173 = vmatprep.subr.mxu0 0.0
    %7174 = vmatpush2.msra.mxu0 0.0
    %7175 = vmatprep.subr.mxu0 0.0
    %7176 = vmatpush2.msra.mxu0 0.0
    %7177 = vmatprep.subr.mxu0 0.0
    %7178 = vmatpush2.msra.mxu0 0.0
    %7179 = vmatprep.mubr.f32.mxu0 0.0
    %7180 = vmatmul.mubr.f32.gmra.mxu0 %v7113
    %v7181 = vpop.f32.mrf.mxu0
    %v7182 = vadd.f32 %v1775, %v7181
    %v7183 = vpop.f32.mrf.mxu0
    %7184 = vdwg.mxu0
    %v7187 = vunpack.c.l.s4 1966171168
    %v7188 = vunpack.c.0.s8 %v7187
    %v7189 = vlaneseq
    %v7190 = vshrl.u32 %v7189, 7
    %v7191 = vsub.s32 %v7188, %v7190
    %v7192 = vrot.slane %v7182, %v7191
    %v7193 = vcombine.high %v7192, %v7192
    %v7195 = vunpack.c.l.s4 1966171168
    %v7196 = vunpack.c.0.s8 %v7195
    %v7197 = vlaneseq
    %v7198 = vshrl.u32 %v7197, 7
    %v7199 = vsub.s32 %v7196, %v7198
    %v7200 = vrot.slane %v7192, %v7199
    %v7202 = vunpack.c.l.s4 1966171168
    %v7203 = vunpack.c.0.s8 %v7202
    %v7204 = vlaneseq
    %v7205 = vshrl.u32 %v7204, 7
    %v7206 = vsub.s32 %v7203, %v7205
    %v7207 = vrot.slane %v7193, %v7206
    %v7208 = vlaneseq
    %v7209 = vshrl.u32 %v7208, 7
    %v7210 = vsub.s32 0, %v7209
    %v7211 = vrot.slane %v7200, %v7210
    %v7212 = vlaneseq
    %v7213 = vshrl.u32 %v7212, 7
    %v7214 = vsub.s32 0, %v7213
    %v7215 = vrot.slane %v7207, %v7214
    %v7218 = vadd.f32 %v7211, %v1743
    %v7219 = vadd.f32 %v7215, %v1748
    %v7220 = vtanh.pop %v7218
    %v7221 = vtanh.pop %v7219
    %v7222 = vmul.f32 %v7220, %v1782
    %v7223 = vmul.f32 %v7221, %v1782
    %v7224 = vsel %vm275, %v7222, 0.0
    %7225 = vadd.xlane.f32.xlu0 %v7224
    %v7226 = vpop.xlane.xlu0 %7225
    %v7227 = vsel %vm275, %v7223, 0.0
    %7228 = vadd.xlane.f32.xlu0 %v7227
    %v7229 = vpop.xlane.xlu0 %7228
    %vm7230 = vcmp.gt.f32.partialorder %v6753, 0.0
    %v7233 = vlaneseq
    %v7234 = vshrl.u32 %v7233, 7
    %v7235 = vsub.s32 %v158, %v7234
    %v7236 = vrot.slane %v7226, %v7235
    %v7237 = vlaneseq
    %v7238 = vshrl.u32 %v7237, 7
    %v7239 = vsub.s32 %v158, %v7238
    %v7240 = vrot.slane %v7229, %v7239
    %v7241 = vsel %vm453, %v7240, %v7236
    %v7243 = vsel %vm7230, %v7241, -1e+30
    %v7244 = vsel %vm2112, %v7243, -inf
    %7245 = vmax.xlane.f32.xlu0 %v7244
    %v7246 = vpop.xlane.xlu0 %7245
    %v7247 = vsub.f32 %v7243, %v7246
    %v7248 = vmul.f32 %v7247, 1.442695
    %v7249 = vpow.pop %v7248
    %v7250 = vsel %vm2112, %v7249, 0.0
    %7251 = vadd.xlane.f32.xlu0 %v7250
    %v7252 = vpop.xlane.xlu0 %7251
    %v7253 = vrcp.pop %v7252
    %v7254 = vmul.f32 %v7249, %v7253
    %v7257 = vunpack.c.l.s4 1966171168
    %v7258 = vunpack.c.0.s8 %v7257
    %v7259 = vlaneseq
    %v7260 = vshrl.u32 %v7259, 7
    %v7261 = vsub.s32 %v7258, %v7260
    %v7262 = vrot.slane %v7254, %v7261
    %v7263 = vcombine.high %v7262, %v7262
    %v7265 = vunpack.c.l.s4 1966171168
    %v7266 = vunpack.c.0.s8 %v7265
    %v7267 = vlaneseq
    %v7268 = vshrl.u32 %v7267, 7
    %v7269 = vsub.s32 %v7266, %v7268
    %v7270 = vrot.slane %v7262, %v7269
    %v7272 = vunpack.c.l.s4 1966171168
    %v7273 = vunpack.c.0.s8 %v7272
    %v7274 = vlaneseq
    %v7275 = vshrl.u32 %v7274, 7
    %v7276 = vsub.s32 %v7273, %v7275
    %v7277 = vrot.slane %v7263, %v7276
    %v7278 = vsel %vm2176, %v7270, 0
    %7280 = vmatprep.subr.mxu0 0.0
    %7281 = vmatpush1.msra.mxu0 0.0
    %7282 = vmatprep.subr.mxu0 0.0
    %7283 = vmatpush1.msra.mxu0 0.0
    %7284 = vmatprep.subr.mxu0 0.0
    %7285 = vmatpush1.msra.mxu0 0.0
    %7286 = vmatprep.subr.mxu0 0.0
    %7287 = vmatpush1.msra.mxu0 0.0
    %7288 = vmatprep.subr.mxu0 0.0
    %7289 = vmatpush1.msra.mxu0 0.0
    %7290 = vmatprep.subr.mxu0 0.0
    %7291 = vmatpush1.msra.mxu0 0.0
    %7292 = vmatprep.subr.mxu0 0.0
    %7293 = vmatpush1.msra.mxu0 0.0
    %7294 = vmatprep.subr.mxu0 0.0
    %7295 = vmatpush1.msra.mxu0 0.0
    %7296 = vmatprep.subr.mxu0 0.0
    %7297 = vmatpush1.msra.mxu0 0.0
    %7298 = vmatprep.subr.mxu0 0.0
    %7299 = vmatpush1.msra.mxu0 0.0
    %7300 = vmatprep.subr.mxu0 0.0
    %7301 = vmatpush1.msra.mxu0 0.0
    %7302 = vmatprep.subr.mxu0 0.0
    %7303 = vmatpush1.msra.mxu0 0.0
    %7304 = vmatprep.subr.mxu0 0.0
    %7305 = vmatpush1.msra.mxu0 0.0
    %7306 = vmatprep.subr.mxu0 0.0
    %7307 = vmatpush1.msra.mxu0 0.0
    %7308 = vmatprep.subr.mxu0 0.0
    %7309 = vmatpush1.msra.mxu0 0.0
    %7310 = vmatprep.subr.mxu0 0.0
    %7311 = vmatpush1.msra.mxu0 %v1743
    %7312 = vmatprep.subr.mxu0 0.0
    %7313 = vmatpush2.msra.mxu0 0.0
    %7314 = vmatprep.subr.mxu0 0.0
    %7315 = vmatpush2.msra.mxu0 0.0
    %7316 = vmatprep.subr.mxu0 0.0
    %7317 = vmatpush2.msra.mxu0 0.0
    %7318 = vmatprep.subr.mxu0 0.0
    %7319 = vmatpush2.msra.mxu0 0.0
    %7320 = vmatprep.subr.mxu0 0.0
    %7321 = vmatpush2.msra.mxu0 0.0
    %7322 = vmatprep.subr.mxu0 0.0
    %7323 = vmatpush2.msra.mxu0 0.0
    %7324 = vmatprep.subr.mxu0 0.0
    %7325 = vmatpush2.msra.mxu0 0.0
    %7326 = vmatprep.subr.mxu0 0.0
    %7327 = vmatpush2.msra.mxu0 0.0
    %7328 = vmatprep.subr.mxu0 0.0
    %7329 = vmatpush2.msra.mxu0 0.0
    %7330 = vmatprep.subr.mxu0 0.0
    %7331 = vmatpush2.msra.mxu0 0.0
    %7332 = vmatprep.subr.mxu0 0.0
    %7333 = vmatpush2.msra.mxu0 0.0
    %7334 = vmatprep.subr.mxu0 0.0
    %7335 = vmatpush2.msra.mxu0 0.0
    %7336 = vmatprep.subr.mxu0 0.0
    %7337 = vmatpush2.msra.mxu0 0.0
    %7338 = vmatprep.subr.mxu0 0.0
    %7339 = vmatpush2.msra.mxu0 0.0
    %7340 = vmatprep.subr.mxu0 0.0
    %7341 = vmatpush2.msra.mxu0 0.0
    %7342 = vmatprep.subr.mxu0 0.0
    %7343 = vmatpush2.msra.mxu0 0.0
    %7344 = vmatprep.mubr.f32.mxu0 0.0
    %7345 = vmatmul.mubr.f32.gmra.mxu0 %v7278
    %v7346 = vpop.f32.mrf.mxu0
    %v7347 = vadd.f32 0.0, %v7346
    %v7348 = vpop.f32.mrf.mxu0
    %7349 = vdwg.mxu0
    %v7350 = vsel %vm2176, %v7277, 0
    %7352 = vmatprep.subr.mxu0 0.0
    %7353 = vmatpush1.msra.mxu0 0.0
    %7354 = vmatprep.subr.mxu0 0.0
    %7355 = vmatpush1.msra.mxu0 0.0
    %7356 = vmatprep.subr.mxu0 0.0
    %7357 = vmatpush1.msra.mxu0 0.0
    %7358 = vmatprep.subr.mxu0 0.0
    %7359 = vmatpush1.msra.mxu0 0.0
    %7360 = vmatprep.subr.mxu0 0.0
    %7361 = vmatpush1.msra.mxu0 0.0
    %7362 = vmatprep.subr.mxu0 0.0
    %7363 = vmatpush1.msra.mxu0 0.0
    %7364 = vmatprep.subr.mxu0 0.0
    %7365 = vmatpush1.msra.mxu0 0.0
    %7366 = vmatprep.subr.mxu0 0.0
    %7367 = vmatpush1.msra.mxu0 0.0
    %7368 = vmatprep.subr.mxu0 0.0
    %7369 = vmatpush1.msra.mxu0 0.0
    %7370 = vmatprep.subr.mxu0 0.0
    %7371 = vmatpush1.msra.mxu0 0.0
    %7372 = vmatprep.subr.mxu0 0.0
    %7373 = vmatpush1.msra.mxu0 0.0
    %7374 = vmatprep.subr.mxu0 0.0
    %7375 = vmatpush1.msra.mxu0 0.0
    %7376 = vmatprep.subr.mxu0 0.0
    %7377 = vmatpush1.msra.mxu0 0.0
    %7378 = vmatprep.subr.mxu0 0.0
    %7379 = vmatpush1.msra.mxu0 0.0
    %7380 = vmatprep.subr.mxu0 0.0
    %7381 = vmatpush1.msra.mxu0 0.0
    %7382 = vmatprep.subr.mxu0 0.0
    %7383 = vmatpush1.msra.mxu0 %v1748
    %7384 = vmatprep.subr.mxu0 0.0
    %7385 = vmatpush2.msra.mxu0 0.0
    %7386 = vmatprep.subr.mxu0 0.0
    %7387 = vmatpush2.msra.mxu0 0.0
    %7388 = vmatprep.subr.mxu0 0.0
    %7389 = vmatpush2.msra.mxu0 0.0
    %7390 = vmatprep.subr.mxu0 0.0
    %7391 = vmatpush2.msra.mxu0 0.0
    %7392 = vmatprep.subr.mxu0 0.0
    %7393 = vmatpush2.msra.mxu0 0.0
    %7394 = vmatprep.subr.mxu0 0.0
    %7395 = vmatpush2.msra.mxu0 0.0
    %7396 = vmatprep.subr.mxu0 0.0
    %7397 = vmatpush2.msra.mxu0 0.0
    %7398 = vmatprep.subr.mxu0 0.0
    %7399 = vmatpush2.msra.mxu0 0.0
    %7400 = vmatprep.subr.mxu0 0.0
    %7401 = vmatpush2.msra.mxu0 0.0
    %7402 = vmatprep.subr.mxu0 0.0
    %7403 = vmatpush2.msra.mxu0 0.0
    %7404 = vmatprep.subr.mxu0 0.0
    %7405 = vmatpush2.msra.mxu0 0.0
    %7406 = vmatprep.subr.mxu0 0.0
    %7407 = vmatpush2.msra.mxu0 0.0
    %7408 = vmatprep.subr.mxu0 0.0
    %7409 = vmatpush2.msra.mxu0 0.0
    %7410 = vmatprep.subr.mxu0 0.0
    %7411 = vmatpush2.msra.mxu0 0.0
    %7412 = vmatprep.subr.mxu0 0.0
    %7413 = vmatpush2.msra.mxu0 0.0
    %7414 = vmatprep.subr.mxu0 0.0
    %7415 = vmatpush2.msra.mxu0 0.0
    %7416 = vmatprep.mubr.f32.mxu0 0.0
    %7417 = vmatmul.mubr.f32.gmra.mxu0 %v7350
    %v7418 = vpop.f32.mrf.mxu0
    %v7419 = vadd.f32 0.0, %v7418
    %v7420 = vpop.f32.mrf.mxu0
    %7421 = vdwg.mxu0
    %7422 = vmatprep.subr.mxu0 0.0
    %7423 = vmatpush1.msra.mxu0 0.0
    %7424 = vmatprep.subr.mxu0 0.0
    %7425 = vmatpush1.msra.mxu0 0.0
    %7426 = vmatprep.subr.mxu0 0.0
    %7427 = vmatpush1.msra.mxu0 0.0
    %7428 = vmatprep.subr.mxu0 0.0
    %7429 = vmatpush1.msra.mxu0 0.0
    %7430 = vmatprep.subr.mxu0 0.0
    %7431 = vmatpush1.msra.mxu0 0.0
    %7432 = vmatprep.subr.mxu0 0.0
    %7433 = vmatpush1.msra.mxu0 0.0
    %7434 = vmatprep.subr.mxu0 0.0
    %7435 = vmatpush1.msra.mxu0 0.0
    %7436 = vmatprep.subr.mxu0 0.0
    %7437 = vmatpush1.msra.mxu0 0.0
    %7438 = vmatprep.subr.mxu0 0.0
    %7439 = vmatpush1.msra.mxu0 0.0
    %7440 = vmatprep.subr.mxu0 0.0
    %7441 = vmatpush1.msra.mxu0 0.0
    %7442 = vmatprep.subr.mxu0 0.0
    %7443 = vmatpush1.msra.mxu0 0.0
    %7444 = vmatprep.subr.mxu0 0.0
    %7445 = vmatpush1.msra.mxu0 0.0
    %7446 = vmatprep.subr.mxu0 0.0
    %7447 = vmatpush1.msra.mxu0 %v1791
    %7448 = vmatprep.subr.mxu0 0.0
    %7449 = vmatpush1.msra.mxu0 %v1790
    %7450 = vmatprep.subr.mxu0 0.0
    %7451 = vmatpush1.msra.mxu0 %v1789
    %7452 = vmatprep.subr.mxu0 0.0
    %7453 = vmatpush1.msra.mxu0 %v1788
    %7454 = vmatprep.subr.mxu0 0.0
    %7455 = vmatpush2.msra.mxu0 0.0
    %7456 = vmatprep.subr.mxu0 0.0
    %7457 = vmatpush2.msra.mxu0 0.0
    %7458 = vmatprep.subr.mxu0 0.0
    %7459 = vmatpush2.msra.mxu0 0.0
    %7460 = vmatprep.subr.mxu0 0.0
    %7461 = vmatpush2.msra.mxu0 0.0
    %7462 = vmatprep.subr.mxu0 0.0
    %7463 = vmatpush2.msra.mxu0 0.0
    %7464 = vmatprep.subr.mxu0 0.0
    %7465 = vmatpush2.msra.mxu0 0.0
    %7466 = vmatprep.subr.mxu0 0.0
    %7467 = vmatpush2.msra.mxu0 0.0
    %7468 = vmatprep.subr.mxu0 0.0
    %7469 = vmatpush2.msra.mxu0 0.0
    %7470 = vmatprep.subr.mxu0 0.0
    %7471 = vmatpush2.msra.mxu0 0.0
    %7472 = vmatprep.subr.mxu0 0.0
    %7473 = vmatpush2.msra.mxu0 0.0
    %7474 = vmatprep.subr.mxu0 0.0
    %7475 = vmatpush2.msra.mxu0 0.0
    %7476 = vmatprep.subr.mxu0 0.0
    %7477 = vmatpush2.msra.mxu0 0.0
    %7478 = vmatprep.subr.mxu0 0.0
    %7479 = vmatpush2.msra.mxu0 0.0
    %7480 = vmatprep.subr.mxu0 0.0
    %7481 = vmatpush2.msra.mxu0 0.0
    %7482 = vmatprep.subr.mxu0 0.0
    %7483 = vmatpush2.msra.mxu0 0.0
    %7484 = vmatprep.subr.mxu0 0.0
    %7485 = vmatpush2.msra.mxu0 0.0
    %7486 = vmatprep.mubr.f32.mxu0 0.0
    %7487 = vmatmul.mubr.f32.gmra.mxu0 %v7113
    %v7488 = vpop.f32.mrf.mxu0
    %v7489 = vadd.f32 0.0, %v7488
    %v7490 = vpop.f32.mrf.mxu0
    %7491 = vdwg.mxu0
    %v7494 = vrot.slane %v7419, 7
    %v7495 = vsel %vm453, %v7494, %v7347
    %v7496 = vsel %vm275, %v7495, 0
    %7498 = vmatprep.subr.mxu0 0.0
    %7499 = vmatpush1.msra.mxu0 0.0
    %7500 = vmatprep.subr.mxu0 0.0
    %7501 = vmatpush1.msra.mxu0 0.0
    %7502 = vmatprep.subr.mxu0 0.0
    %7503 = vmatpush1.msra.mxu0 0.0
    %7504 = vmatprep.subr.mxu0 0.0
    %7505 = vmatpush1.msra.mxu0 0.0
    %7506 = vmatprep.subr.mxu0 0.0
    %7507 = vmatpush1.msra.mxu0 0.0
    %7508 = vmatprep.subr.mxu0 0.0
    %7509 = vmatpush1.msra.mxu0 0.0
    %7510 = vmatprep.subr.mxu0 0.0
    %7511 = vmatpush1.msra.mxu0 0.0
    %7512 = vmatprep.subr.mxu0 0.0
    %7513 = vmatpush1.msra.mxu0 0.0
    %7514 = vmatprep.subr.mxu0 0.0
    %7515 = vmatpush1.msra.mxu0 0.0
    %7516 = vmatprep.subr.mxu0 0.0
    %7517 = vmatpush1.msra.mxu0 0.0
    %7518 = vmatprep.subr.mxu0 0.0
    %7519 = vmatpush1.msra.mxu0 0.0
    %7520 = vmatprep.subr.mxu0 0.0
    %7521 = vmatpush1.msra.mxu0 0.0
    %7522 = vmatprep.subr.mxu0 0.0
    %7523 = vmatpush1.msra.mxu0 %v1787
    %7524 = vmatprep.subr.mxu0 0.0
    %7525 = vmatpush1.msra.mxu0 %v1786
    %7526 = vmatprep.subr.mxu0 0.0
    %7527 = vmatpush1.msra.mxu0 %v1785
    %7528 = vmatprep.subr.mxu0 0.0
    %7529 = vmatpush1.msra.mxu0 %v1784
    %7530 = vmatprep.subr.mxu0 0.0
    %7531 = vmatpush2.msra.mxu0 0.0
    %7532 = vmatprep.subr.mxu0 0.0
    %7533 = vmatpush2.msra.mxu0 0.0
    %7534 = vmatprep.subr.mxu0 0.0
    %7535 = vmatpush2.msra.mxu0 0.0
    %7536 = vmatprep.subr.mxu0 0.0
    %7537 = vmatpush2.msra.mxu0 0.0
    %7538 = vmatprep.subr.mxu0 0.0
    %7539 = vmatpush2.msra.mxu0 0.0
    %7540 = vmatprep.subr.mxu0 0.0
    %7541 = vmatpush2.msra.mxu0 0.0
    %7542 = vmatprep.subr.mxu0 0.0
    %7543 = vmatpush2.msra.mxu0 0.0
    %7544 = vmatprep.subr.mxu0 0.0
    %7545 = vmatpush2.msra.mxu0 0.0
    %7546 = vmatprep.subr.mxu0 0.0
    %7547 = vmatpush2.msra.mxu0 0.0
    %7548 = vmatprep.subr.mxu0 0.0
    %7549 = vmatpush2.msra.mxu0 0.0
    %7550 = vmatprep.subr.mxu0 0.0
    %7551 = vmatpush2.msra.mxu0 0.0
    %7552 = vmatprep.subr.mxu0 0.0
    %7553 = vmatpush2.msra.mxu0 0.0
    %7554 = vmatprep.subr.mxu0 0.0
    %7555 = vmatpush2.msra.mxu0 0.0
    %7556 = vmatprep.subr.mxu0 0.0
    %7557 = vmatpush2.msra.mxu0 0.0
    %7558 = vmatprep.subr.mxu0 0.0
    %7559 = vmatpush2.msra.mxu0 0.0
    %7560 = vmatprep.subr.mxu0 0.0
    %7561 = vmatpush2.msra.mxu0 0.0
    %7562 = vmatprep.mubr.f32.mxu0 0.0
    %7563 = vmatmul.mubr.f32.gmra.mxu0 %v7496
    %v7564 = vpop.f32.mrf.mxu0
    %v7565 = vadd.f32 %v7489, %v7564
    %v7566 = vpop.f32.mrf.mxu0
    %7567 = vdwg.mxu0
    %v7568 = vadd.f32 %v7565, %v1797
    %v7569 = vtanh.pop %v7568
    %v7570 = vmul.f32 %v7254, %v6753
    %v7571 = vsel %vm2112, %v7570, -inf
    %7572 = vmax.xlane.f32.xlu0 %v7571
    %v7573 = vpop.xlane.xlu0 %7572
    %vm7574 = vcmp.eq.f32.partialorder %v7570, %v7573
    %v7575 = vsel %vm7574, %v158, 8
    %v7576 = vsel %vm2112, %v7575, 2147483647
    %v7577 = vand.u32 %v7576, 65535
    %v7578 = vshra.s32 %v7576, 16
    %v7579 = vcvt.s32.f32 %v7577
    %v7580 = vcvt.s32.f32 %v7578
    %7581 = vmin.xlane.f32.xlu0 %v7580
    %v7582 = vpop.xlane.xlu0 %7581
    %vm7583 = vcmp.eq.f32.partialorder %v7580, %v7582
    %v7584 = vsel %vm7583, %v7579, inf
    %7585 = vmin.xlane.f32.xlu0 %v7584
    %v7586 = vpop.xlane.xlu0 %7585
    %v7587 = vcvt.f32.s32 %v7586
    %v7588 = vcvt.f32.s32 %v7582
    %v7589 = vshll.u32 %v7588, 16
    %v7590 = vadd.s32 %v7589, %v7587
    %vm7591 = vcmp.eq.s32.totalorder %v158, %v7590
    %v7592 = vsel %vm7591, 1, 0
    %v7593 = vcvt.s32.f32 %v7592
    %v7594 = vsub.f32 1.0, %v7593
    %v7595 = vmul.f32 %v6753, %v7594
    %v7598 = vunpack.c.l.s4 1966171168
    %v7599 = vunpack.c.0.s8 %v7598
    %v7600 = vlaneseq
    %v7601 = vshrl.u32 %v7600, 7
    %v7602 = vsub.s32 %v7599, %v7601
    %v7603 = vrot.slane %v7593, %v7602
    %v7604 = vcombine.high %v7603, %v7603
    %v7606 = vunpack.c.l.s4 1966171168
    %v7607 = vunpack.c.0.s8 %v7606
    %v7608 = vlaneseq
    %v7609 = vshrl.u32 %v7608, 7
    %v7610 = vsub.s32 %v7607, %v7609
    %v7611 = vrot.slane %v7603, %v7610
    %v7613 = vunpack.c.l.s4 1966171168
    %v7614 = vunpack.c.0.s8 %v7613
    %v7615 = vlaneseq
    %v7616 = vshrl.u32 %v7615, 7
    %v7617 = vsub.s32 %v7614, %v7616
    %v7618 = vrot.slane %v7604, %v7617
    %v7619 = vsel %vm2176, %v7611, 0
    %7621 = vmatprep.subr.mxu0 0.0
    %7622 = vmatpush1.msra.mxu0 0.0
    %7623 = vmatprep.subr.mxu0 0.0
    %7624 = vmatpush1.msra.mxu0 0.0
    %7625 = vmatprep.subr.mxu0 0.0
    %7626 = vmatpush1.msra.mxu0 0.0
    %7627 = vmatprep.subr.mxu0 0.0
    %7628 = vmatpush1.msra.mxu0 0.0
    %7629 = vmatprep.subr.mxu0 0.0
    %7630 = vmatpush1.msra.mxu0 0.0
    %7631 = vmatprep.subr.mxu0 0.0
    %7632 = vmatpush1.msra.mxu0 0.0
    %7633 = vmatprep.subr.mxu0 0.0
    %7634 = vmatpush1.msra.mxu0 0.0
    %7635 = vmatprep.subr.mxu0 0.0
    %7636 = vmatpush1.msra.mxu0 0.0
    %7637 = vmatprep.subr.mxu0 0.0
    %7638 = vmatpush1.msra.mxu0 0.0
    %7639 = vmatprep.subr.mxu0 0.0
    %7640 = vmatpush1.msra.mxu0 0.0
    %7641 = vmatprep.subr.mxu0 0.0
    %7642 = vmatpush1.msra.mxu0 0.0
    %7643 = vmatprep.subr.mxu0 0.0
    %7644 = vmatpush1.msra.mxu0 0.0
    %7645 = vmatprep.subr.mxu0 0.0
    %7646 = vmatpush1.msra.mxu0 0.0
    %7647 = vmatprep.subr.mxu0 0.0
    %7648 = vmatpush1.msra.mxu0 0.0
    %7649 = vmatprep.subr.mxu0 0.0
    %7650 = vmatpush1.msra.mxu0 0.0
    %7651 = vmatprep.subr.mxu0 0.0
    %7652 = vmatpush1.msra.mxu0 %v252
    %7653 = vmatprep.subr.mxu0 0.0
    %7654 = vmatpush2.msra.mxu0 0.0
    %7655 = vmatprep.subr.mxu0 0.0
    %7656 = vmatpush2.msra.mxu0 0.0
    %7657 = vmatprep.subr.mxu0 0.0
    %7658 = vmatpush2.msra.mxu0 0.0
    %7659 = vmatprep.subr.mxu0 0.0
    %7660 = vmatpush2.msra.mxu0 0.0
    %7661 = vmatprep.subr.mxu0 0.0
    %7662 = vmatpush2.msra.mxu0 0.0
    %7663 = vmatprep.subr.mxu0 0.0
    %7664 = vmatpush2.msra.mxu0 0.0
    %7665 = vmatprep.subr.mxu0 0.0
    %7666 = vmatpush2.msra.mxu0 0.0
    %7667 = vmatprep.subr.mxu0 0.0
    %7668 = vmatpush2.msra.mxu0 0.0
    %7669 = vmatprep.subr.mxu0 0.0
    %7670 = vmatpush2.msra.mxu0 0.0
    %7671 = vmatprep.subr.mxu0 0.0
    %7672 = vmatpush2.msra.mxu0 0.0
    %7673 = vmatprep.subr.mxu0 0.0
    %7674 = vmatpush2.msra.mxu0 0.0
    %7675 = vmatprep.subr.mxu0 0.0
    %7676 = vmatpush2.msra.mxu0 0.0
    %7677 = vmatprep.subr.mxu0 0.0
    %7678 = vmatpush2.msra.mxu0 0.0
    %7679 = vmatprep.subr.mxu0 0.0
    %7680 = vmatpush2.msra.mxu0 0.0
    %7681 = vmatprep.subr.mxu0 0.0
    %7682 = vmatpush2.msra.mxu0 0.0
    %7683 = vmatprep.subr.mxu0 0.0
    %7684 = vmatpush2.msra.mxu0 0.0
    %7685 = vmatprep.mubr.f32.mxu0 0.0
    %7686 = vmatmul.mubr.f32.gmra.mxu0 %v7619
    %v7687 = vpop.f32.mrf.mxu0
    %v7688 = vadd.f32 0.0, %v7687
    %v7689 = vpop.f32.mrf.mxu0
    %7690 = vdwg.mxu0
    %v7691 = vsel %vm2176, %v7618, 0
    %7693 = vmatprep.subr.mxu0 0.0
    %7694 = vmatpush1.msra.mxu0 0.0
    %7695 = vmatprep.subr.mxu0 0.0
    %7696 = vmatpush1.msra.mxu0 0.0
    %7697 = vmatprep.subr.mxu0 0.0
    %7698 = vmatpush1.msra.mxu0 0.0
    %7699 = vmatprep.subr.mxu0 0.0
    %7700 = vmatpush1.msra.mxu0 0.0
    %7701 = vmatprep.subr.mxu0 0.0
    %7702 = vmatpush1.msra.mxu0 0.0
    %7703 = vmatprep.subr.mxu0 0.0
    %7704 = vmatpush1.msra.mxu0 0.0
    %7705 = vmatprep.subr.mxu0 0.0
    %7706 = vmatpush1.msra.mxu0 0.0
    %7707 = vmatprep.subr.mxu0 0.0
    %7708 = vmatpush1.msra.mxu0 0.0
    %7709 = vmatprep.subr.mxu0 0.0
    %7710 = vmatpush1.msra.mxu0 0.0
    %7711 = vmatprep.subr.mxu0 0.0
    %7712 = vmatpush1.msra.mxu0 0.0
    %7713 = vmatprep.subr.mxu0 0.0
    %7714 = vmatpush1.msra.mxu0 0.0
    %7715 = vmatprep.subr.mxu0 0.0
    %7716 = vmatpush1.msra.mxu0 0.0
    %7717 = vmatprep.subr.mxu0 0.0
    %7718 = vmatpush1.msra.mxu0 0.0
    %7719 = vmatprep.subr.mxu0 0.0
    %7720 = vmatpush1.msra.mxu0 0.0
    %7721 = vmatprep.subr.mxu0 0.0
    %7722 = vmatpush1.msra.mxu0 0.0
    %7723 = vmatprep.subr.mxu0 0.0
    %7724 = vmatpush1.msra.mxu0 %v257
    %7725 = vmatprep.subr.mxu0 0.0
    %7726 = vmatpush2.msra.mxu0 0.0
    %7727 = vmatprep.subr.mxu0 0.0
    %7728 = vmatpush2.msra.mxu0 0.0
    %7729 = vmatprep.subr.mxu0 0.0
    %7730 = vmatpush2.msra.mxu0 0.0
    %7731 = vmatprep.subr.mxu0 0.0
    %7732 = vmatpush2.msra.mxu0 0.0
    %7733 = vmatprep.subr.mxu0 0.0
    %7734 = vmatpush2.msra.mxu0 0.0
    %7735 = vmatprep.subr.mxu0 0.0
    %7736 = vmatpush2.msra.mxu0 0.0
    %7737 = vmatprep.subr.mxu0 0.0
    %7738 = vmatpush2.msra.mxu0 0.0
    %7739 = vmatprep.subr.mxu0 0.0
    %7740 = vmatpush2.msra.mxu0 0.0
    %7741 = vmatprep.subr.mxu0 0.0
    %7742 = vmatpush2.msra.mxu0 0.0
    %7743 = vmatprep.subr.mxu0 0.0
    %7744 = vmatpush2.msra.mxu0 0.0
    %7745 = vmatprep.subr.mxu0 0.0
    %7746 = vmatpush2.msra.mxu0 0.0
    %7747 = vmatprep.subr.mxu0 0.0
    %7748 = vmatpush2.msra.mxu0 0.0
    %7749 = vmatprep.subr.mxu0 0.0
    %7750 = vmatpush2.msra.mxu0 0.0
    %7751 = vmatprep.subr.mxu0 0.0
    %7752 = vmatpush2.msra.mxu0 0.0
    %7753 = vmatprep.subr.mxu0 0.0
    %7754 = vmatpush2.msra.mxu0 0.0
    %7755 = vmatprep.subr.mxu0 0.0
    %7756 = vmatpush2.msra.mxu0 0.0
    %7757 = vmatprep.mubr.f32.mxu0 0.0
    %7758 = vmatmul.mubr.f32.gmra.mxu0 %v7691
    %v7759 = vpop.f32.mrf.mxu0
    %v7760 = vadd.f32 0.0, %v7759
    %v7761 = vpop.f32.mrf.mxu0
    %7762 = vdwg.mxu0
    %v7763 = vlaneseq
    %v7764 = vshrl.u32 %v7763, 7
    %v7765 = vsub.s32 0, %v7764
    %v7766 = vrot.slane %v7270, %v7765
    %v7767 = vlaneseq
    %v7768 = vshrl.u32 %v7767, 7
    %v7769 = vsub.s32 0, %v7768
    %v7770 = vrot.slane %v7277, %v7769
    %v7773 = vsel %vm1479, %v7766, %v6931
    %v7774 = vsel %vm1479, %v7770, %v6932
    %vm7775 = vcmp.eq.s32.totalorder %v158, 6
    %v7776 = vsel %vm7775, %v7590, %v6934
    %v7778 = vsel %vm275, %v7569, 0
    %7780 = vmatprep.subr.mxu0 0.0
    %7781 = vmatpush1.msra.mxu0 0.0
    %7782 = vmatprep.subr.mxu0 0.0
    %7783 = vmatpush1.msra.mxu0 0.0
    %7784 = vmatprep.subr.mxu0 0.0
    %7785 = vmatpush1.msra.mxu0 0.0
    %7786 = vmatprep.subr.mxu0 0.0
    %7787 = vmatpush1.msra.mxu0 0.0
    %7788 = vmatprep.subr.mxu0 0.0
    %7789 = vmatpush1.msra.mxu0 0.0
    %7790 = vmatprep.subr.mxu0 0.0
    %7791 = vmatpush1.msra.mxu0 0.0
    %7792 = vmatprep.subr.mxu0 0.0
    %7793 = vmatpush1.msra.mxu0 0.0
    %7794 = vmatprep.subr.mxu0 0.0
    %7795 = vmatpush1.msra.mxu0 0.0
    %7796 = vmatprep.subr.mxu0 0.0
    %7797 = vmatpush1.msra.mxu0 0.0
    %7798 = vmatprep.subr.mxu0 0.0
    %7799 = vmatpush1.msra.mxu0 0.0
    %7800 = vmatprep.subr.mxu0 0.0
    %7801 = vmatpush1.msra.mxu0 0.0
    %7802 = vmatprep.subr.mxu0 0.0
    %7803 = vmatpush1.msra.mxu0 0.0
    %7804 = vmatprep.subr.mxu0 0.0
    %7805 = vmatpush1.msra.mxu0 %v1758
    %7806 = vmatprep.subr.mxu0 0.0
    %7807 = vmatpush1.msra.mxu0 %v1757
    %7808 = vmatprep.subr.mxu0 0.0
    %7809 = vmatpush1.msra.mxu0 %v1756
    %7810 = vmatprep.subr.mxu0 0.0
    %7811 = vmatpush1.msra.mxu0 %v1755
    %7812 = vmatprep.subr.mxu0 0.0
    %7813 = vmatpush2.msra.mxu0 0.0
    %7814 = vmatprep.subr.mxu0 0.0
    %7815 = vmatpush2.msra.mxu0 0.0
    %7816 = vmatprep.subr.mxu0 0.0
    %7817 = vmatpush2.msra.mxu0 0.0
    %7818 = vmatprep.subr.mxu0 0.0
    %7819 = vmatpush2.msra.mxu0 0.0
    %7820 = vmatprep.subr.mxu0 0.0
    %7821 = vmatpush2.msra.mxu0 0.0
    %7822 = vmatprep.subr.mxu0 0.0
    %7823 = vmatpush2.msra.mxu0 0.0
    %7824 = vmatprep.subr.mxu0 0.0
    %7825 = vmatpush2.msra.mxu0 0.0
    %7826 = vmatprep.subr.mxu0 0.0
    %7827 = vmatpush2.msra.mxu0 0.0
    %7828 = vmatprep.subr.mxu0 0.0
    %7829 = vmatpush2.msra.mxu0 0.0
    %7830 = vmatprep.subr.mxu0 0.0
    %7831 = vmatpush2.msra.mxu0 0.0
    %7832 = vmatprep.subr.mxu0 0.0
    %7833 = vmatpush2.msra.mxu0 0.0
    %7834 = vmatprep.subr.mxu0 0.0
    %7835 = vmatpush2.msra.mxu0 0.0
    %7836 = vmatprep.subr.mxu0 0.0
    %7837 = vmatpush2.msra.mxu0 0.0
    %7838 = vmatprep.subr.mxu0 0.0
    %7839 = vmatpush2.msra.mxu0 0.0
    %7840 = vmatprep.subr.mxu0 0.0
    %7841 = vmatpush2.msra.mxu0 0.0
    %7842 = vmatprep.subr.mxu0 0.0
    %7843 = vmatpush2.msra.mxu0 0.0
    %7844 = vmatprep.mubr.f32.mxu0 0.0
    %7845 = vmatmul.mubr.f32.gmra.mxu0 %v7778
    %v7846 = vpop.f32.mrf.mxu0
    %v7847 = vadd.f32 0.0, %v7846
    %v7848 = vpop.f32.mrf.mxu0
    %7849 = vdwg.mxu0
    %v7852 = vrot.slane %v7760, 7
    %v7853 = vsel %vm453, %v7852, %v7688
    %v7854 = vsel %vm275, %v7853, 0
    %7856 = vmatprep.subr.mxu0 0.0
    %7857 = vmatpush1.msra.mxu0 0.0
    %7858 = vmatprep.subr.mxu0 0.0
    %7859 = vmatpush1.msra.mxu0 0.0
    %7860 = vmatprep.subr.mxu0 0.0
    %7861 = vmatpush1.msra.mxu0 0.0
    %7862 = vmatprep.subr.mxu0 0.0
    %7863 = vmatpush1.msra.mxu0 0.0
    %7864 = vmatprep.subr.mxu0 0.0
    %7865 = vmatpush1.msra.mxu0 0.0
    %7866 = vmatprep.subr.mxu0 0.0
    %7867 = vmatpush1.msra.mxu0 0.0
    %7868 = vmatprep.subr.mxu0 0.0
    %7869 = vmatpush1.msra.mxu0 0.0
    %7870 = vmatprep.subr.mxu0 0.0
    %7871 = vmatpush1.msra.mxu0 0.0
    %7872 = vmatprep.subr.mxu0 0.0
    %7873 = vmatpush1.msra.mxu0 0.0
    %7874 = vmatprep.subr.mxu0 0.0
    %7875 = vmatpush1.msra.mxu0 0.0
    %7876 = vmatprep.subr.mxu0 0.0
    %7877 = vmatpush1.msra.mxu0 0.0
    %7878 = vmatprep.subr.mxu0 0.0
    %7879 = vmatpush1.msra.mxu0 0.0
    %7880 = vmatprep.subr.mxu0 0.0
    %7881 = vmatpush1.msra.mxu0 %v1754
    %7882 = vmatprep.subr.mxu0 0.0
    %7883 = vmatpush1.msra.mxu0 %v1753
    %7884 = vmatprep.subr.mxu0 0.0
    %7885 = vmatpush1.msra.mxu0 %v1752
    %7886 = vmatprep.subr.mxu0 0.0
    %7887 = vmatpush1.msra.mxu0 %v1751
    %7888 = vmatprep.subr.mxu0 0.0
    %7889 = vmatpush2.msra.mxu0 0.0
    %7890 = vmatprep.subr.mxu0 0.0
    %7891 = vmatpush2.msra.mxu0 0.0
    %7892 = vmatprep.subr.mxu0 0.0
    %7893 = vmatpush2.msra.mxu0 0.0
    %7894 = vmatprep.subr.mxu0 0.0
    %7895 = vmatpush2.msra.mxu0 0.0
    %7896 = vmatprep.subr.mxu0 0.0
    %7897 = vmatpush2.msra.mxu0 0.0
    %7898 = vmatprep.subr.mxu0 0.0
    %7899 = vmatpush2.msra.mxu0 0.0
    %7900 = vmatprep.subr.mxu0 0.0
    %7901 = vmatpush2.msra.mxu0 0.0
    %7902 = vmatprep.subr.mxu0 0.0
    %7903 = vmatpush2.msra.mxu0 0.0
    %7904 = vmatprep.subr.mxu0 0.0
    %7905 = vmatpush2.msra.mxu0 0.0
    %7906 = vmatprep.subr.mxu0 0.0
    %7907 = vmatpush2.msra.mxu0 0.0
    %7908 = vmatprep.subr.mxu0 0.0
    %7909 = vmatpush2.msra.mxu0 0.0
    %7910 = vmatprep.subr.mxu0 0.0
    %7911 = vmatpush2.msra.mxu0 0.0
    %7912 = vmatprep.subr.mxu0 0.0
    %7913 = vmatpush2.msra.mxu0 0.0
    %7914 = vmatprep.subr.mxu0 0.0
    %7915 = vmatpush2.msra.mxu0 0.0
    %7916 = vmatprep.subr.mxu0 0.0
    %7917 = vmatpush2.msra.mxu0 0.0
    %7918 = vmatprep.subr.mxu0 0.0
    %7919 = vmatpush2.msra.mxu0 0.0
    %7920 = vmatprep.mubr.f32.mxu0 0.0
    %7921 = vmatmul.mubr.f32.gmra.mxu0 %v7854
    %v7922 = vpop.f32.mrf.mxu0
    %v7923 = vadd.f32 %v7847, %v7922
    %v7924 = vpop.f32.mrf.mxu0
    %7925 = vdwg.mxu0
    %v7926 = vadd.f32 %v7923, %v1764
    %v7927 = vtanh.pop %v7926
    %v7928 = vxor.u32 %v7926, 2147483648
    %v7929 = vmul.f32 %v7928, 1.442695
    %v7930 = vpow.pop %v7929
    %v7931 = vadd.f32 %v7930, 1.0
    %v7932 = vrcp.pop %v7931
    %v7933 = vmul.f32 1.0, %v7932
    %v7934 = vsel %vm163, %v7927, %v7933
    %v7935 = vmul.f32 %v7934, %v7103
    %7937 = vrot.lane.b32.xlu0 %v7934, 64
    %v7938 = vpop.permute.xlu0 %7937
    %v7940 = vmul.f32 %v7934, %v7938
    %7942 = vrot.lane.b32.xlu0 %v7940, 32
    %v7943 = vpop.permute.xlu0 %7942
    %v7945 = vadd.f32 %v7935, %v7943
    %v7946 = vtanh.pop %v7945
    %7948 = vrot.lane.b32.xlu0 %v7946, 64
    %v7949 = vpop.permute.xlu0 %7948
    %v7951 = vmul.f32 %v7934, %v7949
    %7953 = vrot.lane.b32.xlu0 %v7951, 32
    %v7954 = vpop.permute.xlu0 %7953
    %v7955 = vsel %vm275, %v7954, 0
    %7957 = vmatprep.subr.mxu0 0.0
    %7958 = vmatpush1.msra.mxu0 0.0
    %7959 = vmatprep.subr.mxu0 0.0
    %7960 = vmatpush1.msra.mxu0 0.0
    %7961 = vmatprep.subr.mxu0 0.0
    %7962 = vmatpush1.msra.mxu0 0.0
    %7963 = vmatprep.subr.mxu0 0.0
    %7964 = vmatpush1.msra.mxu0 0.0
    %7965 = vmatprep.subr.mxu0 0.0
    %7966 = vmatpush1.msra.mxu0 0.0
    %7967 = vmatprep.subr.mxu0 0.0
    %7968 = vmatpush1.msra.mxu0 0.0
    %7969 = vmatprep.subr.mxu0 0.0
    %7970 = vmatpush1.msra.mxu0 0.0
    %7971 = vmatprep.subr.mxu0 0.0
    %7972 = vmatpush1.msra.mxu0 0.0
    %7973 = vmatprep.subr.mxu0 0.0
    %7974 = vmatpush1.msra.mxu0 0.0
    %7975 = vmatprep.subr.mxu0 0.0
    %7976 = vmatpush1.msra.mxu0 0.0
    %7977 = vmatprep.subr.mxu0 0.0
    %7978 = vmatpush1.msra.mxu0 0.0
    %7979 = vmatprep.subr.mxu0 0.0
    %7980 = vmatpush1.msra.mxu0 0.0
    %7981 = vmatprep.subr.mxu0 0.0
    %7982 = vmatpush1.msra.mxu0 %v1769
    %7983 = vmatprep.subr.mxu0 0.0
    %7984 = vmatpush1.msra.mxu0 %v1768
    %7985 = vmatprep.subr.mxu0 0.0
    %7986 = vmatpush1.msra.mxu0 %v1767
    %7987 = vmatprep.subr.mxu0 0.0
    %7988 = vmatpush1.msra.mxu0 %v1766
    %7989 = vmatprep.subr.mxu0 0.0
    %7990 = vmatpush2.msra.mxu0 0.0
    %7991 = vmatprep.subr.mxu0 0.0
    %7992 = vmatpush2.msra.mxu0 0.0
    %7993 = vmatprep.subr.mxu0 0.0
    %7994 = vmatpush2.msra.mxu0 0.0
    %7995 = vmatprep.subr.mxu0 0.0
    %7996 = vmatpush2.msra.mxu0 0.0
    %7997 = vmatprep.subr.mxu0 0.0
    %7998 = vmatpush2.msra.mxu0 0.0
    %7999 = vmatprep.subr.mxu0 0.0
    %8000 = vmatpush2.msra.mxu0 0.0
    %8001 = vmatprep.subr.mxu0 0.0
    %8002 = vmatpush2.msra.mxu0 0.0
    %8003 = vmatprep.subr.mxu0 0.0
    %8004 = vmatpush2.msra.mxu0 0.0
    %8005 = vmatprep.subr.mxu0 0.0
    %8006 = vmatpush2.msra.mxu0 0.0
    %8007 = vmatprep.subr.mxu0 0.0
    %8008 = vmatpush2.msra.mxu0 0.0
    %8009 = vmatprep.subr.mxu0 0.0
    %8010 = vmatpush2.msra.mxu0 0.0
    %8011 = vmatprep.subr.mxu0 0.0
    %8012 = vmatpush2.msra.mxu0 0.0
    %8013 = vmatprep.subr.mxu0 0.0
    %8014 = vmatpush2.msra.mxu0 0.0
    %8015 = vmatprep.subr.mxu0 0.0
    %8016 = vmatpush2.msra.mxu0 0.0
    %8017 = vmatprep.subr.mxu0 0.0
    %8018 = vmatpush2.msra.mxu0 0.0
    %8019 = vmatprep.subr.mxu0 0.0
    %8020 = vmatpush2.msra.mxu0 0.0
    %8021 = vmatprep.mubr.f32.mxu0 0.0
    %8022 = vmatmul.mubr.f32.gmra.mxu0 %v7955
    %v8023 = vpop.f32.mrf.mxu0
    %v8024 = vadd.f32 %v1775, %v8023
    %v8025 = vpop.f32.mrf.mxu0
    %8026 = vdwg.mxu0
    %v8029 = vunpack.c.l.s4 1966171168
    %v8030 = vunpack.c.0.s8 %v8029
    %v8031 = vlaneseq
    %v8032 = vshrl.u32 %v8031, 7
    %v8033 = vsub.s32 %v8030, %v8032
    %v8034 = vrot.slane %v8024, %v8033
    %v8035 = vcombine.high %v8034, %v8034
    %v8037 = vunpack.c.l.s4 1966171168
    %v8038 = vunpack.c.0.s8 %v8037
    %v8039 = vlaneseq
    %v8040 = vshrl.u32 %v8039, 7
    %v8041 = vsub.s32 %v8038, %v8040
    %v8042 = vrot.slane %v8034, %v8041
    %v8044 = vunpack.c.l.s4 1966171168
    %v8045 = vunpack.c.0.s8 %v8044
    %v8046 = vlaneseq
    %v8047 = vshrl.u32 %v8046, 7
    %v8048 = vsub.s32 %v8045, %v8047
    %v8049 = vrot.slane %v8035, %v8048
    %v8050 = vlaneseq
    %v8051 = vshrl.u32 %v8050, 7
    %v8052 = vsub.s32 0, %v8051
    %v8053 = vrot.slane %v8042, %v8052
    %v8054 = vlaneseq
    %v8055 = vshrl.u32 %v8054, 7
    %v8056 = vsub.s32 0, %v8055
    %v8057 = vrot.slane %v8049, %v8056
    %v8060 = vadd.f32 %v8053, %v1743
    %v8061 = vadd.f32 %v8057, %v1748
    %v8062 = vtanh.pop %v8060
    %v8063 = vtanh.pop %v8061
    %v8064 = vmul.f32 %v8062, %v1782
    %v8065 = vmul.f32 %v8063, %v1782
    %v8066 = vsel %vm275, %v8064, 0.0
    %8067 = vadd.xlane.f32.xlu0 %v8066
    %v8068 = vpop.xlane.xlu0 %8067
    %v8069 = vsel %vm275, %v8065, 0.0
    %8070 = vadd.xlane.f32.xlu0 %v8069
    %v8071 = vpop.xlane.xlu0 %8070
    %vm8072 = vcmp.gt.f32.partialorder %v7595, 0.0
    %v8075 = vlaneseq
    %v8076 = vshrl.u32 %v8075, 7
    %v8077 = vsub.s32 %v158, %v8076
    %v8078 = vrot.slane %v8068, %v8077
    %v8079 = vlaneseq
    %v8080 = vshrl.u32 %v8079, 7
    %v8081 = vsub.s32 %v158, %v8080
    %v8082 = vrot.slane %v8071, %v8081
    %v8083 = vsel %vm453, %v8082, %v8078
    %v8085 = vsel %vm8072, %v8083, -1e+30
    %v8086 = vsel %vm2112, %v8085, -inf
    %8087 = vmax.xlane.f32.xlu0 %v8086
    %v8088 = vpop.xlane.xlu0 %8087
    %v8089 = vsub.f32 %v8085, %v8088
    %v8090 = vmul.f32 %v8089, 1.442695
    %v8091 = vpow.pop %v8090
    %v8092 = vsel %vm2112, %v8091, 0.0
    %8093 = vadd.xlane.f32.xlu0 %v8092
    %v8094 = vpop.xlane.xlu0 %8093
    %v8095 = vrcp.pop %v8094
    %v8096 = vmul.f32 %v8091, %v8095
    %v8097 = vmul.f32 %v8096, %v7595
    %v8098 = vsel %vm2112, %v8097, -inf
    %8099 = vmax.xlane.f32.xlu0 %v8098
    %v8100 = vpop.xlane.xlu0 %8099
    %vm8101 = vcmp.eq.f32.partialorder %v8097, %v8100
    %v8102 = vsel %vm8101, %v158, 8
    %v8103 = vsel %vm2112, %v8102, 2147483647
    %v8104 = vand.u32 %v8103, 65535
    %v8105 = vshra.s32 %v8103, 16
    %v8106 = vcvt.s32.f32 %v8104
    %v8107 = vcvt.s32.f32 %v8105
    %8108 = vmin.xlane.f32.xlu0 %v8107
    %v8109 = vpop.xlane.xlu0 %8108
    %vm8110 = vcmp.eq.f32.partialorder %v8107, %v8109
    %v8111 = vsel %vm8110, %v8106, inf
    %8112 = vmin.xlane.f32.xlu0 %v8111
    %v8113 = vpop.xlane.xlu0 %8112
    %v8114 = vcvt.f32.s32 %v8113
    %v8115 = vcvt.f32.s32 %v8109
    %v8116 = vshll.u32 %v8115, 16
    %v8117 = vadd.s32 %v8116, %v8114
    %v8120 = vunpack.c.l.s4 1966171168
    %v8121 = vunpack.c.0.s8 %v8120
    %v8122 = vlaneseq
    %v8123 = vshrl.u32 %v8122, 7
    %v8124 = vsub.s32 %v8121, %v8123
    %v8125 = vrot.slane %v8096, %v8124
    %v8126 = vcombine.high %v8125, %v8125
    %v8128 = vunpack.c.l.s4 1966171168
    %v8129 = vunpack.c.0.s8 %v8128
    %v8130 = vlaneseq
    %v8131 = vshrl.u32 %v8130, 7
    %v8132 = vsub.s32 %v8129, %v8131
    %v8133 = vrot.slane %v8125, %v8132
    %v8135 = vunpack.c.l.s4 1966171168
    %v8136 = vunpack.c.0.s8 %v8135
    %v8137 = vlaneseq
    %v8138 = vshrl.u32 %v8137, 7
    %v8139 = vsub.s32 %v8136, %v8138
    %v8140 = vrot.slane %v8126, %v8139
    %v8141 = vlaneseq
    %v8142 = vshrl.u32 %v8141, 7
    %v8143 = vsub.s32 0, %v8142
    %v8144 = vrot.slane %v8133, %v8143
    %v8145 = vlaneseq
    %v8146 = vshrl.u32 %v8145, 7
    %v8147 = vsub.s32 0, %v8146
    %v8148 = vrot.slane %v8140, %v8147
    %v8151 = vsel %vm1642, %v8144, %v7773
    %v8152 = vsel %vm1642, %v8148, %v7774
    %vm8153 = vcmp.eq.s32.totalorder %v158, 7
    %v8154 = vsel %vm8153, %v8117, %v7776
    %8155 = vst.msk [vmem:[#allocation16] sm:$0xff] %vm2176, %v8151
    %8156 = vst.msk [vmem:[#allocation16 + $0x8] sm:$0xff] %vm2176, %v8152
    %8157 = vst.msk [vmem:[#allocation17] sm:$0x3] %vm2112, %v8154
    // Predicated region
    $region102: #{pointer_net_forward.1} parent=1 // pred_check
      _
    $region103: #{pointer_net_forward.1} parent=1 // pred_check_branch
      %8159 = sbr.rel (0) target = $region105
    $region104: #{pointer_net_forward.1} parent=1 // pred_region
      %s8161 = ssub.s32 256, 256
      %8162 = vsyncadd [#allocation4], %s8161
      %s8163 = sshll.u32 [#allocation16], 4
      %s8164 = int_to_ptr.vmem [resolvable:$true] %s8163
      %8169 = dma.vmem_to_hbm [thread:$0]  %s8164, 256, %s17, [#allocation4], 128, 128, 8
    $region105: #{pointer_net_forward.1} parent=1 // pred_fallthru
      _
    // Predicated region
    $region106: #{pointer_net_forward.1} parent=1 // pred_check
      _
    $region107: #{pointer_net_forward.1} parent=1 // pred_check_branch
      %8171 = sbr.rel (0) target = $region109
    $region108: #{pointer_net_forward.1} parent=1 // pred_region
      %s8173 = ssub.s32 32, 32
      %8174 = vsyncadd [#allocation18], %s8173
      %s8176 = sshll.u32 [#allocation17], 4
      %s8177 = int_to_ptr.vmem [resolvable:$true] %s8176
      %8179 = dma.vmem_to_hbm [thread:$0]  %s8177, 32, %s18, [#allocation18]
    $region109: #{pointer_net_forward.1} parent=1 // pred_fallthru
      _
    // Predicated region
    $region110: #{pointer_net_forward.1} parent=1 // pred_check
      _
    $region111: #{pointer_net_forward.1} parent=1 // pred_check_branch
      %8181 = sbr.rel (0) target = $region113
    $region112: #{pointer_net_forward.1} parent=1 // pred_region
      %8182 = dma.done [#allocation4], 256
    $region113: #{pointer_net_forward.1} parent=1 // pred_fallthru
      _
    // Predicated region
    $region114: #{pointer_net_forward.1} parent=1 // pred_check
      _
    $region115: #{pointer_net_forward.1} parent=1 // pred_check_branch
      %8184 = sbr.rel (0) target = $region117
    $region116: #{pointer_net_forward.1} parent=1 // pred_region
      %8185 = dma.done [#allocation18], 32
    $region117: #{pointer_net_forward.1} parent=1 // pred_fallthru
      _
    %8186 = vsyncpa [#allocation3], 1
    %8187 = vsyncpa [#allocation6], 1
    %8188 = vsyncpa [#allocation9], 1
    %8189 = vsyncpa [#allocation12], 1
    %8190 = vsyncpa [#allocation15], 1
    %8191 = vsyncpa [#allocation4], 1
    %8192 = vsyncpa [#allocation18], 1

</llo_original>
